<compile_context>
chip_gen: v7x
topology: tpu7x:2x2x1
jax: 0.10.0
libtpu: 0.0.40
codegen_flags: <defaults>
</compile_context>

<pallas_src>
import functools

import jax
import jax.numpy as jnp
from jax.experimental import pallas as pl
from jax.experimental.pallas import tpu as pltpu

BN_EPS = 1e-5  # PyTorch BatchNorm1d default eps


# --------------------------- fused forward kernel ---------------------------
def _temperature_kernel(src_ref, tgt_ref,
                        w1_ref, b1_ref,
                        w2_ref, b2_ref,
                        w3_ref, b3_ref,
                        w4_ref, b4_ref,
                        temp_ref, res_ref,
                        *, inv_n, temp_min, temp_max):
    # ---- Stage 1: difference first, then ONE lane reduction ----------------
    # mean(src) - mean(tgt) == mean(src - tgt): one XLU reduce instead of two.
    d = src_ref[...].astype(jnp.float32) - tgt_ref[...].astype(jnp.float32)   # (TB, C, N)
    residual = jnp.abs(jnp.sum(d, axis=-1) * inv_n)                            # (TB, C)
    res_ref[...] = residual.astype(res_ref.dtype)

    # ---- Stage 2: (Linear [BN folded into w/b host-side] -> ReLU) x3 -------
    def lin_relu(h, w_ref, b_ref):
        z = jnp.dot(h, w_ref[...], preferred_element_type=jnp.float32)
        return jnp.maximum(z + b_ref[...], 0.0)

    h = lin_relu(residual, w1_ref, b1_ref)                                     # (TB, H)
    h = lin_relu(h,        w2_ref, b2_ref)                                     # (TB, H)
    h = lin_relu(h,        w3_ref, b3_ref)                                     # (TB, H)

    # ---- Final Linear(H -> 1) as a lane reduction, then clamp --------------
    # The MLP's trailing ReLU is subsumed by the clamp (lower bound > 0).
    out = jnp.sum(h * w4_ref[...], axis=-1, keepdims=True) + b4_ref[0]         # (TB, 1)
    temp_ref[...] = jnp.clip(out, temp_min, temp_max).astype(temp_ref.dtype)


# ------------------------------ host-side helpers ----------------------------
def _fold_bn(w, b, gamma, beta, mean, var):
    """Fold eval-mode BatchNorm1d into the preceding Linear's weight / bias."""
    scale = gamma / jnp.sqrt(var + BN_EPS)
    w_f = w * scale[None, :]
    b_f = (b - mean) * scale + beta
    return w_f, b_f.reshape(1, -1)


def _pick_block_b(B, row_bytes, input_budget_bytes):
    """Largest batch tile such that the double-buffered src+tgt tiles fit the
    VMEM budget, the tile divides B, and it is a multiple of 8 (sublane tiling
    on the 2-D output blocks) or equal to B."""
    cap = max(1, int(input_budget_bytes) // (4 * row_bytes))   # 2 inputs x 2 buffers
    cap = min(cap, 128, B)
    if B <= cap:
        return B                                   # single tile, weights DMA'd once
    start = cap - cap % 8
    for d in range(start, 7, -8):                  # largest multiple-of-8 divisor of B
        if B % d == 0:
            return d
    return B                                       # fallback: one full-batch tile


# --------------------------------- wrapper -----------------------------------
def temperature_net_forward(src, tgt, params, temp_factor, *, block_b=None):
    """src/tgt: (B, C, N). Returns (temperature (B, 1), residual (B, C)).

    Eval-mode forward (BatchNorm1d running stats folded into the Linears).
    TODO(synk): training-mode BatchNorm1d (batch statistics) is not implemented.
    """
    B, C, N = src.shape
    H = params["w1"].shape[1]

    # Fold BN into weights/biases once on the host (zero runtime cost).
    w1, b1 = _fold_bn(params["w1"], params["b1"], params["g1"], params["be1"],
                      params["m1"], params["v1"])
    w2, b2 = _fold_bn(params["w2"], params["b2"], params["g2"], params["be2"],
                      params["m2"], params["v2"])
    w3, b3 = _fold_bn(params["w3"], params["b3"], params["g3"], params["be3"],
                      params["m3"], params["v3"])
    w4 = params["w4"].reshape(1, H)
    b4 = params["b4"].reshape(1)

    itemsize = jnp.dtype(src.dtype).itemsize
    row_bytes = C * N * itemsize

    # Generation-aware VMEM budgeting (v5e/v6e: 128 MiB physical, v7x: 64 MiB/TC).
    try:
        vmem_cap = int(pltpu.get_tpu_info().vmem_capacity_bytes)
    except Exception:
        vmem_cap = 64 * 1024 * 1024          # conservative default (v7x per-TC)
    reserve = 8 * 1024 * 1024                # weights + outputs + compiler scratch
    input_budget = max(4 * 1024 * 1024, vmem_cap - reserve)

    if block_b is None:
        block_b = _pick_block_b(B, row_bytes, input_budget)
    assert B % block_b == 0, "block_b must divide the batch size"
    assert block_b % 8 == 0 or block_b == B, (
        "block_b must be a multiple of 8 (sublane tiling) or equal to B")
    grid = (B // block_b,)

    # Explicit scoped-VMEM limit: 2 inputs x 2 buffers + headroom for params/outputs.
    vmem_limit = int(min(vmem_cap, 4 * block_b * row_bytes + 8 * 1024 * 1024))

    row3 = lambda i: (i, 0, 0)      # batch-tiled 3-D inputs
    row2 = lambda i: (i, 0)         # batch-tiled 2-D outputs
    const2 = lambda i: (0, 0)       # VMEM-resident parameters

    kernel = functools.partial(
        _temperature_kernel,
        inv_n=1.0 / N,
        temp_min=1.0 / temp_factor,
        temp_max=1.0 * temp_factor,
    )

    param_bytes = itemsize * (C * H + 2 * H * H + 4 * H + 1)
    flops = 2 * B * C * N + 2 * B * (C * H + 2 * H * H + H)
    bytes_accessed = itemsize * (int(src.size) + int(tgt.size) + B * (C + 1)) + param_bytes

    temperature, residual = pl.pallas_call(
        kernel,
        out_shape=(
            jax.ShapeDtypeStruct((B, 1), src.dtype),
            jax.ShapeDtypeStruct((B, C), src.dtype),
        ),
        grid=grid,
        in_specs=[
            pl.BlockSpec((block_b, C, N), row3),                     # src
            pl.BlockSpec((block_b, C, N), row3),                     # tgt
            pl.BlockSpec((C, H), const2),                            # w1 (BN folded)
            pl.BlockSpec((1, H), const2),                            # b1 (BN folded)
            pl.BlockSpec((H, H), const2),                            # w2
            pl.BlockSpec((1, H), const2),                            # b2
            pl.BlockSpec((H, H), const2),                            # w3
            pl.BlockSpec((1, H), const2),                            # b3
            pl.BlockSpec((1, H), const2),                            # w4 (row vector)
            pl.BlockSpec(memory_space=pltpu.MemorySpace.SMEM),       # b4 scalar
        ],
        out_specs=(
            pl.BlockSpec((block_b, 1), row2),                        # temperature
            pl.BlockSpec((block_b, C), row2),                        # residual
        ),
        compiler_params=pltpu.CompilerParams(
            dimension_semantics=("parallel",),
            vmem_limit_bytes=vmem_limit),
        cost_estimate=pl.CostEstimate(
            flops=flops, transcendentals=0, bytes_accessed=bytes_accessed),
    )(src, tgt, w1, b1, w2, b2, w3, b3, w4, b4)
    return temperature, residual


# ------------------------------ pure-JAX reference ---------------------------
def _ref_forward(src, tgt, params, temp_factor):
    HIGH = jax.lax.Precision.HIGHEST
    s = src.mean(axis=2)
    t = tgt.mean(axis=2)
    residual = jnp.abs(s - t)

    def lin_bn_relu(h, w, b, g, be, m, v):
        z = jnp.matmul(h, w, precision=HIGH) + b
        z = g * (z - m) / jnp.sqrt(v + BN_EPS) + be
        return jnp.maximum(z, 0.0)

    h = lin_bn_relu(residual, params["w1"], params["b1"], params["g1"],
                    params["be1"], params["m1"], params["v1"])
    h = lin_bn_relu(h, params["w2"], params["b2"], params["g2"],
                    params["be2"], params["m2"], params["v2"])
    h = lin_bn_relu(h, params["w3"], params["b3"], params["g3"],
                    params["be3"], params["m3"], params["v3"])
    out = jnp.maximum(jnp.matmul(h, params["w4"], precision=HIGH) + params["b4"], 0.0)
    temperature = jnp.clip(out, 1.0 / temp_factor, 1.0 * temp_factor)
    return temperature, residual


if __name__ == "__main__":
    B, C, N, H = 16, 256, 128, 128      # batch, embedding dims, points, hidden
    temp_factor = 100.0

    k = jax.random.split(jax.random.PRNGKey(0), 22)

    src = jax.random.normal(k[0], (B, C, N), dtype=jnp.float32)
    tgt = jax.random.normal(k[1], (B, C, N), dtype=jnp.float32)

    def linear_init(kw, kb, fan_in, fan_out):
        lim = 1.0 / (fan_in ** 0.5)
        w = jax.random.uniform(kw, (fan_in, fan_out), jnp.float32, -lim, lim)
        b = jax.random.uniform(kb, (fan_out,), jnp.float32, -lim, lim)
        return w, b

    w1, b1 = linear_init(k[2], k[3], C, H)
    w2, b2 = linear_init(k[4], k[5], H, H)
    w3, b3 = linear_init(k[6], k[7], H, H)
    w4, b4 = linear_init(k[8], k[9], H, 1)

    def bn_init(kg, kb_, km, kv, n):
        g = 1.0 + 0.1 * jax.random.normal(kg, (n,), jnp.float32)
        be = 0.1 * jax.random.normal(kb_, (n,), jnp.float32)
        m = 0.1 * jax.random.normal(km, (n,), jnp.float32)
        v = jax.random.uniform(kv, (n,), jnp.float32, 0.5, 1.5)
        return g, be, m, v

    g1, be1, m1, v1 = bn_init(k[10], k[11], k[12], k[13], H)
    g2, be2, m2, v2 = bn_init(k[14], k[15], k[16], k[17], H)
    g3, be3, m3, v3 = bn_init(k[18], k[19], k[20], k[21], H)

    params = dict(w1=w1, b1=b1, g1=g1, be1=be1, m1=m1, v1=v1,
                  w2=w2, b2=b2, g2=g2, be2=be2, m2=m2, v2=v2,
                  w3=w3, b3=b3, g3=g3, be3=be3, m3=m3, v3=v3,
                  w4=w4, b4=b4)

    # block_b defaults to B here (single full-batch tile, grid=(1,)) since the
    # double-buffered input tiles easily fit the VMEM budget at this size.
    temperature, residual = temperature_net_forward(src, tgt, params, temp_factor)
    temperature = jax.block_until_ready(temperature)
    residual = jax.block_until_ready(residual)

    temp_ref, res_ref = _ref_forward(src, tgt, params, temp_factor)

    assert temperature.shape == (B, 1) and residual.shape == (B, C)
    assert jnp.allclose(residual, res_ref, atol=3e-5, rtol=1e-5), "residual mismatch"
    assert jnp.allclose(temperature, temp_ref, atol=5e-3, rtol=5e-3), "temperature mismatch"

    print("KERNEL_OK")
</pallas_src>

<mosaic_0001>
module attributes {stable_mosaic.version = 11 : i64} {
  func.func @_temperature_kernel(%arg0: i32, %arg1: memref<16x256x128xf32, #tpu.memory_space<vmem>>, %arg2: memref<16x256x128xf32, #tpu.memory_space<vmem>>, %arg3: memref<256x128xf32, #tpu.memory_space<vmem>>, %arg4: memref<1x128xf32, #tpu.memory_space<vmem>>, %arg5: memref<128x128xf32, #tpu.memory_space<vmem>>, %arg6: memref<1x128xf32, #tpu.memory_space<vmem>>, %arg7: memref<128x128xf32, #tpu.memory_space<vmem>>, %arg8: memref<1x128xf32, #tpu.memory_space<vmem>>, %arg9: memref<1x128xf32, #tpu.memory_space<vmem>>, %arg10: memref<1xf32, #tpu.memory_space<smem>>, %arg11: memref<16x1xf32, #tpu.memory_space<vmem>>, %arg12: memref<16x256xf32, #tpu.memory_space<vmem>>) attributes {dimension_semantics = [#tpu.dimension_semantics<parallel>], iteration_bounds = array<i64: 1>, scalar_prefetch = 0 : i64, scratch_operands = 0 : i64, tpu.core_type = #tpu.core_type<tc>, window_params = [{transform_indices = @transform_0, window_bounds = array<i64: 16, 256, 128>}, {transform_indices = @transform_1, window_bounds = array<i64: 16, 256, 128>}, {pipeline_mode = #tpu.pipeline_mode<synchronous>, transform_indices = @transform_2, window_bounds = array<i64: 256, 128>}, {pipeline_mode = #tpu.pipeline_mode<synchronous>, transform_indices = @transform_3, window_bounds = array<i64: 1, 128>}, {pipeline_mode = #tpu.pipeline_mode<synchronous>, transform_indices = @transform_4, window_bounds = array<i64: 128, 128>}, {pipeline_mode = #tpu.pipeline_mode<synchronous>, transform_indices = @transform_5, window_bounds = array<i64: 1, 128>}, {pipeline_mode = #tpu.pipeline_mode<synchronous>, transform_indices = @transform_6, window_bounds = array<i64: 128, 128>}, {pipeline_mode = #tpu.pipeline_mode<synchronous>, transform_indices = @transform_7, window_bounds = array<i64: 1, 128>}, {pipeline_mode = #tpu.pipeline_mode<synchronous>, transform_indices = @transform_8, window_bounds = array<i64: 1, 128>}, {transform_indices = @transform_9, window_bounds = array<i64: 1>}, {transform_indices = @transform_10, window_bounds = array<i64: 16, 1>}, {transform_indices = @transform_11, window_bounds = array<i64: 16, 256>}]} {
    %c0 = arith.constant 0 : index
    %c0_0 = arith.constant 0 : index
    %c0_1 = arith.constant 0 : index
    %0 = vector.load %arg1[%c0, %c0_0, %c0_1] : memref<16x256x128xf32, #tpu.memory_space<vmem>>, vector<16x256x128xf32>
    %c0_2 = arith.constant 0 : index
    %c0_3 = arith.constant 0 : index
    %c0_4 = arith.constant 0 : index
    %1 = vector.load %arg2[%c0_2, %c0_3, %c0_4] : memref<16x256x128xf32, #tpu.memory_space<vmem>>, vector<16x256x128xf32>
    %2 = arith.subf %0, %1 : vector<16x256x128xf32>
    %cst = arith.constant dense<0.000000e+00> : vector<16x256xf32>
    %3 = vector.multi_reduction <add>, %2, %cst [2] : vector<16x256x128xf32> to vector<16x256xf32>
    %cst_5 = arith.constant 7.812500e-03 : f32
    %4 = vector.broadcast %cst_5 : f32 to vector<16x256xf32>
    %5 = arith.mulf %3, %4 : vector<16x256xf32>
    %6 = math.absf %5 : vector<16x256xf32>
    %c0_6 = arith.constant 0 : index
    %c0_7 = arith.constant 0 : index
    %7 = vector.load %arg12[%c0_6, %c0_7] : memref<16x256xf32, #tpu.memory_space<vmem>>, vector<16x256xf32>
    tpu.vector_store %arg12[%c0_6, %c0_7], %6 {strides = array<i32>} : memref<16x256xf32, #tpu.memory_space<vmem>>, vector<16x256xf32>,
    %c0_8 = arith.constant 0 : index
    %c0_9 = arith.constant 0 : index
    %8 = vector.load %arg3[%c0_8, %c0_9] : memref<256x128xf32, #tpu.memory_space<vmem>>, vector<256x128xf32>
    %cst_10 = arith.constant dense<0.000000e+00> : vector<16x128xf32>
    %9 = tpu.matmul %6, %8, %cst_10 {dimension_numbers = #tpu.dot_dimension_numbers<[1], [0], [0], [1], [0, 0, 1, 1], [], []>} : vector<16x256xf32>, vector<256x128xf32>, vector<16x128xf32> -> vector<16x128xf32>
    %c0_11 = arith.constant 0 : index
    %c0_12 = arith.constant 0 : index
    %10 = vector.load %arg4[%c0_11, %c0_12] : memref<1x128xf32, #tpu.memory_space<vmem>>, vector<1x128xf32>
    %11 = vector.broadcast %10 : vector<1x128xf32> to vector<16x128xf32>
    %12 = arith.addf %9, %11 : vector<16x128xf32>
    %cst_13 = arith.constant 0.000000e+00 : f32
    %13 = vector.broadcast %cst_13 : f32 to vector<16x128xf32>
    %14 = arith.maximumf %12, %13 : vector<16x128xf32>
    %c0_14 = arith.constant 0 : index
    %c0_15 = arith.constant 0 : index
    %15 = vector.load %arg5[%c0_14, %c0_15] : memref<128x128xf32, #tpu.memory_space<vmem>>, vector<128x128xf32>
    %cst_16 = arith.constant dense<0.000000e+00> : vector<16x128xf32>
    %16 = tpu.matmul %14, %15, %cst_16 {dimension_numbers = #tpu.dot_dimension_numbers<[1], [0], [0], [1], [0, 0, 1, 1], [], []>} : vector<16x128xf32>, vector<128x128xf32>, vector<16x128xf32> -> vector<16x128xf32>
    %c0_17 = arith.constant 0 : index
    %c0_18 = arith.constant 0 : index
    %17 = vector.load %arg6[%c0_17, %c0_18] : memref<1x128xf32, #tpu.memory_space<vmem>>, vector<1x128xf32>
    %18 = vector.broadcast %17 : vector<1x128xf32> to vector<16x128xf32>
    %19 = arith.addf %16, %18 : vector<16x128xf32>
    %cst_19 = arith.constant 0.000000e+00 : f32
    %20 = vector.broadcast %cst_19 : f32 to vector<16x128xf32>
    %21 = arith.maximumf %19, %20 : vector<16x128xf32>
    %c0_20 = arith.constant 0 : index
    %c0_21 = arith.constant 0 : index
    %22 = vector.load %arg7[%c0_20, %c0_21] : memref<128x128xf32, #tpu.memory_space<vmem>>, vector<128x128xf32>
    %cst_22 = arith.constant dense<0.000000e+00> : vector<16x128xf32>
    %23 = tpu.matmul %21, %22, %cst_22 {dimension_numbers = #tpu.dot_dimension_numbers<[1], [0], [0], [1], [0, 0, 1, 1], [], []>} : vector<16x128xf32>, vector<128x128xf32>, vector<16x128xf32> -> vector<16x128xf32>
    %c0_23 = arith.constant 0 : index
    %c0_24 = arith.constant 0 : index
    %24 = vector.load %arg8[%c0_23, %c0_24] : memref<1x128xf32, #tpu.memory_space<vmem>>, vector<1x128xf32>
    %25 = vector.broadcast %24 : vector<1x128xf32> to vector<16x128xf32>
    %26 = arith.addf %23, %25 : vector<16x128xf32>
    %cst_25 = arith.constant 0.000000e+00 : f32
    %27 = vector.broadcast %cst_25 : f32 to vector<16x128xf32>
    %28 = arith.maximumf %26, %27 : vector<16x128xf32>
    %c0_26 = arith.constant 0 : index
    %c0_27 = arith.constant 0 : index
    %29 = vector.load %arg9[%c0_26, %c0_27] : memref<1x128xf32, #tpu.memory_space<vmem>>, vector<1x128xf32>
    %30 = vector.broadcast %29 : vector<1x128xf32> to vector<16x128xf32>
    %31 = arith.mulf %28, %30 : vector<16x128xf32>
    %cst_28 = arith.constant dense<0.000000e+00> : vector<16xf32>
    %32 = vector.multi_reduction <add>, %31, %cst_28 [1] : vector<16x128xf32> to vector<16xf32>
    %33 = vector.shape_cast %32 : vector<16xf32> to vector<16x1xf32>
    %c0_29 = arith.constant 0 : index
    %34 = memref.load %arg10[%c0_29] : memref<1xf32, #tpu.memory_space<smem>>
    %35 = vector.broadcast %34 : f32 to vector<16x1xf32>
    %36 = arith.addf %33, %35 : vector<16x1xf32>
    %cst_30 = arith.constant 0.00999999977 : f32
    %cst_31 = arith.constant 1.000000e+02 : f32
    %37 = vector.broadcast %cst_30 : f32 to vector<16x1xf32>
    %38 = arith.maximumf %37, %36 : vector<16x1xf32>
    %39 = vector.broadcast %cst_31 : f32 to vector<16x1xf32>
    %40 = arith.minimumf %39, %38 : vector<16x1xf32>
    %c0_32 = arith.constant 0 : index
    %c0_33 = arith.constant 0 : index
    %41 = vector.load %arg11[%c0_32, %c0_33] : memref<16x1xf32, #tpu.memory_space<vmem>>, vector<16x1xf32>
    tpu.vector_store %arg11[%c0_32, %c0_33], %40 {strides = array<i32>} : memref<16x1xf32, #tpu.memory_space<vmem>>, vector<16x1xf32>,
    return
  }
  func.func @transform_0(%arg0: i32) -> (i32, i32, i32) {
    %c0_i32 = arith.constant 0 : i32
    %c0_i32_0 = arith.constant 0 : i32
    %c0_i32_1 = arith.constant 0 : i32
    return %arg0, %c0_i32, %c0_i32_0 : i32, i32, i32
  }
  func.func @transform_1(%arg0: i32) -> (i32, i32, i32) {
    %c0_i32 = arith.constant 0 : i32
    %c0_i32_0 = arith.constant 0 : i32
    %c0_i32_1 = arith.constant 0 : i32
    return %arg0, %c0_i32, %c0_i32_0 : i32, i32, i32
  }
  func.func @transform_2(%arg0: i32) -> (i32, i32) {
    %c0_i32 = arith.constant 0 : i32
    %c0_i32_0 = arith.constant 0 : i32
    %c0_i32_1 = arith.constant 0 : i32
    return %c0_i32, %c0_i32_0 : i32, i32
  }
  func.func @transform_3(%arg0: i32) -> (i32, i32) {
    %c0_i32 = arith.constant 0 : i32
    %c0_i32_0 = arith.constant 0 : i32
    %c0_i32_1 = arith.constant 0 : i32
    return %c0_i32, %c0_i32_0 : i32, i32
  }
  func.func @transform_4(%arg0: i32) -> (i32, i32) {
    %c0_i32 = arith.constant 0 : i32
    %c0_i32_0 = arith.constant 0 : i32
    %c0_i32_1 = arith.constant 0 : i32
    return %c0_i32, %c0_i32_0 : i32, i32
  }
  func.func @transform_5(%arg0: i32) -> (i32, i32) {
    %c0_i32 = arith.constant 0 : i32
    %c0_i32_0 = arith.constant 0 : i32
    %c0_i32_1 = arith.constant 0 : i32
    return %c0_i32, %c0_i32_0 : i32, i32
  }
  func.func @transform_6(%arg0: i32) -> (i32, i32) {
    %c0_i32 = arith.constant 0 : i32
    %c0_i32_0 = arith.constant 0 : i32
    %c0_i32_1 = arith.constant 0 : i32
    return %c0_i32, %c0_i32_0 : i32, i32
  }
  func.func @transform_7(%arg0: i32) -> (i32, i32) {
    %c0_i32 = arith.constant 0 : i32
    %c0_i32_0 = arith.constant 0 : i32
    %c0_i32_1 = arith.constant 0 : i32
    return %c0_i32, %c0_i32_0 : i32, i32
  }
  func.func @transform_8(%arg0: i32) -> (i32, i32) {
    %c0_i32 = arith.constant 0 : i32
    %c0_i32_0 = arith.constant 0 : i32
    %c0_i32_1 = arith.constant 0 : i32
    return %c0_i32, %c0_i32_0 : i32, i32
  }
  func.func @transform_9(%arg0: i32) -> i32 {
    %c0_i32 = arith.constant 0 : i32
    %c0_i32_0 = arith.constant 0 : i32
    return %c0_i32 : i32
  }
  func.func @transform_10(%arg0: i32) -> (i32, i32) {
    %c0_i32 = arith.constant 0 : i32
    %c0_i32_0 = arith.constant 0 : i32
    return %arg0, %c0_i32 : i32, i32
  }
  func.func @transform_11(%arg0: i32) -> (i32, i32) {
    %c0_i32 = arith.constant 0 : i32
    %c0_i32_0 = arith.constant 0 : i32
    return %arg0, %c0_i32 : i32, i32
  }
}

</mosaic_0001>

<llo_original>
// kernel: tpu_custom_call.1
$region0: #{tpu_custom_call.1}
  #allocation0 [shape = 'u32[]', space=smem, size = 0x4, offset = 0x4, fixed_abs, tag = 'smem constant byte address 0x4 - core index']
  #allocation1 [shape = 'u32[144,128]{1,0:T(1,128)}', space=vmem, size = 0x12000, scoped, tag = 'internal scratch']
  #allocation2 [shape = 'f32[1]{0:T(128)S(6)}', space=smem, size = 0x200, scoped, tag = 'scoped memory for tpu_custom_call.1']
  %s0 = inlined_call_operand.hbm [shape: f32[16,256,128], index: 0, kind: input, shape index: {}]
  %s1 = inlined_call_operand.hbm [shape: f32[16,256,128], index: 1, kind: input, shape index: {}]
  %s2 = inlined_call_operand.hbm [shape: f32[256,128], index: 2, kind: input, shape index: {}]
  %s3 = inlined_call_operand.hbm [shape: f32[1,128], index: 3, kind: input, shape index: {}]
  %s4 = inlined_call_operand.hbm [shape: f32[128,128], index: 4, kind: input, shape index: {}]
  %s5 = inlined_call_operand.hbm [shape: f32[1,128], index: 5, kind: input, shape index: {}]
  %s6 = inlined_call_operand.hbm [shape: f32[128,128], index: 6, kind: input, shape index: {}]
  %s7 = inlined_call_operand.hbm [shape: f32[1,128], index: 7, kind: input, shape index: {}]
  %s8 = inlined_call_operand.hbm [shape: f32[1,128], index: 8, kind: input, shape index: {}]
  %s9 = inlined_call_operand.<no memory space> [shape: f32[1], index: 9, kind: input, shape index: {}]
  %s10 = inlined_call_operand.vmem [shape: f32[16,1], index: 10, kind: output, shape index: {0}]
  %s11 = inlined_call_operand.hbm [shape: f32[16,256], index: 11, kind: output, shape index: {1}]
  %12 = xla_tuple %s10, %s11
  %s13 = sld [smem:[#allocation0]]
  $region94: #{tpu_custom_call.1} parent=0
    _
  %s15 = ssub.s32 1, %s13
  %s16 = scalar_select 0, %s15, %s13
  %17 = sst [smem:[#allocation2]] %s9
  $region1: #{tpu_custom_call.1} parent=0
    #allocation3 [shape = 'u8[2097152]{0}', space=vmem, size = 0x200000, scoped, tag = 'input window, operand 0, single buffered']
    #allocation4 [shape = 's32[1]{0}', space=sflag, size = 0x4, scoped, tag = 'scoped memory for tpu_custom_call.1']
    #allocation5 [shape = 's32[1]{0}', space=sflag, size = 0x4, scoped, tag = 'scoped memory for tpu_custom_call.1']
    #allocation6 [shape = 'u8[2097152]{0}', space=vmem, size = 0x200000, scoped, tag = 'input window, operand 1, single buffered']
    #allocation7 [shape = 's32[1]{0}', space=sflag, size = 0x4, scoped, tag = 'scoped memory for tpu_custom_call.1']
    #allocation8 [shape = 'u8[131072]{0}', space=vmem, size = 0x20000, scoped, tag = 'input window, operand 2, single buffered']
    #allocation9 [shape = 'u8[512]{0}', space=vmem, size = 0x400, scoped, tag = 'input window, operand 3, single buffered']
    #allocation10 [shape = 's32[1]{0}', space=sflag, size = 0x4, scoped, tag = 'scoped memory for tpu_custom_call.1']
    #allocation11 [shape = 'u8[65536]{0}', space=vmem, size = 0x10000, scoped, tag = 'input window, operand 4, single buffered']
    #allocation12 [shape = 'u8[512]{0}', space=vmem, size = 0x400, scoped, tag = 'input window, operand 5, single buffered']
    #allocation13 [shape = 's32[1]{0}', space=sflag, size = 0x4, scoped, tag = 'scoped memory for tpu_custom_call.1']
    #allocation14 [shape = 'u8[65536]{0}', space=vmem, size = 0x10000, scoped, tag = 'input window, operand 6, single buffered']
    #allocation15 [shape = 'u8[512]{0}', space=vmem, size = 0x400, scoped, tag = 'input window, operand 7, single buffered']
    #allocation16 [shape = 's32[1]{0}', space=sflag, size = 0x4, scoped, tag = 'scoped memory for tpu_custom_call.1']
    #allocation17 [shape = 'u8[512]{0}', space=vmem, size = 0x400, scoped, tag = 'input window, operand 8, single buffered']
    #allocation18 [shape = 'u8[16384]{0}', space=vmem, size = 0x4000, scoped, tag = 'output window, operand 1, single buffered']
    %18 = vsyncpa [#allocation4], 0
    %19 = vsyncpa [#allocation7], 0
    %20 = vsyncpa [#allocation10], 0
    %21 = vsyncpa [#allocation13], 0
    %22 = vsyncpa [#allocation16], 0
    %23 = vsyncpa [#allocation5], 0
    // Predicated region
    $region2: #{tpu_custom_call.1} parent=1 // pred_check
      _
    $region3: #{tpu_custom_call.1} parent=1 // pred_check_branch
      %25 = sbr.rel (0) target = $region5
    $region4: #{tpu_custom_call.1} parent=1 // pred_region
      %s27 = ssub.s32 65536, 65536
      %28 = vsyncadd [#allocation4], %s27
      %s29 = sshll.u32 [#allocation3], 4
      %s30 = int_to_ptr.vmem [resolvable:$true] %s29
      %35 = dma.hbm_to_vmem [thread:$0]  %s0, 65536, %s30, [#allocation4], 128, 128, 8
    $region5: #{tpu_custom_call.1} parent=1 // pred_fallthru
      _
    // Predicated region
    $region6: #{tpu_custom_call.1} parent=1 // pred_check
      _
    $region7: #{tpu_custom_call.1} parent=1 // pred_check_branch
      %37 = sbr.rel (0) target = $region9
    $region8: #{tpu_custom_call.1} parent=1 // pred_region
      %s39 = ssub.s32 65536, 65536
      %40 = vsyncadd [#allocation7], %s39
      %s41 = sshll.u32 [#allocation6], 4
      %s42 = int_to_ptr.vmem [resolvable:$true] %s41
      %47 = dma.hbm_to_vmem [thread:$0]  %s1, 65536, %s42, [#allocation7], 128, 128, 8
    $region9: #{tpu_custom_call.1} parent=1 // pred_fallthru
      _
    // Predicated region
    $region10: #{tpu_custom_call.1} parent=1 // pred_check
      _
    $region11: #{tpu_custom_call.1} parent=1 // pred_check_branch
      %49 = sbr.rel (0) target = $region13
    $region12: #{tpu_custom_call.1} parent=1 // pred_region
      %s51 = ssub.s32 4096, 4096
      %52 = vsyncadd [#allocation7], %s51
      %s53 = sshll.u32 [#allocation8], 4
      %s54 = int_to_ptr.vmem [resolvable:$true] %s53
      %59 = dma.hbm_to_vmem [thread:$0]  %s2, 4096, %s54, [#allocation7], 128, 128, 8
    $region13: #{tpu_custom_call.1} parent=1 // pred_fallthru
      _
    // Predicated region
    $region14: #{tpu_custom_call.1} parent=1 // pred_check
      _
    $region15: #{tpu_custom_call.1} parent=1 // pred_check_branch
      %61 = sbr.rel (0) target = $region17
    $region16: #{tpu_custom_call.1} parent=1 // pred_region
      %s63 = ssub.s32 16, 16
      %64 = vsyncadd [#allocation10], %s63
      %s66 = sshll.u32 [#allocation9], 4
      %s67 = int_to_ptr.vmem [resolvable:$true] %s66
      %69 = dma.hbm_to_vmem [thread:$0]  %s3, 16, %s67, [#allocation10]
    $region17: #{tpu_custom_call.1} parent=1 // pred_fallthru
      _
    // Predicated region
    $region18: #{tpu_custom_call.1} parent=1 // pred_check
      _
    $region19: #{tpu_custom_call.1} parent=1 // pred_check_branch
      %71 = sbr.rel (0) target = $region21
    $region20: #{tpu_custom_call.1} parent=1 // pred_region
      %s73 = ssub.s32 2048, 2048
      %74 = vsyncadd [#allocation10], %s73
      %s75 = sshll.u32 [#allocation11], 4
      %s76 = int_to_ptr.vmem [resolvable:$true] %s75
      %81 = dma.hbm_to_vmem [thread:$0]  %s4, 2048, %s76, [#allocation10], 128, 128, 8
    $region21: #{tpu_custom_call.1} parent=1 // pred_fallthru
      _
    // Predicated region
    $region22: #{tpu_custom_call.1} parent=1 // pred_check
      _
    $region23: #{tpu_custom_call.1} parent=1 // pred_check_branch
      %83 = sbr.rel (0) target = $region25
    $region24: #{tpu_custom_call.1} parent=1 // pred_region
      %s85 = ssub.s32 16, 16
      %86 = vsyncadd [#allocation13], %s85
      %s88 = sshll.u32 [#allocation12], 4
      %s89 = int_to_ptr.vmem [resolvable:$true] %s88
      %91 = dma.hbm_to_vmem [thread:$0]  %s5, 16, %s89, [#allocation13]
    $region25: #{tpu_custom_call.1} parent=1 // pred_fallthru
      _
    // Predicated region
    $region26: #{tpu_custom_call.1} parent=1 // pred_check
      _
    $region27: #{tpu_custom_call.1} parent=1 // pred_check_branch
      %93 = sbr.rel (0) target = $region29
    $region28: #{tpu_custom_call.1} parent=1 // pred_region
      %s95 = ssub.s32 2048, 2048
      %96 = vsyncadd [#allocation13], %s95
      %s97 = sshll.u32 [#allocation14], 4
      %s98 = int_to_ptr.vmem [resolvable:$true] %s97
      %103 = dma.hbm_to_vmem [thread:$0]  %s6, 2048, %s98, [#allocation13], 128, 128, 8
    $region29: #{tpu_custom_call.1} parent=1 // pred_fallthru
      _
    // Predicated region
    $region30: #{tpu_custom_call.1} parent=1 // pred_check
      _
    $region31: #{tpu_custom_call.1} parent=1 // pred_check_branch
      %105 = sbr.rel (0) target = $region33
    $region32: #{tpu_custom_call.1} parent=1 // pred_region
      %s107 = ssub.s32 16, 16
      %108 = vsyncadd [#allocation16], %s107
      %s110 = sshll.u32 [#allocation15], 4
      %s111 = int_to_ptr.vmem [resolvable:$true] %s110
      %113 = dma.hbm_to_vmem [thread:$0]  %s7, 16, %s111, [#allocation16]
    $region33: #{tpu_custom_call.1} parent=1 // pred_fallthru
      _
    // Predicated region
    $region34: #{tpu_custom_call.1} parent=1 // pred_check
      _
    $region35: #{tpu_custom_call.1} parent=1 // pred_check_branch
      %115 = sbr.rel (0) target = $region37
    $region36: #{tpu_custom_call.1} parent=1 // pred_region
      %s117 = ssub.s32 16, 16
      %118 = vsyncadd [#allocation16], %s117
      %s120 = sshll.u32 [#allocation17], 4
      %s121 = int_to_ptr.vmem [resolvable:$true] %s120
      %123 = dma.hbm_to_vmem [thread:$0]  %s8, 16, %s121, [#allocation16]
    $region37: #{tpu_custom_call.1} parent=1 // pred_fallthru
      _
    // Predicated region
    $region38: #{tpu_custom_call.1} parent=1 // pred_check
      _
    $region39: #{tpu_custom_call.1} parent=1 // pred_check_branch
      %125 = sbr.rel (0) target = $region41
    $region40: #{tpu_custom_call.1} parent=1 // pred_region
      _
    $region41: #{tpu_custom_call.1} parent=1 // pred_fallthru
      _
    // Predicated region
    $region42: #{tpu_custom_call.1} parent=1 // pred_check
      _
    $region43: #{tpu_custom_call.1} parent=1 // pred_check_branch
      %127 = sbr.rel (0) target = $region45
    $region44: #{tpu_custom_call.1} parent=1 // pred_region
      %128 = dma.done [#allocation4], 65536
    $region45: #{tpu_custom_call.1} parent=1 // pred_fallthru
      _
    // Predicated region
    $region46: #{tpu_custom_call.1} parent=1 // pred_check
      _
    $region47: #{tpu_custom_call.1} parent=1 // pred_check_branch
      %130 = sbr.rel (0) target = $region49
    $region48: #{tpu_custom_call.1} parent=1 // pred_region
      %131 = dma.done [#allocation7], 65536
    $region49: #{tpu_custom_call.1} parent=1 // pred_fallthru
      _
    // Predicated region
    $region50: #{tpu_custom_call.1} parent=1 // pred_check
      _
    $region51: #{tpu_custom_call.1} parent=1 // pred_check_branch
      %133 = sbr.rel (0) target = $region53
    $region52: #{tpu_custom_call.1} parent=1 // pred_region
      %134 = dma.done [#allocation7], 4096
    $region53: #{tpu_custom_call.1} parent=1 // pred_fallthru
      _
    // Predicated region
    $region54: #{tpu_custom_call.1} parent=1 // pred_check
      _
    $region55: #{tpu_custom_call.1} parent=1 // pred_check_branch
      %136 = sbr.rel (0) target = $region57
    $region56: #{tpu_custom_call.1} parent=1 // pred_region
      %137 = dma.done [#allocation10], 16
    $region57: #{tpu_custom_call.1} parent=1 // pred_fallthru
      _
    // Predicated region
    $region58: #{tpu_custom_call.1} parent=1 // pred_check
      _
    $region59: #{tpu_custom_call.1} parent=1 // pred_check_branch
      %139 = sbr.rel (0) target = $region61
    $region60: #{tpu_custom_call.1} parent=1 // pred_region
      %140 = dma.done [#allocation10], 2048
    $region61: #{tpu_custom_call.1} parent=1 // pred_fallthru
      _
    // Predicated region
    $region62: #{tpu_custom_call.1} parent=1 // pred_check
      _
    $region63: #{tpu_custom_call.1} parent=1 // pred_check_branch
      %142 = sbr.rel (0) target = $region65
    $region64: #{tpu_custom_call.1} parent=1 // pred_region
      %143 = dma.done [#allocation13], 16
    $region65: #{tpu_custom_call.1} parent=1 // pred_fallthru
      _
    // Predicated region
    $region66: #{tpu_custom_call.1} parent=1 // pred_check
      _
    $region67: #{tpu_custom_call.1} parent=1 // pred_check_branch
      %145 = sbr.rel (0) target = $region69
    $region68: #{tpu_custom_call.1} parent=1 // pred_region
      %146 = dma.done [#allocation13], 2048
    $region69: #{tpu_custom_call.1} parent=1 // pred_fallthru
      _
    // Predicated region
    $region70: #{tpu_custom_call.1} parent=1 // pred_check
      _
    $region71: #{tpu_custom_call.1} parent=1 // pred_check_branch
      %148 = sbr.rel (0) target = $region73
    $region72: #{tpu_custom_call.1} parent=1 // pred_region
      %149 = dma.done [#allocation16], 16
    $region73: #{tpu_custom_call.1} parent=1 // pred_fallthru
      _
    // Predicated region
    $region74: #{tpu_custom_call.1} parent=1 // pred_check
      _
    $region75: #{tpu_custom_call.1} parent=1 // pred_check_branch
      %151 = sbr.rel (0) target = $region77
    $region76: #{tpu_custom_call.1} parent=1 // pred_region
      %152 = dma.done [#allocation16], 16
    $region77: #{tpu_custom_call.1} parent=1 // pred_fallthru
      _
    %v153 = vld [vmem:[#allocation3] sm:$0xff]
    %v154 = vld [vmem:[#allocation3 + $0x8] sm:$0xff]
    %v155 = vld [vmem:[#allocation3 + $0x10] sm:$0xff]
    %v156 = vld [vmem:[#allocation3 + $0x18] sm:$0xff]
    %v157 = vld [vmem:[#allocation3 + $0x20] sm:$0xff]
    %v158 = vld [vmem:[#allocation3 + $0x28] sm:$0xff]
    %v159 = vld [vmem:[#allocation3 + $0x30] sm:$0xff]
    %v160 = vld [vmem:[#allocation3 + $0x38] sm:$0xff]
    %v161 = vld [vmem:[#allocation3 + $0x40] sm:$0xff]
    %v162 = vld [vmem:[#allocation3 + $0x48] sm:$0xff]
    %v163 = vld [vmem:[#allocation3 + $0x50] sm:$0xff]
    %v164 = vld [vmem:[#allocation3 + $0x58] sm:$0xff]
    %v165 = vld [vmem:[#allocation3 + $0x60] sm:$0xff]
    %v166 = vld [vmem:[#allocation3 + $0x68] sm:$0xff]
    %v167 = vld [vmem:[#allocation3 + $0x70] sm:$0xff]
    %v168 = vld [vmem:[#allocation3 + $0x78] sm:$0xff]
    %v169 = vld [vmem:[#allocation3 + $0x80] sm:$0xff]
    %v170 = vld [vmem:[#allocation3 + $0x88] sm:$0xff]
    %v171 = vld [vmem:[#allocation3 + $0x90] sm:$0xff]
    %v172 = vld [vmem:[#allocation3 + $0x98] sm:$0xff]
    %v173 = vld [vmem:[#allocation3 + $0xa0] sm:$0xff]
    %v174 = vld [vmem:[#allocation3 + $0xa8] sm:$0xff]
    %v175 = vld [vmem:[#allocation3 + $0xb0] sm:$0xff]
    %v176 = vld [vmem:[#allocation3 + $0xb8] sm:$0xff]
    %v177 = vld [vmem:[#allocation3 + $0xc0] sm:$0xff]
    %v178 = vld [vmem:[#allocation3 + $0xc8] sm:$0xff]
    %v179 = vld [vmem:[#allocation3 + $0xd0] sm:$0xff]
    %v180 = vld [vmem:[#allocation3 + $0xd8] sm:$0xff]
    %v181 = vld [vmem:[#allocation3 + $0xe0] sm:$0xff]
    %v182 = vld [vmem:[#allocation3 + $0xe8] sm:$0xff]
    %v183 = vld [vmem:[#allocation3 + $0xf0] sm:$0xff]
    %v184 = vld [vmem:[#allocation3 + $0xf8] sm:$0xff]
    %v185 = vld [vmem:[#allocation3 + $0x100] sm:$0xff]
    %v186 = vld [vmem:[#allocation3 + $0x108] sm:$0xff]
    %v187 = vld [vmem:[#allocation3 + $0x110] sm:$0xff]
    %v188 = vld [vmem:[#allocation3 + $0x118] sm:$0xff]
    %v189 = vld [vmem:[#allocation3 + $0x120] sm:$0xff]
    %v190 = vld [vmem:[#allocation3 + $0x128] sm:$0xff]
    %v191 = vld [vmem:[#allocation3 + $0x130] sm:$0xff]
    %v192 = vld [vmem:[#allocation3 + $0x138] sm:$0xff]
    %v193 = vld [vmem:[#allocation3 + $0x140] sm:$0xff]
    %v194 = vld [vmem:[#allocation3 + $0x148] sm:$0xff]
    %v195 = vld [vmem:[#allocation3 + $0x150] sm:$0xff]
    %v196 = vld [vmem:[#allocation3 + $0x158] sm:$0xff]
    %v197 = vld [vmem:[#allocation3 + $0x160] sm:$0xff]
    %v198 = vld [vmem:[#allocation3 + $0x168] sm:$0xff]
    %v199 = vld [vmem:[#allocation3 + $0x170] sm:$0xff]
    %v200 = vld [vmem:[#allocation3 + $0x178] sm:$0xff]
    %v201 = vld [vmem:[#allocation3 + $0x180] sm:$0xff]
    %v202 = vld [vmem:[#allocation3 + $0x188] sm:$0xff]
    %v203 = vld [vmem:[#allocation3 + $0x190] sm:$0xff]
    %v204 = vld [vmem:[#allocation3 + $0x198] sm:$0xff]
    %v205 = vld [vmem:[#allocation3 + $0x1a0] sm:$0xff]
    %v206 = vld [vmem:[#allocation3 + $0x1a8] sm:$0xff]
    %v207 = vld [vmem:[#allocation3 + $0x1b0] sm:$0xff]
    %v208 = vld [vmem:[#allocation3 + $0x1b8] sm:$0xff]
    %v209 = vld [vmem:[#allocation3 + $0x1c0] sm:$0xff]
    %v210 = vld [vmem:[#allocation3 + $0x1c8] sm:$0xff]
    %v211 = vld [vmem:[#allocation3 + $0x1d0] sm:$0xff]
    %v212 = vld [vmem:[#allocation3 + $0x1d8] sm:$0xff]
    %v213 = vld [vmem:[#allocation3 + $0x1e0] sm:$0xff]
    %v214 = vld [vmem:[#allocation3 + $0x1e8] sm:$0xff]
    %v215 = vld [vmem:[#allocation3 + $0x1f0] sm:$0xff]
    %v216 = vld [vmem:[#allocation3 + $0x1f8] sm:$0xff]
    %v217 = vld [vmem:[#allocation3 + $0x200] sm:$0xff]
    %v218 = vld [vmem:[#allocation3 + $0x208] sm:$0xff]
    %v219 = vld [vmem:[#allocation3 + $0x210] sm:$0xff]
    %v220 = vld [vmem:[#allocation3 + $0x218] sm:$0xff]
    %v221 = vld [vmem:[#allocation3 + $0x220] sm:$0xff]
    %v222 = vld [vmem:[#allocation3 + $0x228] sm:$0xff]
    %v223 = vld [vmem:[#allocation3 + $0x230] sm:$0xff]
    %v224 = vld [vmem:[#allocation3 + $0x238] sm:$0xff]
    %v225 = vld [vmem:[#allocation3 + $0x240] sm:$0xff]
    %v226 = vld [vmem:[#allocation3 + $0x248] sm:$0xff]
    %v227 = vld [vmem:[#allocation3 + $0x250] sm:$0xff]
    %v228 = vld [vmem:[#allocation3 + $0x258] sm:$0xff]
    %v229 = vld [vmem:[#allocation3 + $0x260] sm:$0xff]
    %v230 = vld [vmem:[#allocation3 + $0x268] sm:$0xff]
    %v231 = vld [vmem:[#allocation3 + $0x270] sm:$0xff]
    %v232 = vld [vmem:[#allocation3 + $0x278] sm:$0xff]
    %v233 = vld [vmem:[#allocation3 + $0x280] sm:$0xff]
    %v234 = vld [vmem:[#allocation3 + $0x288] sm:$0xff]
    %v235 = vld [vmem:[#allocation3 + $0x290] sm:$0xff]
    %v236 = vld [vmem:[#allocation3 + $0x298] sm:$0xff]
    %v237 = vld [vmem:[#allocation3 + $0x2a0] sm:$0xff]
    %v238 = vld [vmem:[#allocation3 + $0x2a8] sm:$0xff]
    %v239 = vld [vmem:[#allocation3 + $0x2b0] sm:$0xff]
    %v240 = vld [vmem:[#allocation3 + $0x2b8] sm:$0xff]
    %v241 = vld [vmem:[#allocation3 + $0x2c0] sm:$0xff]
    %v242 = vld [vmem:[#allocation3 + $0x2c8] sm:$0xff]
    %v243 = vld [vmem:[#allocation3 + $0x2d0] sm:$0xff]
    %v244 = vld [vmem:[#allocation3 + $0x2d8] sm:$0xff]
    %v245 = vld [vmem:[#allocation3 + $0x2e0] sm:$0xff]
    %v246 = vld [vmem:[#allocation3 + $0x2e8] sm:$0xff]
    %v247 = vld [vmem:[#allocation3 + $0x2f0] sm:$0xff]
    %v248 = vld [vmem:[#allocation3 + $0x2f8] sm:$0xff]
    %v249 = vld [vmem:[#allocation3 + $0x300] sm:$0xff]
    %v250 = vld [vmem:[#allocation3 + $0x308] sm:$0xff]
    %v251 = vld [vmem:[#allocation3 + $0x310] sm:$0xff]
    %v252 = vld [vmem:[#allocation3 + $0x318] sm:$0xff]
    %v253 = vld [vmem:[#allocation3 + $0x320] sm:$0xff]
    %v254 = vld [vmem:[#allocation3 + $0x328] sm:$0xff]
    %v255 = vld [vmem:[#allocation3 + $0x330] sm:$0xff]
    %v256 = vld [vmem:[#allocation3 + $0x338] sm:$0xff]
    %v257 = vld [vmem:[#allocation3 + $0x340] sm:$0xff]
    %v258 = vld [vmem:[#allocation3 + $0x348] sm:$0xff]
    %v259 = vld [vmem:[#allocation3 + $0x350] sm:$0xff]
    %v260 = vld [vmem:[#allocation3 + $0x358] sm:$0xff]
    %v261 = vld [vmem:[#allocation3 + $0x360] sm:$0xff]
    %v262 = vld [vmem:[#allocation3 + $0x368] sm:$0xff]
    %v263 = vld [vmem:[#allocation3 + $0x370] sm:$0xff]
    %v264 = vld [vmem:[#allocation3 + $0x378] sm:$0xff]
    %v265 = vld [vmem:[#allocation3 + $0x380] sm:$0xff]
    %v266 = vld [vmem:[#allocation3 + $0x388] sm:$0xff]
    %v267 = vld [vmem:[#allocation3 + $0x390] sm:$0xff]
    %v268 = vld [vmem:[#allocation3 + $0x398] sm:$0xff]
    %v269 = vld [vmem:[#allocation3 + $0x3a0] sm:$0xff]
    %v270 = vld [vmem:[#allocation3 + $0x3a8] sm:$0xff]
    %v271 = vld [vmem:[#allocation3 + $0x3b0] sm:$0xff]
    %v272 = vld [vmem:[#allocation3 + $0x3b8] sm:$0xff]
    %v273 = vld [vmem:[#allocation3 + $0x3c0] sm:$0xff]
    %v274 = vld [vmem:[#allocation3 + $0x3c8] sm:$0xff]
    %v275 = vld [vmem:[#allocation3 + $0x3d0] sm:$0xff]
    %v276 = vld [vmem:[#allocation3 + $0x3d8] sm:$0xff]
    %v277 = vld [vmem:[#allocation3 + $0x3e0] sm:$0xff]
    %v278 = vld [vmem:[#allocation3 + $0x3e8] sm:$0xff]
    %v279 = vld [vmem:[#allocation3 + $0x3f0] sm:$0xff]
    %v280 = vld [vmem:[#allocation3 + $0x3f8] sm:$0xff]
    %v281 = vld [vmem:[#allocation3 + $0x400] sm:$0xff]
    %v282 = vld [vmem:[#allocation3 + $0x408] sm:$0xff]
    %v283 = vld [vmem:[#allocation3 + $0x410] sm:$0xff]
    %v284 = vld [vmem:[#allocation3 + $0x418] sm:$0xff]
    %v285 = vld [vmem:[#allocation3 + $0x420] sm:$0xff]
    %v286 = vld [vmem:[#allocation3 + $0x428] sm:$0xff]
    %v287 = vld [vmem:[#allocation3 + $0x430] sm:$0xff]
    %v288 = vld [vmem:[#allocation3 + $0x438] sm:$0xff]
    %v289 = vld [vmem:[#allocation3 + $0x440] sm:$0xff]
    %v290 = vld [vmem:[#allocation3 + $0x448] sm:$0xff]
    %v291 = vld [vmem:[#allocation3 + $0x450] sm:$0xff]
    %v292 = vld [vmem:[#allocation3 + $0x458] sm:$0xff]
    %v293 = vld [vmem:[#allocation3 + $0x460] sm:$0xff]
    %v294 = vld [vmem:[#allocation3 + $0x468] sm:$0xff]
    %v295 = vld [vmem:[#allocation3 + $0x470] sm:$0xff]
    %v296 = vld [vmem:[#allocation3 + $0x478] sm:$0xff]
    %v297 = vld [vmem:[#allocation3 + $0x480] sm:$0xff]
    %v298 = vld [vmem:[#allocation3 + $0x488] sm:$0xff]
    %v299 = vld [vmem:[#allocation3 + $0x490] sm:$0xff]
    %v300 = vld [vmem:[#allocation3 + $0x498] sm:$0xff]
    %v301 = vld [vmem:[#allocation3 + $0x4a0] sm:$0xff]
    %v302 = vld [vmem:[#allocation3 + $0x4a8] sm:$0xff]
    %v303 = vld [vmem:[#allocation3 + $0x4b0] sm:$0xff]
    %v304 = vld [vmem:[#allocation3 + $0x4b8] sm:$0xff]
    %v305 = vld [vmem:[#allocation3 + $0x4c0] sm:$0xff]
    %v306 = vld [vmem:[#allocation3 + $0x4c8] sm:$0xff]
    %v307 = vld [vmem:[#allocation3 + $0x4d0] sm:$0xff]
    %v308 = vld [vmem:[#allocation3 + $0x4d8] sm:$0xff]
    %v309 = vld [vmem:[#allocation3 + $0x4e0] sm:$0xff]
    %v310 = vld [vmem:[#allocation3 + $0x4e8] sm:$0xff]
    %v311 = vld [vmem:[#allocation3 + $0x4f0] sm:$0xff]
    %v312 = vld [vmem:[#allocation3 + $0x4f8] sm:$0xff]
    %v313 = vld [vmem:[#allocation3 + $0x500] sm:$0xff]
    %v314 = vld [vmem:[#allocation3 + $0x508] sm:$0xff]
    %v315 = vld [vmem:[#allocation3 + $0x510] sm:$0xff]
    %v316 = vld [vmem:[#allocation3 + $0x518] sm:$0xff]
    %v317 = vld [vmem:[#allocation3 + $0x520] sm:$0xff]
    %v318 = vld [vmem:[#allocation3 + $0x528] sm:$0xff]
    %v319 = vld [vmem:[#allocation3 + $0x530] sm:$0xff]
    %v320 = vld [vmem:[#allocation3 + $0x538] sm:$0xff]
    %v321 = vld [vmem:[#allocation3 + $0x540] sm:$0xff]
    %v322 = vld [vmem:[#allocation3 + $0x548] sm:$0xff]
    %v323 = vld [vmem:[#allocation3 + $0x550] sm:$0xff]
    %v324 = vld [vmem:[#allocation3 + $0x558] sm:$0xff]
    %v325 = vld [vmem:[#allocation3 + $0x560] sm:$0xff]
    %v326 = vld [vmem:[#allocation3 + $0x568] sm:$0xff]
    %v327 = vld [vmem:[#allocation3 + $0x570] sm:$0xff]
    %v328 = vld [vmem:[#allocation3 + $0x578] sm:$0xff]
    %v329 = vld [vmem:[#allocation3 + $0x580] sm:$0xff]
    %v330 = vld [vmem:[#allocation3 + $0x588] sm:$0xff]
    %v331 = vld [vmem:[#allocation3 + $0x590] sm:$0xff]
    %v332 = vld [vmem:[#allocation3 + $0x598] sm:$0xff]
    %v333 = vld [vmem:[#allocation3 + $0x5a0] sm:$0xff]
    %v334 = vld [vmem:[#allocation3 + $0x5a8] sm:$0xff]
    %v335 = vld [vmem:[#allocation3 + $0x5b0] sm:$0xff]
    %v336 = vld [vmem:[#allocation3 + $0x5b8] sm:$0xff]
    %v337 = vld [vmem:[#allocation3 + $0x5c0] sm:$0xff]
    %v338 = vld [vmem:[#allocation3 + $0x5c8] sm:$0xff]
    %v339 = vld [vmem:[#allocation3 + $0x5d0] sm:$0xff]
    %v340 = vld [vmem:[#allocation3 + $0x5d8] sm:$0xff]
    %v341 = vld [vmem:[#allocation3 + $0x5e0] sm:$0xff]
    %v342 = vld [vmem:[#allocation3 + $0x5e8] sm:$0xff]
    %v343 = vld [vmem:[#allocation3 + $0x5f0] sm:$0xff]
    %v344 = vld [vmem:[#allocation3 + $0x5f8] sm:$0xff]
    %v345 = vld [vmem:[#allocation3 + $0x600] sm:$0xff]
    %v346 = vld [vmem:[#allocation3 + $0x608] sm:$0xff]
    %v347 = vld [vmem:[#allocation3 + $0x610] sm:$0xff]
    %v348 = vld [vmem:[#allocation3 + $0x618] sm:$0xff]
    %v349 = vld [vmem:[#allocation3 + $0x620] sm:$0xff]
    %v350 = vld [vmem:[#allocation3 + $0x628] sm:$0xff]
    %v351 = vld [vmem:[#allocation3 + $0x630] sm:$0xff]
    %v352 = vld [vmem:[#allocation3 + $0x638] sm:$0xff]
    %v353 = vld [vmem:[#allocation3 + $0x640] sm:$0xff]
    %v354 = vld [vmem:[#allocation3 + $0x648] sm:$0xff]
    %v355 = vld [vmem:[#allocation3 + $0x650] sm:$0xff]
    %v356 = vld [vmem:[#allocation3 + $0x658] sm:$0xff]
    %v357 = vld [vmem:[#allocation3 + $0x660] sm:$0xff]
    %v358 = vld [vmem:[#allocation3 + $0x668] sm:$0xff]
    %v359 = vld [vmem:[#allocation3 + $0x670] sm:$0xff]
    %v360 = vld [vmem:[#allocation3 + $0x678] sm:$0xff]
    %v361 = vld [vmem:[#allocation3 + $0x680] sm:$0xff]
    %v362 = vld [vmem:[#allocation3 + $0x688] sm:$0xff]
    %v363 = vld [vmem:[#allocation3 + $0x690] sm:$0xff]
    %v364 = vld [vmem:[#allocation3 + $0x698] sm:$0xff]
    %v365 = vld [vmem:[#allocation3 + $0x6a0] sm:$0xff]
    %v366 = vld [vmem:[#allocation3 + $0x6a8] sm:$0xff]
    %v367 = vld [vmem:[#allocation3 + $0x6b0] sm:$0xff]
    %v368 = vld [vmem:[#allocation3 + $0x6b8] sm:$0xff]
    %v369 = vld [vmem:[#allocation3 + $0x6c0] sm:$0xff]
    %v370 = vld [vmem:[#allocation3 + $0x6c8] sm:$0xff]
    %v371 = vld [vmem:[#allocation3 + $0x6d0] sm:$0xff]
    %v372 = vld [vmem:[#allocation3 + $0x6d8] sm:$0xff]
    %v373 = vld [vmem:[#allocation3 + $0x6e0] sm:$0xff]
    %v374 = vld [vmem:[#allocation3 + $0x6e8] sm:$0xff]
    %v375 = vld [vmem:[#allocation3 + $0x6f0] sm:$0xff]
    %v376 = vld [vmem:[#allocation3 + $0x6f8] sm:$0xff]
    %v377 = vld [vmem:[#allocation3 + $0x700] sm:$0xff]
    %v378 = vld [vmem:[#allocation3 + $0x708] sm:$0xff]
    %v379 = vld [vmem:[#allocation3 + $0x710] sm:$0xff]
    %v380 = vld [vmem:[#allocation3 + $0x718] sm:$0xff]
    %v381 = vld [vmem:[#allocation3 + $0x720] sm:$0xff]
    %v382 = vld [vmem:[#allocation3 + $0x728] sm:$0xff]
    %v383 = vld [vmem:[#allocation3 + $0x730] sm:$0xff]
    %v384 = vld [vmem:[#allocation3 + $0x738] sm:$0xff]
    %v385 = vld [vmem:[#allocation3 + $0x740] sm:$0xff]
    %v386 = vld [vmem:[#allocation3 + $0x748] sm:$0xff]
    %v387 = vld [vmem:[#allocation3 + $0x750] sm:$0xff]
    %v388 = vld [vmem:[#allocation3 + $0x758] sm:$0xff]
    %v389 = vld [vmem:[#allocation3 + $0x760] sm:$0xff]
    %v390 = vld [vmem:[#allocation3 + $0x768] sm:$0xff]
    %v391 = vld [vmem:[#allocation3 + $0x770] sm:$0xff]
    %v392 = vld [vmem:[#allocation3 + $0x778] sm:$0xff]
    %v393 = vld [vmem:[#allocation3 + $0x780] sm:$0xff]
    %v394 = vld [vmem:[#allocation3 + $0x788] sm:$0xff]
    %v395 = vld [vmem:[#allocation3 + $0x790] sm:$0xff]
    %v396 = vld [vmem:[#allocation3 + $0x798] sm:$0xff]
    %v397 = vld [vmem:[#allocation3 + $0x7a0] sm:$0xff]
    %v398 = vld [vmem:[#allocation3 + $0x7a8] sm:$0xff]
    %v399 = vld [vmem:[#allocation3 + $0x7b0] sm:$0xff]
    %v400 = vld [vmem:[#allocation3 + $0x7b8] sm:$0xff]
    %v401 = vld [vmem:[#allocation3 + $0x7c0] sm:$0xff]
    %v402 = vld [vmem:[#allocation3 + $0x7c8] sm:$0xff]
    %v403 = vld [vmem:[#allocation3 + $0x7d0] sm:$0xff]
    %v404 = vld [vmem:[#allocation3 + $0x7d8] sm:$0xff]
    %v405 = vld [vmem:[#allocation3 + $0x7e0] sm:$0xff]
    %v406 = vld [vmem:[#allocation3 + $0x7e8] sm:$0xff]
    %v407 = vld [vmem:[#allocation3 + $0x7f0] sm:$0xff]
    %v408 = vld [vmem:[#allocation3 + $0x7f8] sm:$0xff]
    %v409 = vld [vmem:[#allocation3 + $0x800] sm:$0xff]
    %v410 = vld [vmem:[#allocation3 + $0x808] sm:$0xff]
    %v411 = vld [vmem:[#allocation3 + $0x810] sm:$0xff]
    %v412 = vld [vmem:[#allocation3 + $0x818] sm:$0xff]
    %v413 = vld [vmem:[#allocation3 + $0x820] sm:$0xff]
    %v414 = vld [vmem:[#allocation3 + $0x828] sm:$0xff]
    %v415 = vld [vmem:[#allocation3 + $0x830] sm:$0xff]
    %v416 = vld [vmem:[#allocation3 + $0x838] sm:$0xff]
    %v417 = vld [vmem:[#allocation3 + $0x840] sm:$0xff]
    %v418 = vld [vmem:[#allocation3 + $0x848] sm:$0xff]
    %v419 = vld [vmem:[#allocation3 + $0x850] sm:$0xff]
    %v420 = vld [vmem:[#allocation3 + $0x858] sm:$0xff]
    %v421 = vld [vmem:[#allocation3 + $0x860] sm:$0xff]
    %v422 = vld [vmem:[#allocation3 + $0x868] sm:$0xff]
    %v423 = vld [vmem:[#allocation3 + $0x870] sm:$0xff]
    %v424 = vld [vmem:[#allocation3 + $0x878] sm:$0xff]
    %v425 = vld [vmem:[#allocation3 + $0x880] sm:$0xff]
    %v426 = vld [vmem:[#allocation3 + $0x888] sm:$0xff]
    %v427 = vld [vmem:[#allocation3 + $0x890] sm:$0xff]
    %v428 = vld [vmem:[#allocation3 + $0x898] sm:$0xff]
    %v429 = vld [vmem:[#allocation3 + $0x8a0] sm:$0xff]
    %v430 = vld [vmem:[#allocation3 + $0x8a8] sm:$0xff]
    %v431 = vld [vmem:[#allocation3 + $0x8b0] sm:$0xff]
    %v432 = vld [vmem:[#allocation3 + $0x8b8] sm:$0xff]
    %v433 = vld [vmem:[#allocation3 + $0x8c0] sm:$0xff]
    %v434 = vld [vmem:[#allocation3 + $0x8c8] sm:$0xff]
    %v435 = vld [vmem:[#allocation3 + $0x8d0] sm:$0xff]
    %v436 = vld [vmem:[#allocation3 + $0x8d8] sm:$0xff]
    %v437 = vld [vmem:[#allocation3 + $0x8e0] sm:$0xff]
    %v438 = vld [vmem:[#allocation3 + $0x8e8] sm:$0xff]
    %v439 = vld [vmem:[#allocation3 + $0x8f0] sm:$0xff]
    %v440 = vld [vmem:[#allocation3 + $0x8f8] sm:$0xff]
    %v441 = vld [vmem:[#allocation3 + $0x900] sm:$0xff]
    %v442 = vld [vmem:[#allocation3 + $0x908] sm:$0xff]
    %v443 = vld [vmem:[#allocation3 + $0x910] sm:$0xff]
    %v444 = vld [vmem:[#allocation3 + $0x918] sm:$0xff]
    %v445 = vld [vmem:[#allocation3 + $0x920] sm:$0xff]
    %v446 = vld [vmem:[#allocation3 + $0x928] sm:$0xff]
    %v447 = vld [vmem:[#allocation3 + $0x930] sm:$0xff]
    %v448 = vld [vmem:[#allocation3 + $0x938] sm:$0xff]
    %v449 = vld [vmem:[#allocation3 + $0x940] sm:$0xff]
    %v450 = vld [vmem:[#allocation3 + $0x948] sm:$0xff]
    %v451 = vld [vmem:[#allocation3 + $0x950] sm:$0xff]
    %v452 = vld [vmem:[#allocation3 + $0x958] sm:$0xff]
    %v453 = vld [vmem:[#allocation3 + $0x960] sm:$0xff]
    %v454 = vld [vmem:[#allocation3 + $0x968] sm:$0xff]
    %v455 = vld [vmem:[#allocation3 + $0x970] sm:$0xff]
    %v456 = vld [vmem:[#allocation3 + $0x978] sm:$0xff]
    %v457 = vld [vmem:[#allocation3 + $0x980] sm:$0xff]
    %v458 = vld [vmem:[#allocation3 + $0x988] sm:$0xff]
    %v459 = vld [vmem:[#allocation3 + $0x990] sm:$0xff]
    %v460 = vld [vmem:[#allocation3 + $0x998] sm:$0xff]
    %v461 = vld [vmem:[#allocation3 + $0x9a0] sm:$0xff]
    %v462 = vld [vmem:[#allocation3 + $0x9a8] sm:$0xff]
    %v463 = vld [vmem:[#allocation3 + $0x9b0] sm:$0xff]
    %v464 = vld [vmem:[#allocation3 + $0x9b8] sm:$0xff]
    %v465 = vld [vmem:[#allocation3 + $0x9c0] sm:$0xff]
    %v466 = vld [vmem:[#allocation3 + $0x9c8] sm:$0xff]
    %v467 = vld [vmem:[#allocation3 + $0x9d0] sm:$0xff]
    %v468 = vld [vmem:[#allocation3 + $0x9d8] sm:$0xff]
    %v469 = vld [vmem:[#allocation3 + $0x9e0] sm:$0xff]
    %v470 = vld [vmem:[#allocation3 + $0x9e8] sm:$0xff]
    %v471 = vld [vmem:[#allocation3 + $0x9f0] sm:$0xff]
    %v472 = vld [vmem:[#allocation3 + $0x9f8] sm:$0xff]
    %v473 = vld [vmem:[#allocation3 + $0xa00] sm:$0xff]
    %v474 = vld [vmem:[#allocation3 + $0xa08] sm:$0xff]
    %v475 = vld [vmem:[#allocation3 + $0xa10] sm:$0xff]
    %v476 = vld [vmem:[#allocation3 + $0xa18] sm:$0xff]
    %v477 = vld [vmem:[#allocation3 + $0xa20] sm:$0xff]
    %v478 = vld [vmem:[#allocation3 + $0xa28] sm:$0xff]
    %v479 = vld [vmem:[#allocation3 + $0xa30] sm:$0xff]
    %v480 = vld [vmem:[#allocation3 + $0xa38] sm:$0xff]
    %v481 = vld [vmem:[#allocation3 + $0xa40] sm:$0xff]
    %v482 = vld [vmem:[#allocation3 + $0xa48] sm:$0xff]
    %v483 = vld [vmem:[#allocation3 + $0xa50] sm:$0xff]
    %v484 = vld [vmem:[#allocation3 + $0xa58] sm:$0xff]
    %v485 = vld [vmem:[#allocation3 + $0xa60] sm:$0xff]
    %v486 = vld [vmem:[#allocation3 + $0xa68] sm:$0xff]
    %v487 = vld [vmem:[#allocation3 + $0xa70] sm:$0xff]
    %v488 = vld [vmem:[#allocation3 + $0xa78] sm:$0xff]
    %v489 = vld [vmem:[#allocation3 + $0xa80] sm:$0xff]
    %v490 = vld [vmem:[#allocation3 + $0xa88] sm:$0xff]
    %v491 = vld [vmem:[#allocation3 + $0xa90] sm:$0xff]
    %v492 = vld [vmem:[#allocation3 + $0xa98] sm:$0xff]
    %v493 = vld [vmem:[#allocation3 + $0xaa0] sm:$0xff]
    %v494 = vld [vmem:[#allocation3 + $0xaa8] sm:$0xff]
    %v495 = vld [vmem:[#allocation3 + $0xab0] sm:$0xff]
    %v496 = vld [vmem:[#allocation3 + $0xab8] sm:$0xff]
    %v497 = vld [vmem:[#allocation3 + $0xac0] sm:$0xff]
    %v498 = vld [vmem:[#allocation3 + $0xac8] sm:$0xff]
    %v499 = vld [vmem:[#allocation3 + $0xad0] sm:$0xff]
    %v500 = vld [vmem:[#allocation3 + $0xad8] sm:$0xff]
    %v501 = vld [vmem:[#allocation3 + $0xae0] sm:$0xff]
    %v502 = vld [vmem:[#allocation3 + $0xae8] sm:$0xff]
    %v503 = vld [vmem:[#allocation3 + $0xaf0] sm:$0xff]
    %v504 = vld [vmem:[#allocation3 + $0xaf8] sm:$0xff]
    %v505 = vld [vmem:[#allocation3 + $0xb00] sm:$0xff]
    %v506 = vld [vmem:[#allocation3 + $0xb08] sm:$0xff]
    %v507 = vld [vmem:[#allocation3 + $0xb10] sm:$0xff]
    %v508 = vld [vmem:[#allocation3 + $0xb18] sm:$0xff]
    %v509 = vld [vmem:[#allocation3 + $0xb20] sm:$0xff]
    %v510 = vld [vmem:[#allocation3 + $0xb28] sm:$0xff]
    %v511 = vld [vmem:[#allocation3 + $0xb30] sm:$0xff]
    %v512 = vld [vmem:[#allocation3 + $0xb38] sm:$0xff]
    %v513 = vld [vmem:[#allocation3 + $0xb40] sm:$0xff]
    %v514 = vld [vmem:[#allocation3 + $0xb48] sm:$0xff]
    %v515 = vld [vmem:[#allocation3 + $0xb50] sm:$0xff]
    %v516 = vld [vmem:[#allocation3 + $0xb58] sm:$0xff]
    %v517 = vld [vmem:[#allocation3 + $0xb60] sm:$0xff]
    %v518 = vld [vmem:[#allocation3 + $0xb68] sm:$0xff]
    %v519 = vld [vmem:[#allocation3 + $0xb70] sm:$0xff]
    %v520 = vld [vmem:[#allocation3 + $0xb78] sm:$0xff]
    %v521 = vld [vmem:[#allocation3 + $0xb80] sm:$0xff]
    %v522 = vld [vmem:[#allocation3 + $0xb88] sm:$0xff]
    %v523 = vld [vmem:[#allocation3 + $0xb90] sm:$0xff]
    %v524 = vld [vmem:[#allocation3 + $0xb98] sm:$0xff]
    %v525 = vld [vmem:[#allocation3 + $0xba0] sm:$0xff]
    %v526 = vld [vmem:[#allocation3 + $0xba8] sm:$0xff]
    %v527 = vld [vmem:[#allocation3 + $0xbb0] sm:$0xff]
    %v528 = vld [vmem:[#allocation3 + $0xbb8] sm:$0xff]
    %v529 = vld [vmem:[#allocation3 + $0xbc0] sm:$0xff]
    %v530 = vld [vmem:[#allocation3 + $0xbc8] sm:$0xff]
    %v531 = vld [vmem:[#allocation3 + $0xbd0] sm:$0xff]
    %v532 = vld [vmem:[#allocation3 + $0xbd8] sm:$0xff]
    %v533 = vld [vmem:[#allocation3 + $0xbe0] sm:$0xff]
    %v534 = vld [vmem:[#allocation3 + $0xbe8] sm:$0xff]
    %v535 = vld [vmem:[#allocation3 + $0xbf0] sm:$0xff]
    %v536 = vld [vmem:[#allocation3 + $0xbf8] sm:$0xff]
    %v537 = vld [vmem:[#allocation3 + $0xc00] sm:$0xff]
    %v538 = vld [vmem:[#allocation3 + $0xc08] sm:$0xff]
    %v539 = vld [vmem:[#allocation3 + $0xc10] sm:$0xff]
    %v540 = vld [vmem:[#allocation3 + $0xc18] sm:$0xff]
    %v541 = vld [vmem:[#allocation3 + $0xc20] sm:$0xff]
    %v542 = vld [vmem:[#allocation3 + $0xc28] sm:$0xff]
    %v543 = vld [vmem:[#allocation3 + $0xc30] sm:$0xff]
    %v544 = vld [vmem:[#allocation3 + $0xc38] sm:$0xff]
    %v545 = vld [vmem:[#allocation3 + $0xc40] sm:$0xff]
    %v546 = vld [vmem:[#allocation3 + $0xc48] sm:$0xff]
    %v547 = vld [vmem:[#allocation3 + $0xc50] sm:$0xff]
    %v548 = vld [vmem:[#allocation3 + $0xc58] sm:$0xff]
    %v549 = vld [vmem:[#allocation3 + $0xc60] sm:$0xff]
    %v550 = vld [vmem:[#allocation3 + $0xc68] sm:$0xff]
    %v551 = vld [vmem:[#allocation3 + $0xc70] sm:$0xff]
    %v552 = vld [vmem:[#allocation3 + $0xc78] sm:$0xff]
    %v553 = vld [vmem:[#allocation3 + $0xc80] sm:$0xff]
    %v554 = vld [vmem:[#allocation3 + $0xc88] sm:$0xff]
    %v555 = vld [vmem:[#allocation3 + $0xc90] sm:$0xff]
    %v556 = vld [vmem:[#allocation3 + $0xc98] sm:$0xff]
    %v557 = vld [vmem:[#allocation3 + $0xca0] sm:$0xff]
    %v558 = vld [vmem:[#allocation3 + $0xca8] sm:$0xff]
    %v559 = vld [vmem:[#allocation3 + $0xcb0] sm:$0xff]
    %v560 = vld [vmem:[#allocation3 + $0xcb8] sm:$0xff]
    %v561 = vld [vmem:[#allocation3 + $0xcc0] sm:$0xff]
    %v562 = vld [vmem:[#allocation3 + $0xcc8] sm:$0xff]
    %v563 = vld [vmem:[#allocation3 + $0xcd0] sm:$0xff]
    %v564 = vld [vmem:[#allocation3 + $0xcd8] sm:$0xff]
    %v565 = vld [vmem:[#allocation3 + $0xce0] sm:$0xff]
    %v566 = vld [vmem:[#allocation3 + $0xce8] sm:$0xff]
    %v567 = vld [vmem:[#allocation3 + $0xcf0] sm:$0xff]
    %v568 = vld [vmem:[#allocation3 + $0xcf8] sm:$0xff]
    %v569 = vld [vmem:[#allocation3 + $0xd00] sm:$0xff]
    %v570 = vld [vmem:[#allocation3 + $0xd08] sm:$0xff]
    %v571 = vld [vmem:[#allocation3 + $0xd10] sm:$0xff]
    %v572 = vld [vmem:[#allocation3 + $0xd18] sm:$0xff]
    %v573 = vld [vmem:[#allocation3 + $0xd20] sm:$0xff]
    %v574 = vld [vmem:[#allocation3 + $0xd28] sm:$0xff]
    %v575 = vld [vmem:[#allocation3 + $0xd30] sm:$0xff]
    %v576 = vld [vmem:[#allocation3 + $0xd38] sm:$0xff]
    %v577 = vld [vmem:[#allocation3 + $0xd40] sm:$0xff]
    %v578 = vld [vmem:[#allocation3 + $0xd48] sm:$0xff]
    %v579 = vld [vmem:[#allocation3 + $0xd50] sm:$0xff]
    %v580 = vld [vmem:[#allocation3 + $0xd58] sm:$0xff]
    %v581 = vld [vmem:[#allocation3 + $0xd60] sm:$0xff]
    %v582 = vld [vmem:[#allocation3 + $0xd68] sm:$0xff]
    %v583 = vld [vmem:[#allocation3 + $0xd70] sm:$0xff]
    %v584 = vld [vmem:[#allocation3 + $0xd78] sm:$0xff]
    %v585 = vld [vmem:[#allocation3 + $0xd80] sm:$0xff]
    %v586 = vld [vmem:[#allocation3 + $0xd88] sm:$0xff]
    %v587 = vld [vmem:[#allocation3 + $0xd90] sm:$0xff]
    %v588 = vld [vmem:[#allocation3 + $0xd98] sm:$0xff]
    %v589 = vld [vmem:[#allocation3 + $0xda0] sm:$0xff]
    %v590 = vld [vmem:[#allocation3 + $0xda8] sm:$0xff]
    %v591 = vld [vmem:[#allocation3 + $0xdb0] sm:$0xff]
    %v592 = vld [vmem:[#allocation3 + $0xdb8] sm:$0xff]
    %v593 = vld [vmem:[#allocation3 + $0xdc0] sm:$0xff]
    %v594 = vld [vmem:[#allocation3 + $0xdc8] sm:$0xff]
    %v595 = vld [vmem:[#allocation3 + $0xdd0] sm:$0xff]
    %v596 = vld [vmem:[#allocation3 + $0xdd8] sm:$0xff]
    %v597 = vld [vmem:[#allocation3 + $0xde0] sm:$0xff]
    %v598 = vld [vmem:[#allocation3 + $0xde8] sm:$0xff]
    %v599 = vld [vmem:[#allocation3 + $0xdf0] sm:$0xff]
    %v600 = vld [vmem:[#allocation3 + $0xdf8] sm:$0xff]
    %v601 = vld [vmem:[#allocation3 + $0xe00] sm:$0xff]
    %v602 = vld [vmem:[#allocation3 + $0xe08] sm:$0xff]
    %v603 = vld [vmem:[#allocation3 + $0xe10] sm:$0xff]
    %v604 = vld [vmem:[#allocation3 + $0xe18] sm:$0xff]
    %v605 = vld [vmem:[#allocation3 + $0xe20] sm:$0xff]
    %v606 = vld [vmem:[#allocation3 + $0xe28] sm:$0xff]
    %v607 = vld [vmem:[#allocation3 + $0xe30] sm:$0xff]
    %v608 = vld [vmem:[#allocation3 + $0xe38] sm:$0xff]
    %v609 = vld [vmem:[#allocation3 + $0xe40] sm:$0xff]
    %v610 = vld [vmem:[#allocation3 + $0xe48] sm:$0xff]
    %v611 = vld [vmem:[#allocation3 + $0xe50] sm:$0xff]
    %v612 = vld [vmem:[#allocation3 + $0xe58] sm:$0xff]
    %v613 = vld [vmem:[#allocation3 + $0xe60] sm:$0xff]
    %v614 = vld [vmem:[#allocation3 + $0xe68] sm:$0xff]
    %v615 = vld [vmem:[#allocation3 + $0xe70] sm:$0xff]
    %v616 = vld [vmem:[#allocation3 + $0xe78] sm:$0xff]
    %v617 = vld [vmem:[#allocation3 + $0xe80] sm:$0xff]
    %v618 = vld [vmem:[#allocation3 + $0xe88] sm:$0xff]
    %v619 = vld [vmem:[#allocation3 + $0xe90] sm:$0xff]
    %v620 = vld [vmem:[#allocation3 + $0xe98] sm:$0xff]
    %v621 = vld [vmem:[#allocation3 + $0xea0] sm:$0xff]
    %v622 = vld [vmem:[#allocation3 + $0xea8] sm:$0xff]
    %v623 = vld [vmem:[#allocation3 + $0xeb0] sm:$0xff]
    %v624 = vld [vmem:[#allocation3 + $0xeb8] sm:$0xff]
    %v625 = vld [vmem:[#allocation3 + $0xec0] sm:$0xff]
    %v626 = vld [vmem:[#allocation3 + $0xec8] sm:$0xff]
    %v627 = vld [vmem:[#allocation3 + $0xed0] sm:$0xff]
    %v628 = vld [vmem:[#allocation3 + $0xed8] sm:$0xff]
    %v629 = vld [vmem:[#allocation3 + $0xee0] sm:$0xff]
    %v630 = vld [vmem:[#allocation3 + $0xee8] sm:$0xff]
    %v631 = vld [vmem:[#allocation3 + $0xef0] sm:$0xff]
    %v632 = vld [vmem:[#allocation3 + $0xef8] sm:$0xff]
    %v633 = vld [vmem:[#allocation3 + $0xf00] sm:$0xff]
    %v634 = vld [vmem:[#allocation3 + $0xf08] sm:$0xff]
    %v635 = vld [vmem:[#allocation3 + $0xf10] sm:$0xff]
    %v636 = vld [vmem:[#allocation3 + $0xf18] sm:$0xff]
    %v637 = vld [vmem:[#allocation3 + $0xf20] sm:$0xff]
    %v638 = vld [vmem:[#allocation3 + $0xf28] sm:$0xff]
    %v639 = vld [vmem:[#allocation3 + $0xf30] sm:$0xff]
    %v640 = vld [vmem:[#allocation3 + $0xf38] sm:$0xff]
    %v641 = vld [vmem:[#allocation3 + $0xf40] sm:$0xff]
    %v642 = vld [vmem:[#allocation3 + $0xf48] sm:$0xff]
    %v643 = vld [vmem:[#allocation3 + $0xf50] sm:$0xff]
    %v644 = vld [vmem:[#allocation3 + $0xf58] sm:$0xff]
    %v645 = vld [vmem:[#allocation3 + $0xf60] sm:$0xff]
    %v646 = vld [vmem:[#allocation3 + $0xf68] sm:$0xff]
    %v647 = vld [vmem:[#allocation3 + $0xf70] sm:$0xff]
    %v648 = vld [vmem:[#allocation3 + $0xf78] sm:$0xff]
    %v649 = vld [vmem:[#allocation3 + $0xf80] sm:$0xff]
    %v650 = vld [vmem:[#allocation3 + $0xf88] sm:$0xff]
    %v651 = vld [vmem:[#allocation3 + $0xf90] sm:$0xff]
    %v652 = vld [vmem:[#allocation3 + $0xf98] sm:$0xff]
    %v653 = vld [vmem:[#allocation3 + $0xfa0] sm:$0xff]
    %v654 = vld [vmem:[#allocation3 + $0xfa8] sm:$0xff]
    %v655 = vld [vmem:[#allocation3 + $0xfb0] sm:$0xff]
    %v656 = vld [vmem:[#allocation3 + $0xfb8] sm:$0xff]
    %v657 = vld [vmem:[#allocation3 + $0xfc0] sm:$0xff]
    %v658 = vld [vmem:[#allocation3 + $0xfc8] sm:$0xff]
    %v659 = vld [vmem:[#allocation3 + $0xfd0] sm:$0xff]
    %v660 = vld [vmem:[#allocation3 + $0xfd8] sm:$0xff]
    %v661 = vld [vmem:[#allocation3 + $0xfe0] sm:$0xff]
    %v662 = vld [vmem:[#allocation3 + $0xfe8] sm:$0xff]
    %v663 = vld [vmem:[#allocation3 + $0xff0] sm:$0xff]
    %v664 = vld [vmem:[#allocation3 + $0xff8] sm:$0xff]
    %v665 = vld [vmem:[#allocation6] sm:$0xff]
    %v666 = vld [vmem:[#allocation6 + $0x8] sm:$0xff]
    %v667 = vld [vmem:[#allocation6 + $0x10] sm:$0xff]
    %v668 = vld [vmem:[#allocation6 + $0x18] sm:$0xff]
    %v669 = vld [vmem:[#allocation6 + $0x20] sm:$0xff]
    %v670 = vld [vmem:[#allocation6 + $0x28] sm:$0xff]
    %v671 = vld [vmem:[#allocation6 + $0x30] sm:$0xff]
    %v672 = vld [vmem:[#allocation6 + $0x38] sm:$0xff]
    %v673 = vld [vmem:[#allocation6 + $0x40] sm:$0xff]
    %v674 = vld [vmem:[#allocation6 + $0x48] sm:$0xff]
    %v675 = vld [vmem:[#allocation6 + $0x50] sm:$0xff]
    %v676 = vld [vmem:[#allocation6 + $0x58] sm:$0xff]
    %v677 = vld [vmem:[#allocation6 + $0x60] sm:$0xff]
    %v678 = vld [vmem:[#allocation6 + $0x68] sm:$0xff]
    %v679 = vld [vmem:[#allocation6 + $0x70] sm:$0xff]
    %v680 = vld [vmem:[#allocation6 + $0x78] sm:$0xff]
    %v681 = vld [vmem:[#allocation6 + $0x80] sm:$0xff]
    %v682 = vld [vmem:[#allocation6 + $0x88] sm:$0xff]
    %v683 = vld [vmem:[#allocation6 + $0x90] sm:$0xff]
    %v684 = vld [vmem:[#allocation6 + $0x98] sm:$0xff]
    %v685 = vld [vmem:[#allocation6 + $0xa0] sm:$0xff]
    %v686 = vld [vmem:[#allocation6 + $0xa8] sm:$0xff]
    %v687 = vld [vmem:[#allocation6 + $0xb0] sm:$0xff]
    %v688 = vld [vmem:[#allocation6 + $0xb8] sm:$0xff]
    %v689 = vld [vmem:[#allocation6 + $0xc0] sm:$0xff]
    %v690 = vld [vmem:[#allocation6 + $0xc8] sm:$0xff]
    %v691 = vld [vmem:[#allocation6 + $0xd0] sm:$0xff]
    %v692 = vld [vmem:[#allocation6 + $0xd8] sm:$0xff]
    %v693 = vld [vmem:[#allocation6 + $0xe0] sm:$0xff]
    %v694 = vld [vmem:[#allocation6 + $0xe8] sm:$0xff]
    %v695 = vld [vmem:[#allocation6 + $0xf0] sm:$0xff]
    %v696 = vld [vmem:[#allocation6 + $0xf8] sm:$0xff]
    %v697 = vld [vmem:[#allocation6 + $0x100] sm:$0xff]
    %v698 = vld [vmem:[#allocation6 + $0x108] sm:$0xff]
    %v699 = vld [vmem:[#allocation6 + $0x110] sm:$0xff]
    %v700 = vld [vmem:[#allocation6 + $0x118] sm:$0xff]
    %v701 = vld [vmem:[#allocation6 + $0x120] sm:$0xff]
    %v702 = vld [vmem:[#allocation6 + $0x128] sm:$0xff]
    %v703 = vld [vmem:[#allocation6 + $0x130] sm:$0xff]
    %v704 = vld [vmem:[#allocation6 + $0x138] sm:$0xff]
    %v705 = vld [vmem:[#allocation6 + $0x140] sm:$0xff]
    %v706 = vld [vmem:[#allocation6 + $0x148] sm:$0xff]
    %v707 = vld [vmem:[#allocation6 + $0x150] sm:$0xff]
    %v708 = vld [vmem:[#allocation6 + $0x158] sm:$0xff]
    %v709 = vld [vmem:[#allocation6 + $0x160] sm:$0xff]
    %v710 = vld [vmem:[#allocation6 + $0x168] sm:$0xff]
    %v711 = vld [vmem:[#allocation6 + $0x170] sm:$0xff]
    %v712 = vld [vmem:[#allocation6 + $0x178] sm:$0xff]
    %v713 = vld [vmem:[#allocation6 + $0x180] sm:$0xff]
    %v714 = vld [vmem:[#allocation6 + $0x188] sm:$0xff]
    %v715 = vld [vmem:[#allocation6 + $0x190] sm:$0xff]
    %v716 = vld [vmem:[#allocation6 + $0x198] sm:$0xff]
    %v717 = vld [vmem:[#allocation6 + $0x1a0] sm:$0xff]
    %v718 = vld [vmem:[#allocation6 + $0x1a8] sm:$0xff]
    %v719 = vld [vmem:[#allocation6 + $0x1b0] sm:$0xff]
    %v720 = vld [vmem:[#allocation6 + $0x1b8] sm:$0xff]
    %v721 = vld [vmem:[#allocation6 + $0x1c0] sm:$0xff]
    %v722 = vld [vmem:[#allocation6 + $0x1c8] sm:$0xff]
    %v723 = vld [vmem:[#allocation6 + $0x1d0] sm:$0xff]
    %v724 = vld [vmem:[#allocation6 + $0x1d8] sm:$0xff]
    %v725 = vld [vmem:[#allocation6 + $0x1e0] sm:$0xff]
    %v726 = vld [vmem:[#allocation6 + $0x1e8] sm:$0xff]
    %v727 = vld [vmem:[#allocation6 + $0x1f0] sm:$0xff]
    %v728 = vld [vmem:[#allocation6 + $0x1f8] sm:$0xff]
    %v729 = vld [vmem:[#allocation6 + $0x200] sm:$0xff]
    %v730 = vld [vmem:[#allocation6 + $0x208] sm:$0xff]
    %v731 = vld [vmem:[#allocation6 + $0x210] sm:$0xff]
    %v732 = vld [vmem:[#allocation6 + $0x218] sm:$0xff]
    %v733 = vld [vmem:[#allocation6 + $0x220] sm:$0xff]
    %v734 = vld [vmem:[#allocation6 + $0x228] sm:$0xff]
    %v735 = vld [vmem:[#allocation6 + $0x230] sm:$0xff]
    %v736 = vld [vmem:[#allocation6 + $0x238] sm:$0xff]
    %v737 = vld [vmem:[#allocation6 + $0x240] sm:$0xff]
    %v738 = vld [vmem:[#allocation6 + $0x248] sm:$0xff]
    %v739 = vld [vmem:[#allocation6 + $0x250] sm:$0xff]
    %v740 = vld [vmem:[#allocation6 + $0x258] sm:$0xff]
    %v741 = vld [vmem:[#allocation6 + $0x260] sm:$0xff]
    %v742 = vld [vmem:[#allocation6 + $0x268] sm:$0xff]
    %v743 = vld [vmem:[#allocation6 + $0x270] sm:$0xff]
    %v744 = vld [vmem:[#allocation6 + $0x278] sm:$0xff]
    %v745 = vld [vmem:[#allocation6 + $0x280] sm:$0xff]
    %v746 = vld [vmem:[#allocation6 + $0x288] sm:$0xff]
    %v747 = vld [vmem:[#allocation6 + $0x290] sm:$0xff]
    %v748 = vld [vmem:[#allocation6 + $0x298] sm:$0xff]
    %v749 = vld [vmem:[#allocation6 + $0x2a0] sm:$0xff]
    %v750 = vld [vmem:[#allocation6 + $0x2a8] sm:$0xff]
    %v751 = vld [vmem:[#allocation6 + $0x2b0] sm:$0xff]
    %v752 = vld [vmem:[#allocation6 + $0x2b8] sm:$0xff]
    %v753 = vld [vmem:[#allocation6 + $0x2c0] sm:$0xff]
    %v754 = vld [vmem:[#allocation6 + $0x2c8] sm:$0xff]
    %v755 = vld [vmem:[#allocation6 + $0x2d0] sm:$0xff]
    %v756 = vld [vmem:[#allocation6 + $0x2d8] sm:$0xff]
    %v757 = vld [vmem:[#allocation6 + $0x2e0] sm:$0xff]
    %v758 = vld [vmem:[#allocation6 + $0x2e8] sm:$0xff]
    %v759 = vld [vmem:[#allocation6 + $0x2f0] sm:$0xff]
    %v760 = vld [vmem:[#allocation6 + $0x2f8] sm:$0xff]
    %v761 = vld [vmem:[#allocation6 + $0x300] sm:$0xff]
    %v762 = vld [vmem:[#allocation6 + $0x308] sm:$0xff]
    %v763 = vld [vmem:[#allocation6 + $0x310] sm:$0xff]
    %v764 = vld [vmem:[#allocation6 + $0x318] sm:$0xff]
    %v765 = vld [vmem:[#allocation6 + $0x320] sm:$0xff]
    %v766 = vld [vmem:[#allocation6 + $0x328] sm:$0xff]
    %v767 = vld [vmem:[#allocation6 + $0x330] sm:$0xff]
    %v768 = vld [vmem:[#allocation6 + $0x338] sm:$0xff]
    %v769 = vld [vmem:[#allocation6 + $0x340] sm:$0xff]
    %v770 = vld [vmem:[#allocation6 + $0x348] sm:$0xff]
    %v771 = vld [vmem:[#allocation6 + $0x350] sm:$0xff]
    %v772 = vld [vmem:[#allocation6 + $0x358] sm:$0xff]
    %v773 = vld [vmem:[#allocation6 + $0x360] sm:$0xff]
    %v774 = vld [vmem:[#allocation6 + $0x368] sm:$0xff]
    %v775 = vld [vmem:[#allocation6 + $0x370] sm:$0xff]
    %v776 = vld [vmem:[#allocation6 + $0x378] sm:$0xff]
    %v777 = vld [vmem:[#allocation6 + $0x380] sm:$0xff]
    %v778 = vld [vmem:[#allocation6 + $0x388] sm:$0xff]
    %v779 = vld [vmem:[#allocation6 + $0x390] sm:$0xff]
    %v780 = vld [vmem:[#allocation6 + $0x398] sm:$0xff]
    %v781 = vld [vmem:[#allocation6 + $0x3a0] sm:$0xff]
    %v782 = vld [vmem:[#allocation6 + $0x3a8] sm:$0xff]
    %v783 = vld [vmem:[#allocation6 + $0x3b0] sm:$0xff]
    %v784 = vld [vmem:[#allocation6 + $0x3b8] sm:$0xff]
    %v785 = vld [vmem:[#allocation6 + $0x3c0] sm:$0xff]
    %v786 = vld [vmem:[#allocation6 + $0x3c8] sm:$0xff]
    %v787 = vld [vmem:[#allocation6 + $0x3d0] sm:$0xff]
    %v788 = vld [vmem:[#allocation6 + $0x3d8] sm:$0xff]
    %v789 = vld [vmem:[#allocation6 + $0x3e0] sm:$0xff]
    %v790 = vld [vmem:[#allocation6 + $0x3e8] sm:$0xff]
    %v791 = vld [vmem:[#allocation6 + $0x3f0] sm:$0xff]
    %v792 = vld [vmem:[#allocation6 + $0x3f8] sm:$0xff]
    %v793 = vld [vmem:[#allocation6 + $0x400] sm:$0xff]
    %v794 = vld [vmem:[#allocation6 + $0x408] sm:$0xff]
    %v795 = vld [vmem:[#allocation6 + $0x410] sm:$0xff]
    %v796 = vld [vmem:[#allocation6 + $0x418] sm:$0xff]
    %v797 = vld [vmem:[#allocation6 + $0x420] sm:$0xff]
    %v798 = vld [vmem:[#allocation6 + $0x428] sm:$0xff]
    %v799 = vld [vmem:[#allocation6 + $0x430] sm:$0xff]
    %v800 = vld [vmem:[#allocation6 + $0x438] sm:$0xff]
    %v801 = vld [vmem:[#allocation6 + $0x440] sm:$0xff]
    %v802 = vld [vmem:[#allocation6 + $0x448] sm:$0xff]
    %v803 = vld [vmem:[#allocation6 + $0x450] sm:$0xff]
    %v804 = vld [vmem:[#allocation6 + $0x458] sm:$0xff]
    %v805 = vld [vmem:[#allocation6 + $0x460] sm:$0xff]
    %v806 = vld [vmem:[#allocation6 + $0x468] sm:$0xff]
    %v807 = vld [vmem:[#allocation6 + $0x470] sm:$0xff]
    %v808 = vld [vmem:[#allocation6 + $0x478] sm:$0xff]
    %v809 = vld [vmem:[#allocation6 + $0x480] sm:$0xff]
    %v810 = vld [vmem:[#allocation6 + $0x488] sm:$0xff]
    %v811 = vld [vmem:[#allocation6 + $0x490] sm:$0xff]
    %v812 = vld [vmem:[#allocation6 + $0x498] sm:$0xff]
    %v813 = vld [vmem:[#allocation6 + $0x4a0] sm:$0xff]
    %v814 = vld [vmem:[#allocation6 + $0x4a8] sm:$0xff]
    %v815 = vld [vmem:[#allocation6 + $0x4b0] sm:$0xff]
    %v816 = vld [vmem:[#allocation6 + $0x4b8] sm:$0xff]
    %v817 = vld [vmem:[#allocation6 + $0x4c0] sm:$0xff]
    %v818 = vld [vmem:[#allocation6 + $0x4c8] sm:$0xff]
    %v819 = vld [vmem:[#allocation6 + $0x4d0] sm:$0xff]
    %v820 = vld [vmem:[#allocation6 + $0x4d8] sm:$0xff]
    %v821 = vld [vmem:[#allocation6 + $0x4e0] sm:$0xff]
    %v822 = vld [vmem:[#allocation6 + $0x4e8] sm:$0xff]
    %v823 = vld [vmem:[#allocation6 + $0x4f0] sm:$0xff]
    %v824 = vld [vmem:[#allocation6 + $0x4f8] sm:$0xff]
    %v825 = vld [vmem:[#allocation6 + $0x500] sm:$0xff]
    %v826 = vld [vmem:[#allocation6 + $0x508] sm:$0xff]
    %v827 = vld [vmem:[#allocation6 + $0x510] sm:$0xff]
    %v828 = vld [vmem:[#allocation6 + $0x518] sm:$0xff]
    %v829 = vld [vmem:[#allocation6 + $0x520] sm:$0xff]
    %v830 = vld [vmem:[#allocation6 + $0x528] sm:$0xff]
    %v831 = vld [vmem:[#allocation6 + $0x530] sm:$0xff]
    %v832 = vld [vmem:[#allocation6 + $0x538] sm:$0xff]
    %v833 = vld [vmem:[#allocation6 + $0x540] sm:$0xff]
    %v834 = vld [vmem:[#allocation6 + $0x548] sm:$0xff]
    %v835 = vld [vmem:[#allocation6 + $0x550] sm:$0xff]
    %v836 = vld [vmem:[#allocation6 + $0x558] sm:$0xff]
    %v837 = vld [vmem:[#allocation6 + $0x560] sm:$0xff]
    %v838 = vld [vmem:[#allocation6 + $0x568] sm:$0xff]
    %v839 = vld [vmem:[#allocation6 + $0x570] sm:$0xff]
    %v840 = vld [vmem:[#allocation6 + $0x578] sm:$0xff]
    %v841 = vld [vmem:[#allocation6 + $0x580] sm:$0xff]
    %v842 = vld [vmem:[#allocation6 + $0x588] sm:$0xff]
    %v843 = vld [vmem:[#allocation6 + $0x590] sm:$0xff]
    %v844 = vld [vmem:[#allocation6 + $0x598] sm:$0xff]
    %v845 = vld [vmem:[#allocation6 + $0x5a0] sm:$0xff]
    %v846 = vld [vmem:[#allocation6 + $0x5a8] sm:$0xff]
    %v847 = vld [vmem:[#allocation6 + $0x5b0] sm:$0xff]
    %v848 = vld [vmem:[#allocation6 + $0x5b8] sm:$0xff]
    %v849 = vld [vmem:[#allocation6 + $0x5c0] sm:$0xff]
    %v850 = vld [vmem:[#allocation6 + $0x5c8] sm:$0xff]
    %v851 = vld [vmem:[#allocation6 + $0x5d0] sm:$0xff]
    %v852 = vld [vmem:[#allocation6 + $0x5d8] sm:$0xff]
    %v853 = vld [vmem:[#allocation6 + $0x5e0] sm:$0xff]
    %v854 = vld [vmem:[#allocation6 + $0x5e8] sm:$0xff]
    %v855 = vld [vmem:[#allocation6 + $0x5f0] sm:$0xff]
    %v856 = vld [vmem:[#allocation6 + $0x5f8] sm:$0xff]
    %v857 = vld [vmem:[#allocation6 + $0x600] sm:$0xff]
    %v858 = vld [vmem:[#allocation6 + $0x608] sm:$0xff]
    %v859 = vld [vmem:[#allocation6 + $0x610] sm:$0xff]
    %v860 = vld [vmem:[#allocation6 + $0x618] sm:$0xff]
    %v861 = vld [vmem:[#allocation6 + $0x620] sm:$0xff]
    %v862 = vld [vmem:[#allocation6 + $0x628] sm:$0xff]
    %v863 = vld [vmem:[#allocation6 + $0x630] sm:$0xff]
    %v864 = vld [vmem:[#allocation6 + $0x638] sm:$0xff]
    %v865 = vld [vmem:[#allocation6 + $0x640] sm:$0xff]
    %v866 = vld [vmem:[#allocation6 + $0x648] sm:$0xff]
    %v867 = vld [vmem:[#allocation6 + $0x650] sm:$0xff]
    %v868 = vld [vmem:[#allocation6 + $0x658] sm:$0xff]
    %v869 = vld [vmem:[#allocation6 + $0x660] sm:$0xff]
    %v870 = vld [vmem:[#allocation6 + $0x668] sm:$0xff]
    %v871 = vld [vmem:[#allocation6 + $0x670] sm:$0xff]
    %v872 = vld [vmem:[#allocation6 + $0x678] sm:$0xff]
    %v873 = vld [vmem:[#allocation6 + $0x680] sm:$0xff]
    %v874 = vld [vmem:[#allocation6 + $0x688] sm:$0xff]
    %v875 = vld [vmem:[#allocation6 + $0x690] sm:$0xff]
    %v876 = vld [vmem:[#allocation6 + $0x698] sm:$0xff]
    %v877 = vld [vmem:[#allocation6 + $0x6a0] sm:$0xff]
    %v878 = vld [vmem:[#allocation6 + $0x6a8] sm:$0xff]
    %v879 = vld [vmem:[#allocation6 + $0x6b0] sm:$0xff]
    %v880 = vld [vmem:[#allocation6 + $0x6b8] sm:$0xff]
    %v881 = vld [vmem:[#allocation6 + $0x6c0] sm:$0xff]
    %v882 = vld [vmem:[#allocation6 + $0x6c8] sm:$0xff]
    %v883 = vld [vmem:[#allocation6 + $0x6d0] sm:$0xff]
    %v884 = vld [vmem:[#allocation6 + $0x6d8] sm:$0xff]
    %v885 = vld [vmem:[#allocation6 + $0x6e0] sm:$0xff]
    %v886 = vld [vmem:[#allocation6 + $0x6e8] sm:$0xff]
    %v887 = vld [vmem:[#allocation6 + $0x6f0] sm:$0xff]
    %v888 = vld [vmem:[#allocation6 + $0x6f8] sm:$0xff]
    %v889 = vld [vmem:[#allocation6 + $0x700] sm:$0xff]
    %v890 = vld [vmem:[#allocation6 + $0x708] sm:$0xff]
    %v891 = vld [vmem:[#allocation6 + $0x710] sm:$0xff]
    %v892 = vld [vmem:[#allocation6 + $0x718] sm:$0xff]
    %v893 = vld [vmem:[#allocation6 + $0x720] sm:$0xff]
    %v894 = vld [vmem:[#allocation6 + $0x728] sm:$0xff]
    %v895 = vld [vmem:[#allocation6 + $0x730] sm:$0xff]
    %v896 = vld [vmem:[#allocation6 + $0x738] sm:$0xff]
    %v897 = vld [vmem:[#allocation6 + $0x740] sm:$0xff]
    %v898 = vld [vmem:[#allocation6 + $0x748] sm:$0xff]
    %v899 = vld [vmem:[#allocation6 + $0x750] sm:$0xff]
    %v900 = vld [vmem:[#allocation6 + $0x758] sm:$0xff]
    %v901 = vld [vmem:[#allocation6 + $0x760] sm:$0xff]
    %v902 = vld [vmem:[#allocation6 + $0x768] sm:$0xff]
    %v903 = vld [vmem:[#allocation6 + $0x770] sm:$0xff]
    %v904 = vld [vmem:[#allocation6 + $0x778] sm:$0xff]
    %v905 = vld [vmem:[#allocation6 + $0x780] sm:$0xff]
    %v906 = vld [vmem:[#allocation6 + $0x788] sm:$0xff]
    %v907 = vld [vmem:[#allocation6 + $0x790] sm:$0xff]
    %v908 = vld [vmem:[#allocation6 + $0x798] sm:$0xff]
    %v909 = vld [vmem:[#allocation6 + $0x7a0] sm:$0xff]
    %v910 = vld [vmem:[#allocation6 + $0x7a8] sm:$0xff]
    %v911 = vld [vmem:[#allocation6 + $0x7b0] sm:$0xff]
    %v912 = vld [vmem:[#allocation6 + $0x7b8] sm:$0xff]
    %v913 = vld [vmem:[#allocation6 + $0x7c0] sm:$0xff]
    %v914 = vld [vmem:[#allocation6 + $0x7c8] sm:$0xff]
    %v915 = vld [vmem:[#allocation6 + $0x7d0] sm:$0xff]
    %v916 = vld [vmem:[#allocation6 + $0x7d8] sm:$0xff]
    %v917 = vld [vmem:[#allocation6 + $0x7e0] sm:$0xff]
    %v918 = vld [vmem:[#allocation6 + $0x7e8] sm:$0xff]
    %v919 = vld [vmem:[#allocation6 + $0x7f0] sm:$0xff]
    %v920 = vld [vmem:[#allocation6 + $0x7f8] sm:$0xff]
    %v921 = vld [vmem:[#allocation6 + $0x800] sm:$0xff]
    %v922 = vld [vmem:[#allocation6 + $0x808] sm:$0xff]
    %v923 = vld [vmem:[#allocation6 + $0x810] sm:$0xff]
    %v924 = vld [vmem:[#allocation6 + $0x818] sm:$0xff]
    %v925 = vld [vmem:[#allocation6 + $0x820] sm:$0xff]
    %v926 = vld [vmem:[#allocation6 + $0x828] sm:$0xff]
    %v927 = vld [vmem:[#allocation6 + $0x830] sm:$0xff]
    %v928 = vld [vmem:[#allocation6 + $0x838] sm:$0xff]
    %v929 = vld [vmem:[#allocation6 + $0x840] sm:$0xff]
    %v930 = vld [vmem:[#allocation6 + $0x848] sm:$0xff]
    %v931 = vld [vmem:[#allocation6 + $0x850] sm:$0xff]
    %v932 = vld [vmem:[#allocation6 + $0x858] sm:$0xff]
    %v933 = vld [vmem:[#allocation6 + $0x860] sm:$0xff]
    %v934 = vld [vmem:[#allocation6 + $0x868] sm:$0xff]
    %v935 = vld [vmem:[#allocation6 + $0x870] sm:$0xff]
    %v936 = vld [vmem:[#allocation6 + $0x878] sm:$0xff]
    %v937 = vld [vmem:[#allocation6 + $0x880] sm:$0xff]
    %v938 = vld [vmem:[#allocation6 + $0x888] sm:$0xff]
    %v939 = vld [vmem:[#allocation6 + $0x890] sm:$0xff]
    %v940 = vld [vmem:[#allocation6 + $0x898] sm:$0xff]
    %v941 = vld [vmem:[#allocation6 + $0x8a0] sm:$0xff]
    %v942 = vld [vmem:[#allocation6 + $0x8a8] sm:$0xff]
    %v943 = vld [vmem:[#allocation6 + $0x8b0] sm:$0xff]
    %v944 = vld [vmem:[#allocation6 + $0x8b8] sm:$0xff]
    %v945 = vld [vmem:[#allocation6 + $0x8c0] sm:$0xff]
    %v946 = vld [vmem:[#allocation6 + $0x8c8] sm:$0xff]
    %v947 = vld [vmem:[#allocation6 + $0x8d0] sm:$0xff]
    %v948 = vld [vmem:[#allocation6 + $0x8d8] sm:$0xff]
    %v949 = vld [vmem:[#allocation6 + $0x8e0] sm:$0xff]
    %v950 = vld [vmem:[#allocation6 + $0x8e8] sm:$0xff]
    %v951 = vld [vmem:[#allocation6 + $0x8f0] sm:$0xff]
    %v952 = vld [vmem:[#allocation6 + $0x8f8] sm:$0xff]
    %v953 = vld [vmem:[#allocation6 + $0x900] sm:$0xff]
    %v954 = vld [vmem:[#allocation6 + $0x908] sm:$0xff]
    %v955 = vld [vmem:[#allocation6 + $0x910] sm:$0xff]
    %v956 = vld [vmem:[#allocation6 + $0x918] sm:$0xff]
    %v957 = vld [vmem:[#allocation6 + $0x920] sm:$0xff]
    %v958 = vld [vmem:[#allocation6 + $0x928] sm:$0xff]
    %v959 = vld [vmem:[#allocation6 + $0x930] sm:$0xff]
    %v960 = vld [vmem:[#allocation6 + $0x938] sm:$0xff]
    %v961 = vld [vmem:[#allocation6 + $0x940] sm:$0xff]
    %v962 = vld [vmem:[#allocation6 + $0x948] sm:$0xff]
    %v963 = vld [vmem:[#allocation6 + $0x950] sm:$0xff]
    %v964 = vld [vmem:[#allocation6 + $0x958] sm:$0xff]
    %v965 = vld [vmem:[#allocation6 + $0x960] sm:$0xff]
    %v966 = vld [vmem:[#allocation6 + $0x968] sm:$0xff]
    %v967 = vld [vmem:[#allocation6 + $0x970] sm:$0xff]
    %v968 = vld [vmem:[#allocation6 + $0x978] sm:$0xff]
    %v969 = vld [vmem:[#allocation6 + $0x980] sm:$0xff]
    %v970 = vld [vmem:[#allocation6 + $0x988] sm:$0xff]
    %v971 = vld [vmem:[#allocation6 + $0x990] sm:$0xff]
    %v972 = vld [vmem:[#allocation6 + $0x998] sm:$0xff]
    %v973 = vld [vmem:[#allocation6 + $0x9a0] sm:$0xff]
    %v974 = vld [vmem:[#allocation6 + $0x9a8] sm:$0xff]
    %v975 = vld [vmem:[#allocation6 + $0x9b0] sm:$0xff]
    %v976 = vld [vmem:[#allocation6 + $0x9b8] sm:$0xff]
    %v977 = vld [vmem:[#allocation6 + $0x9c0] sm:$0xff]
    %v978 = vld [vmem:[#allocation6 + $0x9c8] sm:$0xff]
    %v979 = vld [vmem:[#allocation6 + $0x9d0] sm:$0xff]
    %v980 = vld [vmem:[#allocation6 + $0x9d8] sm:$0xff]
    %v981 = vld [vmem:[#allocation6 + $0x9e0] sm:$0xff]
    %v982 = vld [vmem:[#allocation6 + $0x9e8] sm:$0xff]
    %v983 = vld [vmem:[#allocation6 + $0x9f0] sm:$0xff]
    %v984 = vld [vmem:[#allocation6 + $0x9f8] sm:$0xff]
    %v985 = vld [vmem:[#allocation6 + $0xa00] sm:$0xff]
    %v986 = vld [vmem:[#allocation6 + $0xa08] sm:$0xff]
    %v987 = vld [vmem:[#allocation6 + $0xa10] sm:$0xff]
    %v988 = vld [vmem:[#allocation6 + $0xa18] sm:$0xff]
    %v989 = vld [vmem:[#allocation6 + $0xa20] sm:$0xff]
    %v990 = vld [vmem:[#allocation6 + $0xa28] sm:$0xff]
    %v991 = vld [vmem:[#allocation6 + $0xa30] sm:$0xff]
    %v992 = vld [vmem:[#allocation6 + $0xa38] sm:$0xff]
    %v993 = vld [vmem:[#allocation6 + $0xa40] sm:$0xff]
    %v994 = vld [vmem:[#allocation6 + $0xa48] sm:$0xff]
    %v995 = vld [vmem:[#allocation6 + $0xa50] sm:$0xff]
    %v996 = vld [vmem:[#allocation6 + $0xa58] sm:$0xff]
    %v997 = vld [vmem:[#allocation6 + $0xa60] sm:$0xff]
    %v998 = vld [vmem:[#allocation6 + $0xa68] sm:$0xff]
    %v999 = vld [vmem:[#allocation6 + $0xa70] sm:$0xff]
    %v1000 = vld [vmem:[#allocation6 + $0xa78] sm:$0xff]
    %v1001 = vld [vmem:[#allocation6 + $0xa80] sm:$0xff]
    %v1002 = vld [vmem:[#allocation6 + $0xa88] sm:$0xff]
    %v1003 = vld [vmem:[#allocation6 + $0xa90] sm:$0xff]
    %v1004 = vld [vmem:[#allocation6 + $0xa98] sm:$0xff]
    %v1005 = vld [vmem:[#allocation6 + $0xaa0] sm:$0xff]
    %v1006 = vld [vmem:[#allocation6 + $0xaa8] sm:$0xff]
    %v1007 = vld [vmem:[#allocation6 + $0xab0] sm:$0xff]
    %v1008 = vld [vmem:[#allocation6 + $0xab8] sm:$0xff]
    %v1009 = vld [vmem:[#allocation6 + $0xac0] sm:$0xff]
    %v1010 = vld [vmem:[#allocation6 + $0xac8] sm:$0xff]
    %v1011 = vld [vmem:[#allocation6 + $0xad0] sm:$0xff]
    %v1012 = vld [vmem:[#allocation6 + $0xad8] sm:$0xff]
    %v1013 = vld [vmem:[#allocation6 + $0xae0] sm:$0xff]
    %v1014 = vld [vmem:[#allocation6 + $0xae8] sm:$0xff]
    %v1015 = vld [vmem:[#allocation6 + $0xaf0] sm:$0xff]
    %v1016 = vld [vmem:[#allocation6 + $0xaf8] sm:$0xff]
    %v1017 = vld [vmem:[#allocation6 + $0xb00] sm:$0xff]
    %v1018 = vld [vmem:[#allocation6 + $0xb08] sm:$0xff]
    %v1019 = vld [vmem:[#allocation6 + $0xb10] sm:$0xff]
    %v1020 = vld [vmem:[#allocation6 + $0xb18] sm:$0xff]
    %v1021 = vld [vmem:[#allocation6 + $0xb20] sm:$0xff]
    %v1022 = vld [vmem:[#allocation6 + $0xb28] sm:$0xff]
    %v1023 = vld [vmem:[#allocation6 + $0xb30] sm:$0xff]
    %v1024 = vld [vmem:[#allocation6 + $0xb38] sm:$0xff]
    %v1025 = vld [vmem:[#allocation6 + $0xb40] sm:$0xff]
    %v1026 = vld [vmem:[#allocation6 + $0xb48] sm:$0xff]
    %v1027 = vld [vmem:[#allocation6 + $0xb50] sm:$0xff]
    %v1028 = vld [vmem:[#allocation6 + $0xb58] sm:$0xff]
    %v1029 = vld [vmem:[#allocation6 + $0xb60] sm:$0xff]
    %v1030 = vld [vmem:[#allocation6 + $0xb68] sm:$0xff]
    %v1031 = vld [vmem:[#allocation6 + $0xb70] sm:$0xff]
    %v1032 = vld [vmem:[#allocation6 + $0xb78] sm:$0xff]
    %v1033 = vld [vmem:[#allocation6 + $0xb80] sm:$0xff]
    %v1034 = vld [vmem:[#allocation6 + $0xb88] sm:$0xff]
    %v1035 = vld [vmem:[#allocation6 + $0xb90] sm:$0xff]
    %v1036 = vld [vmem:[#allocation6 + $0xb98] sm:$0xff]
    %v1037 = vld [vmem:[#allocation6 + $0xba0] sm:$0xff]
    %v1038 = vld [vmem:[#allocation6 + $0xba8] sm:$0xff]
    %v1039 = vld [vmem:[#allocation6 + $0xbb0] sm:$0xff]
    %v1040 = vld [vmem:[#allocation6 + $0xbb8] sm:$0xff]
    %v1041 = vld [vmem:[#allocation6 + $0xbc0] sm:$0xff]
    %v1042 = vld [vmem:[#allocation6 + $0xbc8] sm:$0xff]
    %v1043 = vld [vmem:[#allocation6 + $0xbd0] sm:$0xff]
    %v1044 = vld [vmem:[#allocation6 + $0xbd8] sm:$0xff]
    %v1045 = vld [vmem:[#allocation6 + $0xbe0] sm:$0xff]
    %v1046 = vld [vmem:[#allocation6 + $0xbe8] sm:$0xff]
    %v1047 = vld [vmem:[#allocation6 + $0xbf0] sm:$0xff]
    %v1048 = vld [vmem:[#allocation6 + $0xbf8] sm:$0xff]
    %v1049 = vld [vmem:[#allocation6 + $0xc00] sm:$0xff]
    %v1050 = vld [vmem:[#allocation6 + $0xc08] sm:$0xff]
    %v1051 = vld [vmem:[#allocation6 + $0xc10] sm:$0xff]
    %v1052 = vld [vmem:[#allocation6 + $0xc18] sm:$0xff]
    %v1053 = vld [vmem:[#allocation6 + $0xc20] sm:$0xff]
    %v1054 = vld [vmem:[#allocation6 + $0xc28] sm:$0xff]
    %v1055 = vld [vmem:[#allocation6 + $0xc30] sm:$0xff]
    %v1056 = vld [vmem:[#allocation6 + $0xc38] sm:$0xff]
    %v1057 = vld [vmem:[#allocation6 + $0xc40] sm:$0xff]
    %v1058 = vld [vmem:[#allocation6 + $0xc48] sm:$0xff]
    %v1059 = vld [vmem:[#allocation6 + $0xc50] sm:$0xff]
    %v1060 = vld [vmem:[#allocation6 + $0xc58] sm:$0xff]
    %v1061 = vld [vmem:[#allocation6 + $0xc60] sm:$0xff]
    %v1062 = vld [vmem:[#allocation6 + $0xc68] sm:$0xff]
    %v1063 = vld [vmem:[#allocation6 + $0xc70] sm:$0xff]
    %v1064 = vld [vmem:[#allocation6 + $0xc78] sm:$0xff]
    %v1065 = vld [vmem:[#allocation6 + $0xc80] sm:$0xff]
    %v1066 = vld [vmem:[#allocation6 + $0xc88] sm:$0xff]
    %v1067 = vld [vmem:[#allocation6 + $0xc90] sm:$0xff]
    %v1068 = vld [vmem:[#allocation6 + $0xc98] sm:$0xff]
    %v1069 = vld [vmem:[#allocation6 + $0xca0] sm:$0xff]
    %v1070 = vld [vmem:[#allocation6 + $0xca8] sm:$0xff]
    %v1071 = vld [vmem:[#allocation6 + $0xcb0] sm:$0xff]
    %v1072 = vld [vmem:[#allocation6 + $0xcb8] sm:$0xff]
    %v1073 = vld [vmem:[#allocation6 + $0xcc0] sm:$0xff]
    %v1074 = vld [vmem:[#allocation6 + $0xcc8] sm:$0xff]
    %v1075 = vld [vmem:[#allocation6 + $0xcd0] sm:$0xff]
    %v1076 = vld [vmem:[#allocation6 + $0xcd8] sm:$0xff]
    %v1077 = vld [vmem:[#allocation6 + $0xce0] sm:$0xff]
    %v1078 = vld [vmem:[#allocation6 + $0xce8] sm:$0xff]
    %v1079 = vld [vmem:[#allocation6 + $0xcf0] sm:$0xff]
    %v1080 = vld [vmem:[#allocation6 + $0xcf8] sm:$0xff]
    %v1081 = vld [vmem:[#allocation6 + $0xd00] sm:$0xff]
    %v1082 = vld [vmem:[#allocation6 + $0xd08] sm:$0xff]
    %v1083 = vld [vmem:[#allocation6 + $0xd10] sm:$0xff]
    %v1084 = vld [vmem:[#allocation6 + $0xd18] sm:$0xff]
    %v1085 = vld [vmem:[#allocation6 + $0xd20] sm:$0xff]
    %v1086 = vld [vmem:[#allocation6 + $0xd28] sm:$0xff]
    %v1087 = vld [vmem:[#allocation6 + $0xd30] sm:$0xff]
    %v1088 = vld [vmem:[#allocation6 + $0xd38] sm:$0xff]
    %v1089 = vld [vmem:[#allocation6 + $0xd40] sm:$0xff]
    %v1090 = vld [vmem:[#allocation6 + $0xd48] sm:$0xff]
    %v1091 = vld [vmem:[#allocation6 + $0xd50] sm:$0xff]
    %v1092 = vld [vmem:[#allocation6 + $0xd58] sm:$0xff]
    %v1093 = vld [vmem:[#allocation6 + $0xd60] sm:$0xff]
    %v1094 = vld [vmem:[#allocation6 + $0xd68] sm:$0xff]
    %v1095 = vld [vmem:[#allocation6 + $0xd70] sm:$0xff]
    %v1096 = vld [vmem:[#allocation6 + $0xd78] sm:$0xff]
    %v1097 = vld [vmem:[#allocation6 + $0xd80] sm:$0xff]
    %v1098 = vld [vmem:[#allocation6 + $0xd88] sm:$0xff]
    %v1099 = vld [vmem:[#allocation6 + $0xd90] sm:$0xff]
    %v1100 = vld [vmem:[#allocation6 + $0xd98] sm:$0xff]
    %v1101 = vld [vmem:[#allocation6 + $0xda0] sm:$0xff]
    %v1102 = vld [vmem:[#allocation6 + $0xda8] sm:$0xff]
    %v1103 = vld [vmem:[#allocation6 + $0xdb0] sm:$0xff]
    %v1104 = vld [vmem:[#allocation6 + $0xdb8] sm:$0xff]
    %v1105 = vld [vmem:[#allocation6 + $0xdc0] sm:$0xff]
    %v1106 = vld [vmem:[#allocation6 + $0xdc8] sm:$0xff]
    %v1107 = vld [vmem:[#allocation6 + $0xdd0] sm:$0xff]
    %v1108 = vld [vmem:[#allocation6 + $0xdd8] sm:$0xff]
    %v1109 = vld [vmem:[#allocation6 + $0xde0] sm:$0xff]
    %v1110 = vld [vmem:[#allocation6 + $0xde8] sm:$0xff]
    %v1111 = vld [vmem:[#allocation6 + $0xdf0] sm:$0xff]
    %v1112 = vld [vmem:[#allocation6 + $0xdf8] sm:$0xff]
    %v1113 = vld [vmem:[#allocation6 + $0xe00] sm:$0xff]
    %v1114 = vld [vmem:[#allocation6 + $0xe08] sm:$0xff]
    %v1115 = vld [vmem:[#allocation6 + $0xe10] sm:$0xff]
    %v1116 = vld [vmem:[#allocation6 + $0xe18] sm:$0xff]
    %v1117 = vld [vmem:[#allocation6 + $0xe20] sm:$0xff]
    %v1118 = vld [vmem:[#allocation6 + $0xe28] sm:$0xff]
    %v1119 = vld [vmem:[#allocation6 + $0xe30] sm:$0xff]
    %v1120 = vld [vmem:[#allocation6 + $0xe38] sm:$0xff]
    %v1121 = vld [vmem:[#allocation6 + $0xe40] sm:$0xff]
    %v1122 = vld [vmem:[#allocation6 + $0xe48] sm:$0xff]
    %v1123 = vld [vmem:[#allocation6 + $0xe50] sm:$0xff]
    %v1124 = vld [vmem:[#allocation6 + $0xe58] sm:$0xff]
    %v1125 = vld [vmem:[#allocation6 + $0xe60] sm:$0xff]
    %v1126 = vld [vmem:[#allocation6 + $0xe68] sm:$0xff]
    %v1127 = vld [vmem:[#allocation6 + $0xe70] sm:$0xff]
    %v1128 = vld [vmem:[#allocation6 + $0xe78] sm:$0xff]
    %v1129 = vld [vmem:[#allocation6 + $0xe80] sm:$0xff]
    %v1130 = vld [vmem:[#allocation6 + $0xe88] sm:$0xff]
    %v1131 = vld [vmem:[#allocation6 + $0xe90] sm:$0xff]
    %v1132 = vld [vmem:[#allocation6 + $0xe98] sm:$0xff]
    %v1133 = vld [vmem:[#allocation6 + $0xea0] sm:$0xff]
    %v1134 = vld [vmem:[#allocation6 + $0xea8] sm:$0xff]
    %v1135 = vld [vmem:[#allocation6 + $0xeb0] sm:$0xff]
    %v1136 = vld [vmem:[#allocation6 + $0xeb8] sm:$0xff]
    %v1137 = vld [vmem:[#allocation6 + $0xec0] sm:$0xff]
    %v1138 = vld [vmem:[#allocation6 + $0xec8] sm:$0xff]
    %v1139 = vld [vmem:[#allocation6 + $0xed0] sm:$0xff]
    %v1140 = vld [vmem:[#allocation6 + $0xed8] sm:$0xff]
    %v1141 = vld [vmem:[#allocation6 + $0xee0] sm:$0xff]
    %v1142 = vld [vmem:[#allocation6 + $0xee8] sm:$0xff]
    %v1143 = vld [vmem:[#allocation6 + $0xef0] sm:$0xff]
    %v1144 = vld [vmem:[#allocation6 + $0xef8] sm:$0xff]
    %v1145 = vld [vmem:[#allocation6 + $0xf00] sm:$0xff]
    %v1146 = vld [vmem:[#allocation6 + $0xf08] sm:$0xff]
    %v1147 = vld [vmem:[#allocation6 + $0xf10] sm:$0xff]
    %v1148 = vld [vmem:[#allocation6 + $0xf18] sm:$0xff]
    %v1149 = vld [vmem:[#allocation6 + $0xf20] sm:$0xff]
    %v1150 = vld [vmem:[#allocation6 + $0xf28] sm:$0xff]
    %v1151 = vld [vmem:[#allocation6 + $0xf30] sm:$0xff]
    %v1152 = vld [vmem:[#allocation6 + $0xf38] sm:$0xff]
    %v1153 = vld [vmem:[#allocation6 + $0xf40] sm:$0xff]
    %v1154 = vld [vmem:[#allocation6 + $0xf48] sm:$0xff]
    %v1155 = vld [vmem:[#allocation6 + $0xf50] sm:$0xff]
    %v1156 = vld [vmem:[#allocation6 + $0xf58] sm:$0xff]
    %v1157 = vld [vmem:[#allocation6 + $0xf60] sm:$0xff]
    %v1158 = vld [vmem:[#allocation6 + $0xf68] sm:$0xff]
    %v1159 = vld [vmem:[#allocation6 + $0xf70] sm:$0xff]
    %v1160 = vld [vmem:[#allocation6 + $0xf78] sm:$0xff]
    %v1161 = vld [vmem:[#allocation6 + $0xf80] sm:$0xff]
    %v1162 = vld [vmem:[#allocation6 + $0xf88] sm:$0xff]
    %v1163 = vld [vmem:[#allocation6 + $0xf90] sm:$0xff]
    %v1164 = vld [vmem:[#allocation6 + $0xf98] sm:$0xff]
    %v1165 = vld [vmem:[#allocation6 + $0xfa0] sm:$0xff]
    %v1166 = vld [vmem:[#allocation6 + $0xfa8] sm:$0xff]
    %v1167 = vld [vmem:[#allocation6 + $0xfb0] sm:$0xff]
    %v1168 = vld [vmem:[#allocation6 + $0xfb8] sm:$0xff]
    %v1169 = vld [vmem:[#allocation6 + $0xfc0] sm:$0xff]
    %v1170 = vld [vmem:[#allocation6 + $0xfc8] sm:$0xff]
    %v1171 = vld [vmem:[#allocation6 + $0xfd0] sm:$0xff]
    %v1172 = vld [vmem:[#allocation6 + $0xfd8] sm:$0xff]
    %v1173 = vld [vmem:[#allocation6 + $0xfe0] sm:$0xff]
    %v1174 = vld [vmem:[#allocation6 + $0xfe8] sm:$0xff]
    %v1175 = vld [vmem:[#allocation6 + $0xff0] sm:$0xff]
    %v1176 = vld [vmem:[#allocation6 + $0xff8] sm:$0xff]
    %v1177 = vsub.f32 %v153, %v665
    %v1178 = vsub.f32 %v154, %v666
    %v1179 = vsub.f32 %v155, %v667
    %v1180 = vsub.f32 %v156, %v668
    %v1181 = vsub.f32 %v157, %v669
    %v1182 = vsub.f32 %v158, %v670
    %v1183 = vsub.f32 %v159, %v671
    %v1184 = vsub.f32 %v160, %v672
    %v1185 = vsub.f32 %v161, %v673
    %v1186 = vsub.f32 %v162, %v674
    %v1187 = vsub.f32 %v163, %v675
    %v1188 = vsub.f32 %v164, %v676
    %v1189 = vsub.f32 %v165, %v677
    %v1190 = vsub.f32 %v166, %v678
    %v1191 = vsub.f32 %v167, %v679
    %v1192 = vsub.f32 %v168, %v680
    %v1193 = vsub.f32 %v169, %v681
    %v1194 = vsub.f32 %v170, %v682
    %v1195 = vsub.f32 %v171, %v683
    %v1196 = vsub.f32 %v172, %v684
    %v1197 = vsub.f32 %v173, %v685
    %v1198 = vsub.f32 %v174, %v686
    %v1199 = vsub.f32 %v175, %v687
    %v1200 = vsub.f32 %v176, %v688
    %v1201 = vsub.f32 %v177, %v689
    %v1202 = vsub.f32 %v178, %v690
    %v1203 = vsub.f32 %v179, %v691
    %v1204 = vsub.f32 %v180, %v692
    %v1205 = vsub.f32 %v181, %v693
    %v1206 = vsub.f32 %v182, %v694
    %v1207 = vsub.f32 %v183, %v695
    %v1208 = vsub.f32 %v184, %v696
    %v1209 = vsub.f32 %v185, %v697
    %v1210 = vsub.f32 %v186, %v698
    %v1211 = vsub.f32 %v187, %v699
    %v1212 = vsub.f32 %v188, %v700
    %v1213 = vsub.f32 %v189, %v701
    %v1214 = vsub.f32 %v190, %v702
    %v1215 = vsub.f32 %v191, %v703
    %v1216 = vsub.f32 %v192, %v704
    %v1217 = vsub.f32 %v193, %v705
    %v1218 = vsub.f32 %v194, %v706
    %v1219 = vsub.f32 %v195, %v707
    %v1220 = vsub.f32 %v196, %v708
    %v1221 = vsub.f32 %v197, %v709
    %v1222 = vsub.f32 %v198, %v710
    %v1223 = vsub.f32 %v199, %v711
    %v1224 = vsub.f32 %v200, %v712
    %v1225 = vsub.f32 %v201, %v713
    %v1226 = vsub.f32 %v202, %v714
    %v1227 = vsub.f32 %v203, %v715
    %v1228 = vsub.f32 %v204, %v716
    %v1229 = vsub.f32 %v205, %v717
    %v1230 = vsub.f32 %v206, %v718
    %v1231 = vsub.f32 %v207, %v719
    %v1232 = vsub.f32 %v208, %v720
    %v1233 = vsub.f32 %v209, %v721
    %v1234 = vsub.f32 %v210, %v722
    %v1235 = vsub.f32 %v211, %v723
    %v1236 = vsub.f32 %v212, %v724
    %v1237 = vsub.f32 %v213, %v725
    %v1238 = vsub.f32 %v214, %v726
    %v1239 = vsub.f32 %v215, %v727
    %v1240 = vsub.f32 %v216, %v728
    %v1241 = vsub.f32 %v217, %v729
    %v1242 = vsub.f32 %v218, %v730
    %v1243 = vsub.f32 %v219, %v731
    %v1244 = vsub.f32 %v220, %v732
    %v1245 = vsub.f32 %v221, %v733
    %v1246 = vsub.f32 %v222, %v734
    %v1247 = vsub.f32 %v223, %v735
    %v1248 = vsub.f32 %v224, %v736
    %v1249 = vsub.f32 %v225, %v737
    %v1250 = vsub.f32 %v226, %v738
    %v1251 = vsub.f32 %v227, %v739
    %v1252 = vsub.f32 %v228, %v740
    %v1253 = vsub.f32 %v229, %v741
    %v1254 = vsub.f32 %v230, %v742
    %v1255 = vsub.f32 %v231, %v743
    %v1256 = vsub.f32 %v232, %v744
    %v1257 = vsub.f32 %v233, %v745
    %v1258 = vsub.f32 %v234, %v746
    %v1259 = vsub.f32 %v235, %v747
    %v1260 = vsub.f32 %v236, %v748
    %v1261 = vsub.f32 %v237, %v749
    %v1262 = vsub.f32 %v238, %v750
    %v1263 = vsub.f32 %v239, %v751
    %v1264 = vsub.f32 %v240, %v752
    %v1265 = vsub.f32 %v241, %v753
    %v1266 = vsub.f32 %v242, %v754
    %v1267 = vsub.f32 %v243, %v755
    %v1268 = vsub.f32 %v244, %v756
    %v1269 = vsub.f32 %v245, %v757
    %v1270 = vsub.f32 %v246, %v758
    %v1271 = vsub.f32 %v247, %v759
    %v1272 = vsub.f32 %v248, %v760
    %v1273 = vsub.f32 %v249, %v761
    %v1274 = vsub.f32 %v250, %v762
    %v1275 = vsub.f32 %v251, %v763
    %v1276 = vsub.f32 %v252, %v764
    %v1277 = vsub.f32 %v253, %v765
    %v1278 = vsub.f32 %v254, %v766
    %v1279 = vsub.f32 %v255, %v767
    %v1280 = vsub.f32 %v256, %v768
    %v1281 = vsub.f32 %v257, %v769
    %v1282 = vsub.f32 %v258, %v770
    %v1283 = vsub.f32 %v259, %v771
    %v1284 = vsub.f32 %v260, %v772
    %v1285 = vsub.f32 %v261, %v773
    %v1286 = vsub.f32 %v262, %v774
    %v1287 = vsub.f32 %v263, %v775
    %v1288 = vsub.f32 %v264, %v776
    %v1289 = vsub.f32 %v265, %v777
    %v1290 = vsub.f32 %v266, %v778
    %v1291 = vsub.f32 %v267, %v779
    %v1292 = vsub.f32 %v268, %v780
    %v1293 = vsub.f32 %v269, %v781
    %v1294 = vsub.f32 %v270, %v782
    %v1295 = vsub.f32 %v271, %v783
    %v1296 = vsub.f32 %v272, %v784
    %v1297 = vsub.f32 %v273, %v785
    %v1298 = vsub.f32 %v274, %v786
    %v1299 = vsub.f32 %v275, %v787
    %v1300 = vsub.f32 %v276, %v788
    %v1301 = vsub.f32 %v277, %v789
    %v1302 = vsub.f32 %v278, %v790
    %v1303 = vsub.f32 %v279, %v791
    %v1304 = vsub.f32 %v280, %v792
    %v1305 = vsub.f32 %v281, %v793
    %v1306 = vsub.f32 %v282, %v794
    %v1307 = vsub.f32 %v283, %v795
    %v1308 = vsub.f32 %v284, %v796
    %v1309 = vsub.f32 %v285, %v797
    %v1310 = vsub.f32 %v286, %v798
    %v1311 = vsub.f32 %v287, %v799
    %v1312 = vsub.f32 %v288, %v800
    %v1313 = vsub.f32 %v289, %v801
    %v1314 = vsub.f32 %v290, %v802
    %v1315 = vsub.f32 %v291, %v803
    %v1316 = vsub.f32 %v292, %v804
    %v1317 = vsub.f32 %v293, %v805
    %v1318 = vsub.f32 %v294, %v806
    %v1319 = vsub.f32 %v295, %v807
    %v1320 = vsub.f32 %v296, %v808
    %v1321 = vsub.f32 %v297, %v809
    %v1322 = vsub.f32 %v298, %v810
    %v1323 = vsub.f32 %v299, %v811
    %v1324 = vsub.f32 %v300, %v812
    %v1325 = vsub.f32 %v301, %v813
    %v1326 = vsub.f32 %v302, %v814
    %v1327 = vsub.f32 %v303, %v815
    %v1328 = vsub.f32 %v304, %v816
    %v1329 = vsub.f32 %v305, %v817
    %v1330 = vsub.f32 %v306, %v818
    %v1331 = vsub.f32 %v307, %v819
    %v1332 = vsub.f32 %v308, %v820
    %v1333 = vsub.f32 %v309, %v821
    %v1334 = vsub.f32 %v310, %v822
    %v1335 = vsub.f32 %v311, %v823
    %v1336 = vsub.f32 %v312, %v824
    %v1337 = vsub.f32 %v313, %v825
    %v1338 = vsub.f32 %v314, %v826
    %v1339 = vsub.f32 %v315, %v827
    %v1340 = vsub.f32 %v316, %v828
    %v1341 = vsub.f32 %v317, %v829
    %v1342 = vsub.f32 %v318, %v830
    %v1343 = vsub.f32 %v319, %v831
    %v1344 = vsub.f32 %v320, %v832
    %v1345 = vsub.f32 %v321, %v833
    %v1346 = vsub.f32 %v322, %v834
    %v1347 = vsub.f32 %v323, %v835
    %v1348 = vsub.f32 %v324, %v836
    %v1349 = vsub.f32 %v325, %v837
    %v1350 = vsub.f32 %v326, %v838
    %v1351 = vsub.f32 %v327, %v839
    %v1352 = vsub.f32 %v328, %v840
    %v1353 = vsub.f32 %v329, %v841
    %v1354 = vsub.f32 %v330, %v842
    %v1355 = vsub.f32 %v331, %v843
    %v1356 = vsub.f32 %v332, %v844
    %v1357 = vsub.f32 %v333, %v845
    %v1358 = vsub.f32 %v334, %v846
    %v1359 = vsub.f32 %v335, %v847
    %v1360 = vsub.f32 %v336, %v848
    %v1361 = vsub.f32 %v337, %v849
    %v1362 = vsub.f32 %v338, %v850
    %v1363 = vsub.f32 %v339, %v851
    %v1364 = vsub.f32 %v340, %v852
    %v1365 = vsub.f32 %v341, %v853
    %v1366 = vsub.f32 %v342, %v854
    %v1367 = vsub.f32 %v343, %v855
    %v1368 = vsub.f32 %v344, %v856
    %v1369 = vsub.f32 %v345, %v857
    %v1370 = vsub.f32 %v346, %v858
    %v1371 = vsub.f32 %v347, %v859
    %v1372 = vsub.f32 %v348, %v860
    %v1373 = vsub.f32 %v349, %v861
    %v1374 = vsub.f32 %v350, %v862
    %v1375 = vsub.f32 %v351, %v863
    %v1376 = vsub.f32 %v352, %v864
    %v1377 = vsub.f32 %v353, %v865
    %v1378 = vsub.f32 %v354, %v866
    %v1379 = vsub.f32 %v355, %v867
    %v1380 = vsub.f32 %v356, %v868
    %v1381 = vsub.f32 %v357, %v869
    %v1382 = vsub.f32 %v358, %v870
    %v1383 = vsub.f32 %v359, %v871
    %v1384 = vsub.f32 %v360, %v872
    %v1385 = vsub.f32 %v361, %v873
    %v1386 = vsub.f32 %v362, %v874
    %v1387 = vsub.f32 %v363, %v875
    %v1388 = vsub.f32 %v364, %v876
    %v1389 = vsub.f32 %v365, %v877
    %v1390 = vsub.f32 %v366, %v878
    %v1391 = vsub.f32 %v367, %v879
    %v1392 = vsub.f32 %v368, %v880
    %v1393 = vsub.f32 %v369, %v881
    %v1394 = vsub.f32 %v370, %v882
    %v1395 = vsub.f32 %v371, %v883
    %v1396 = vsub.f32 %v372, %v884
    %v1397 = vsub.f32 %v373, %v885
    %v1398 = vsub.f32 %v374, %v886
    %v1399 = vsub.f32 %v375, %v887
    %v1400 = vsub.f32 %v376, %v888
    %v1401 = vsub.f32 %v377, %v889
    %v1402 = vsub.f32 %v378, %v890
    %v1403 = vsub.f32 %v379, %v891
    %v1404 = vsub.f32 %v380, %v892
    %v1405 = vsub.f32 %v381, %v893
    %v1406 = vsub.f32 %v382, %v894
    %v1407 = vsub.f32 %v383, %v895
    %v1408 = vsub.f32 %v384, %v896
    %v1409 = vsub.f32 %v385, %v897
    %v1410 = vsub.f32 %v386, %v898
    %v1411 = vsub.f32 %v387, %v899
    %v1412 = vsub.f32 %v388, %v900
    %v1413 = vsub.f32 %v389, %v901
    %v1414 = vsub.f32 %v390, %v902
    %v1415 = vsub.f32 %v391, %v903
    %v1416 = vsub.f32 %v392, %v904
    %v1417 = vsub.f32 %v393, %v905
    %v1418 = vsub.f32 %v394, %v906
    %v1419 = vsub.f32 %v395, %v907
    %v1420 = vsub.f32 %v396, %v908
    %v1421 = vsub.f32 %v397, %v909
    %v1422 = vsub.f32 %v398, %v910
    %v1423 = vsub.f32 %v399, %v911
    %v1424 = vsub.f32 %v400, %v912
    %v1425 = vsub.f32 %v401, %v913
    %v1426 = vsub.f32 %v402, %v914
    %v1427 = vsub.f32 %v403, %v915
    %v1428 = vsub.f32 %v404, %v916
    %v1429 = vsub.f32 %v405, %v917
    %v1430 = vsub.f32 %v406, %v918
    %v1431 = vsub.f32 %v407, %v919
    %v1432 = vsub.f32 %v408, %v920
    %v1433 = vsub.f32 %v409, %v921
    %v1434 = vsub.f32 %v410, %v922
    %v1435 = vsub.f32 %v411, %v923
    %v1436 = vsub.f32 %v412, %v924
    %v1437 = vsub.f32 %v413, %v925
    %v1438 = vsub.f32 %v414, %v926
    %v1439 = vsub.f32 %v415, %v927
    %v1440 = vsub.f32 %v416, %v928
    %v1441 = vsub.f32 %v417, %v929
    %v1442 = vsub.f32 %v418, %v930
    %v1443 = vsub.f32 %v419, %v931
    %v1444 = vsub.f32 %v420, %v932
    %v1445 = vsub.f32 %v421, %v933
    %v1446 = vsub.f32 %v422, %v934
    %v1447 = vsub.f32 %v423, %v935
    %v1448 = vsub.f32 %v424, %v936
    %v1449 = vsub.f32 %v425, %v937
    %v1450 = vsub.f32 %v426, %v938
    %v1451 = vsub.f32 %v427, %v939
    %v1452 = vsub.f32 %v428, %v940
    %v1453 = vsub.f32 %v429, %v941
    %v1454 = vsub.f32 %v430, %v942
    %v1455 = vsub.f32 %v431, %v943
    %v1456 = vsub.f32 %v432, %v944
    %v1457 = vsub.f32 %v433, %v945
    %v1458 = vsub.f32 %v434, %v946
    %v1459 = vsub.f32 %v435, %v947
    %v1460 = vsub.f32 %v436, %v948
    %v1461 = vsub.f32 %v437, %v949
    %v1462 = vsub.f32 %v438, %v950
    %v1463 = vsub.f32 %v439, %v951
    %v1464 = vsub.f32 %v440, %v952
    %v1465 = vsub.f32 %v441, %v953
    %v1466 = vsub.f32 %v442, %v954
    %v1467 = vsub.f32 %v443, %v955
    %v1468 = vsub.f32 %v444, %v956
    %v1469 = vsub.f32 %v445, %v957
    %v1470 = vsub.f32 %v446, %v958
    %v1471 = vsub.f32 %v447, %v959
    %v1472 = vsub.f32 %v448, %v960
    %v1473 = vsub.f32 %v449, %v961
    %v1474 = vsub.f32 %v450, %v962
    %v1475 = vsub.f32 %v451, %v963
    %v1476 = vsub.f32 %v452, %v964
    %v1477 = vsub.f32 %v453, %v965
    %v1478 = vsub.f32 %v454, %v966
    %v1479 = vsub.f32 %v455, %v967
    %v1480 = vsub.f32 %v456, %v968
    %v1481 = vsub.f32 %v457, %v969
    %v1482 = vsub.f32 %v458, %v970
    %v1483 = vsub.f32 %v459, %v971
    %v1484 = vsub.f32 %v460, %v972
    %v1485 = vsub.f32 %v461, %v973
    %v1486 = vsub.f32 %v462, %v974
    %v1487 = vsub.f32 %v463, %v975
    %v1488 = vsub.f32 %v464, %v976
    %v1489 = vsub.f32 %v465, %v977
    %v1490 = vsub.f32 %v466, %v978
    %v1491 = vsub.f32 %v467, %v979
    %v1492 = vsub.f32 %v468, %v980
    %v1493 = vsub.f32 %v469, %v981
    %v1494 = vsub.f32 %v470, %v982
    %v1495 = vsub.f32 %v471, %v983
    %v1496 = vsub.f32 %v472, %v984
    %v1497 = vsub.f32 %v473, %v985
    %v1498 = vsub.f32 %v474, %v986
    %v1499 = vsub.f32 %v475, %v987
    %v1500 = vsub.f32 %v476, %v988
    %v1501 = vsub.f32 %v477, %v989
    %v1502 = vsub.f32 %v478, %v990
    %v1503 = vsub.f32 %v479, %v991
    %v1504 = vsub.f32 %v480, %v992
    %v1505 = vsub.f32 %v481, %v993
    %v1506 = vsub.f32 %v482, %v994
    %v1507 = vsub.f32 %v483, %v995
    %v1508 = vsub.f32 %v484, %v996
    %v1509 = vsub.f32 %v485, %v997
    %v1510 = vsub.f32 %v486, %v998
    %v1511 = vsub.f32 %v487, %v999
    %v1512 = vsub.f32 %v488, %v1000
    %v1513 = vsub.f32 %v489, %v1001
    %v1514 = vsub.f32 %v490, %v1002
    %v1515 = vsub.f32 %v491, %v1003
    %v1516 = vsub.f32 %v492, %v1004
    %v1517 = vsub.f32 %v493, %v1005
    %v1518 = vsub.f32 %v494, %v1006
    %v1519 = vsub.f32 %v495, %v1007
    %v1520 = vsub.f32 %v496, %v1008
    %v1521 = vsub.f32 %v497, %v1009
    %v1522 = vsub.f32 %v498, %v1010
    %v1523 = vsub.f32 %v499, %v1011
    %v1524 = vsub.f32 %v500, %v1012
    %v1525 = vsub.f32 %v501, %v1013
    %v1526 = vsub.f32 %v502, %v1014
    %v1527 = vsub.f32 %v503, %v1015
    %v1528 = vsub.f32 %v504, %v1016
    %v1529 = vsub.f32 %v505, %v1017
    %v1530 = vsub.f32 %v506, %v1018
    %v1531 = vsub.f32 %v507, %v1019
    %v1532 = vsub.f32 %v508, %v1020
    %v1533 = vsub.f32 %v509, %v1021
    %v1534 = vsub.f32 %v510, %v1022
    %v1535 = vsub.f32 %v511, %v1023
    %v1536 = vsub.f32 %v512, %v1024
    %v1537 = vsub.f32 %v513, %v1025
    %v1538 = vsub.f32 %v514, %v1026
    %v1539 = vsub.f32 %v515, %v1027
    %v1540 = vsub.f32 %v516, %v1028
    %v1541 = vsub.f32 %v517, %v1029
    %v1542 = vsub.f32 %v518, %v1030
    %v1543 = vsub.f32 %v519, %v1031
    %v1544 = vsub.f32 %v520, %v1032
    %v1545 = vsub.f32 %v521, %v1033
    %v1546 = vsub.f32 %v522, %v1034
    %v1547 = vsub.f32 %v523, %v1035
    %v1548 = vsub.f32 %v524, %v1036
    %v1549 = vsub.f32 %v525, %v1037
    %v1550 = vsub.f32 %v526, %v1038
    %v1551 = vsub.f32 %v527, %v1039
    %v1552 = vsub.f32 %v528, %v1040
    %v1553 = vsub.f32 %v529, %v1041
    %v1554 = vsub.f32 %v530, %v1042
    %v1555 = vsub.f32 %v531, %v1043
    %v1556 = vsub.f32 %v532, %v1044
    %v1557 = vsub.f32 %v533, %v1045
    %v1558 = vsub.f32 %v534, %v1046
    %v1559 = vsub.f32 %v535, %v1047
    %v1560 = vsub.f32 %v536, %v1048
    %v1561 = vsub.f32 %v537, %v1049
    %v1562 = vsub.f32 %v538, %v1050
    %v1563 = vsub.f32 %v539, %v1051
    %v1564 = vsub.f32 %v540, %v1052
    %v1565 = vsub.f32 %v541, %v1053
    %v1566 = vsub.f32 %v542, %v1054
    %v1567 = vsub.f32 %v543, %v1055
    %v1568 = vsub.f32 %v544, %v1056
    %v1569 = vsub.f32 %v545, %v1057
    %v1570 = vsub.f32 %v546, %v1058
    %v1571 = vsub.f32 %v547, %v1059
    %v1572 = vsub.f32 %v548, %v1060
    %v1573 = vsub.f32 %v549, %v1061
    %v1574 = vsub.f32 %v550, %v1062
    %v1575 = vsub.f32 %v551, %v1063
    %v1576 = vsub.f32 %v552, %v1064
    %v1577 = vsub.f32 %v553, %v1065
    %v1578 = vsub.f32 %v554, %v1066
    %v1579 = vsub.f32 %v555, %v1067
    %v1580 = vsub.f32 %v556, %v1068
    %v1581 = vsub.f32 %v557, %v1069
    %v1582 = vsub.f32 %v558, %v1070
    %v1583 = vsub.f32 %v559, %v1071
    %v1584 = vsub.f32 %v560, %v1072
    %v1585 = vsub.f32 %v561, %v1073
    %v1586 = vsub.f32 %v562, %v1074
    %v1587 = vsub.f32 %v563, %v1075
    %v1588 = vsub.f32 %v564, %v1076
    %v1589 = vsub.f32 %v565, %v1077
    %v1590 = vsub.f32 %v566, %v1078
    %v1591 = vsub.f32 %v567, %v1079
    %v1592 = vsub.f32 %v568, %v1080
    %v1593 = vsub.f32 %v569, %v1081
    %v1594 = vsub.f32 %v570, %v1082
    %v1595 = vsub.f32 %v571, %v1083
    %v1596 = vsub.f32 %v572, %v1084
    %v1597 = vsub.f32 %v573, %v1085
    %v1598 = vsub.f32 %v574, %v1086
    %v1599 = vsub.f32 %v575, %v1087
    %v1600 = vsub.f32 %v576, %v1088
    %v1601 = vsub.f32 %v577, %v1089
    %v1602 = vsub.f32 %v578, %v1090
    %v1603 = vsub.f32 %v579, %v1091
    %v1604 = vsub.f32 %v580, %v1092
    %v1605 = vsub.f32 %v581, %v1093
    %v1606 = vsub.f32 %v582, %v1094
    %v1607 = vsub.f32 %v583, %v1095
    %v1608 = vsub.f32 %v584, %v1096
    %v1609 = vsub.f32 %v585, %v1097
    %v1610 = vsub.f32 %v586, %v1098
    %v1611 = vsub.f32 %v587, %v1099
    %v1612 = vsub.f32 %v588, %v1100
    %v1613 = vsub.f32 %v589, %v1101
    %v1614 = vsub.f32 %v590, %v1102
    %v1615 = vsub.f32 %v591, %v1103
    %v1616 = vsub.f32 %v592, %v1104
    %v1617 = vsub.f32 %v593, %v1105
    %v1618 = vsub.f32 %v594, %v1106
    %v1619 = vsub.f32 %v595, %v1107
    %v1620 = vsub.f32 %v596, %v1108
    %v1621 = vsub.f32 %v597, %v1109
    %v1622 = vsub.f32 %v598, %v1110
    %v1623 = vsub.f32 %v599, %v1111
    %v1624 = vsub.f32 %v600, %v1112
    %v1625 = vsub.f32 %v601, %v1113
    %v1626 = vsub.f32 %v602, %v1114
    %v1627 = vsub.f32 %v603, %v1115
    %v1628 = vsub.f32 %v604, %v1116
    %v1629 = vsub.f32 %v605, %v1117
    %v1630 = vsub.f32 %v606, %v1118
    %v1631 = vsub.f32 %v607, %v1119
    %v1632 = vsub.f32 %v608, %v1120
    %v1633 = vsub.f32 %v609, %v1121
    %v1634 = vsub.f32 %v610, %v1122
    %v1635 = vsub.f32 %v611, %v1123
    %v1636 = vsub.f32 %v612, %v1124
    %v1637 = vsub.f32 %v613, %v1125
    %v1638 = vsub.f32 %v614, %v1126
    %v1639 = vsub.f32 %v615, %v1127
    %v1640 = vsub.f32 %v616, %v1128
    %v1641 = vsub.f32 %v617, %v1129
    %v1642 = vsub.f32 %v618, %v1130
    %v1643 = vsub.f32 %v619, %v1131
    %v1644 = vsub.f32 %v620, %v1132
    %v1645 = vsub.f32 %v621, %v1133
    %v1646 = vsub.f32 %v622, %v1134
    %v1647 = vsub.f32 %v623, %v1135
    %v1648 = vsub.f32 %v624, %v1136
    %v1649 = vsub.f32 %v625, %v1137
    %v1650 = vsub.f32 %v626, %v1138
    %v1651 = vsub.f32 %v627, %v1139
    %v1652 = vsub.f32 %v628, %v1140
    %v1653 = vsub.f32 %v629, %v1141
    %v1654 = vsub.f32 %v630, %v1142
    %v1655 = vsub.f32 %v631, %v1143
    %v1656 = vsub.f32 %v632, %v1144
    %v1657 = vsub.f32 %v633, %v1145
    %v1658 = vsub.f32 %v634, %v1146
    %v1659 = vsub.f32 %v635, %v1147
    %v1660 = vsub.f32 %v636, %v1148
    %v1661 = vsub.f32 %v637, %v1149
    %v1662 = vsub.f32 %v638, %v1150
    %v1663 = vsub.f32 %v639, %v1151
    %v1664 = vsub.f32 %v640, %v1152
    %v1665 = vsub.f32 %v641, %v1153
    %v1666 = vsub.f32 %v642, %v1154
    %v1667 = vsub.f32 %v643, %v1155
    %v1668 = vsub.f32 %v644, %v1156
    %v1669 = vsub.f32 %v645, %v1157
    %v1670 = vsub.f32 %v646, %v1158
    %v1671 = vsub.f32 %v647, %v1159
    %v1672 = vsub.f32 %v648, %v1160
    %v1673 = vsub.f32 %v649, %v1161
    %v1674 = vsub.f32 %v650, %v1162
    %v1675 = vsub.f32 %v651, %v1163
    %v1676 = vsub.f32 %v652, %v1164
    %v1677 = vsub.f32 %v653, %v1165
    %v1678 = vsub.f32 %v654, %v1166
    %v1679 = vsub.f32 %v655, %v1167
    %v1680 = vsub.f32 %v656, %v1168
    %v1681 = vsub.f32 %v657, %v1169
    %v1682 = vsub.f32 %v658, %v1170
    %v1683 = vsub.f32 %v659, %v1171
    %v1684 = vsub.f32 %v660, %v1172
    %v1685 = vsub.f32 %v661, %v1173
    %v1686 = vsub.f32 %v662, %v1174
    %v1687 = vsub.f32 %v663, %v1175
    %v1688 = vsub.f32 %v664, %v1176
    %1689 = vadd.xlane.f32.xlu0 %v1177
    %v1690 = vpop.xlane.xlu0 %1689
    %1691 = vadd.xlane.f32.xlu0 %v1178
    %v1692 = vpop.xlane.xlu0 %1691
    %1693 = vadd.xlane.f32.xlu0 %v1179
    %v1694 = vpop.xlane.xlu0 %1693
    %1695 = vadd.xlane.f32.xlu0 %v1180
    %v1696 = vpop.xlane.xlu0 %1695
    %1697 = vadd.xlane.f32.xlu0 %v1181
    %v1698 = vpop.xlane.xlu0 %1697
    %1699 = vadd.xlane.f32.xlu0 %v1182
    %v1700 = vpop.xlane.xlu0 %1699
    %1701 = vadd.xlane.f32.xlu0 %v1183
    %v1702 = vpop.xlane.xlu0 %1701
    %1703 = vadd.xlane.f32.xlu0 %v1184
    %v1704 = vpop.xlane.xlu0 %1703
    %1705 = vadd.xlane.f32.xlu0 %v1185
    %v1706 = vpop.xlane.xlu0 %1705
    %1707 = vadd.xlane.f32.xlu0 %v1186
    %v1708 = vpop.xlane.xlu0 %1707
    %1709 = vadd.xlane.f32.xlu0 %v1187
    %v1710 = vpop.xlane.xlu0 %1709
    %1711 = vadd.xlane.f32.xlu0 %v1188
    %v1712 = vpop.xlane.xlu0 %1711
    %1713 = vadd.xlane.f32.xlu0 %v1189
    %v1714 = vpop.xlane.xlu0 %1713
    %1715 = vadd.xlane.f32.xlu0 %v1190
    %v1716 = vpop.xlane.xlu0 %1715
    %1717 = vadd.xlane.f32.xlu0 %v1191
    %v1718 = vpop.xlane.xlu0 %1717
    %1719 = vadd.xlane.f32.xlu0 %v1192
    %v1720 = vpop.xlane.xlu0 %1719
    %1721 = vadd.xlane.f32.xlu0 %v1193
    %v1722 = vpop.xlane.xlu0 %1721
    %1723 = vadd.xlane.f32.xlu0 %v1194
    %v1724 = vpop.xlane.xlu0 %1723
    %1725 = vadd.xlane.f32.xlu0 %v1195
    %v1726 = vpop.xlane.xlu0 %1725
    %1727 = vadd.xlane.f32.xlu0 %v1196
    %v1728 = vpop.xlane.xlu0 %1727
    %1729 = vadd.xlane.f32.xlu0 %v1197
    %v1730 = vpop.xlane.xlu0 %1729
    %1731 = vadd.xlane.f32.xlu0 %v1198
    %v1732 = vpop.xlane.xlu0 %1731
    %1733 = vadd.xlane.f32.xlu0 %v1199
    %v1734 = vpop.xlane.xlu0 %1733
    %1735 = vadd.xlane.f32.xlu0 %v1200
    %v1736 = vpop.xlane.xlu0 %1735
    %1737 = vadd.xlane.f32.xlu0 %v1201
    %v1738 = vpop.xlane.xlu0 %1737
    %1739 = vadd.xlane.f32.xlu0 %v1202
    %v1740 = vpop.xlane.xlu0 %1739
    %1741 = vadd.xlane.f32.xlu0 %v1203
    %v1742 = vpop.xlane.xlu0 %1741
    %1743 = vadd.xlane.f32.xlu0 %v1204
    %v1744 = vpop.xlane.xlu0 %1743
    %1745 = vadd.xlane.f32.xlu0 %v1205
    %v1746 = vpop.xlane.xlu0 %1745
    %1747 = vadd.xlane.f32.xlu0 %v1206
    %v1748 = vpop.xlane.xlu0 %1747
    %1749 = vadd.xlane.f32.xlu0 %v1207
    %v1750 = vpop.xlane.xlu0 %1749
    %1751 = vadd.xlane.f32.xlu0 %v1208
    %v1752 = vpop.xlane.xlu0 %1751
    %1753 = vadd.xlane.f32.xlu0 %v1209
    %v1754 = vpop.xlane.xlu0 %1753
    %1755 = vadd.xlane.f32.xlu0 %v1210
    %v1756 = vpop.xlane.xlu0 %1755
    %1757 = vadd.xlane.f32.xlu0 %v1211
    %v1758 = vpop.xlane.xlu0 %1757
    %1759 = vadd.xlane.f32.xlu0 %v1212
    %v1760 = vpop.xlane.xlu0 %1759
    %1761 = vadd.xlane.f32.xlu0 %v1213
    %v1762 = vpop.xlane.xlu0 %1761
    %1763 = vadd.xlane.f32.xlu0 %v1214
    %v1764 = vpop.xlane.xlu0 %1763
    %1765 = vadd.xlane.f32.xlu0 %v1215
    %v1766 = vpop.xlane.xlu0 %1765
    %1767 = vadd.xlane.f32.xlu0 %v1216
    %v1768 = vpop.xlane.xlu0 %1767
    %1769 = vadd.xlane.f32.xlu0 %v1217
    %v1770 = vpop.xlane.xlu0 %1769
    %1771 = vadd.xlane.f32.xlu0 %v1218
    %v1772 = vpop.xlane.xlu0 %1771
    %1773 = vadd.xlane.f32.xlu0 %v1219
    %v1774 = vpop.xlane.xlu0 %1773
    %1775 = vadd.xlane.f32.xlu0 %v1220
    %v1776 = vpop.xlane.xlu0 %1775
    %1777 = vadd.xlane.f32.xlu0 %v1221
    %v1778 = vpop.xlane.xlu0 %1777
    %1779 = vadd.xlane.f32.xlu0 %v1222
    %v1780 = vpop.xlane.xlu0 %1779
    %1781 = vadd.xlane.f32.xlu0 %v1223
    %v1782 = vpop.xlane.xlu0 %1781
    %1783 = vadd.xlane.f32.xlu0 %v1224
    %v1784 = vpop.xlane.xlu0 %1783
    %1785 = vadd.xlane.f32.xlu0 %v1225
    %v1786 = vpop.xlane.xlu0 %1785
    %1787 = vadd.xlane.f32.xlu0 %v1226
    %v1788 = vpop.xlane.xlu0 %1787
    %1789 = vadd.xlane.f32.xlu0 %v1227
    %v1790 = vpop.xlane.xlu0 %1789
    %1791 = vadd.xlane.f32.xlu0 %v1228
    %v1792 = vpop.xlane.xlu0 %1791
    %1793 = vadd.xlane.f32.xlu0 %v1229
    %v1794 = vpop.xlane.xlu0 %1793
    %1795 = vadd.xlane.f32.xlu0 %v1230
    %v1796 = vpop.xlane.xlu0 %1795
    %1797 = vadd.xlane.f32.xlu0 %v1231
    %v1798 = vpop.xlane.xlu0 %1797
    %1799 = vadd.xlane.f32.xlu0 %v1232
    %v1800 = vpop.xlane.xlu0 %1799
    %1801 = vadd.xlane.f32.xlu0 %v1233
    %v1802 = vpop.xlane.xlu0 %1801
    %1803 = vadd.xlane.f32.xlu0 %v1234
    %v1804 = vpop.xlane.xlu0 %1803
    %1805 = vadd.xlane.f32.xlu0 %v1235
    %v1806 = vpop.xlane.xlu0 %1805
    %1807 = vadd.xlane.f32.xlu0 %v1236
    %v1808 = vpop.xlane.xlu0 %1807
    %1809 = vadd.xlane.f32.xlu0 %v1237
    %v1810 = vpop.xlane.xlu0 %1809
    %1811 = vadd.xlane.f32.xlu0 %v1238
    %v1812 = vpop.xlane.xlu0 %1811
    %1813 = vadd.xlane.f32.xlu0 %v1239
    %v1814 = vpop.xlane.xlu0 %1813
    %1815 = vadd.xlane.f32.xlu0 %v1240
    %v1816 = vpop.xlane.xlu0 %1815
    %1817 = vadd.xlane.f32.xlu0 %v1241
    %v1818 = vpop.xlane.xlu0 %1817
    %1819 = vadd.xlane.f32.xlu0 %v1242
    %v1820 = vpop.xlane.xlu0 %1819
    %1821 = vadd.xlane.f32.xlu0 %v1243
    %v1822 = vpop.xlane.xlu0 %1821
    %1823 = vadd.xlane.f32.xlu0 %v1244
    %v1824 = vpop.xlane.xlu0 %1823
    %1825 = vadd.xlane.f32.xlu0 %v1245
    %v1826 = vpop.xlane.xlu0 %1825
    %1827 = vadd.xlane.f32.xlu0 %v1246
    %v1828 = vpop.xlane.xlu0 %1827
    %1829 = vadd.xlane.f32.xlu0 %v1247
    %v1830 = vpop.xlane.xlu0 %1829
    %1831 = vadd.xlane.f32.xlu0 %v1248
    %v1832 = vpop.xlane.xlu0 %1831
    %1833 = vadd.xlane.f32.xlu0 %v1249
    %v1834 = vpop.xlane.xlu0 %1833
    %1835 = vadd.xlane.f32.xlu0 %v1250
    %v1836 = vpop.xlane.xlu0 %1835
    %1837 = vadd.xlane.f32.xlu0 %v1251
    %v1838 = vpop.xlane.xlu0 %1837
    %1839 = vadd.xlane.f32.xlu0 %v1252
    %v1840 = vpop.xlane.xlu0 %1839
    %1841 = vadd.xlane.f32.xlu0 %v1253
    %v1842 = vpop.xlane.xlu0 %1841
    %1843 = vadd.xlane.f32.xlu0 %v1254
    %v1844 = vpop.xlane.xlu0 %1843
    %1845 = vadd.xlane.f32.xlu0 %v1255
    %v1846 = vpop.xlane.xlu0 %1845
    %1847 = vadd.xlane.f32.xlu0 %v1256
    %v1848 = vpop.xlane.xlu0 %1847
    %1849 = vadd.xlane.f32.xlu0 %v1257
    %v1850 = vpop.xlane.xlu0 %1849
    %1851 = vadd.xlane.f32.xlu0 %v1258
    %v1852 = vpop.xlane.xlu0 %1851
    %1853 = vadd.xlane.f32.xlu0 %v1259
    %v1854 = vpop.xlane.xlu0 %1853
    %1855 = vadd.xlane.f32.xlu0 %v1260
    %v1856 = vpop.xlane.xlu0 %1855
    %1857 = vadd.xlane.f32.xlu0 %v1261
    %v1858 = vpop.xlane.xlu0 %1857
    %1859 = vadd.xlane.f32.xlu0 %v1262
    %v1860 = vpop.xlane.xlu0 %1859
    %1861 = vadd.xlane.f32.xlu0 %v1263
    %v1862 = vpop.xlane.xlu0 %1861
    %1863 = vadd.xlane.f32.xlu0 %v1264
    %v1864 = vpop.xlane.xlu0 %1863
    %1865 = vadd.xlane.f32.xlu0 %v1265
    %v1866 = vpop.xlane.xlu0 %1865
    %1867 = vadd.xlane.f32.xlu0 %v1266
    %v1868 = vpop.xlane.xlu0 %1867
    %1869 = vadd.xlane.f32.xlu0 %v1267
    %v1870 = vpop.xlane.xlu0 %1869
    %1871 = vadd.xlane.f32.xlu0 %v1268
    %v1872 = vpop.xlane.xlu0 %1871
    %1873 = vadd.xlane.f32.xlu0 %v1269
    %v1874 = vpop.xlane.xlu0 %1873
    %1875 = vadd.xlane.f32.xlu0 %v1270
    %v1876 = vpop.xlane.xlu0 %1875
    %1877 = vadd.xlane.f32.xlu0 %v1271
    %v1878 = vpop.xlane.xlu0 %1877
    %1879 = vadd.xlane.f32.xlu0 %v1272
    %v1880 = vpop.xlane.xlu0 %1879
    %1881 = vadd.xlane.f32.xlu0 %v1273
    %v1882 = vpop.xlane.xlu0 %1881
    %1883 = vadd.xlane.f32.xlu0 %v1274
    %v1884 = vpop.xlane.xlu0 %1883
    %1885 = vadd.xlane.f32.xlu0 %v1275
    %v1886 = vpop.xlane.xlu0 %1885
    %1887 = vadd.xlane.f32.xlu0 %v1276
    %v1888 = vpop.xlane.xlu0 %1887
    %1889 = vadd.xlane.f32.xlu0 %v1277
    %v1890 = vpop.xlane.xlu0 %1889
    %1891 = vadd.xlane.f32.xlu0 %v1278
    %v1892 = vpop.xlane.xlu0 %1891
    %1893 = vadd.xlane.f32.xlu0 %v1279
    %v1894 = vpop.xlane.xlu0 %1893
    %1895 = vadd.xlane.f32.xlu0 %v1280
    %v1896 = vpop.xlane.xlu0 %1895
    %1897 = vadd.xlane.f32.xlu0 %v1281
    %v1898 = vpop.xlane.xlu0 %1897
    %1899 = vadd.xlane.f32.xlu0 %v1282
    %v1900 = vpop.xlane.xlu0 %1899
    %1901 = vadd.xlane.f32.xlu0 %v1283
    %v1902 = vpop.xlane.xlu0 %1901
    %1903 = vadd.xlane.f32.xlu0 %v1284
    %v1904 = vpop.xlane.xlu0 %1903
    %1905 = vadd.xlane.f32.xlu0 %v1285
    %v1906 = vpop.xlane.xlu0 %1905
    %1907 = vadd.xlane.f32.xlu0 %v1286
    %v1908 = vpop.xlane.xlu0 %1907
    %1909 = vadd.xlane.f32.xlu0 %v1287
    %v1910 = vpop.xlane.xlu0 %1909
    %1911 = vadd.xlane.f32.xlu0 %v1288
    %v1912 = vpop.xlane.xlu0 %1911
    %1913 = vadd.xlane.f32.xlu0 %v1289
    %v1914 = vpop.xlane.xlu0 %1913
    %1915 = vadd.xlane.f32.xlu0 %v1290
    %v1916 = vpop.xlane.xlu0 %1915
    %1917 = vadd.xlane.f32.xlu0 %v1291
    %v1918 = vpop.xlane.xlu0 %1917
    %1919 = vadd.xlane.f32.xlu0 %v1292
    %v1920 = vpop.xlane.xlu0 %1919
    %1921 = vadd.xlane.f32.xlu0 %v1293
    %v1922 = vpop.xlane.xlu0 %1921
    %1923 = vadd.xlane.f32.xlu0 %v1294
    %v1924 = vpop.xlane.xlu0 %1923
    %1925 = vadd.xlane.f32.xlu0 %v1295
    %v1926 = vpop.xlane.xlu0 %1925
    %1927 = vadd.xlane.f32.xlu0 %v1296
    %v1928 = vpop.xlane.xlu0 %1927
    %1929 = vadd.xlane.f32.xlu0 %v1297
    %v1930 = vpop.xlane.xlu0 %1929
    %1931 = vadd.xlane.f32.xlu0 %v1298
    %v1932 = vpop.xlane.xlu0 %1931
    %1933 = vadd.xlane.f32.xlu0 %v1299
    %v1934 = vpop.xlane.xlu0 %1933
    %1935 = vadd.xlane.f32.xlu0 %v1300
    %v1936 = vpop.xlane.xlu0 %1935
    %1937 = vadd.xlane.f32.xlu0 %v1301
    %v1938 = vpop.xlane.xlu0 %1937
    %1939 = vadd.xlane.f32.xlu0 %v1302
    %v1940 = vpop.xlane.xlu0 %1939
    %1941 = vadd.xlane.f32.xlu0 %v1303
    %v1942 = vpop.xlane.xlu0 %1941
    %1943 = vadd.xlane.f32.xlu0 %v1304
    %v1944 = vpop.xlane.xlu0 %1943
    %1945 = vadd.xlane.f32.xlu0 %v1305
    %v1946 = vpop.xlane.xlu0 %1945
    %1947 = vadd.xlane.f32.xlu0 %v1306
    %v1948 = vpop.xlane.xlu0 %1947
    %1949 = vadd.xlane.f32.xlu0 %v1307
    %v1950 = vpop.xlane.xlu0 %1949
    %1951 = vadd.xlane.f32.xlu0 %v1308
    %v1952 = vpop.xlane.xlu0 %1951
    %1953 = vadd.xlane.f32.xlu0 %v1309
    %v1954 = vpop.xlane.xlu0 %1953
    %1955 = vadd.xlane.f32.xlu0 %v1310
    %v1956 = vpop.xlane.xlu0 %1955
    %1957 = vadd.xlane.f32.xlu0 %v1311
    %v1958 = vpop.xlane.xlu0 %1957
    %1959 = vadd.xlane.f32.xlu0 %v1312
    %v1960 = vpop.xlane.xlu0 %1959
    %1961 = vadd.xlane.f32.xlu0 %v1313
    %v1962 = vpop.xlane.xlu0 %1961
    %1963 = vadd.xlane.f32.xlu0 %v1314
    %v1964 = vpop.xlane.xlu0 %1963
    %1965 = vadd.xlane.f32.xlu0 %v1315
    %v1966 = vpop.xlane.xlu0 %1965
    %1967 = vadd.xlane.f32.xlu0 %v1316
    %v1968 = vpop.xlane.xlu0 %1967
    %1969 = vadd.xlane.f32.xlu0 %v1317
    %v1970 = vpop.xlane.xlu0 %1969
    %1971 = vadd.xlane.f32.xlu0 %v1318
    %v1972 = vpop.xlane.xlu0 %1971
    %1973 = vadd.xlane.f32.xlu0 %v1319
    %v1974 = vpop.xlane.xlu0 %1973
    %1975 = vadd.xlane.f32.xlu0 %v1320
    %v1976 = vpop.xlane.xlu0 %1975
    %1977 = vadd.xlane.f32.xlu0 %v1321
    %v1978 = vpop.xlane.xlu0 %1977
    %1979 = vadd.xlane.f32.xlu0 %v1322
    %v1980 = vpop.xlane.xlu0 %1979
    %1981 = vadd.xlane.f32.xlu0 %v1323
    %v1982 = vpop.xlane.xlu0 %1981
    %1983 = vadd.xlane.f32.xlu0 %v1324
    %v1984 = vpop.xlane.xlu0 %1983
    %1985 = vadd.xlane.f32.xlu0 %v1325
    %v1986 = vpop.xlane.xlu0 %1985
    %1987 = vadd.xlane.f32.xlu0 %v1326
    %v1988 = vpop.xlane.xlu0 %1987
    %1989 = vadd.xlane.f32.xlu0 %v1327
    %v1990 = vpop.xlane.xlu0 %1989
    %1991 = vadd.xlane.f32.xlu0 %v1328
    %v1992 = vpop.xlane.xlu0 %1991
    %1993 = vadd.xlane.f32.xlu0 %v1329
    %v1994 = vpop.xlane.xlu0 %1993
    %1995 = vadd.xlane.f32.xlu0 %v1330
    %v1996 = vpop.xlane.xlu0 %1995
    %1997 = vadd.xlane.f32.xlu0 %v1331
    %v1998 = vpop.xlane.xlu0 %1997
    %1999 = vadd.xlane.f32.xlu0 %v1332
    %v2000 = vpop.xlane.xlu0 %1999
    %2001 = vadd.xlane.f32.xlu0 %v1333
    %v2002 = vpop.xlane.xlu0 %2001
    %2003 = vadd.xlane.f32.xlu0 %v1334
    %v2004 = vpop.xlane.xlu0 %2003
    %2005 = vadd.xlane.f32.xlu0 %v1335
    %v2006 = vpop.xlane.xlu0 %2005
    %2007 = vadd.xlane.f32.xlu0 %v1336
    %v2008 = vpop.xlane.xlu0 %2007
    %2009 = vadd.xlane.f32.xlu0 %v1337
    %v2010 = vpop.xlane.xlu0 %2009
    %2011 = vadd.xlane.f32.xlu0 %v1338
    %v2012 = vpop.xlane.xlu0 %2011
    %2013 = vadd.xlane.f32.xlu0 %v1339
    %v2014 = vpop.xlane.xlu0 %2013
    %2015 = vadd.xlane.f32.xlu0 %v1340
    %v2016 = vpop.xlane.xlu0 %2015
    %2017 = vadd.xlane.f32.xlu0 %v1341
    %v2018 = vpop.xlane.xlu0 %2017
    %2019 = vadd.xlane.f32.xlu0 %v1342
    %v2020 = vpop.xlane.xlu0 %2019
    %2021 = vadd.xlane.f32.xlu0 %v1343
    %v2022 = vpop.xlane.xlu0 %2021
    %2023 = vadd.xlane.f32.xlu0 %v1344
    %v2024 = vpop.xlane.xlu0 %2023
    %2025 = vadd.xlane.f32.xlu0 %v1345
    %v2026 = vpop.xlane.xlu0 %2025
    %2027 = vadd.xlane.f32.xlu0 %v1346
    %v2028 = vpop.xlane.xlu0 %2027
    %2029 = vadd.xlane.f32.xlu0 %v1347
    %v2030 = vpop.xlane.xlu0 %2029
    %2031 = vadd.xlane.f32.xlu0 %v1348
    %v2032 = vpop.xlane.xlu0 %2031
    %2033 = vadd.xlane.f32.xlu0 %v1349
    %v2034 = vpop.xlane.xlu0 %2033
    %2035 = vadd.xlane.f32.xlu0 %v1350
    %v2036 = vpop.xlane.xlu0 %2035
    %2037 = vadd.xlane.f32.xlu0 %v1351
    %v2038 = vpop.xlane.xlu0 %2037
    %2039 = vadd.xlane.f32.xlu0 %v1352
    %v2040 = vpop.xlane.xlu0 %2039
    %2041 = vadd.xlane.f32.xlu0 %v1353
    %v2042 = vpop.xlane.xlu0 %2041
    %2043 = vadd.xlane.f32.xlu0 %v1354
    %v2044 = vpop.xlane.xlu0 %2043
    %2045 = vadd.xlane.f32.xlu0 %v1355
    %v2046 = vpop.xlane.xlu0 %2045
    %2047 = vadd.xlane.f32.xlu0 %v1356
    %v2048 = vpop.xlane.xlu0 %2047
    %2049 = vadd.xlane.f32.xlu0 %v1357
    %v2050 = vpop.xlane.xlu0 %2049
    %2051 = vadd.xlane.f32.xlu0 %v1358
    %v2052 = vpop.xlane.xlu0 %2051
    %2053 = vadd.xlane.f32.xlu0 %v1359
    %v2054 = vpop.xlane.xlu0 %2053
    %2055 = vadd.xlane.f32.xlu0 %v1360
    %v2056 = vpop.xlane.xlu0 %2055
    %2057 = vadd.xlane.f32.xlu0 %v1361
    %v2058 = vpop.xlane.xlu0 %2057
    %2059 = vadd.xlane.f32.xlu0 %v1362
    %v2060 = vpop.xlane.xlu0 %2059
    %2061 = vadd.xlane.f32.xlu0 %v1363
    %v2062 = vpop.xlane.xlu0 %2061
    %2063 = vadd.xlane.f32.xlu0 %v1364
    %v2064 = vpop.xlane.xlu0 %2063
    %2065 = vadd.xlane.f32.xlu0 %v1365
    %v2066 = vpop.xlane.xlu0 %2065
    %2067 = vadd.xlane.f32.xlu0 %v1366
    %v2068 = vpop.xlane.xlu0 %2067
    %2069 = vadd.xlane.f32.xlu0 %v1367
    %v2070 = vpop.xlane.xlu0 %2069
    %2071 = vadd.xlane.f32.xlu0 %v1368
    %v2072 = vpop.xlane.xlu0 %2071
    %2073 = vadd.xlane.f32.xlu0 %v1369
    %v2074 = vpop.xlane.xlu0 %2073
    %2075 = vadd.xlane.f32.xlu0 %v1370
    %v2076 = vpop.xlane.xlu0 %2075
    %2077 = vadd.xlane.f32.xlu0 %v1371
    %v2078 = vpop.xlane.xlu0 %2077
    %2079 = vadd.xlane.f32.xlu0 %v1372
    %v2080 = vpop.xlane.xlu0 %2079
    %2081 = vadd.xlane.f32.xlu0 %v1373
    %v2082 = vpop.xlane.xlu0 %2081
    %2083 = vadd.xlane.f32.xlu0 %v1374
    %v2084 = vpop.xlane.xlu0 %2083
    %2085 = vadd.xlane.f32.xlu0 %v1375
    %v2086 = vpop.xlane.xlu0 %2085
    %2087 = vadd.xlane.f32.xlu0 %v1376
    %v2088 = vpop.xlane.xlu0 %2087
    %2089 = vadd.xlane.f32.xlu0 %v1377
    %v2090 = vpop.xlane.xlu0 %2089
    %2091 = vadd.xlane.f32.xlu0 %v1378
    %v2092 = vpop.xlane.xlu0 %2091
    %2093 = vadd.xlane.f32.xlu0 %v1379
    %v2094 = vpop.xlane.xlu0 %2093
    %2095 = vadd.xlane.f32.xlu0 %v1380
    %v2096 = vpop.xlane.xlu0 %2095
    %2097 = vadd.xlane.f32.xlu0 %v1381
    %v2098 = vpop.xlane.xlu0 %2097
    %2099 = vadd.xlane.f32.xlu0 %v1382
    %v2100 = vpop.xlane.xlu0 %2099
    %2101 = vadd.xlane.f32.xlu0 %v1383
    %v2102 = vpop.xlane.xlu0 %2101
    %2103 = vadd.xlane.f32.xlu0 %v1384
    %v2104 = vpop.xlane.xlu0 %2103
    %2105 = vadd.xlane.f32.xlu0 %v1385
    %v2106 = vpop.xlane.xlu0 %2105
    %2107 = vadd.xlane.f32.xlu0 %v1386
    %v2108 = vpop.xlane.xlu0 %2107
    %2109 = vadd.xlane.f32.xlu0 %v1387
    %v2110 = vpop.xlane.xlu0 %2109
    %2111 = vadd.xlane.f32.xlu0 %v1388
    %v2112 = vpop.xlane.xlu0 %2111
    %2113 = vadd.xlane.f32.xlu0 %v1389
    %v2114 = vpop.xlane.xlu0 %2113
    %2115 = vadd.xlane.f32.xlu0 %v1390
    %v2116 = vpop.xlane.xlu0 %2115
    %2117 = vadd.xlane.f32.xlu0 %v1391
    %v2118 = vpop.xlane.xlu0 %2117
    %2119 = vadd.xlane.f32.xlu0 %v1392
    %v2120 = vpop.xlane.xlu0 %2119
    %2121 = vadd.xlane.f32.xlu0 %v1393
    %v2122 = vpop.xlane.xlu0 %2121
    %2123 = vadd.xlane.f32.xlu0 %v1394
    %v2124 = vpop.xlane.xlu0 %2123
    %2125 = vadd.xlane.f32.xlu0 %v1395
    %v2126 = vpop.xlane.xlu0 %2125
    %2127 = vadd.xlane.f32.xlu0 %v1396
    %v2128 = vpop.xlane.xlu0 %2127
    %2129 = vadd.xlane.f32.xlu0 %v1397
    %v2130 = vpop.xlane.xlu0 %2129
    %2131 = vadd.xlane.f32.xlu0 %v1398
    %v2132 = vpop.xlane.xlu0 %2131
    %2133 = vadd.xlane.f32.xlu0 %v1399
    %v2134 = vpop.xlane.xlu0 %2133
    %2135 = vadd.xlane.f32.xlu0 %v1400
    %v2136 = vpop.xlane.xlu0 %2135
    %2137 = vadd.xlane.f32.xlu0 %v1401
    %v2138 = vpop.xlane.xlu0 %2137
    %2139 = vadd.xlane.f32.xlu0 %v1402
    %v2140 = vpop.xlane.xlu0 %2139
    %2141 = vadd.xlane.f32.xlu0 %v1403
    %v2142 = vpop.xlane.xlu0 %2141
    %2143 = vadd.xlane.f32.xlu0 %v1404
    %v2144 = vpop.xlane.xlu0 %2143
    %2145 = vadd.xlane.f32.xlu0 %v1405
    %v2146 = vpop.xlane.xlu0 %2145
    %2147 = vadd.xlane.f32.xlu0 %v1406
    %v2148 = vpop.xlane.xlu0 %2147
    %2149 = vadd.xlane.f32.xlu0 %v1407
    %v2150 = vpop.xlane.xlu0 %2149
    %2151 = vadd.xlane.f32.xlu0 %v1408
    %v2152 = vpop.xlane.xlu0 %2151
    %2153 = vadd.xlane.f32.xlu0 %v1409
    %v2154 = vpop.xlane.xlu0 %2153
    %2155 = vadd.xlane.f32.xlu0 %v1410
    %v2156 = vpop.xlane.xlu0 %2155
    %2157 = vadd.xlane.f32.xlu0 %v1411
    %v2158 = vpop.xlane.xlu0 %2157
    %2159 = vadd.xlane.f32.xlu0 %v1412
    %v2160 = vpop.xlane.xlu0 %2159
    %2161 = vadd.xlane.f32.xlu0 %v1413
    %v2162 = vpop.xlane.xlu0 %2161
    %2163 = vadd.xlane.f32.xlu0 %v1414
    %v2164 = vpop.xlane.xlu0 %2163
    %2165 = vadd.xlane.f32.xlu0 %v1415
    %v2166 = vpop.xlane.xlu0 %2165
    %2167 = vadd.xlane.f32.xlu0 %v1416
    %v2168 = vpop.xlane.xlu0 %2167
    %2169 = vadd.xlane.f32.xlu0 %v1417
    %v2170 = vpop.xlane.xlu0 %2169
    %2171 = vadd.xlane.f32.xlu0 %v1418
    %v2172 = vpop.xlane.xlu0 %2171
    %2173 = vadd.xlane.f32.xlu0 %v1419
    %v2174 = vpop.xlane.xlu0 %2173
    %2175 = vadd.xlane.f32.xlu0 %v1420
    %v2176 = vpop.xlane.xlu0 %2175
    %2177 = vadd.xlane.f32.xlu0 %v1421
    %v2178 = vpop.xlane.xlu0 %2177
    %2179 = vadd.xlane.f32.xlu0 %v1422
    %v2180 = vpop.xlane.xlu0 %2179
    %2181 = vadd.xlane.f32.xlu0 %v1423
    %v2182 = vpop.xlane.xlu0 %2181
    %2183 = vadd.xlane.f32.xlu0 %v1424
    %v2184 = vpop.xlane.xlu0 %2183
    %2185 = vadd.xlane.f32.xlu0 %v1425
    %v2186 = vpop.xlane.xlu0 %2185
    %2187 = vadd.xlane.f32.xlu0 %v1426
    %v2188 = vpop.xlane.xlu0 %2187
    %2189 = vadd.xlane.f32.xlu0 %v1427
    %v2190 = vpop.xlane.xlu0 %2189
    %2191 = vadd.xlane.f32.xlu0 %v1428
    %v2192 = vpop.xlane.xlu0 %2191
    %2193 = vadd.xlane.f32.xlu0 %v1429
    %v2194 = vpop.xlane.xlu0 %2193
    %2195 = vadd.xlane.f32.xlu0 %v1430
    %v2196 = vpop.xlane.xlu0 %2195
    %2197 = vadd.xlane.f32.xlu0 %v1431
    %v2198 = vpop.xlane.xlu0 %2197
    %2199 = vadd.xlane.f32.xlu0 %v1432
    %v2200 = vpop.xlane.xlu0 %2199
    %2201 = vadd.xlane.f32.xlu0 %v1433
    %v2202 = vpop.xlane.xlu0 %2201
    %2203 = vadd.xlane.f32.xlu0 %v1434
    %v2204 = vpop.xlane.xlu0 %2203
    %2205 = vadd.xlane.f32.xlu0 %v1435
    %v2206 = vpop.xlane.xlu0 %2205
    %2207 = vadd.xlane.f32.xlu0 %v1436
    %v2208 = vpop.xlane.xlu0 %2207
    %2209 = vadd.xlane.f32.xlu0 %v1437
    %v2210 = vpop.xlane.xlu0 %2209
    %2211 = vadd.xlane.f32.xlu0 %v1438
    %v2212 = vpop.xlane.xlu0 %2211
    %2213 = vadd.xlane.f32.xlu0 %v1439
    %v2214 = vpop.xlane.xlu0 %2213
    %2215 = vadd.xlane.f32.xlu0 %v1440
    %v2216 = vpop.xlane.xlu0 %2215
    %2217 = vadd.xlane.f32.xlu0 %v1441
    %v2218 = vpop.xlane.xlu0 %2217
    %2219 = vadd.xlane.f32.xlu0 %v1442
    %v2220 = vpop.xlane.xlu0 %2219
    %2221 = vadd.xlane.f32.xlu0 %v1443
    %v2222 = vpop.xlane.xlu0 %2221
    %2223 = vadd.xlane.f32.xlu0 %v1444
    %v2224 = vpop.xlane.xlu0 %2223
    %2225 = vadd.xlane.f32.xlu0 %v1445
    %v2226 = vpop.xlane.xlu0 %2225
    %2227 = vadd.xlane.f32.xlu0 %v1446
    %v2228 = vpop.xlane.xlu0 %2227
    %2229 = vadd.xlane.f32.xlu0 %v1447
    %v2230 = vpop.xlane.xlu0 %2229
    %2231 = vadd.xlane.f32.xlu0 %v1448
    %v2232 = vpop.xlane.xlu0 %2231
    %2233 = vadd.xlane.f32.xlu0 %v1449
    %v2234 = vpop.xlane.xlu0 %2233
    %2235 = vadd.xlane.f32.xlu0 %v1450
    %v2236 = vpop.xlane.xlu0 %2235
    %2237 = vadd.xlane.f32.xlu0 %v1451
    %v2238 = vpop.xlane.xlu0 %2237
    %2239 = vadd.xlane.f32.xlu0 %v1452
    %v2240 = vpop.xlane.xlu0 %2239
    %2241 = vadd.xlane.f32.xlu0 %v1453
    %v2242 = vpop.xlane.xlu0 %2241
    %2243 = vadd.xlane.f32.xlu0 %v1454
    %v2244 = vpop.xlane.xlu0 %2243
    %2245 = vadd.xlane.f32.xlu0 %v1455
    %v2246 = vpop.xlane.xlu0 %2245
    %2247 = vadd.xlane.f32.xlu0 %v1456
    %v2248 = vpop.xlane.xlu0 %2247
    %2249 = vadd.xlane.f32.xlu0 %v1457
    %v2250 = vpop.xlane.xlu0 %2249
    %2251 = vadd.xlane.f32.xlu0 %v1458
    %v2252 = vpop.xlane.xlu0 %2251
    %2253 = vadd.xlane.f32.xlu0 %v1459
    %v2254 = vpop.xlane.xlu0 %2253
    %2255 = vadd.xlane.f32.xlu0 %v1460
    %v2256 = vpop.xlane.xlu0 %2255
    %2257 = vadd.xlane.f32.xlu0 %v1461
    %v2258 = vpop.xlane.xlu0 %2257
    %2259 = vadd.xlane.f32.xlu0 %v1462
    %v2260 = vpop.xlane.xlu0 %2259
    %2261 = vadd.xlane.f32.xlu0 %v1463
    %v2262 = vpop.xlane.xlu0 %2261
    %2263 = vadd.xlane.f32.xlu0 %v1464
    %v2264 = vpop.xlane.xlu0 %2263
    %2265 = vadd.xlane.f32.xlu0 %v1465
    %v2266 = vpop.xlane.xlu0 %2265
    %2267 = vadd.xlane.f32.xlu0 %v1466
    %v2268 = vpop.xlane.xlu0 %2267
    %2269 = vadd.xlane.f32.xlu0 %v1467
    %v2270 = vpop.xlane.xlu0 %2269
    %2271 = vadd.xlane.f32.xlu0 %v1468
    %v2272 = vpop.xlane.xlu0 %2271
    %2273 = vadd.xlane.f32.xlu0 %v1469
    %v2274 = vpop.xlane.xlu0 %2273
    %2275 = vadd.xlane.f32.xlu0 %v1470
    %v2276 = vpop.xlane.xlu0 %2275
    %2277 = vadd.xlane.f32.xlu0 %v1471
    %v2278 = vpop.xlane.xlu0 %2277
    %2279 = vadd.xlane.f32.xlu0 %v1472
    %v2280 = vpop.xlane.xlu0 %2279
    %2281 = vadd.xlane.f32.xlu0 %v1473
    %v2282 = vpop.xlane.xlu0 %2281
    %2283 = vadd.xlane.f32.xlu0 %v1474
    %v2284 = vpop.xlane.xlu0 %2283
    %2285 = vadd.xlane.f32.xlu0 %v1475
    %v2286 = vpop.xlane.xlu0 %2285
    %2287 = vadd.xlane.f32.xlu0 %v1476
    %v2288 = vpop.xlane.xlu0 %2287
    %2289 = vadd.xlane.f32.xlu0 %v1477
    %v2290 = vpop.xlane.xlu0 %2289
    %2291 = vadd.xlane.f32.xlu0 %v1478
    %v2292 = vpop.xlane.xlu0 %2291
    %2293 = vadd.xlane.f32.xlu0 %v1479
    %v2294 = vpop.xlane.xlu0 %2293
    %2295 = vadd.xlane.f32.xlu0 %v1480
    %v2296 = vpop.xlane.xlu0 %2295
    %2297 = vadd.xlane.f32.xlu0 %v1481
    %v2298 = vpop.xlane.xlu0 %2297
    %2299 = vadd.xlane.f32.xlu0 %v1482
    %v2300 = vpop.xlane.xlu0 %2299
    %2301 = vadd.xlane.f32.xlu0 %v1483
    %v2302 = vpop.xlane.xlu0 %2301
    %2303 = vadd.xlane.f32.xlu0 %v1484
    %v2304 = vpop.xlane.xlu0 %2303
    %2305 = vadd.xlane.f32.xlu0 %v1485
    %v2306 = vpop.xlane.xlu0 %2305
    %2307 = vadd.xlane.f32.xlu0 %v1486
    %v2308 = vpop.xlane.xlu0 %2307
    %2309 = vadd.xlane.f32.xlu0 %v1487
    %v2310 = vpop.xlane.xlu0 %2309
    %2311 = vadd.xlane.f32.xlu0 %v1488
    %v2312 = vpop.xlane.xlu0 %2311
    %2313 = vadd.xlane.f32.xlu0 %v1489
    %v2314 = vpop.xlane.xlu0 %2313
    %2315 = vadd.xlane.f32.xlu0 %v1490
    %v2316 = vpop.xlane.xlu0 %2315
    %2317 = vadd.xlane.f32.xlu0 %v1491
    %v2318 = vpop.xlane.xlu0 %2317
    %2319 = vadd.xlane.f32.xlu0 %v1492
    %v2320 = vpop.xlane.xlu0 %2319
    %2321 = vadd.xlane.f32.xlu0 %v1493
    %v2322 = vpop.xlane.xlu0 %2321
    %2323 = vadd.xlane.f32.xlu0 %v1494
    %v2324 = vpop.xlane.xlu0 %2323
    %2325 = vadd.xlane.f32.xlu0 %v1495
    %v2326 = vpop.xlane.xlu0 %2325
    %2327 = vadd.xlane.f32.xlu0 %v1496
    %v2328 = vpop.xlane.xlu0 %2327
    %2329 = vadd.xlane.f32.xlu0 %v1497
    %v2330 = vpop.xlane.xlu0 %2329
    %2331 = vadd.xlane.f32.xlu0 %v1498
    %v2332 = vpop.xlane.xlu0 %2331
    %2333 = vadd.xlane.f32.xlu0 %v1499
    %v2334 = vpop.xlane.xlu0 %2333
    %2335 = vadd.xlane.f32.xlu0 %v1500
    %v2336 = vpop.xlane.xlu0 %2335
    %2337 = vadd.xlane.f32.xlu0 %v1501
    %v2338 = vpop.xlane.xlu0 %2337
    %2339 = vadd.xlane.f32.xlu0 %v1502
    %v2340 = vpop.xlane.xlu0 %2339
    %2341 = vadd.xlane.f32.xlu0 %v1503
    %v2342 = vpop.xlane.xlu0 %2341
    %2343 = vadd.xlane.f32.xlu0 %v1504
    %v2344 = vpop.xlane.xlu0 %2343
    %2345 = vadd.xlane.f32.xlu0 %v1505
    %v2346 = vpop.xlane.xlu0 %2345
    %2347 = vadd.xlane.f32.xlu0 %v1506
    %v2348 = vpop.xlane.xlu0 %2347
    %2349 = vadd.xlane.f32.xlu0 %v1507
    %v2350 = vpop.xlane.xlu0 %2349
    %2351 = vadd.xlane.f32.xlu0 %v1508
    %v2352 = vpop.xlane.xlu0 %2351
    %2353 = vadd.xlane.f32.xlu0 %v1509
    %v2354 = vpop.xlane.xlu0 %2353
    %2355 = vadd.xlane.f32.xlu0 %v1510
    %v2356 = vpop.xlane.xlu0 %2355
    %2357 = vadd.xlane.f32.xlu0 %v1511
    %v2358 = vpop.xlane.xlu0 %2357
    %2359 = vadd.xlane.f32.xlu0 %v1512
    %v2360 = vpop.xlane.xlu0 %2359
    %2361 = vadd.xlane.f32.xlu0 %v1513
    %v2362 = vpop.xlane.xlu0 %2361
    %2363 = vadd.xlane.f32.xlu0 %v1514
    %v2364 = vpop.xlane.xlu0 %2363
    %2365 = vadd.xlane.f32.xlu0 %v1515
    %v2366 = vpop.xlane.xlu0 %2365
    %2367 = vadd.xlane.f32.xlu0 %v1516
    %v2368 = vpop.xlane.xlu0 %2367
    %2369 = vadd.xlane.f32.xlu0 %v1517
    %v2370 = vpop.xlane.xlu0 %2369
    %2371 = vadd.xlane.f32.xlu0 %v1518
    %v2372 = vpop.xlane.xlu0 %2371
    %2373 = vadd.xlane.f32.xlu0 %v1519
    %v2374 = vpop.xlane.xlu0 %2373
    %2375 = vadd.xlane.f32.xlu0 %v1520
    %v2376 = vpop.xlane.xlu0 %2375
    %2377 = vadd.xlane.f32.xlu0 %v1521
    %v2378 = vpop.xlane.xlu0 %2377
    %2379 = vadd.xlane.f32.xlu0 %v1522
    %v2380 = vpop.xlane.xlu0 %2379
    %2381 = vadd.xlane.f32.xlu0 %v1523
    %v2382 = vpop.xlane.xlu0 %2381
    %2383 = vadd.xlane.f32.xlu0 %v1524
    %v2384 = vpop.xlane.xlu0 %2383
    %2385 = vadd.xlane.f32.xlu0 %v1525
    %v2386 = vpop.xlane.xlu0 %2385
    %2387 = vadd.xlane.f32.xlu0 %v1526
    %v2388 = vpop.xlane.xlu0 %2387
    %2389 = vadd.xlane.f32.xlu0 %v1527
    %v2390 = vpop.xlane.xlu0 %2389
    %2391 = vadd.xlane.f32.xlu0 %v1528
    %v2392 = vpop.xlane.xlu0 %2391
    %2393 = vadd.xlane.f32.xlu0 %v1529
    %v2394 = vpop.xlane.xlu0 %2393
    %2395 = vadd.xlane.f32.xlu0 %v1530
    %v2396 = vpop.xlane.xlu0 %2395
    %2397 = vadd.xlane.f32.xlu0 %v1531
    %v2398 = vpop.xlane.xlu0 %2397
    %2399 = vadd.xlane.f32.xlu0 %v1532
    %v2400 = vpop.xlane.xlu0 %2399
    %2401 = vadd.xlane.f32.xlu0 %v1533
    %v2402 = vpop.xlane.xlu0 %2401
    %2403 = vadd.xlane.f32.xlu0 %v1534
    %v2404 = vpop.xlane.xlu0 %2403
    %2405 = vadd.xlane.f32.xlu0 %v1535
    %v2406 = vpop.xlane.xlu0 %2405
    %2407 = vadd.xlane.f32.xlu0 %v1536
    %v2408 = vpop.xlane.xlu0 %2407
    %2409 = vadd.xlane.f32.xlu0 %v1537
    %v2410 = vpop.xlane.xlu0 %2409
    %2411 = vadd.xlane.f32.xlu0 %v1538
    %v2412 = vpop.xlane.xlu0 %2411
    %2413 = vadd.xlane.f32.xlu0 %v1539
    %v2414 = vpop.xlane.xlu0 %2413
    %2415 = vadd.xlane.f32.xlu0 %v1540
    %v2416 = vpop.xlane.xlu0 %2415
    %2417 = vadd.xlane.f32.xlu0 %v1541
    %v2418 = vpop.xlane.xlu0 %2417
    %2419 = vadd.xlane.f32.xlu0 %v1542
    %v2420 = vpop.xlane.xlu0 %2419
    %2421 = vadd.xlane.f32.xlu0 %v1543
    %v2422 = vpop.xlane.xlu0 %2421
    %2423 = vadd.xlane.f32.xlu0 %v1544
    %v2424 = vpop.xlane.xlu0 %2423
    %2425 = vadd.xlane.f32.xlu0 %v1545
    %v2426 = vpop.xlane.xlu0 %2425
    %2427 = vadd.xlane.f32.xlu0 %v1546
    %v2428 = vpop.xlane.xlu0 %2427
    %2429 = vadd.xlane.f32.xlu0 %v1547
    %v2430 = vpop.xlane.xlu0 %2429
    %2431 = vadd.xlane.f32.xlu0 %v1548
    %v2432 = vpop.xlane.xlu0 %2431
    %2433 = vadd.xlane.f32.xlu0 %v1549
    %v2434 = vpop.xlane.xlu0 %2433
    %2435 = vadd.xlane.f32.xlu0 %v1550
    %v2436 = vpop.xlane.xlu0 %2435
    %2437 = vadd.xlane.f32.xlu0 %v1551
    %v2438 = vpop.xlane.xlu0 %2437
    %2439 = vadd.xlane.f32.xlu0 %v1552
    %v2440 = vpop.xlane.xlu0 %2439
    %2441 = vadd.xlane.f32.xlu0 %v1553
    %v2442 = vpop.xlane.xlu0 %2441
    %2443 = vadd.xlane.f32.xlu0 %v1554
    %v2444 = vpop.xlane.xlu0 %2443
    %2445 = vadd.xlane.f32.xlu0 %v1555
    %v2446 = vpop.xlane.xlu0 %2445
    %2447 = vadd.xlane.f32.xlu0 %v1556
    %v2448 = vpop.xlane.xlu0 %2447
    %2449 = vadd.xlane.f32.xlu0 %v1557
    %v2450 = vpop.xlane.xlu0 %2449
    %2451 = vadd.xlane.f32.xlu0 %v1558
    %v2452 = vpop.xlane.xlu0 %2451
    %2453 = vadd.xlane.f32.xlu0 %v1559
    %v2454 = vpop.xlane.xlu0 %2453
    %2455 = vadd.xlane.f32.xlu0 %v1560
    %v2456 = vpop.xlane.xlu0 %2455
    %2457 = vadd.xlane.f32.xlu0 %v1561
    %v2458 = vpop.xlane.xlu0 %2457
    %2459 = vadd.xlane.f32.xlu0 %v1562
    %v2460 = vpop.xlane.xlu0 %2459
    %2461 = vadd.xlane.f32.xlu0 %v1563
    %v2462 = vpop.xlane.xlu0 %2461
    %2463 = vadd.xlane.f32.xlu0 %v1564
    %v2464 = vpop.xlane.xlu0 %2463
    %2465 = vadd.xlane.f32.xlu0 %v1565
    %v2466 = vpop.xlane.xlu0 %2465
    %2467 = vadd.xlane.f32.xlu0 %v1566
    %v2468 = vpop.xlane.xlu0 %2467
    %2469 = vadd.xlane.f32.xlu0 %v1567
    %v2470 = vpop.xlane.xlu0 %2469
    %2471 = vadd.xlane.f32.xlu0 %v1568
    %v2472 = vpop.xlane.xlu0 %2471
    %2473 = vadd.xlane.f32.xlu0 %v1569
    %v2474 = vpop.xlane.xlu0 %2473
    %2475 = vadd.xlane.f32.xlu0 %v1570
    %v2476 = vpop.xlane.xlu0 %2475
    %2477 = vadd.xlane.f32.xlu0 %v1571
    %v2478 = vpop.xlane.xlu0 %2477
    %2479 = vadd.xlane.f32.xlu0 %v1572
    %v2480 = vpop.xlane.xlu0 %2479
    %2481 = vadd.xlane.f32.xlu0 %v1573
    %v2482 = vpop.xlane.xlu0 %2481
    %2483 = vadd.xlane.f32.xlu0 %v1574
    %v2484 = vpop.xlane.xlu0 %2483
    %2485 = vadd.xlane.f32.xlu0 %v1575
    %v2486 = vpop.xlane.xlu0 %2485
    %2487 = vadd.xlane.f32.xlu0 %v1576
    %v2488 = vpop.xlane.xlu0 %2487
    %2489 = vadd.xlane.f32.xlu0 %v1577
    %v2490 = vpop.xlane.xlu0 %2489
    %2491 = vadd.xlane.f32.xlu0 %v1578
    %v2492 = vpop.xlane.xlu0 %2491
    %2493 = vadd.xlane.f32.xlu0 %v1579
    %v2494 = vpop.xlane.xlu0 %2493
    %2495 = vadd.xlane.f32.xlu0 %v1580
    %v2496 = vpop.xlane.xlu0 %2495
    %2497 = vadd.xlane.f32.xlu0 %v1581
    %v2498 = vpop.xlane.xlu0 %2497
    %2499 = vadd.xlane.f32.xlu0 %v1582
    %v2500 = vpop.xlane.xlu0 %2499
    %2501 = vadd.xlane.f32.xlu0 %v1583
    %v2502 = vpop.xlane.xlu0 %2501
    %2503 = vadd.xlane.f32.xlu0 %v1584
    %v2504 = vpop.xlane.xlu0 %2503
    %2505 = vadd.xlane.f32.xlu0 %v1585
    %v2506 = vpop.xlane.xlu0 %2505
    %2507 = vadd.xlane.f32.xlu0 %v1586
    %v2508 = vpop.xlane.xlu0 %2507
    %2509 = vadd.xlane.f32.xlu0 %v1587
    %v2510 = vpop.xlane.xlu0 %2509
    %2511 = vadd.xlane.f32.xlu0 %v1588
    %v2512 = vpop.xlane.xlu0 %2511
    %2513 = vadd.xlane.f32.xlu0 %v1589
    %v2514 = vpop.xlane.xlu0 %2513
    %2515 = vadd.xlane.f32.xlu0 %v1590
    %v2516 = vpop.xlane.xlu0 %2515
    %2517 = vadd.xlane.f32.xlu0 %v1591
    %v2518 = vpop.xlane.xlu0 %2517
    %2519 = vadd.xlane.f32.xlu0 %v1592
    %v2520 = vpop.xlane.xlu0 %2519
    %2521 = vadd.xlane.f32.xlu0 %v1593
    %v2522 = vpop.xlane.xlu0 %2521
    %2523 = vadd.xlane.f32.xlu0 %v1594
    %v2524 = vpop.xlane.xlu0 %2523
    %2525 = vadd.xlane.f32.xlu0 %v1595
    %v2526 = vpop.xlane.xlu0 %2525
    %2527 = vadd.xlane.f32.xlu0 %v1596
    %v2528 = vpop.xlane.xlu0 %2527
    %2529 = vadd.xlane.f32.xlu0 %v1597
    %v2530 = vpop.xlane.xlu0 %2529
    %2531 = vadd.xlane.f32.xlu0 %v1598
    %v2532 = vpop.xlane.xlu0 %2531
    %2533 = vadd.xlane.f32.xlu0 %v1599
    %v2534 = vpop.xlane.xlu0 %2533
    %2535 = vadd.xlane.f32.xlu0 %v1600
    %v2536 = vpop.xlane.xlu0 %2535
    %2537 = vadd.xlane.f32.xlu0 %v1601
    %v2538 = vpop.xlane.xlu0 %2537
    %2539 = vadd.xlane.f32.xlu0 %v1602
    %v2540 = vpop.xlane.xlu0 %2539
    %2541 = vadd.xlane.f32.xlu0 %v1603
    %v2542 = vpop.xlane.xlu0 %2541
    %2543 = vadd.xlane.f32.xlu0 %v1604
    %v2544 = vpop.xlane.xlu0 %2543
    %2545 = vadd.xlane.f32.xlu0 %v1605
    %v2546 = vpop.xlane.xlu0 %2545
    %2547 = vadd.xlane.f32.xlu0 %v1606
    %v2548 = vpop.xlane.xlu0 %2547
    %2549 = vadd.xlane.f32.xlu0 %v1607
    %v2550 = vpop.xlane.xlu0 %2549
    %2551 = vadd.xlane.f32.xlu0 %v1608
    %v2552 = vpop.xlane.xlu0 %2551
    %2553 = vadd.xlane.f32.xlu0 %v1609
    %v2554 = vpop.xlane.xlu0 %2553
    %2555 = vadd.xlane.f32.xlu0 %v1610
    %v2556 = vpop.xlane.xlu0 %2555
    %2557 = vadd.xlane.f32.xlu0 %v1611
    %v2558 = vpop.xlane.xlu0 %2557
    %2559 = vadd.xlane.f32.xlu0 %v1612
    %v2560 = vpop.xlane.xlu0 %2559
    %2561 = vadd.xlane.f32.xlu0 %v1613
    %v2562 = vpop.xlane.xlu0 %2561
    %2563 = vadd.xlane.f32.xlu0 %v1614
    %v2564 = vpop.xlane.xlu0 %2563
    %2565 = vadd.xlane.f32.xlu0 %v1615
    %v2566 = vpop.xlane.xlu0 %2565
    %2567 = vadd.xlane.f32.xlu0 %v1616
    %v2568 = vpop.xlane.xlu0 %2567
    %2569 = vadd.xlane.f32.xlu0 %v1617
    %v2570 = vpop.xlane.xlu0 %2569
    %2571 = vadd.xlane.f32.xlu0 %v1618
    %v2572 = vpop.xlane.xlu0 %2571
    %2573 = vadd.xlane.f32.xlu0 %v1619
    %v2574 = vpop.xlane.xlu0 %2573
    %2575 = vadd.xlane.f32.xlu0 %v1620
    %v2576 = vpop.xlane.xlu0 %2575
    %2577 = vadd.xlane.f32.xlu0 %v1621
    %v2578 = vpop.xlane.xlu0 %2577
    %2579 = vadd.xlane.f32.xlu0 %v1622
    %v2580 = vpop.xlane.xlu0 %2579
    %2581 = vadd.xlane.f32.xlu0 %v1623
    %v2582 = vpop.xlane.xlu0 %2581
    %2583 = vadd.xlane.f32.xlu0 %v1624
    %v2584 = vpop.xlane.xlu0 %2583
    %2585 = vadd.xlane.f32.xlu0 %v1625
    %v2586 = vpop.xlane.xlu0 %2585
    %2587 = vadd.xlane.f32.xlu0 %v1626
    %v2588 = vpop.xlane.xlu0 %2587
    %2589 = vadd.xlane.f32.xlu0 %v1627
    %v2590 = vpop.xlane.xlu0 %2589
    %2591 = vadd.xlane.f32.xlu0 %v1628
    %v2592 = vpop.xlane.xlu0 %2591
    %2593 = vadd.xlane.f32.xlu0 %v1629
    %v2594 = vpop.xlane.xlu0 %2593
    %2595 = vadd.xlane.f32.xlu0 %v1630
    %v2596 = vpop.xlane.xlu0 %2595
    %2597 = vadd.xlane.f32.xlu0 %v1631
    %v2598 = vpop.xlane.xlu0 %2597
    %2599 = vadd.xlane.f32.xlu0 %v1632
    %v2600 = vpop.xlane.xlu0 %2599
    %2601 = vadd.xlane.f32.xlu0 %v1633
    %v2602 = vpop.xlane.xlu0 %2601
    %2603 = vadd.xlane.f32.xlu0 %v1634
    %v2604 = vpop.xlane.xlu0 %2603
    %2605 = vadd.xlane.f32.xlu0 %v1635
    %v2606 = vpop.xlane.xlu0 %2605
    %2607 = vadd.xlane.f32.xlu0 %v1636
    %v2608 = vpop.xlane.xlu0 %2607
    %2609 = vadd.xlane.f32.xlu0 %v1637
    %v2610 = vpop.xlane.xlu0 %2609
    %2611 = vadd.xlane.f32.xlu0 %v1638
    %v2612 = vpop.xlane.xlu0 %2611
    %2613 = vadd.xlane.f32.xlu0 %v1639
    %v2614 = vpop.xlane.xlu0 %2613
    %2615 = vadd.xlane.f32.xlu0 %v1640
    %v2616 = vpop.xlane.xlu0 %2615
    %2617 = vadd.xlane.f32.xlu0 %v1641
    %v2618 = vpop.xlane.xlu0 %2617
    %2619 = vadd.xlane.f32.xlu0 %v1642
    %v2620 = vpop.xlane.xlu0 %2619
    %2621 = vadd.xlane.f32.xlu0 %v1643
    %v2622 = vpop.xlane.xlu0 %2621
    %2623 = vadd.xlane.f32.xlu0 %v1644
    %v2624 = vpop.xlane.xlu0 %2623
    %2625 = vadd.xlane.f32.xlu0 %v1645
    %v2626 = vpop.xlane.xlu0 %2625
    %2627 = vadd.xlane.f32.xlu0 %v1646
    %v2628 = vpop.xlane.xlu0 %2627
    %2629 = vadd.xlane.f32.xlu0 %v1647
    %v2630 = vpop.xlane.xlu0 %2629
    %2631 = vadd.xlane.f32.xlu0 %v1648
    %v2632 = vpop.xlane.xlu0 %2631
    %2633 = vadd.xlane.f32.xlu0 %v1649
    %v2634 = vpop.xlane.xlu0 %2633
    %2635 = vadd.xlane.f32.xlu0 %v1650
    %v2636 = vpop.xlane.xlu0 %2635
    %2637 = vadd.xlane.f32.xlu0 %v1651
    %v2638 = vpop.xlane.xlu0 %2637
    %2639 = vadd.xlane.f32.xlu0 %v1652
    %v2640 = vpop.xlane.xlu0 %2639
    %2641 = vadd.xlane.f32.xlu0 %v1653
    %v2642 = vpop.xlane.xlu0 %2641
    %2643 = vadd.xlane.f32.xlu0 %v1654
    %v2644 = vpop.xlane.xlu0 %2643
    %2645 = vadd.xlane.f32.xlu0 %v1655
    %v2646 = vpop.xlane.xlu0 %2645
    %2647 = vadd.xlane.f32.xlu0 %v1656
    %v2648 = vpop.xlane.xlu0 %2647
    %2649 = vadd.xlane.f32.xlu0 %v1657
    %v2650 = vpop.xlane.xlu0 %2649
    %2651 = vadd.xlane.f32.xlu0 %v1658
    %v2652 = vpop.xlane.xlu0 %2651
    %2653 = vadd.xlane.f32.xlu0 %v1659
    %v2654 = vpop.xlane.xlu0 %2653
    %2655 = vadd.xlane.f32.xlu0 %v1660
    %v2656 = vpop.xlane.xlu0 %2655
    %2657 = vadd.xlane.f32.xlu0 %v1661
    %v2658 = vpop.xlane.xlu0 %2657
    %2659 = vadd.xlane.f32.xlu0 %v1662
    %v2660 = vpop.xlane.xlu0 %2659
    %2661 = vadd.xlane.f32.xlu0 %v1663
    %v2662 = vpop.xlane.xlu0 %2661
    %2663 = vadd.xlane.f32.xlu0 %v1664
    %v2664 = vpop.xlane.xlu0 %2663
    %2665 = vadd.xlane.f32.xlu0 %v1665
    %v2666 = vpop.xlane.xlu0 %2665
    %2667 = vadd.xlane.f32.xlu0 %v1666
    %v2668 = vpop.xlane.xlu0 %2667
    %2669 = vadd.xlane.f32.xlu0 %v1667
    %v2670 = vpop.xlane.xlu0 %2669
    %2671 = vadd.xlane.f32.xlu0 %v1668
    %v2672 = vpop.xlane.xlu0 %2671
    %2673 = vadd.xlane.f32.xlu0 %v1669
    %v2674 = vpop.xlane.xlu0 %2673
    %2675 = vadd.xlane.f32.xlu0 %v1670
    %v2676 = vpop.xlane.xlu0 %2675
    %2677 = vadd.xlane.f32.xlu0 %v1671
    %v2678 = vpop.xlane.xlu0 %2677
    %2679 = vadd.xlane.f32.xlu0 %v1672
    %v2680 = vpop.xlane.xlu0 %2679
    %2681 = vadd.xlane.f32.xlu0 %v1673
    %v2682 = vpop.xlane.xlu0 %2681
    %2683 = vadd.xlane.f32.xlu0 %v1674
    %v2684 = vpop.xlane.xlu0 %2683
    %2685 = vadd.xlane.f32.xlu0 %v1675
    %v2686 = vpop.xlane.xlu0 %2685
    %2687 = vadd.xlane.f32.xlu0 %v1676
    %v2688 = vpop.xlane.xlu0 %2687
    %2689 = vadd.xlane.f32.xlu0 %v1677
    %v2690 = vpop.xlane.xlu0 %2689
    %2691 = vadd.xlane.f32.xlu0 %v1678
    %v2692 = vpop.xlane.xlu0 %2691
    %2693 = vadd.xlane.f32.xlu0 %v1679
    %v2694 = vpop.xlane.xlu0 %2693
    %2695 = vadd.xlane.f32.xlu0 %v1680
    %v2696 = vpop.xlane.xlu0 %2695
    %2697 = vadd.xlane.f32.xlu0 %v1681
    %v2698 = vpop.xlane.xlu0 %2697
    %2699 = vadd.xlane.f32.xlu0 %v1682
    %v2700 = vpop.xlane.xlu0 %2699
    %2701 = vadd.xlane.f32.xlu0 %v1683
    %v2702 = vpop.xlane.xlu0 %2701
    %2703 = vadd.xlane.f32.xlu0 %v1684
    %v2704 = vpop.xlane.xlu0 %2703
    %2705 = vadd.xlane.f32.xlu0 %v1685
    %v2706 = vpop.xlane.xlu0 %2705
    %2707 = vadd.xlane.f32.xlu0 %v1686
    %v2708 = vpop.xlane.xlu0 %2707
    %2709 = vadd.xlane.f32.xlu0 %v1687
    %v2710 = vpop.xlane.xlu0 %2709
    %2711 = vadd.xlane.f32.xlu0 %v1688
    %v2712 = vpop.xlane.xlu0 %2711
    %v2713 = vmul.f32 %v1690, 0.0078125
    %v2714 = vmul.f32 %v1692, 0.0078125
    %v2715 = vmul.f32 %v1694, 0.0078125
    %v2716 = vmul.f32 %v1696, 0.0078125
    %v2717 = vmul.f32 %v1698, 0.0078125
    %v2718 = vmul.f32 %v1700, 0.0078125
    %v2719 = vmul.f32 %v1702, 0.0078125
    %v2720 = vmul.f32 %v1704, 0.0078125
    %v2721 = vmul.f32 %v1706, 0.0078125
    %v2722 = vmul.f32 %v1708, 0.0078125
    %v2723 = vmul.f32 %v1710, 0.0078125
    %v2724 = vmul.f32 %v1712, 0.0078125
    %v2725 = vmul.f32 %v1714, 0.0078125
    %v2726 = vmul.f32 %v1716, 0.0078125
    %v2727 = vmul.f32 %v1718, 0.0078125
    %v2728 = vmul.f32 %v1720, 0.0078125
    %v2729 = vmul.f32 %v1722, 0.0078125
    %v2730 = vmul.f32 %v1724, 0.0078125
    %v2731 = vmul.f32 %v1726, 0.0078125
    %v2732 = vmul.f32 %v1728, 0.0078125
    %v2733 = vmul.f32 %v1730, 0.0078125
    %v2734 = vmul.f32 %v1732, 0.0078125
    %v2735 = vmul.f32 %v1734, 0.0078125
    %v2736 = vmul.f32 %v1736, 0.0078125
    %v2737 = vmul.f32 %v1738, 0.0078125
    %v2738 = vmul.f32 %v1740, 0.0078125
    %v2739 = vmul.f32 %v1742, 0.0078125
    %v2740 = vmul.f32 %v1744, 0.0078125
    %v2741 = vmul.f32 %v1746, 0.0078125
    %v2742 = vmul.f32 %v1748, 0.0078125
    %v2743 = vmul.f32 %v1750, 0.0078125
    %v2744 = vmul.f32 %v1752, 0.0078125
    %v2745 = vmul.f32 %v1754, 0.0078125
    %v2746 = vmul.f32 %v1756, 0.0078125
    %v2747 = vmul.f32 %v1758, 0.0078125
    %v2748 = vmul.f32 %v1760, 0.0078125
    %v2749 = vmul.f32 %v1762, 0.0078125
    %v2750 = vmul.f32 %v1764, 0.0078125
    %v2751 = vmul.f32 %v1766, 0.0078125
    %v2752 = vmul.f32 %v1768, 0.0078125
    %v2753 = vmul.f32 %v1770, 0.0078125
    %v2754 = vmul.f32 %v1772, 0.0078125
    %v2755 = vmul.f32 %v1774, 0.0078125
    %v2756 = vmul.f32 %v1776, 0.0078125
    %v2757 = vmul.f32 %v1778, 0.0078125
    %v2758 = vmul.f32 %v1780, 0.0078125
    %v2759 = vmul.f32 %v1782, 0.0078125
    %v2760 = vmul.f32 %v1784, 0.0078125
    %v2761 = vmul.f32 %v1786, 0.0078125
    %v2762 = vmul.f32 %v1788, 0.0078125
    %v2763 = vmul.f32 %v1790, 0.0078125
    %v2764 = vmul.f32 %v1792, 0.0078125
    %v2765 = vmul.f32 %v1794, 0.0078125
    %v2766 = vmul.f32 %v1796, 0.0078125
    %v2767 = vmul.f32 %v1798, 0.0078125
    %v2768 = vmul.f32 %v1800, 0.0078125
    %v2769 = vmul.f32 %v1802, 0.0078125
    %v2770 = vmul.f32 %v1804, 0.0078125
    %v2771 = vmul.f32 %v1806, 0.0078125
    %v2772 = vmul.f32 %v1808, 0.0078125
    %v2773 = vmul.f32 %v1810, 0.0078125
    %v2774 = vmul.f32 %v1812, 0.0078125
    %v2775 = vmul.f32 %v1814, 0.0078125
    %v2776 = vmul.f32 %v1816, 0.0078125
    %v2777 = vmul.f32 %v1818, 0.0078125
    %v2778 = vmul.f32 %v1820, 0.0078125
    %v2779 = vmul.f32 %v1822, 0.0078125
    %v2780 = vmul.f32 %v1824, 0.0078125
    %v2781 = vmul.f32 %v1826, 0.0078125
    %v2782 = vmul.f32 %v1828, 0.0078125
    %v2783 = vmul.f32 %v1830, 0.0078125
    %v2784 = vmul.f32 %v1832, 0.0078125
    %v2785 = vmul.f32 %v1834, 0.0078125
    %v2786 = vmul.f32 %v1836, 0.0078125
    %v2787 = vmul.f32 %v1838, 0.0078125
    %v2788 = vmul.f32 %v1840, 0.0078125
    %v2789 = vmul.f32 %v1842, 0.0078125
    %v2790 = vmul.f32 %v1844, 0.0078125
    %v2791 = vmul.f32 %v1846, 0.0078125
    %v2792 = vmul.f32 %v1848, 0.0078125
    %v2793 = vmul.f32 %v1850, 0.0078125
    %v2794 = vmul.f32 %v1852, 0.0078125
    %v2795 = vmul.f32 %v1854, 0.0078125
    %v2796 = vmul.f32 %v1856, 0.0078125
    %v2797 = vmul.f32 %v1858, 0.0078125
    %v2798 = vmul.f32 %v1860, 0.0078125
    %v2799 = vmul.f32 %v1862, 0.0078125
    %v2800 = vmul.f32 %v1864, 0.0078125
    %v2801 = vmul.f32 %v1866, 0.0078125
    %v2802 = vmul.f32 %v1868, 0.0078125
    %v2803 = vmul.f32 %v1870, 0.0078125
    %v2804 = vmul.f32 %v1872, 0.0078125
    %v2805 = vmul.f32 %v1874, 0.0078125
    %v2806 = vmul.f32 %v1876, 0.0078125
    %v2807 = vmul.f32 %v1878, 0.0078125
    %v2808 = vmul.f32 %v1880, 0.0078125
    %v2809 = vmul.f32 %v1882, 0.0078125
    %v2810 = vmul.f32 %v1884, 0.0078125
    %v2811 = vmul.f32 %v1886, 0.0078125
    %v2812 = vmul.f32 %v1888, 0.0078125
    %v2813 = vmul.f32 %v1890, 0.0078125
    %v2814 = vmul.f32 %v1892, 0.0078125
    %v2815 = vmul.f32 %v1894, 0.0078125
    %v2816 = vmul.f32 %v1896, 0.0078125
    %v2817 = vmul.f32 %v1898, 0.0078125
    %v2818 = vmul.f32 %v1900, 0.0078125
    %v2819 = vmul.f32 %v1902, 0.0078125
    %v2820 = vmul.f32 %v1904, 0.0078125
    %v2821 = vmul.f32 %v1906, 0.0078125
    %v2822 = vmul.f32 %v1908, 0.0078125
    %v2823 = vmul.f32 %v1910, 0.0078125
    %v2824 = vmul.f32 %v1912, 0.0078125
    %v2825 = vmul.f32 %v1914, 0.0078125
    %v2826 = vmul.f32 %v1916, 0.0078125
    %v2827 = vmul.f32 %v1918, 0.0078125
    %v2828 = vmul.f32 %v1920, 0.0078125
    %v2829 = vmul.f32 %v1922, 0.0078125
    %v2830 = vmul.f32 %v1924, 0.0078125
    %v2831 = vmul.f32 %v1926, 0.0078125
    %v2832 = vmul.f32 %v1928, 0.0078125
    %v2833 = vmul.f32 %v1930, 0.0078125
    %v2834 = vmul.f32 %v1932, 0.0078125
    %v2835 = vmul.f32 %v1934, 0.0078125
    %v2836 = vmul.f32 %v1936, 0.0078125
    %v2837 = vmul.f32 %v1938, 0.0078125
    %v2838 = vmul.f32 %v1940, 0.0078125
    %v2839 = vmul.f32 %v1942, 0.0078125
    %v2840 = vmul.f32 %v1944, 0.0078125
    %v2841 = vmul.f32 %v1946, 0.0078125
    %v2842 = vmul.f32 %v1948, 0.0078125
    %v2843 = vmul.f32 %v1950, 0.0078125
    %v2844 = vmul.f32 %v1952, 0.0078125
    %v2845 = vmul.f32 %v1954, 0.0078125
    %v2846 = vmul.f32 %v1956, 0.0078125
    %v2847 = vmul.f32 %v1958, 0.0078125
    %v2848 = vmul.f32 %v1960, 0.0078125
    %v2849 = vmul.f32 %v1962, 0.0078125
    %v2850 = vmul.f32 %v1964, 0.0078125
    %v2851 = vmul.f32 %v1966, 0.0078125
    %v2852 = vmul.f32 %v1968, 0.0078125
    %v2853 = vmul.f32 %v1970, 0.0078125
    %v2854 = vmul.f32 %v1972, 0.0078125
    %v2855 = vmul.f32 %v1974, 0.0078125
    %v2856 = vmul.f32 %v1976, 0.0078125
    %v2857 = vmul.f32 %v1978, 0.0078125
    %v2858 = vmul.f32 %v1980, 0.0078125
    %v2859 = vmul.f32 %v1982, 0.0078125
    %v2860 = vmul.f32 %v1984, 0.0078125
    %v2861 = vmul.f32 %v1986, 0.0078125
    %v2862 = vmul.f32 %v1988, 0.0078125
    %v2863 = vmul.f32 %v1990, 0.0078125
    %v2864 = vmul.f32 %v1992, 0.0078125
    %v2865 = vmul.f32 %v1994, 0.0078125
    %v2866 = vmul.f32 %v1996, 0.0078125
    %v2867 = vmul.f32 %v1998, 0.0078125
    %v2868 = vmul.f32 %v2000, 0.0078125
    %v2869 = vmul.f32 %v2002, 0.0078125
    %v2870 = vmul.f32 %v2004, 0.0078125
    %v2871 = vmul.f32 %v2006, 0.0078125
    %v2872 = vmul.f32 %v2008, 0.0078125
    %v2873 = vmul.f32 %v2010, 0.0078125
    %v2874 = vmul.f32 %v2012, 0.0078125
    %v2875 = vmul.f32 %v2014, 0.0078125
    %v2876 = vmul.f32 %v2016, 0.0078125
    %v2877 = vmul.f32 %v2018, 0.0078125
    %v2878 = vmul.f32 %v2020, 0.0078125
    %v2879 = vmul.f32 %v2022, 0.0078125
    %v2880 = vmul.f32 %v2024, 0.0078125
    %v2881 = vmul.f32 %v2026, 0.0078125
    %v2882 = vmul.f32 %v2028, 0.0078125
    %v2883 = vmul.f32 %v2030, 0.0078125
    %v2884 = vmul.f32 %v2032, 0.0078125
    %v2885 = vmul.f32 %v2034, 0.0078125
    %v2886 = vmul.f32 %v2036, 0.0078125
    %v2887 = vmul.f32 %v2038, 0.0078125
    %v2888 = vmul.f32 %v2040, 0.0078125
    %v2889 = vmul.f32 %v2042, 0.0078125
    %v2890 = vmul.f32 %v2044, 0.0078125
    %v2891 = vmul.f32 %v2046, 0.0078125
    %v2892 = vmul.f32 %v2048, 0.0078125
    %v2893 = vmul.f32 %v2050, 0.0078125
    %v2894 = vmul.f32 %v2052, 0.0078125
    %v2895 = vmul.f32 %v2054, 0.0078125
    %v2896 = vmul.f32 %v2056, 0.0078125
    %v2897 = vmul.f32 %v2058, 0.0078125
    %v2898 = vmul.f32 %v2060, 0.0078125
    %v2899 = vmul.f32 %v2062, 0.0078125
    %v2900 = vmul.f32 %v2064, 0.0078125
    %v2901 = vmul.f32 %v2066, 0.0078125
    %v2902 = vmul.f32 %v2068, 0.0078125
    %v2903 = vmul.f32 %v2070, 0.0078125
    %v2904 = vmul.f32 %v2072, 0.0078125
    %v2905 = vmul.f32 %v2074, 0.0078125
    %v2906 = vmul.f32 %v2076, 0.0078125
    %v2907 = vmul.f32 %v2078, 0.0078125
    %v2908 = vmul.f32 %v2080, 0.0078125
    %v2909 = vmul.f32 %v2082, 0.0078125
    %v2910 = vmul.f32 %v2084, 0.0078125
    %v2911 = vmul.f32 %v2086, 0.0078125
    %v2912 = vmul.f32 %v2088, 0.0078125
    %v2913 = vmul.f32 %v2090, 0.0078125
    %v2914 = vmul.f32 %v2092, 0.0078125
    %v2915 = vmul.f32 %v2094, 0.0078125
    %v2916 = vmul.f32 %v2096, 0.0078125
    %v2917 = vmul.f32 %v2098, 0.0078125
    %v2918 = vmul.f32 %v2100, 0.0078125
    %v2919 = vmul.f32 %v2102, 0.0078125
    %v2920 = vmul.f32 %v2104, 0.0078125
    %v2921 = vmul.f32 %v2106, 0.0078125
    %v2922 = vmul.f32 %v2108, 0.0078125
    %v2923 = vmul.f32 %v2110, 0.0078125
    %v2924 = vmul.f32 %v2112, 0.0078125
    %v2925 = vmul.f32 %v2114, 0.0078125
    %v2926 = vmul.f32 %v2116, 0.0078125
    %v2927 = vmul.f32 %v2118, 0.0078125
    %v2928 = vmul.f32 %v2120, 0.0078125
    %v2929 = vmul.f32 %v2122, 0.0078125
    %v2930 = vmul.f32 %v2124, 0.0078125
    %v2931 = vmul.f32 %v2126, 0.0078125
    %v2932 = vmul.f32 %v2128, 0.0078125
    %v2933 = vmul.f32 %v2130, 0.0078125
    %v2934 = vmul.f32 %v2132, 0.0078125
    %v2935 = vmul.f32 %v2134, 0.0078125
    %v2936 = vmul.f32 %v2136, 0.0078125
    %v2937 = vmul.f32 %v2138, 0.0078125
    %v2938 = vmul.f32 %v2140, 0.0078125
    %v2939 = vmul.f32 %v2142, 0.0078125
    %v2940 = vmul.f32 %v2144, 0.0078125
    %v2941 = vmul.f32 %v2146, 0.0078125
    %v2942 = vmul.f32 %v2148, 0.0078125
    %v2943 = vmul.f32 %v2150, 0.0078125
    %v2944 = vmul.f32 %v2152, 0.0078125
    %v2945 = vmul.f32 %v2154, 0.0078125
    %v2946 = vmul.f32 %v2156, 0.0078125
    %v2947 = vmul.f32 %v2158, 0.0078125
    %v2948 = vmul.f32 %v2160, 0.0078125
    %v2949 = vmul.f32 %v2162, 0.0078125
    %v2950 = vmul.f32 %v2164, 0.0078125
    %v2951 = vmul.f32 %v2166, 0.0078125
    %v2952 = vmul.f32 %v2168, 0.0078125
    %v2953 = vmul.f32 %v2170, 0.0078125
    %v2954 = vmul.f32 %v2172, 0.0078125
    %v2955 = vmul.f32 %v2174, 0.0078125
    %v2956 = vmul.f32 %v2176, 0.0078125
    %v2957 = vmul.f32 %v2178, 0.0078125
    %v2958 = vmul.f32 %v2180, 0.0078125
    %v2959 = vmul.f32 %v2182, 0.0078125
    %v2960 = vmul.f32 %v2184, 0.0078125
    %v2961 = vmul.f32 %v2186, 0.0078125
    %v2962 = vmul.f32 %v2188, 0.0078125
    %v2963 = vmul.f32 %v2190, 0.0078125
    %v2964 = vmul.f32 %v2192, 0.0078125
    %v2965 = vmul.f32 %v2194, 0.0078125
    %v2966 = vmul.f32 %v2196, 0.0078125
    %v2967 = vmul.f32 %v2198, 0.0078125
    %v2968 = vmul.f32 %v2200, 0.0078125
    %v2969 = vmul.f32 %v2202, 0.0078125
    %v2970 = vmul.f32 %v2204, 0.0078125
    %v2971 = vmul.f32 %v2206, 0.0078125
    %v2972 = vmul.f32 %v2208, 0.0078125
    %v2973 = vmul.f32 %v2210, 0.0078125
    %v2974 = vmul.f32 %v2212, 0.0078125
    %v2975 = vmul.f32 %v2214, 0.0078125
    %v2976 = vmul.f32 %v2216, 0.0078125
    %v2977 = vmul.f32 %v2218, 0.0078125
    %v2978 = vmul.f32 %v2220, 0.0078125
    %v2979 = vmul.f32 %v2222, 0.0078125
    %v2980 = vmul.f32 %v2224, 0.0078125
    %v2981 = vmul.f32 %v2226, 0.0078125
    %v2982 = vmul.f32 %v2228, 0.0078125
    %v2983 = vmul.f32 %v2230, 0.0078125
    %v2984 = vmul.f32 %v2232, 0.0078125
    %v2985 = vmul.f32 %v2234, 0.0078125
    %v2986 = vmul.f32 %v2236, 0.0078125
    %v2987 = vmul.f32 %v2238, 0.0078125
    %v2988 = vmul.f32 %v2240, 0.0078125
    %v2989 = vmul.f32 %v2242, 0.0078125
    %v2990 = vmul.f32 %v2244, 0.0078125
    %v2991 = vmul.f32 %v2246, 0.0078125
    %v2992 = vmul.f32 %v2248, 0.0078125
    %v2993 = vmul.f32 %v2250, 0.0078125
    %v2994 = vmul.f32 %v2252, 0.0078125
    %v2995 = vmul.f32 %v2254, 0.0078125
    %v2996 = vmul.f32 %v2256, 0.0078125
    %v2997 = vmul.f32 %v2258, 0.0078125
    %v2998 = vmul.f32 %v2260, 0.0078125
    %v2999 = vmul.f32 %v2262, 0.0078125
    %v3000 = vmul.f32 %v2264, 0.0078125
    %v3001 = vmul.f32 %v2266, 0.0078125
    %v3002 = vmul.f32 %v2268, 0.0078125
    %v3003 = vmul.f32 %v2270, 0.0078125
    %v3004 = vmul.f32 %v2272, 0.0078125
    %v3005 = vmul.f32 %v2274, 0.0078125
    %v3006 = vmul.f32 %v2276, 0.0078125
    %v3007 = vmul.f32 %v2278, 0.0078125
    %v3008 = vmul.f32 %v2280, 0.0078125
    %v3009 = vmul.f32 %v2282, 0.0078125
    %v3010 = vmul.f32 %v2284, 0.0078125
    %v3011 = vmul.f32 %v2286, 0.0078125
    %v3012 = vmul.f32 %v2288, 0.0078125
    %v3013 = vmul.f32 %v2290, 0.0078125
    %v3014 = vmul.f32 %v2292, 0.0078125
    %v3015 = vmul.f32 %v2294, 0.0078125
    %v3016 = vmul.f32 %v2296, 0.0078125
    %v3017 = vmul.f32 %v2298, 0.0078125
    %v3018 = vmul.f32 %v2300, 0.0078125
    %v3019 = vmul.f32 %v2302, 0.0078125
    %v3020 = vmul.f32 %v2304, 0.0078125
    %v3021 = vmul.f32 %v2306, 0.0078125
    %v3022 = vmul.f32 %v2308, 0.0078125
    %v3023 = vmul.f32 %v2310, 0.0078125
    %v3024 = vmul.f32 %v2312, 0.0078125
    %v3025 = vmul.f32 %v2314, 0.0078125
    %v3026 = vmul.f32 %v2316, 0.0078125
    %v3027 = vmul.f32 %v2318, 0.0078125
    %v3028 = vmul.f32 %v2320, 0.0078125
    %v3029 = vmul.f32 %v2322, 0.0078125
    %v3030 = vmul.f32 %v2324, 0.0078125
    %v3031 = vmul.f32 %v2326, 0.0078125
    %v3032 = vmul.f32 %v2328, 0.0078125
    %v3033 = vmul.f32 %v2330, 0.0078125
    %v3034 = vmul.f32 %v2332, 0.0078125
    %v3035 = vmul.f32 %v2334, 0.0078125
    %v3036 = vmul.f32 %v2336, 0.0078125
    %v3037 = vmul.f32 %v2338, 0.0078125
    %v3038 = vmul.f32 %v2340, 0.0078125
    %v3039 = vmul.f32 %v2342, 0.0078125
    %v3040 = vmul.f32 %v2344, 0.0078125
    %v3041 = vmul.f32 %v2346, 0.0078125
    %v3042 = vmul.f32 %v2348, 0.0078125
    %v3043 = vmul.f32 %v2350, 0.0078125
    %v3044 = vmul.f32 %v2352, 0.0078125
    %v3045 = vmul.f32 %v2354, 0.0078125
    %v3046 = vmul.f32 %v2356, 0.0078125
    %v3047 = vmul.f32 %v2358, 0.0078125
    %v3048 = vmul.f32 %v2360, 0.0078125
    %v3049 = vmul.f32 %v2362, 0.0078125
    %v3050 = vmul.f32 %v2364, 0.0078125
    %v3051 = vmul.f32 %v2366, 0.0078125
    %v3052 = vmul.f32 %v2368, 0.0078125
    %v3053 = vmul.f32 %v2370, 0.0078125
    %v3054 = vmul.f32 %v2372, 0.0078125
    %v3055 = vmul.f32 %v2374, 0.0078125
    %v3056 = vmul.f32 %v2376, 0.0078125
    %v3057 = vmul.f32 %v2378, 0.0078125
    %v3058 = vmul.f32 %v2380, 0.0078125
    %v3059 = vmul.f32 %v2382, 0.0078125
    %v3060 = vmul.f32 %v2384, 0.0078125
    %v3061 = vmul.f32 %v2386, 0.0078125
    %v3062 = vmul.f32 %v2388, 0.0078125
    %v3063 = vmul.f32 %v2390, 0.0078125
    %v3064 = vmul.f32 %v2392, 0.0078125
    %v3065 = vmul.f32 %v2394, 0.0078125
    %v3066 = vmul.f32 %v2396, 0.0078125
    %v3067 = vmul.f32 %v2398, 0.0078125
    %v3068 = vmul.f32 %v2400, 0.0078125
    %v3069 = vmul.f32 %v2402, 0.0078125
    %v3070 = vmul.f32 %v2404, 0.0078125
    %v3071 = vmul.f32 %v2406, 0.0078125
    %v3072 = vmul.f32 %v2408, 0.0078125
    %v3073 = vmul.f32 %v2410, 0.0078125
    %v3074 = vmul.f32 %v2412, 0.0078125
    %v3075 = vmul.f32 %v2414, 0.0078125
    %v3076 = vmul.f32 %v2416, 0.0078125
    %v3077 = vmul.f32 %v2418, 0.0078125
    %v3078 = vmul.f32 %v2420, 0.0078125
    %v3079 = vmul.f32 %v2422, 0.0078125
    %v3080 = vmul.f32 %v2424, 0.0078125
    %v3081 = vmul.f32 %v2426, 0.0078125
    %v3082 = vmul.f32 %v2428, 0.0078125
    %v3083 = vmul.f32 %v2430, 0.0078125
    %v3084 = vmul.f32 %v2432, 0.0078125
    %v3085 = vmul.f32 %v2434, 0.0078125
    %v3086 = vmul.f32 %v2436, 0.0078125
    %v3087 = vmul.f32 %v2438, 0.0078125
    %v3088 = vmul.f32 %v2440, 0.0078125
    %v3089 = vmul.f32 %v2442, 0.0078125
    %v3090 = vmul.f32 %v2444, 0.0078125
    %v3091 = vmul.f32 %v2446, 0.0078125
    %v3092 = vmul.f32 %v2448, 0.0078125
    %v3093 = vmul.f32 %v2450, 0.0078125
    %v3094 = vmul.f32 %v2452, 0.0078125
    %v3095 = vmul.f32 %v2454, 0.0078125
    %v3096 = vmul.f32 %v2456, 0.0078125
    %v3097 = vmul.f32 %v2458, 0.0078125
    %v3098 = vmul.f32 %v2460, 0.0078125
    %v3099 = vmul.f32 %v2462, 0.0078125
    %v3100 = vmul.f32 %v2464, 0.0078125
    %v3101 = vmul.f32 %v2466, 0.0078125
    %v3102 = vmul.f32 %v2468, 0.0078125
    %v3103 = vmul.f32 %v2470, 0.0078125
    %v3104 = vmul.f32 %v2472, 0.0078125
    %v3105 = vmul.f32 %v2474, 0.0078125
    %v3106 = vmul.f32 %v2476, 0.0078125
    %v3107 = vmul.f32 %v2478, 0.0078125
    %v3108 = vmul.f32 %v2480, 0.0078125
    %v3109 = vmul.f32 %v2482, 0.0078125
    %v3110 = vmul.f32 %v2484, 0.0078125
    %v3111 = vmul.f32 %v2486, 0.0078125
    %v3112 = vmul.f32 %v2488, 0.0078125
    %v3113 = vmul.f32 %v2490, 0.0078125
    %v3114 = vmul.f32 %v2492, 0.0078125
    %v3115 = vmul.f32 %v2494, 0.0078125
    %v3116 = vmul.f32 %v2496, 0.0078125
    %v3117 = vmul.f32 %v2498, 0.0078125
    %v3118 = vmul.f32 %v2500, 0.0078125
    %v3119 = vmul.f32 %v2502, 0.0078125
    %v3120 = vmul.f32 %v2504, 0.0078125
    %v3121 = vmul.f32 %v2506, 0.0078125
    %v3122 = vmul.f32 %v2508, 0.0078125
    %v3123 = vmul.f32 %v2510, 0.0078125
    %v3124 = vmul.f32 %v2512, 0.0078125
    %v3125 = vmul.f32 %v2514, 0.0078125
    %v3126 = vmul.f32 %v2516, 0.0078125
    %v3127 = vmul.f32 %v2518, 0.0078125
    %v3128 = vmul.f32 %v2520, 0.0078125
    %v3129 = vmul.f32 %v2522, 0.0078125
    %v3130 = vmul.f32 %v2524, 0.0078125
    %v3131 = vmul.f32 %v2526, 0.0078125
    %v3132 = vmul.f32 %v2528, 0.0078125
    %v3133 = vmul.f32 %v2530, 0.0078125
    %v3134 = vmul.f32 %v2532, 0.0078125
    %v3135 = vmul.f32 %v2534, 0.0078125
    %v3136 = vmul.f32 %v2536, 0.0078125
    %v3137 = vmul.f32 %v2538, 0.0078125
    %v3138 = vmul.f32 %v2540, 0.0078125
    %v3139 = vmul.f32 %v2542, 0.0078125
    %v3140 = vmul.f32 %v2544, 0.0078125
    %v3141 = vmul.f32 %v2546, 0.0078125
    %v3142 = vmul.f32 %v2548, 0.0078125
    %v3143 = vmul.f32 %v2550, 0.0078125
    %v3144 = vmul.f32 %v2552, 0.0078125
    %v3145 = vmul.f32 %v2554, 0.0078125
    %v3146 = vmul.f32 %v2556, 0.0078125
    %v3147 = vmul.f32 %v2558, 0.0078125
    %v3148 = vmul.f32 %v2560, 0.0078125
    %v3149 = vmul.f32 %v2562, 0.0078125
    %v3150 = vmul.f32 %v2564, 0.0078125
    %v3151 = vmul.f32 %v2566, 0.0078125
    %v3152 = vmul.f32 %v2568, 0.0078125
    %v3153 = vmul.f32 %v2570, 0.0078125
    %v3154 = vmul.f32 %v2572, 0.0078125
    %v3155 = vmul.f32 %v2574, 0.0078125
    %v3156 = vmul.f32 %v2576, 0.0078125
    %v3157 = vmul.f32 %v2578, 0.0078125
    %v3158 = vmul.f32 %v2580, 0.0078125
    %v3159 = vmul.f32 %v2582, 0.0078125
    %v3160 = vmul.f32 %v2584, 0.0078125
    %v3161 = vmul.f32 %v2586, 0.0078125
    %v3162 = vmul.f32 %v2588, 0.0078125
    %v3163 = vmul.f32 %v2590, 0.0078125
    %v3164 = vmul.f32 %v2592, 0.0078125
    %v3165 = vmul.f32 %v2594, 0.0078125
    %v3166 = vmul.f32 %v2596, 0.0078125
    %v3167 = vmul.f32 %v2598, 0.0078125
    %v3168 = vmul.f32 %v2600, 0.0078125
    %v3169 = vmul.f32 %v2602, 0.0078125
    %v3170 = vmul.f32 %v2604, 0.0078125
    %v3171 = vmul.f32 %v2606, 0.0078125
    %v3172 = vmul.f32 %v2608, 0.0078125
    %v3173 = vmul.f32 %v2610, 0.0078125
    %v3174 = vmul.f32 %v2612, 0.0078125
    %v3175 = vmul.f32 %v2614, 0.0078125
    %v3176 = vmul.f32 %v2616, 0.0078125
    %v3177 = vmul.f32 %v2618, 0.0078125
    %v3178 = vmul.f32 %v2620, 0.0078125
    %v3179 = vmul.f32 %v2622, 0.0078125
    %v3180 = vmul.f32 %v2624, 0.0078125
    %v3181 = vmul.f32 %v2626, 0.0078125
    %v3182 = vmul.f32 %v2628, 0.0078125
    %v3183 = vmul.f32 %v2630, 0.0078125
    %v3184 = vmul.f32 %v2632, 0.0078125
    %v3185 = vmul.f32 %v2634, 0.0078125
    %v3186 = vmul.f32 %v2636, 0.0078125
    %v3187 = vmul.f32 %v2638, 0.0078125
    %v3188 = vmul.f32 %v2640, 0.0078125
    %v3189 = vmul.f32 %v2642, 0.0078125
    %v3190 = vmul.f32 %v2644, 0.0078125
    %v3191 = vmul.f32 %v2646, 0.0078125
    %v3192 = vmul.f32 %v2648, 0.0078125
    %v3193 = vmul.f32 %v2650, 0.0078125
    %v3194 = vmul.f32 %v2652, 0.0078125
    %v3195 = vmul.f32 %v2654, 0.0078125
    %v3196 = vmul.f32 %v2656, 0.0078125
    %v3197 = vmul.f32 %v2658, 0.0078125
    %v3198 = vmul.f32 %v2660, 0.0078125
    %v3199 = vmul.f32 %v2662, 0.0078125
    %v3200 = vmul.f32 %v2664, 0.0078125
    %v3201 = vmul.f32 %v2666, 0.0078125
    %v3202 = vmul.f32 %v2668, 0.0078125
    %v3203 = vmul.f32 %v2670, 0.0078125
    %v3204 = vmul.f32 %v2672, 0.0078125
    %v3205 = vmul.f32 %v2674, 0.0078125
    %v3206 = vmul.f32 %v2676, 0.0078125
    %v3207 = vmul.f32 %v2678, 0.0078125
    %v3208 = vmul.f32 %v2680, 0.0078125
    %v3209 = vmul.f32 %v2682, 0.0078125
    %v3210 = vmul.f32 %v2684, 0.0078125
    %v3211 = vmul.f32 %v2686, 0.0078125
    %v3212 = vmul.f32 %v2688, 0.0078125
    %v3213 = vmul.f32 %v2690, 0.0078125
    %v3214 = vmul.f32 %v2692, 0.0078125
    %v3215 = vmul.f32 %v2694, 0.0078125
    %v3216 = vmul.f32 %v2696, 0.0078125
    %v3217 = vmul.f32 %v2698, 0.0078125
    %v3218 = vmul.f32 %v2700, 0.0078125
    %v3219 = vmul.f32 %v2702, 0.0078125
    %v3220 = vmul.f32 %v2704, 0.0078125
    %v3221 = vmul.f32 %v2706, 0.0078125
    %v3222 = vmul.f32 %v2708, 0.0078125
    %v3223 = vmul.f32 %v2710, 0.0078125
    %v3224 = vmul.f32 %v2712, 0.0078125
    %v3225 = vand.u32 2147483647, %v2713
    %v3226 = vand.u32 2147483647, %v2714
    %v3227 = vand.u32 2147483647, %v2715
    %v3228 = vand.u32 2147483647, %v2716
    %v3229 = vand.u32 2147483647, %v2717
    %v3230 = vand.u32 2147483647, %v2718
    %v3231 = vand.u32 2147483647, %v2719
    %v3232 = vand.u32 2147483647, %v2720
    %v3233 = vand.u32 2147483647, %v2721
    %v3234 = vand.u32 2147483647, %v2722
    %v3235 = vand.u32 2147483647, %v2723
    %v3236 = vand.u32 2147483647, %v2724
    %v3237 = vand.u32 2147483647, %v2725
    %v3238 = vand.u32 2147483647, %v2726
    %v3239 = vand.u32 2147483647, %v2727
    %v3240 = vand.u32 2147483647, %v2728
    %v3241 = vand.u32 2147483647, %v2729
    %v3242 = vand.u32 2147483647, %v2730
    %v3243 = vand.u32 2147483647, %v2731
    %v3244 = vand.u32 2147483647, %v2732
    %v3245 = vand.u32 2147483647, %v2733
    %v3246 = vand.u32 2147483647, %v2734
    %v3247 = vand.u32 2147483647, %v2735
    %v3248 = vand.u32 2147483647, %v2736
    %v3249 = vand.u32 2147483647, %v2737
    %v3250 = vand.u32 2147483647, %v2738
    %v3251 = vand.u32 2147483647, %v2739
    %v3252 = vand.u32 2147483647, %v2740
    %v3253 = vand.u32 2147483647, %v2741
    %v3254 = vand.u32 2147483647, %v2742
    %v3255 = vand.u32 2147483647, %v2743
    %v3256 = vand.u32 2147483647, %v2744
    %v3257 = vand.u32 2147483647, %v2745
    %v3258 = vand.u32 2147483647, %v2746
    %v3259 = vand.u32 2147483647, %v2747
    %v3260 = vand.u32 2147483647, %v2748
    %v3261 = vand.u32 2147483647, %v2749
    %v3262 = vand.u32 2147483647, %v2750
    %v3263 = vand.u32 2147483647, %v2751
    %v3264 = vand.u32 2147483647, %v2752
    %v3265 = vand.u32 2147483647, %v2753
    %v3266 = vand.u32 2147483647, %v2754
    %v3267 = vand.u32 2147483647, %v2755
    %v3268 = vand.u32 2147483647, %v2756
    %v3269 = vand.u32 2147483647, %v2757
    %v3270 = vand.u32 2147483647, %v2758
    %v3271 = vand.u32 2147483647, %v2759
    %v3272 = vand.u32 2147483647, %v2760
    %v3273 = vand.u32 2147483647, %v2761
    %v3274 = vand.u32 2147483647, %v2762
    %v3275 = vand.u32 2147483647, %v2763
    %v3276 = vand.u32 2147483647, %v2764
    %v3277 = vand.u32 2147483647, %v2765
    %v3278 = vand.u32 2147483647, %v2766
    %v3279 = vand.u32 2147483647, %v2767
    %v3280 = vand.u32 2147483647, %v2768
    %v3281 = vand.u32 2147483647, %v2769
    %v3282 = vand.u32 2147483647, %v2770
    %v3283 = vand.u32 2147483647, %v2771
    %v3284 = vand.u32 2147483647, %v2772
    %v3285 = vand.u32 2147483647, %v2773
    %v3286 = vand.u32 2147483647, %v2774
    %v3287 = vand.u32 2147483647, %v2775
    %v3288 = vand.u32 2147483647, %v2776
    %v3289 = vand.u32 2147483647, %v2777
    %v3290 = vand.u32 2147483647, %v2778
    %v3291 = vand.u32 2147483647, %v2779
    %v3292 = vand.u32 2147483647, %v2780
    %v3293 = vand.u32 2147483647, %v2781
    %v3294 = vand.u32 2147483647, %v2782
    %v3295 = vand.u32 2147483647, %v2783
    %v3296 = vand.u32 2147483647, %v2784
    %v3297 = vand.u32 2147483647, %v2785
    %v3298 = vand.u32 2147483647, %v2786
    %v3299 = vand.u32 2147483647, %v2787
    %v3300 = vand.u32 2147483647, %v2788
    %v3301 = vand.u32 2147483647, %v2789
    %v3302 = vand.u32 2147483647, %v2790
    %v3303 = vand.u32 2147483647, %v2791
    %v3304 = vand.u32 2147483647, %v2792
    %v3305 = vand.u32 2147483647, %v2793
    %v3306 = vand.u32 2147483647, %v2794
    %v3307 = vand.u32 2147483647, %v2795
    %v3308 = vand.u32 2147483647, %v2796
    %v3309 = vand.u32 2147483647, %v2797
    %v3310 = vand.u32 2147483647, %v2798
    %v3311 = vand.u32 2147483647, %v2799
    %v3312 = vand.u32 2147483647, %v2800
    %v3313 = vand.u32 2147483647, %v2801
    %v3314 = vand.u32 2147483647, %v2802
    %v3315 = vand.u32 2147483647, %v2803
    %v3316 = vand.u32 2147483647, %v2804
    %v3317 = vand.u32 2147483647, %v2805
    %v3318 = vand.u32 2147483647, %v2806
    %v3319 = vand.u32 2147483647, %v2807
    %v3320 = vand.u32 2147483647, %v2808
    %v3321 = vand.u32 2147483647, %v2809
    %v3322 = vand.u32 2147483647, %v2810
    %v3323 = vand.u32 2147483647, %v2811
    %v3324 = vand.u32 2147483647, %v2812
    %v3325 = vand.u32 2147483647, %v2813
    %v3326 = vand.u32 2147483647, %v2814
    %v3327 = vand.u32 2147483647, %v2815
    %v3328 = vand.u32 2147483647, %v2816
    %v3329 = vand.u32 2147483647, %v2817
    %v3330 = vand.u32 2147483647, %v2818
    %v3331 = vand.u32 2147483647, %v2819
    %v3332 = vand.u32 2147483647, %v2820
    %v3333 = vand.u32 2147483647, %v2821
    %v3334 = vand.u32 2147483647, %v2822
    %v3335 = vand.u32 2147483647, %v2823
    %v3336 = vand.u32 2147483647, %v2824
    %v3337 = vand.u32 2147483647, %v2825
    %v3338 = vand.u32 2147483647, %v2826
    %v3339 = vand.u32 2147483647, %v2827
    %v3340 = vand.u32 2147483647, %v2828
    %v3341 = vand.u32 2147483647, %v2829
    %v3342 = vand.u32 2147483647, %v2830
    %v3343 = vand.u32 2147483647, %v2831
    %v3344 = vand.u32 2147483647, %v2832
    %v3345 = vand.u32 2147483647, %v2833
    %v3346 = vand.u32 2147483647, %v2834
    %v3347 = vand.u32 2147483647, %v2835
    %v3348 = vand.u32 2147483647, %v2836
    %v3349 = vand.u32 2147483647, %v2837
    %v3350 = vand.u32 2147483647, %v2838
    %v3351 = vand.u32 2147483647, %v2839
    %v3352 = vand.u32 2147483647, %v2840
    %v3353 = vand.u32 2147483647, %v2841
    %v3354 = vand.u32 2147483647, %v2842
    %v3355 = vand.u32 2147483647, %v2843
    %v3356 = vand.u32 2147483647, %v2844
    %v3357 = vand.u32 2147483647, %v2845
    %v3358 = vand.u32 2147483647, %v2846
    %v3359 = vand.u32 2147483647, %v2847
    %v3360 = vand.u32 2147483647, %v2848
    %v3361 = vand.u32 2147483647, %v2849
    %v3362 = vand.u32 2147483647, %v2850
    %v3363 = vand.u32 2147483647, %v2851
    %v3364 = vand.u32 2147483647, %v2852
    %v3365 = vand.u32 2147483647, %v2853
    %v3366 = vand.u32 2147483647, %v2854
    %v3367 = vand.u32 2147483647, %v2855
    %v3368 = vand.u32 2147483647, %v2856
    %v3369 = vand.u32 2147483647, %v2857
    %v3370 = vand.u32 2147483647, %v2858
    %v3371 = vand.u32 2147483647, %v2859
    %v3372 = vand.u32 2147483647, %v2860
    %v3373 = vand.u32 2147483647, %v2861
    %v3374 = vand.u32 2147483647, %v2862
    %v3375 = vand.u32 2147483647, %v2863
    %v3376 = vand.u32 2147483647, %v2864
    %v3377 = vand.u32 2147483647, %v2865
    %v3378 = vand.u32 2147483647, %v2866
    %v3379 = vand.u32 2147483647, %v2867
    %v3380 = vand.u32 2147483647, %v2868
    %v3381 = vand.u32 2147483647, %v2869
    %v3382 = vand.u32 2147483647, %v2870
    %v3383 = vand.u32 2147483647, %v2871
    %v3384 = vand.u32 2147483647, %v2872
    %v3385 = vand.u32 2147483647, %v2873
    %v3386 = vand.u32 2147483647, %v2874
    %v3387 = vand.u32 2147483647, %v2875
    %v3388 = vand.u32 2147483647, %v2876
    %v3389 = vand.u32 2147483647, %v2877
    %v3390 = vand.u32 2147483647, %v2878
    %v3391 = vand.u32 2147483647, %v2879
    %v3392 = vand.u32 2147483647, %v2880
    %v3393 = vand.u32 2147483647, %v2881
    %v3394 = vand.u32 2147483647, %v2882
    %v3395 = vand.u32 2147483647, %v2883
    %v3396 = vand.u32 2147483647, %v2884
    %v3397 = vand.u32 2147483647, %v2885
    %v3398 = vand.u32 2147483647, %v2886
    %v3399 = vand.u32 2147483647, %v2887
    %v3400 = vand.u32 2147483647, %v2888
    %v3401 = vand.u32 2147483647, %v2889
    %v3402 = vand.u32 2147483647, %v2890
    %v3403 = vand.u32 2147483647, %v2891
    %v3404 = vand.u32 2147483647, %v2892
    %v3405 = vand.u32 2147483647, %v2893
    %v3406 = vand.u32 2147483647, %v2894
    %v3407 = vand.u32 2147483647, %v2895
    %v3408 = vand.u32 2147483647, %v2896
    %v3409 = vand.u32 2147483647, %v2897
    %v3410 = vand.u32 2147483647, %v2898
    %v3411 = vand.u32 2147483647, %v2899
    %v3412 = vand.u32 2147483647, %v2900
    %v3413 = vand.u32 2147483647, %v2901
    %v3414 = vand.u32 2147483647, %v2902
    %v3415 = vand.u32 2147483647, %v2903
    %v3416 = vand.u32 2147483647, %v2904
    %v3417 = vand.u32 2147483647, %v2905
    %v3418 = vand.u32 2147483647, %v2906
    %v3419 = vand.u32 2147483647, %v2907
    %v3420 = vand.u32 2147483647, %v2908
    %v3421 = vand.u32 2147483647, %v2909
    %v3422 = vand.u32 2147483647, %v2910
    %v3423 = vand.u32 2147483647, %v2911
    %v3424 = vand.u32 2147483647, %v2912
    %v3425 = vand.u32 2147483647, %v2913
    %v3426 = vand.u32 2147483647, %v2914
    %v3427 = vand.u32 2147483647, %v2915
    %v3428 = vand.u32 2147483647, %v2916
    %v3429 = vand.u32 2147483647, %v2917
    %v3430 = vand.u32 2147483647, %v2918
    %v3431 = vand.u32 2147483647, %v2919
    %v3432 = vand.u32 2147483647, %v2920
    %v3433 = vand.u32 2147483647, %v2921
    %v3434 = vand.u32 2147483647, %v2922
    %v3435 = vand.u32 2147483647, %v2923
    %v3436 = vand.u32 2147483647, %v2924
    %v3437 = vand.u32 2147483647, %v2925
    %v3438 = vand.u32 2147483647, %v2926
    %v3439 = vand.u32 2147483647, %v2927
    %v3440 = vand.u32 2147483647, %v2928
    %v3441 = vand.u32 2147483647, %v2929
    %v3442 = vand.u32 2147483647, %v2930
    %v3443 = vand.u32 2147483647, %v2931
    %v3444 = vand.u32 2147483647, %v2932
    %v3445 = vand.u32 2147483647, %v2933
    %v3446 = vand.u32 2147483647, %v2934
    %v3447 = vand.u32 2147483647, %v2935
    %v3448 = vand.u32 2147483647, %v2936
    %v3449 = vand.u32 2147483647, %v2937
    %v3450 = vand.u32 2147483647, %v2938
    %v3451 = vand.u32 2147483647, %v2939
    %v3452 = vand.u32 2147483647, %v2940
    %v3453 = vand.u32 2147483647, %v2941
    %v3454 = vand.u32 2147483647, %v2942
    %v3455 = vand.u32 2147483647, %v2943
    %v3456 = vand.u32 2147483647, %v2944
    %v3457 = vand.u32 2147483647, %v2945
    %v3458 = vand.u32 2147483647, %v2946
    %v3459 = vand.u32 2147483647, %v2947
    %v3460 = vand.u32 2147483647, %v2948
    %v3461 = vand.u32 2147483647, %v2949
    %v3462 = vand.u32 2147483647, %v2950
    %v3463 = vand.u32 2147483647, %v2951
    %v3464 = vand.u32 2147483647, %v2952
    %v3465 = vand.u32 2147483647, %v2953
    %v3466 = vand.u32 2147483647, %v2954
    %v3467 = vand.u32 2147483647, %v2955
    %v3468 = vand.u32 2147483647, %v2956
    %v3469 = vand.u32 2147483647, %v2957
    %v3470 = vand.u32 2147483647, %v2958
    %v3471 = vand.u32 2147483647, %v2959
    %v3472 = vand.u32 2147483647, %v2960
    %v3473 = vand.u32 2147483647, %v2961
    %v3474 = vand.u32 2147483647, %v2962
    %v3475 = vand.u32 2147483647, %v2963
    %v3476 = vand.u32 2147483647, %v2964
    %v3477 = vand.u32 2147483647, %v2965
    %v3478 = vand.u32 2147483647, %v2966
    %v3479 = vand.u32 2147483647, %v2967
    %v3480 = vand.u32 2147483647, %v2968
    %v3481 = vand.u32 2147483647, %v2969
    %v3482 = vand.u32 2147483647, %v2970
    %v3483 = vand.u32 2147483647, %v2971
    %v3484 = vand.u32 2147483647, %v2972
    %v3485 = vand.u32 2147483647, %v2973
    %v3486 = vand.u32 2147483647, %v2974
    %v3487 = vand.u32 2147483647, %v2975
    %v3488 = vand.u32 2147483647, %v2976
    %v3489 = vand.u32 2147483647, %v2977
    %v3490 = vand.u32 2147483647, %v2978
    %v3491 = vand.u32 2147483647, %v2979
    %v3492 = vand.u32 2147483647, %v2980
    %v3493 = vand.u32 2147483647, %v2981
    %v3494 = vand.u32 2147483647, %v2982
    %v3495 = vand.u32 2147483647, %v2983
    %v3496 = vand.u32 2147483647, %v2984
    %v3497 = vand.u32 2147483647, %v2985
    %v3498 = vand.u32 2147483647, %v2986
    %v3499 = vand.u32 2147483647, %v2987
    %v3500 = vand.u32 2147483647, %v2988
    %v3501 = vand.u32 2147483647, %v2989
    %v3502 = vand.u32 2147483647, %v2990
    %v3503 = vand.u32 2147483647, %v2991
    %v3504 = vand.u32 2147483647, %v2992
    %v3505 = vand.u32 2147483647, %v2993
    %v3506 = vand.u32 2147483647, %v2994
    %v3507 = vand.u32 2147483647, %v2995
    %v3508 = vand.u32 2147483647, %v2996
    %v3509 = vand.u32 2147483647, %v2997
    %v3510 = vand.u32 2147483647, %v2998
    %v3511 = vand.u32 2147483647, %v2999
    %v3512 = vand.u32 2147483647, %v3000
    %v3513 = vand.u32 2147483647, %v3001
    %v3514 = vand.u32 2147483647, %v3002
    %v3515 = vand.u32 2147483647, %v3003
    %v3516 = vand.u32 2147483647, %v3004
    %v3517 = vand.u32 2147483647, %v3005
    %v3518 = vand.u32 2147483647, %v3006
    %v3519 = vand.u32 2147483647, %v3007
    %v3520 = vand.u32 2147483647, %v3008
    %v3521 = vand.u32 2147483647, %v3009
    %v3522 = vand.u32 2147483647, %v3010
    %v3523 = vand.u32 2147483647, %v3011
    %v3524 = vand.u32 2147483647, %v3012
    %v3525 = vand.u32 2147483647, %v3013
    %v3526 = vand.u32 2147483647, %v3014
    %v3527 = vand.u32 2147483647, %v3015
    %v3528 = vand.u32 2147483647, %v3016
    %v3529 = vand.u32 2147483647, %v3017
    %v3530 = vand.u32 2147483647, %v3018
    %v3531 = vand.u32 2147483647, %v3019
    %v3532 = vand.u32 2147483647, %v3020
    %v3533 = vand.u32 2147483647, %v3021
    %v3534 = vand.u32 2147483647, %v3022
    %v3535 = vand.u32 2147483647, %v3023
    %v3536 = vand.u32 2147483647, %v3024
    %v3537 = vand.u32 2147483647, %v3025
    %v3538 = vand.u32 2147483647, %v3026
    %v3539 = vand.u32 2147483647, %v3027
    %v3540 = vand.u32 2147483647, %v3028
    %v3541 = vand.u32 2147483647, %v3029
    %v3542 = vand.u32 2147483647, %v3030
    %v3543 = vand.u32 2147483647, %v3031
    %v3544 = vand.u32 2147483647, %v3032
    %v3545 = vand.u32 2147483647, %v3033
    %v3546 = vand.u32 2147483647, %v3034
    %v3547 = vand.u32 2147483647, %v3035
    %v3548 = vand.u32 2147483647, %v3036
    %v3549 = vand.u32 2147483647, %v3037
    %v3550 = vand.u32 2147483647, %v3038
    %v3551 = vand.u32 2147483647, %v3039
    %v3552 = vand.u32 2147483647, %v3040
    %v3553 = vand.u32 2147483647, %v3041
    %v3554 = vand.u32 2147483647, %v3042
    %v3555 = vand.u32 2147483647, %v3043
    %v3556 = vand.u32 2147483647, %v3044
    %v3557 = vand.u32 2147483647, %v3045
    %v3558 = vand.u32 2147483647, %v3046
    %v3559 = vand.u32 2147483647, %v3047
    %v3560 = vand.u32 2147483647, %v3048
    %v3561 = vand.u32 2147483647, %v3049
    %v3562 = vand.u32 2147483647, %v3050
    %v3563 = vand.u32 2147483647, %v3051
    %v3564 = vand.u32 2147483647, %v3052
    %v3565 = vand.u32 2147483647, %v3053
    %v3566 = vand.u32 2147483647, %v3054
    %v3567 = vand.u32 2147483647, %v3055
    %v3568 = vand.u32 2147483647, %v3056
    %v3569 = vand.u32 2147483647, %v3057
    %v3570 = vand.u32 2147483647, %v3058
    %v3571 = vand.u32 2147483647, %v3059
    %v3572 = vand.u32 2147483647, %v3060
    %v3573 = vand.u32 2147483647, %v3061
    %v3574 = vand.u32 2147483647, %v3062
    %v3575 = vand.u32 2147483647, %v3063
    %v3576 = vand.u32 2147483647, %v3064
    %v3577 = vand.u32 2147483647, %v3065
    %v3578 = vand.u32 2147483647, %v3066
    %v3579 = vand.u32 2147483647, %v3067
    %v3580 = vand.u32 2147483647, %v3068
    %v3581 = vand.u32 2147483647, %v3069
    %v3582 = vand.u32 2147483647, %v3070
    %v3583 = vand.u32 2147483647, %v3071
    %v3584 = vand.u32 2147483647, %v3072
    %v3585 = vand.u32 2147483647, %v3073
    %v3586 = vand.u32 2147483647, %v3074
    %v3587 = vand.u32 2147483647, %v3075
    %v3588 = vand.u32 2147483647, %v3076
    %v3589 = vand.u32 2147483647, %v3077
    %v3590 = vand.u32 2147483647, %v3078
    %v3591 = vand.u32 2147483647, %v3079
    %v3592 = vand.u32 2147483647, %v3080
    %v3593 = vand.u32 2147483647, %v3081
    %v3594 = vand.u32 2147483647, %v3082
    %v3595 = vand.u32 2147483647, %v3083
    %v3596 = vand.u32 2147483647, %v3084
    %v3597 = vand.u32 2147483647, %v3085
    %v3598 = vand.u32 2147483647, %v3086
    %v3599 = vand.u32 2147483647, %v3087
    %v3600 = vand.u32 2147483647, %v3088
    %v3601 = vand.u32 2147483647, %v3089
    %v3602 = vand.u32 2147483647, %v3090
    %v3603 = vand.u32 2147483647, %v3091
    %v3604 = vand.u32 2147483647, %v3092
    %v3605 = vand.u32 2147483647, %v3093
    %v3606 = vand.u32 2147483647, %v3094
    %v3607 = vand.u32 2147483647, %v3095
    %v3608 = vand.u32 2147483647, %v3096
    %v3609 = vand.u32 2147483647, %v3097
    %v3610 = vand.u32 2147483647, %v3098
    %v3611 = vand.u32 2147483647, %v3099
    %v3612 = vand.u32 2147483647, %v3100
    %v3613 = vand.u32 2147483647, %v3101
    %v3614 = vand.u32 2147483647, %v3102
    %v3615 = vand.u32 2147483647, %v3103
    %v3616 = vand.u32 2147483647, %v3104
    %v3617 = vand.u32 2147483647, %v3105
    %v3618 = vand.u32 2147483647, %v3106
    %v3619 = vand.u32 2147483647, %v3107
    %v3620 = vand.u32 2147483647, %v3108
    %v3621 = vand.u32 2147483647, %v3109
    %v3622 = vand.u32 2147483647, %v3110
    %v3623 = vand.u32 2147483647, %v3111
    %v3624 = vand.u32 2147483647, %v3112
    %v3625 = vand.u32 2147483647, %v3113
    %v3626 = vand.u32 2147483647, %v3114
    %v3627 = vand.u32 2147483647, %v3115
    %v3628 = vand.u32 2147483647, %v3116
    %v3629 = vand.u32 2147483647, %v3117
    %v3630 = vand.u32 2147483647, %v3118
    %v3631 = vand.u32 2147483647, %v3119
    %v3632 = vand.u32 2147483647, %v3120
    %v3633 = vand.u32 2147483647, %v3121
    %v3634 = vand.u32 2147483647, %v3122
    %v3635 = vand.u32 2147483647, %v3123
    %v3636 = vand.u32 2147483647, %v3124
    %v3637 = vand.u32 2147483647, %v3125
    %v3638 = vand.u32 2147483647, %v3126
    %v3639 = vand.u32 2147483647, %v3127
    %v3640 = vand.u32 2147483647, %v3128
    %v3641 = vand.u32 2147483647, %v3129
    %v3642 = vand.u32 2147483647, %v3130
    %v3643 = vand.u32 2147483647, %v3131
    %v3644 = vand.u32 2147483647, %v3132
    %v3645 = vand.u32 2147483647, %v3133
    %v3646 = vand.u32 2147483647, %v3134
    %v3647 = vand.u32 2147483647, %v3135
    %v3648 = vand.u32 2147483647, %v3136
    %v3649 = vand.u32 2147483647, %v3137
    %v3650 = vand.u32 2147483647, %v3138
    %v3651 = vand.u32 2147483647, %v3139
    %v3652 = vand.u32 2147483647, %v3140
    %v3653 = vand.u32 2147483647, %v3141
    %v3654 = vand.u32 2147483647, %v3142
    %v3655 = vand.u32 2147483647, %v3143
    %v3656 = vand.u32 2147483647, %v3144
    %v3657 = vand.u32 2147483647, %v3145
    %v3658 = vand.u32 2147483647, %v3146
    %v3659 = vand.u32 2147483647, %v3147
    %v3660 = vand.u32 2147483647, %v3148
    %v3661 = vand.u32 2147483647, %v3149
    %v3662 = vand.u32 2147483647, %v3150
    %v3663 = vand.u32 2147483647, %v3151
    %v3664 = vand.u32 2147483647, %v3152
    %v3665 = vand.u32 2147483647, %v3153
    %v3666 = vand.u32 2147483647, %v3154
    %v3667 = vand.u32 2147483647, %v3155
    %v3668 = vand.u32 2147483647, %v3156
    %v3669 = vand.u32 2147483647, %v3157
    %v3670 = vand.u32 2147483647, %v3158
    %v3671 = vand.u32 2147483647, %v3159
    %v3672 = vand.u32 2147483647, %v3160
    %v3673 = vand.u32 2147483647, %v3161
    %v3674 = vand.u32 2147483647, %v3162
    %v3675 = vand.u32 2147483647, %v3163
    %v3676 = vand.u32 2147483647, %v3164
    %v3677 = vand.u32 2147483647, %v3165
    %v3678 = vand.u32 2147483647, %v3166
    %v3679 = vand.u32 2147483647, %v3167
    %v3680 = vand.u32 2147483647, %v3168
    %v3681 = vand.u32 2147483647, %v3169
    %v3682 = vand.u32 2147483647, %v3170
    %v3683 = vand.u32 2147483647, %v3171
    %v3684 = vand.u32 2147483647, %v3172
    %v3685 = vand.u32 2147483647, %v3173
    %v3686 = vand.u32 2147483647, %v3174
    %v3687 = vand.u32 2147483647, %v3175
    %v3688 = vand.u32 2147483647, %v3176
    %v3689 = vand.u32 2147483647, %v3177
    %v3690 = vand.u32 2147483647, %v3178
    %v3691 = vand.u32 2147483647, %v3179
    %v3692 = vand.u32 2147483647, %v3180
    %v3693 = vand.u32 2147483647, %v3181
    %v3694 = vand.u32 2147483647, %v3182
    %v3695 = vand.u32 2147483647, %v3183
    %v3696 = vand.u32 2147483647, %v3184
    %v3697 = vand.u32 2147483647, %v3185
    %v3698 = vand.u32 2147483647, %v3186
    %v3699 = vand.u32 2147483647, %v3187
    %v3700 = vand.u32 2147483647, %v3188
    %v3701 = vand.u32 2147483647, %v3189
    %v3702 = vand.u32 2147483647, %v3190
    %v3703 = vand.u32 2147483647, %v3191
    %v3704 = vand.u32 2147483647, %v3192
    %v3705 = vand.u32 2147483647, %v3193
    %v3706 = vand.u32 2147483647, %v3194
    %v3707 = vand.u32 2147483647, %v3195
    %v3708 = vand.u32 2147483647, %v3196
    %v3709 = vand.u32 2147483647, %v3197
    %v3710 = vand.u32 2147483647, %v3198
    %v3711 = vand.u32 2147483647, %v3199
    %v3712 = vand.u32 2147483647, %v3200
    %v3713 = vand.u32 2147483647, %v3201
    %v3714 = vand.u32 2147483647, %v3202
    %v3715 = vand.u32 2147483647, %v3203
    %v3716 = vand.u32 2147483647, %v3204
    %v3717 = vand.u32 2147483647, %v3205
    %v3718 = vand.u32 2147483647, %v3206
    %v3719 = vand.u32 2147483647, %v3207
    %v3720 = vand.u32 2147483647, %v3208
    %v3721 = vand.u32 2147483647, %v3209
    %v3722 = vand.u32 2147483647, %v3210
    %v3723 = vand.u32 2147483647, %v3211
    %v3724 = vand.u32 2147483647, %v3212
    %v3725 = vand.u32 2147483647, %v3213
    %v3726 = vand.u32 2147483647, %v3214
    %v3727 = vand.u32 2147483647, %v3215
    %v3728 = vand.u32 2147483647, %v3216
    %v3729 = vand.u32 2147483647, %v3217
    %v3730 = vand.u32 2147483647, %v3218
    %v3731 = vand.u32 2147483647, %v3219
    %v3732 = vand.u32 2147483647, %v3220
    %v3733 = vand.u32 2147483647, %v3221
    %v3734 = vand.u32 2147483647, %v3222
    %v3735 = vand.u32 2147483647, %v3223
    %v3736 = vand.u32 2147483647, %v3224
    %v4249 = vlaneseq
    %v4250 = vand.u32 %v4249, 127
    %v4251 = vlaneseq
    %v4252 = vshrl.u32 %v4251, 7
    %v4253 = vsub.s32 %v4250, %v4252
    %v4254 = vrot.slane %v3225, %v4253
    %v4255 = vadd.s32 %v4250, 4294967288
    %v4256 = vlaneseq
    %v4257 = vshrl.u32 %v4256, 7
    %v4258 = vsub.s32 %v4255, %v4257
    %v4259 = vrot.slane %v3226, %v4258
    %vm4260 = vcmask 130112
    %v4261 = vsel %vm4260, %v4259, %v4254
    %v4262 = vadd.s32 %v4250, 4294967280
    %v4263 = vlaneseq
    %v4264 = vshrl.u32 %v4263, 7
    %v4265 = vsub.s32 %v4262, %v4264
    %v4266 = vrot.slane %v3227, %v4265
    %vm4267 = vcmask 195712
    %v4268 = vsel %vm4267, %v4266, %v4261
    %v4269 = vadd.s32 %v4250, 4294967272
    %v4270 = vlaneseq
    %v4271 = vshrl.u32 %v4270, 7
    %v4272 = vsub.s32 %v4269, %v4271
    %v4273 = vrot.slane %v3228, %v4272
    %vm4274 = vcmask 261312
    %v4275 = vsel %vm4274, %v4273, %v4268
    %v4276 = vadd.s32 %v4250, 4294967264
    %v4277 = vlaneseq
    %v4278 = vshrl.u32 %v4277, 7
    %v4279 = vsub.s32 %v4276, %v4278
    %v4280 = vrot.slane %v3229, %v4279
    %vm4281 = vcmask 326912
    %v4282 = vsel %vm4281, %v4280, %v4275
    %v4283 = vadd.s32 %v4250, 4294967256
    %v4284 = vlaneseq
    %v4285 = vshrl.u32 %v4284, 7
    %v4286 = vsub.s32 %v4283, %v4285
    %v4287 = vrot.slane %v3230, %v4286
    %vm4288 = vcmask 392512
    %v4289 = vsel %vm4288, %v4287, %v4282
    %v4290 = vadd.s32 %v4250, 4294967248
    %v4291 = vlaneseq
    %v4292 = vshrl.u32 %v4291, 7
    %v4293 = vsub.s32 %v4290, %v4292
    %v4294 = vrot.slane %v3231, %v4293
    %vm4295 = vcmask 458112
    %v4296 = vsel %vm4295, %v4294, %v4289
    %v4297 = vadd.s32 %v4250, 4294967240
    %v4298 = vlaneseq
    %v4299 = vshrl.u32 %v4298, 7
    %v4300 = vsub.s32 %v4297, %v4299
    %v4301 = vrot.slane %v3232, %v4300
    %vm4302 = vcmask 523712
    %v4303 = vsel %vm4302, %v4301, %v4296
    %v4304 = vadd.s32 %v4250, 4294967232
    %v4305 = vlaneseq
    %v4306 = vshrl.u32 %v4305, 7
    %v4307 = vsub.s32 %v4304, %v4306
    %v4308 = vrot.slane %v3233, %v4307
    %vm4309 = vcmask 589312
    %v4310 = vsel %vm4309, %v4308, %v4303
    %v4311 = vadd.s32 %v4250, 4294967224
    %v4312 = vlaneseq
    %v4313 = vshrl.u32 %v4312, 7
    %v4314 = vsub.s32 %v4311, %v4313
    %v4315 = vrot.slane %v3234, %v4314
    %vm4316 = vcmask 654912
    %v4317 = vsel %vm4316, %v4315, %v4310
    %v4318 = vadd.s32 %v4250, 4294967216
    %v4319 = vlaneseq
    %v4320 = vshrl.u32 %v4319, 7
    %v4321 = vsub.s32 %v4318, %v4320
    %v4322 = vrot.slane %v3235, %v4321
    %vm4323 = vcmask 720512
    %v4324 = vsel %vm4323, %v4322, %v4317
    %v4325 = vadd.s32 %v4250, 4294967208
    %v4326 = vlaneseq
    %v4327 = vshrl.u32 %v4326, 7
    %v4328 = vsub.s32 %v4325, %v4327
    %v4329 = vrot.slane %v3236, %v4328
    %vm4330 = vcmask 786112
    %v4331 = vsel %vm4330, %v4329, %v4324
    %v4332 = vadd.s32 %v4250, 4294967200
    %v4333 = vlaneseq
    %v4334 = vshrl.u32 %v4333, 7
    %v4335 = vsub.s32 %v4332, %v4334
    %v4336 = vrot.slane %v3237, %v4335
    %vm4337 = vcmask 851712
    %v4338 = vsel %vm4337, %v4336, %v4331
    %v4339 = vadd.s32 %v4250, 4294967192
    %v4340 = vlaneseq
    %v4341 = vshrl.u32 %v4340, 7
    %v4342 = vsub.s32 %v4339, %v4341
    %v4343 = vrot.slane %v3238, %v4342
    %vm4344 = vcmask 917312
    %v4345 = vsel %vm4344, %v4343, %v4338
    %v4346 = vadd.s32 %v4250, 4294967184
    %v4347 = vlaneseq
    %v4348 = vshrl.u32 %v4347, 7
    %v4349 = vsub.s32 %v4346, %v4348
    %v4350 = vrot.slane %v3239, %v4349
    %vm4351 = vcmask 982912
    %v4352 = vsel %vm4351, %v4350, %v4345
    %v4353 = vadd.s32 %v4250, 4294967176
    %v4354 = vlaneseq
    %v4355 = vshrl.u32 %v4354, 7
    %v4356 = vsub.s32 %v4353, %v4355
    %v4357 = vrot.slane %v3240, %v4356
    %vm4358 = vcmask 1048512
    %v4359 = vsel %vm4358, %v4357, %v4352
    %v4360 = vlaneseq
    %v4361 = vshrl.u32 %v4360, 7
    %v4362 = vsub.s32 %v4250, %v4361
    %v4363 = vrot.slane %v3241, %v4362
    %v4364 = vlaneseq
    %v4365 = vshrl.u32 %v4364, 7
    %v4366 = vsub.s32 %v4255, %v4365
    %v4367 = vrot.slane %v3242, %v4366
    %v4368 = vsel %vm4260, %v4367, %v4363
    %v4369 = vlaneseq
    %v4370 = vshrl.u32 %v4369, 7
    %v4371 = vsub.s32 %v4262, %v4370
    %v4372 = vrot.slane %v3243, %v4371
    %v4373 = vsel %vm4267, %v4372, %v4368
    %v4374 = vlaneseq
    %v4375 = vshrl.u32 %v4374, 7
    %v4376 = vsub.s32 %v4269, %v4375
    %v4377 = vrot.slane %v3244, %v4376
    %v4378 = vsel %vm4274, %v4377, %v4373
    %v4379 = vlaneseq
    %v4380 = vshrl.u32 %v4379, 7
    %v4381 = vsub.s32 %v4276, %v4380
    %v4382 = vrot.slane %v3245, %v4381
    %v4383 = vsel %vm4281, %v4382, %v4378
    %v4384 = vlaneseq
    %v4385 = vshrl.u32 %v4384, 7
    %v4386 = vsub.s32 %v4283, %v4385
    %v4387 = vrot.slane %v3246, %v4386
    %v4388 = vsel %vm4288, %v4387, %v4383
    %v4389 = vlaneseq
    %v4390 = vshrl.u32 %v4389, 7
    %v4391 = vsub.s32 %v4290, %v4390
    %v4392 = vrot.slane %v3247, %v4391
    %v4393 = vsel %vm4295, %v4392, %v4388
    %v4394 = vlaneseq
    %v4395 = vshrl.u32 %v4394, 7
    %v4396 = vsub.s32 %v4297, %v4395
    %v4397 = vrot.slane %v3248, %v4396
    %v4398 = vsel %vm4302, %v4397, %v4393
    %v4399 = vlaneseq
    %v4400 = vshrl.u32 %v4399, 7
    %v4401 = vsub.s32 %v4304, %v4400
    %v4402 = vrot.slane %v3249, %v4401
    %v4403 = vsel %vm4309, %v4402, %v4398
    %v4404 = vlaneseq
    %v4405 = vshrl.u32 %v4404, 7
    %v4406 = vsub.s32 %v4311, %v4405
    %v4407 = vrot.slane %v3250, %v4406
    %v4408 = vsel %vm4316, %v4407, %v4403
    %v4409 = vlaneseq
    %v4410 = vshrl.u32 %v4409, 7
    %v4411 = vsub.s32 %v4318, %v4410
    %v4412 = vrot.slane %v3251, %v4411
    %v4413 = vsel %vm4323, %v4412, %v4408
    %v4414 = vlaneseq
    %v4415 = vshrl.u32 %v4414, 7
    %v4416 = vsub.s32 %v4325, %v4415
    %v4417 = vrot.slane %v3252, %v4416
    %v4418 = vsel %vm4330, %v4417, %v4413
    %v4419 = vlaneseq
    %v4420 = vshrl.u32 %v4419, 7
    %v4421 = vsub.s32 %v4332, %v4420
    %v4422 = vrot.slane %v3253, %v4421
    %v4423 = vsel %vm4337, %v4422, %v4418
    %v4424 = vlaneseq
    %v4425 = vshrl.u32 %v4424, 7
    %v4426 = vsub.s32 %v4339, %v4425
    %v4427 = vrot.slane %v3254, %v4426
    %v4428 = vsel %vm4344, %v4427, %v4423
    %v4429 = vlaneseq
    %v4430 = vshrl.u32 %v4429, 7
    %v4431 = vsub.s32 %v4346, %v4430
    %v4432 = vrot.slane %v3255, %v4431
    %v4433 = vsel %vm4351, %v4432, %v4428
    %v4434 = vlaneseq
    %v4435 = vshrl.u32 %v4434, 7
    %v4436 = vsub.s32 %v4353, %v4435
    %v4437 = vrot.slane %v3256, %v4436
    %v4438 = vsel %vm4358, %v4437, %v4433
    %v4439 = vlaneseq
    %v4440 = vshrl.u32 %v4439, 7
    %v4441 = vsub.s32 %v4250, %v4440
    %v4442 = vrot.slane %v3257, %v4441
    %v4443 = vlaneseq
    %v4444 = vshrl.u32 %v4443, 7
    %v4445 = vsub.s32 %v4255, %v4444
    %v4446 = vrot.slane %v3258, %v4445
    %v4447 = vsel %vm4260, %v4446, %v4442
    %v4448 = vlaneseq
    %v4449 = vshrl.u32 %v4448, 7
    %v4450 = vsub.s32 %v4262, %v4449
    %v4451 = vrot.slane %v3259, %v4450
    %v4452 = vsel %vm4267, %v4451, %v4447
    %v4453 = vlaneseq
    %v4454 = vshrl.u32 %v4453, 7
    %v4455 = vsub.s32 %v4269, %v4454
    %v4456 = vrot.slane %v3260, %v4455
    %v4457 = vsel %vm4274, %v4456, %v4452
    %v4458 = vlaneseq
    %v4459 = vshrl.u32 %v4458, 7
    %v4460 = vsub.s32 %v4276, %v4459
    %v4461 = vrot.slane %v3261, %v4460
    %v4462 = vsel %vm4281, %v4461, %v4457
    %v4463 = vlaneseq
    %v4464 = vshrl.u32 %v4463, 7
    %v4465 = vsub.s32 %v4283, %v4464
    %v4466 = vrot.slane %v3262, %v4465
    %v4467 = vsel %vm4288, %v4466, %v4462
    %v4468 = vlaneseq
    %v4469 = vshrl.u32 %v4468, 7
    %v4470 = vsub.s32 %v4290, %v4469
    %v4471 = vrot.slane %v3263, %v4470
    %v4472 = vsel %vm4295, %v4471, %v4467
    %v4473 = vlaneseq
    %v4474 = vshrl.u32 %v4473, 7
    %v4475 = vsub.s32 %v4297, %v4474
    %v4476 = vrot.slane %v3264, %v4475
    %v4477 = vsel %vm4302, %v4476, %v4472
    %v4478 = vlaneseq
    %v4479 = vshrl.u32 %v4478, 7
    %v4480 = vsub.s32 %v4304, %v4479
    %v4481 = vrot.slane %v3265, %v4480
    %v4482 = vsel %vm4309, %v4481, %v4477
    %v4483 = vlaneseq
    %v4484 = vshrl.u32 %v4483, 7
    %v4485 = vsub.s32 %v4311, %v4484
    %v4486 = vrot.slane %v3266, %v4485
    %v4487 = vsel %vm4316, %v4486, %v4482
    %v4488 = vlaneseq
    %v4489 = vshrl.u32 %v4488, 7
    %v4490 = vsub.s32 %v4318, %v4489
    %v4491 = vrot.slane %v3267, %v4490
    %v4492 = vsel %vm4323, %v4491, %v4487
    %v4493 = vlaneseq
    %v4494 = vshrl.u32 %v4493, 7
    %v4495 = vsub.s32 %v4325, %v4494
    %v4496 = vrot.slane %v3268, %v4495
    %v4497 = vsel %vm4330, %v4496, %v4492
    %v4498 = vlaneseq
    %v4499 = vshrl.u32 %v4498, 7
    %v4500 = vsub.s32 %v4332, %v4499
    %v4501 = vrot.slane %v3269, %v4500
    %v4502 = vsel %vm4337, %v4501, %v4497
    %v4503 = vlaneseq
    %v4504 = vshrl.u32 %v4503, 7
    %v4505 = vsub.s32 %v4339, %v4504
    %v4506 = vrot.slane %v3270, %v4505
    %v4507 = vsel %vm4344, %v4506, %v4502
    %v4508 = vlaneseq
    %v4509 = vshrl.u32 %v4508, 7
    %v4510 = vsub.s32 %v4346, %v4509
    %v4511 = vrot.slane %v3271, %v4510
    %v4512 = vsel %vm4351, %v4511, %v4507
    %v4513 = vlaneseq
    %v4514 = vshrl.u32 %v4513, 7
    %v4515 = vsub.s32 %v4353, %v4514
    %v4516 = vrot.slane %v3272, %v4515
    %v4517 = vsel %vm4358, %v4516, %v4512
    %v4518 = vlaneseq
    %v4519 = vshrl.u32 %v4518, 7
    %v4520 = vsub.s32 %v4250, %v4519
    %v4521 = vrot.slane %v3273, %v4520
    %v4522 = vlaneseq
    %v4523 = vshrl.u32 %v4522, 7
    %v4524 = vsub.s32 %v4255, %v4523
    %v4525 = vrot.slane %v3274, %v4524
    %v4526 = vsel %vm4260, %v4525, %v4521
    %v4527 = vlaneseq
    %v4528 = vshrl.u32 %v4527, 7
    %v4529 = vsub.s32 %v4262, %v4528
    %v4530 = vrot.slane %v3275, %v4529
    %v4531 = vsel %vm4267, %v4530, %v4526
    %v4532 = vlaneseq
    %v4533 = vshrl.u32 %v4532, 7
    %v4534 = vsub.s32 %v4269, %v4533
    %v4535 = vrot.slane %v3276, %v4534
    %v4536 = vsel %vm4274, %v4535, %v4531
    %v4537 = vlaneseq
    %v4538 = vshrl.u32 %v4537, 7
    %v4539 = vsub.s32 %v4276, %v4538
    %v4540 = vrot.slane %v3277, %v4539
    %v4541 = vsel %vm4281, %v4540, %v4536
    %v4542 = vlaneseq
    %v4543 = vshrl.u32 %v4542, 7
    %v4544 = vsub.s32 %v4283, %v4543
    %v4545 = vrot.slane %v3278, %v4544
    %v4546 = vsel %vm4288, %v4545, %v4541
    %v4547 = vlaneseq
    %v4548 = vshrl.u32 %v4547, 7
    %v4549 = vsub.s32 %v4290, %v4548
    %v4550 = vrot.slane %v3279, %v4549
    %v4551 = vsel %vm4295, %v4550, %v4546
    %v4552 = vlaneseq
    %v4553 = vshrl.u32 %v4552, 7
    %v4554 = vsub.s32 %v4297, %v4553
    %v4555 = vrot.slane %v3280, %v4554
    %v4556 = vsel %vm4302, %v4555, %v4551
    %v4557 = vlaneseq
    %v4558 = vshrl.u32 %v4557, 7
    %v4559 = vsub.s32 %v4304, %v4558
    %v4560 = vrot.slane %v3281, %v4559
    %v4561 = vsel %vm4309, %v4560, %v4556
    %v4562 = vlaneseq
    %v4563 = vshrl.u32 %v4562, 7
    %v4564 = vsub.s32 %v4311, %v4563
    %v4565 = vrot.slane %v3282, %v4564
    %v4566 = vsel %vm4316, %v4565, %v4561
    %v4567 = vlaneseq
    %v4568 = vshrl.u32 %v4567, 7
    %v4569 = vsub.s32 %v4318, %v4568
    %v4570 = vrot.slane %v3283, %v4569
    %v4571 = vsel %vm4323, %v4570, %v4566
    %v4572 = vlaneseq
    %v4573 = vshrl.u32 %v4572, 7
    %v4574 = vsub.s32 %v4325, %v4573
    %v4575 = vrot.slane %v3284, %v4574
    %v4576 = vsel %vm4330, %v4575, %v4571
    %v4577 = vlaneseq
    %v4578 = vshrl.u32 %v4577, 7
    %v4579 = vsub.s32 %v4332, %v4578
    %v4580 = vrot.slane %v3285, %v4579
    %v4581 = vsel %vm4337, %v4580, %v4576
    %v4582 = vlaneseq
    %v4583 = vshrl.u32 %v4582, 7
    %v4584 = vsub.s32 %v4339, %v4583
    %v4585 = vrot.slane %v3286, %v4584
    %v4586 = vsel %vm4344, %v4585, %v4581
    %v4587 = vlaneseq
    %v4588 = vshrl.u32 %v4587, 7
    %v4589 = vsub.s32 %v4346, %v4588
    %v4590 = vrot.slane %v3287, %v4589
    %v4591 = vsel %vm4351, %v4590, %v4586
    %v4592 = vlaneseq
    %v4593 = vshrl.u32 %v4592, 7
    %v4594 = vsub.s32 %v4353, %v4593
    %v4595 = vrot.slane %v3288, %v4594
    %v4596 = vsel %vm4358, %v4595, %v4591
    %v4597 = vlaneseq
    %v4598 = vshrl.u32 %v4597, 7
    %v4599 = vsub.s32 %v4250, %v4598
    %v4600 = vrot.slane %v3289, %v4599
    %v4601 = vlaneseq
    %v4602 = vshrl.u32 %v4601, 7
    %v4603 = vsub.s32 %v4255, %v4602
    %v4604 = vrot.slane %v3290, %v4603
    %v4605 = vsel %vm4260, %v4604, %v4600
    %v4606 = vlaneseq
    %v4607 = vshrl.u32 %v4606, 7
    %v4608 = vsub.s32 %v4262, %v4607
    %v4609 = vrot.slane %v3291, %v4608
    %v4610 = vsel %vm4267, %v4609, %v4605
    %v4611 = vlaneseq
    %v4612 = vshrl.u32 %v4611, 7
    %v4613 = vsub.s32 %v4269, %v4612
    %v4614 = vrot.slane %v3292, %v4613
    %v4615 = vsel %vm4274, %v4614, %v4610
    %v4616 = vlaneseq
    %v4617 = vshrl.u32 %v4616, 7
    %v4618 = vsub.s32 %v4276, %v4617
    %v4619 = vrot.slane %v3293, %v4618
    %v4620 = vsel %vm4281, %v4619, %v4615
    %v4621 = vlaneseq
    %v4622 = vshrl.u32 %v4621, 7
    %v4623 = vsub.s32 %v4283, %v4622
    %v4624 = vrot.slane %v3294, %v4623
    %v4625 = vsel %vm4288, %v4624, %v4620
    %v4626 = vlaneseq
    %v4627 = vshrl.u32 %v4626, 7
    %v4628 = vsub.s32 %v4290, %v4627
    %v4629 = vrot.slane %v3295, %v4628
    %v4630 = vsel %vm4295, %v4629, %v4625
    %v4631 = vlaneseq
    %v4632 = vshrl.u32 %v4631, 7
    %v4633 = vsub.s32 %v4297, %v4632
    %v4634 = vrot.slane %v3296, %v4633
    %v4635 = vsel %vm4302, %v4634, %v4630
    %v4636 = vlaneseq
    %v4637 = vshrl.u32 %v4636, 7
    %v4638 = vsub.s32 %v4304, %v4637
    %v4639 = vrot.slane %v3297, %v4638
    %v4640 = vsel %vm4309, %v4639, %v4635
    %v4641 = vlaneseq
    %v4642 = vshrl.u32 %v4641, 7
    %v4643 = vsub.s32 %v4311, %v4642
    %v4644 = vrot.slane %v3298, %v4643
    %v4645 = vsel %vm4316, %v4644, %v4640
    %v4646 = vlaneseq
    %v4647 = vshrl.u32 %v4646, 7
    %v4648 = vsub.s32 %v4318, %v4647
    %v4649 = vrot.slane %v3299, %v4648
    %v4650 = vsel %vm4323, %v4649, %v4645
    %v4651 = vlaneseq
    %v4652 = vshrl.u32 %v4651, 7
    %v4653 = vsub.s32 %v4325, %v4652
    %v4654 = vrot.slane %v3300, %v4653
    %v4655 = vsel %vm4330, %v4654, %v4650
    %v4656 = vlaneseq
    %v4657 = vshrl.u32 %v4656, 7
    %v4658 = vsub.s32 %v4332, %v4657
    %v4659 = vrot.slane %v3301, %v4658
    %v4660 = vsel %vm4337, %v4659, %v4655
    %v4661 = vlaneseq
    %v4662 = vshrl.u32 %v4661, 7
    %v4663 = vsub.s32 %v4339, %v4662
    %v4664 = vrot.slane %v3302, %v4663
    %v4665 = vsel %vm4344, %v4664, %v4660
    %v4666 = vlaneseq
    %v4667 = vshrl.u32 %v4666, 7
    %v4668 = vsub.s32 %v4346, %v4667
    %v4669 = vrot.slane %v3303, %v4668
    %v4670 = vsel %vm4351, %v4669, %v4665
    %v4671 = vlaneseq
    %v4672 = vshrl.u32 %v4671, 7
    %v4673 = vsub.s32 %v4353, %v4672
    %v4674 = vrot.slane %v3304, %v4673
    %v4675 = vsel %vm4358, %v4674, %v4670
    %v4676 = vlaneseq
    %v4677 = vshrl.u32 %v4676, 7
    %v4678 = vsub.s32 %v4250, %v4677
    %v4679 = vrot.slane %v3305, %v4678
    %v4680 = vlaneseq
    %v4681 = vshrl.u32 %v4680, 7
    %v4682 = vsub.s32 %v4255, %v4681
    %v4683 = vrot.slane %v3306, %v4682
    %v4684 = vsel %vm4260, %v4683, %v4679
    %v4685 = vlaneseq
    %v4686 = vshrl.u32 %v4685, 7
    %v4687 = vsub.s32 %v4262, %v4686
    %v4688 = vrot.slane %v3307, %v4687
    %v4689 = vsel %vm4267, %v4688, %v4684
    %v4690 = vlaneseq
    %v4691 = vshrl.u32 %v4690, 7
    %v4692 = vsub.s32 %v4269, %v4691
    %v4693 = vrot.slane %v3308, %v4692
    %v4694 = vsel %vm4274, %v4693, %v4689
    %v4695 = vlaneseq
    %v4696 = vshrl.u32 %v4695, 7
    %v4697 = vsub.s32 %v4276, %v4696
    %v4698 = vrot.slane %v3309, %v4697
    %v4699 = vsel %vm4281, %v4698, %v4694
    %v4700 = vlaneseq
    %v4701 = vshrl.u32 %v4700, 7
    %v4702 = vsub.s32 %v4283, %v4701
    %v4703 = vrot.slane %v3310, %v4702
    %v4704 = vsel %vm4288, %v4703, %v4699
    %v4705 = vlaneseq
    %v4706 = vshrl.u32 %v4705, 7
    %v4707 = vsub.s32 %v4290, %v4706
    %v4708 = vrot.slane %v3311, %v4707
    %v4709 = vsel %vm4295, %v4708, %v4704
    %v4710 = vlaneseq
    %v4711 = vshrl.u32 %v4710, 7
    %v4712 = vsub.s32 %v4297, %v4711
    %v4713 = vrot.slane %v3312, %v4712
    %v4714 = vsel %vm4302, %v4713, %v4709
    %v4715 = vlaneseq
    %v4716 = vshrl.u32 %v4715, 7
    %v4717 = vsub.s32 %v4304, %v4716
    %v4718 = vrot.slane %v3313, %v4717
    %v4719 = vsel %vm4309, %v4718, %v4714
    %v4720 = vlaneseq
    %v4721 = vshrl.u32 %v4720, 7
    %v4722 = vsub.s32 %v4311, %v4721
    %v4723 = vrot.slane %v3314, %v4722
    %v4724 = vsel %vm4316, %v4723, %v4719
    %v4725 = vlaneseq
    %v4726 = vshrl.u32 %v4725, 7
    %v4727 = vsub.s32 %v4318, %v4726
    %v4728 = vrot.slane %v3315, %v4727
    %v4729 = vsel %vm4323, %v4728, %v4724
    %v4730 = vlaneseq
    %v4731 = vshrl.u32 %v4730, 7
    %v4732 = vsub.s32 %v4325, %v4731
    %v4733 = vrot.slane %v3316, %v4732
    %v4734 = vsel %vm4330, %v4733, %v4729
    %v4735 = vlaneseq
    %v4736 = vshrl.u32 %v4735, 7
    %v4737 = vsub.s32 %v4332, %v4736
    %v4738 = vrot.slane %v3317, %v4737
    %v4739 = vsel %vm4337, %v4738, %v4734
    %v4740 = vlaneseq
    %v4741 = vshrl.u32 %v4740, 7
    %v4742 = vsub.s32 %v4339, %v4741
    %v4743 = vrot.slane %v3318, %v4742
    %v4744 = vsel %vm4344, %v4743, %v4739
    %v4745 = vlaneseq
    %v4746 = vshrl.u32 %v4745, 7
    %v4747 = vsub.s32 %v4346, %v4746
    %v4748 = vrot.slane %v3319, %v4747
    %v4749 = vsel %vm4351, %v4748, %v4744
    %v4750 = vlaneseq
    %v4751 = vshrl.u32 %v4750, 7
    %v4752 = vsub.s32 %v4353, %v4751
    %v4753 = vrot.slane %v3320, %v4752
    %v4754 = vsel %vm4358, %v4753, %v4749
    %v4755 = vlaneseq
    %v4756 = vshrl.u32 %v4755, 7
    %v4757 = vsub.s32 %v4250, %v4756
    %v4758 = vrot.slane %v3321, %v4757
    %v4759 = vlaneseq
    %v4760 = vshrl.u32 %v4759, 7
    %v4761 = vsub.s32 %v4255, %v4760
    %v4762 = vrot.slane %v3322, %v4761
    %v4763 = vsel %vm4260, %v4762, %v4758
    %v4764 = vlaneseq
    %v4765 = vshrl.u32 %v4764, 7
    %v4766 = vsub.s32 %v4262, %v4765
    %v4767 = vrot.slane %v3323, %v4766
    %v4768 = vsel %vm4267, %v4767, %v4763
    %v4769 = vlaneseq
    %v4770 = vshrl.u32 %v4769, 7
    %v4771 = vsub.s32 %v4269, %v4770
    %v4772 = vrot.slane %v3324, %v4771
    %v4773 = vsel %vm4274, %v4772, %v4768
    %v4774 = vlaneseq
    %v4775 = vshrl.u32 %v4774, 7
    %v4776 = vsub.s32 %v4276, %v4775
    %v4777 = vrot.slane %v3325, %v4776
    %v4778 = vsel %vm4281, %v4777, %v4773
    %v4779 = vlaneseq
    %v4780 = vshrl.u32 %v4779, 7
    %v4781 = vsub.s32 %v4283, %v4780
    %v4782 = vrot.slane %v3326, %v4781
    %v4783 = vsel %vm4288, %v4782, %v4778
    %v4784 = vlaneseq
    %v4785 = vshrl.u32 %v4784, 7
    %v4786 = vsub.s32 %v4290, %v4785
    %v4787 = vrot.slane %v3327, %v4786
    %v4788 = vsel %vm4295, %v4787, %v4783
    %v4789 = vlaneseq
    %v4790 = vshrl.u32 %v4789, 7
    %v4791 = vsub.s32 %v4297, %v4790
    %v4792 = vrot.slane %v3328, %v4791
    %v4793 = vsel %vm4302, %v4792, %v4788
    %v4794 = vlaneseq
    %v4795 = vshrl.u32 %v4794, 7
    %v4796 = vsub.s32 %v4304, %v4795
    %v4797 = vrot.slane %v3329, %v4796
    %v4798 = vsel %vm4309, %v4797, %v4793
    %v4799 = vlaneseq
    %v4800 = vshrl.u32 %v4799, 7
    %v4801 = vsub.s32 %v4311, %v4800
    %v4802 = vrot.slane %v3330, %v4801
    %v4803 = vsel %vm4316, %v4802, %v4798
    %v4804 = vlaneseq
    %v4805 = vshrl.u32 %v4804, 7
    %v4806 = vsub.s32 %v4318, %v4805
    %v4807 = vrot.slane %v3331, %v4806
    %v4808 = vsel %vm4323, %v4807, %v4803
    %v4809 = vlaneseq
    %v4810 = vshrl.u32 %v4809, 7
    %v4811 = vsub.s32 %v4325, %v4810
    %v4812 = vrot.slane %v3332, %v4811
    %v4813 = vsel %vm4330, %v4812, %v4808
    %v4814 = vlaneseq
    %v4815 = vshrl.u32 %v4814, 7
    %v4816 = vsub.s32 %v4332, %v4815
    %v4817 = vrot.slane %v3333, %v4816
    %v4818 = vsel %vm4337, %v4817, %v4813
    %v4819 = vlaneseq
    %v4820 = vshrl.u32 %v4819, 7
    %v4821 = vsub.s32 %v4339, %v4820
    %v4822 = vrot.slane %v3334, %v4821
    %v4823 = vsel %vm4344, %v4822, %v4818
    %v4824 = vlaneseq
    %v4825 = vshrl.u32 %v4824, 7
    %v4826 = vsub.s32 %v4346, %v4825
    %v4827 = vrot.slane %v3335, %v4826
    %v4828 = vsel %vm4351, %v4827, %v4823
    %v4829 = vlaneseq
    %v4830 = vshrl.u32 %v4829, 7
    %v4831 = vsub.s32 %v4353, %v4830
    %v4832 = vrot.slane %v3336, %v4831
    %v4833 = vsel %vm4358, %v4832, %v4828
    %v4834 = vlaneseq
    %v4835 = vshrl.u32 %v4834, 7
    %v4836 = vsub.s32 %v4250, %v4835
    %v4837 = vrot.slane %v3337, %v4836
    %v4838 = vlaneseq
    %v4839 = vshrl.u32 %v4838, 7
    %v4840 = vsub.s32 %v4255, %v4839
    %v4841 = vrot.slane %v3338, %v4840
    %v4842 = vsel %vm4260, %v4841, %v4837
    %v4843 = vlaneseq
    %v4844 = vshrl.u32 %v4843, 7
    %v4845 = vsub.s32 %v4262, %v4844
    %v4846 = vrot.slane %v3339, %v4845
    %v4847 = vsel %vm4267, %v4846, %v4842
    %v4848 = vlaneseq
    %v4849 = vshrl.u32 %v4848, 7
    %v4850 = vsub.s32 %v4269, %v4849
    %v4851 = vrot.slane %v3340, %v4850
    %v4852 = vsel %vm4274, %v4851, %v4847
    %v4853 = vlaneseq
    %v4854 = vshrl.u32 %v4853, 7
    %v4855 = vsub.s32 %v4276, %v4854
    %v4856 = vrot.slane %v3341, %v4855
    %v4857 = vsel %vm4281, %v4856, %v4852
    %v4858 = vlaneseq
    %v4859 = vshrl.u32 %v4858, 7
    %v4860 = vsub.s32 %v4283, %v4859
    %v4861 = vrot.slane %v3342, %v4860
    %v4862 = vsel %vm4288, %v4861, %v4857
    %v4863 = vlaneseq
    %v4864 = vshrl.u32 %v4863, 7
    %v4865 = vsub.s32 %v4290, %v4864
    %v4866 = vrot.slane %v3343, %v4865
    %v4867 = vsel %vm4295, %v4866, %v4862
    %v4868 = vlaneseq
    %v4869 = vshrl.u32 %v4868, 7
    %v4870 = vsub.s32 %v4297, %v4869
    %v4871 = vrot.slane %v3344, %v4870
    %v4872 = vsel %vm4302, %v4871, %v4867
    %v4873 = vlaneseq
    %v4874 = vshrl.u32 %v4873, 7
    %v4875 = vsub.s32 %v4304, %v4874
    %v4876 = vrot.slane %v3345, %v4875
    %v4877 = vsel %vm4309, %v4876, %v4872
    %v4878 = vlaneseq
    %v4879 = vshrl.u32 %v4878, 7
    %v4880 = vsub.s32 %v4311, %v4879
    %v4881 = vrot.slane %v3346, %v4880
    %v4882 = vsel %vm4316, %v4881, %v4877
    %v4883 = vlaneseq
    %v4884 = vshrl.u32 %v4883, 7
    %v4885 = vsub.s32 %v4318, %v4884
    %v4886 = vrot.slane %v3347, %v4885
    %v4887 = vsel %vm4323, %v4886, %v4882
    %v4888 = vlaneseq
    %v4889 = vshrl.u32 %v4888, 7
    %v4890 = vsub.s32 %v4325, %v4889
    %v4891 = vrot.slane %v3348, %v4890
    %v4892 = vsel %vm4330, %v4891, %v4887
    %v4893 = vlaneseq
    %v4894 = vshrl.u32 %v4893, 7
    %v4895 = vsub.s32 %v4332, %v4894
    %v4896 = vrot.slane %v3349, %v4895
    %v4897 = vsel %vm4337, %v4896, %v4892
    %v4898 = vlaneseq
    %v4899 = vshrl.u32 %v4898, 7
    %v4900 = vsub.s32 %v4339, %v4899
    %v4901 = vrot.slane %v3350, %v4900
    %v4902 = vsel %vm4344, %v4901, %v4897
    %v4903 = vlaneseq
    %v4904 = vshrl.u32 %v4903, 7
    %v4905 = vsub.s32 %v4346, %v4904
    %v4906 = vrot.slane %v3351, %v4905
    %v4907 = vsel %vm4351, %v4906, %v4902
    %v4908 = vlaneseq
    %v4909 = vshrl.u32 %v4908, 7
    %v4910 = vsub.s32 %v4353, %v4909
    %v4911 = vrot.slane %v3352, %v4910
    %v4912 = vsel %vm4358, %v4911, %v4907
    %v4913 = vlaneseq
    %v4914 = vshrl.u32 %v4913, 7
    %v4915 = vsub.s32 %v4250, %v4914
    %v4916 = vrot.slane %v3353, %v4915
    %v4917 = vlaneseq
    %v4918 = vshrl.u32 %v4917, 7
    %v4919 = vsub.s32 %v4255, %v4918
    %v4920 = vrot.slane %v3354, %v4919
    %v4921 = vsel %vm4260, %v4920, %v4916
    %v4922 = vlaneseq
    %v4923 = vshrl.u32 %v4922, 7
    %v4924 = vsub.s32 %v4262, %v4923
    %v4925 = vrot.slane %v3355, %v4924
    %v4926 = vsel %vm4267, %v4925, %v4921
    %v4927 = vlaneseq
    %v4928 = vshrl.u32 %v4927, 7
    %v4929 = vsub.s32 %v4269, %v4928
    %v4930 = vrot.slane %v3356, %v4929
    %v4931 = vsel %vm4274, %v4930, %v4926
    %v4932 = vlaneseq
    %v4933 = vshrl.u32 %v4932, 7
    %v4934 = vsub.s32 %v4276, %v4933
    %v4935 = vrot.slane %v3357, %v4934
    %v4936 = vsel %vm4281, %v4935, %v4931
    %v4937 = vlaneseq
    %v4938 = vshrl.u32 %v4937, 7
    %v4939 = vsub.s32 %v4283, %v4938
    %v4940 = vrot.slane %v3358, %v4939
    %v4941 = vsel %vm4288, %v4940, %v4936
    %v4942 = vlaneseq
    %v4943 = vshrl.u32 %v4942, 7
    %v4944 = vsub.s32 %v4290, %v4943
    %v4945 = vrot.slane %v3359, %v4944
    %v4946 = vsel %vm4295, %v4945, %v4941
    %v4947 = vlaneseq
    %v4948 = vshrl.u32 %v4947, 7
    %v4949 = vsub.s32 %v4297, %v4948
    %v4950 = vrot.slane %v3360, %v4949
    %v4951 = vsel %vm4302, %v4950, %v4946
    %v4952 = vlaneseq
    %v4953 = vshrl.u32 %v4952, 7
    %v4954 = vsub.s32 %v4304, %v4953
    %v4955 = vrot.slane %v3361, %v4954
    %v4956 = vsel %vm4309, %v4955, %v4951
    %v4957 = vlaneseq
    %v4958 = vshrl.u32 %v4957, 7
    %v4959 = vsub.s32 %v4311, %v4958
    %v4960 = vrot.slane %v3362, %v4959
    %v4961 = vsel %vm4316, %v4960, %v4956
    %v4962 = vlaneseq
    %v4963 = vshrl.u32 %v4962, 7
    %v4964 = vsub.s32 %v4318, %v4963
    %v4965 = vrot.slane %v3363, %v4964
    %v4966 = vsel %vm4323, %v4965, %v4961
    %v4967 = vlaneseq
    %v4968 = vshrl.u32 %v4967, 7
    %v4969 = vsub.s32 %v4325, %v4968
    %v4970 = vrot.slane %v3364, %v4969
    %v4971 = vsel %vm4330, %v4970, %v4966
    %v4972 = vlaneseq
    %v4973 = vshrl.u32 %v4972, 7
    %v4974 = vsub.s32 %v4332, %v4973
    %v4975 = vrot.slane %v3365, %v4974
    %v4976 = vsel %vm4337, %v4975, %v4971
    %v4977 = vlaneseq
    %v4978 = vshrl.u32 %v4977, 7
    %v4979 = vsub.s32 %v4339, %v4978
    %v4980 = vrot.slane %v3366, %v4979
    %v4981 = vsel %vm4344, %v4980, %v4976
    %v4982 = vlaneseq
    %v4983 = vshrl.u32 %v4982, 7
    %v4984 = vsub.s32 %v4346, %v4983
    %v4985 = vrot.slane %v3367, %v4984
    %v4986 = vsel %vm4351, %v4985, %v4981
    %v4987 = vlaneseq
    %v4988 = vshrl.u32 %v4987, 7
    %v4989 = vsub.s32 %v4353, %v4988
    %v4990 = vrot.slane %v3368, %v4989
    %v4991 = vsel %vm4358, %v4990, %v4986
    %v4992 = vlaneseq
    %v4993 = vshrl.u32 %v4992, 7
    %v4994 = vsub.s32 %v4250, %v4993
    %v4995 = vrot.slane %v3369, %v4994
    %v4996 = vlaneseq
    %v4997 = vshrl.u32 %v4996, 7
    %v4998 = vsub.s32 %v4255, %v4997
    %v4999 = vrot.slane %v3370, %v4998
    %v5000 = vsel %vm4260, %v4999, %v4995
    %v5001 = vlaneseq
    %v5002 = vshrl.u32 %v5001, 7
    %v5003 = vsub.s32 %v4262, %v5002
    %v5004 = vrot.slane %v3371, %v5003
    %v5005 = vsel %vm4267, %v5004, %v5000
    %v5006 = vlaneseq
    %v5007 = vshrl.u32 %v5006, 7
    %v5008 = vsub.s32 %v4269, %v5007
    %v5009 = vrot.slane %v3372, %v5008
    %v5010 = vsel %vm4274, %v5009, %v5005
    %v5011 = vlaneseq
    %v5012 = vshrl.u32 %v5011, 7
    %v5013 = vsub.s32 %v4276, %v5012
    %v5014 = vrot.slane %v3373, %v5013
    %v5015 = vsel %vm4281, %v5014, %v5010
    %v5016 = vlaneseq
    %v5017 = vshrl.u32 %v5016, 7
    %v5018 = vsub.s32 %v4283, %v5017
    %v5019 = vrot.slane %v3374, %v5018
    %v5020 = vsel %vm4288, %v5019, %v5015
    %v5021 = vlaneseq
    %v5022 = vshrl.u32 %v5021, 7
    %v5023 = vsub.s32 %v4290, %v5022
    %v5024 = vrot.slane %v3375, %v5023
    %v5025 = vsel %vm4295, %v5024, %v5020
    %v5026 = vlaneseq
    %v5027 = vshrl.u32 %v5026, 7
    %v5028 = vsub.s32 %v4297, %v5027
    %v5029 = vrot.slane %v3376, %v5028
    %v5030 = vsel %vm4302, %v5029, %v5025
    %v5031 = vlaneseq
    %v5032 = vshrl.u32 %v5031, 7
    %v5033 = vsub.s32 %v4304, %v5032
    %v5034 = vrot.slane %v3377, %v5033
    %v5035 = vsel %vm4309, %v5034, %v5030
    %v5036 = vlaneseq
    %v5037 = vshrl.u32 %v5036, 7
    %v5038 = vsub.s32 %v4311, %v5037
    %v5039 = vrot.slane %v3378, %v5038
    %v5040 = vsel %vm4316, %v5039, %v5035
    %v5041 = vlaneseq
    %v5042 = vshrl.u32 %v5041, 7
    %v5043 = vsub.s32 %v4318, %v5042
    %v5044 = vrot.slane %v3379, %v5043
    %v5045 = vsel %vm4323, %v5044, %v5040
    %v5046 = vlaneseq
    %v5047 = vshrl.u32 %v5046, 7
    %v5048 = vsub.s32 %v4325, %v5047
    %v5049 = vrot.slane %v3380, %v5048
    %v5050 = vsel %vm4330, %v5049, %v5045
    %v5051 = vlaneseq
    %v5052 = vshrl.u32 %v5051, 7
    %v5053 = vsub.s32 %v4332, %v5052
    %v5054 = vrot.slane %v3381, %v5053
    %v5055 = vsel %vm4337, %v5054, %v5050
    %v5056 = vlaneseq
    %v5057 = vshrl.u32 %v5056, 7
    %v5058 = vsub.s32 %v4339, %v5057
    %v5059 = vrot.slane %v3382, %v5058
    %v5060 = vsel %vm4344, %v5059, %v5055
    %v5061 = vlaneseq
    %v5062 = vshrl.u32 %v5061, 7
    %v5063 = vsub.s32 %v4346, %v5062
    %v5064 = vrot.slane %v3383, %v5063
    %v5065 = vsel %vm4351, %v5064, %v5060
    %v5066 = vlaneseq
    %v5067 = vshrl.u32 %v5066, 7
    %v5068 = vsub.s32 %v4353, %v5067
    %v5069 = vrot.slane %v3384, %v5068
    %v5070 = vsel %vm4358, %v5069, %v5065
    %v5071 = vlaneseq
    %v5072 = vshrl.u32 %v5071, 7
    %v5073 = vsub.s32 %v4250, %v5072
    %v5074 = vrot.slane %v3385, %v5073
    %v5075 = vlaneseq
    %v5076 = vshrl.u32 %v5075, 7
    %v5077 = vsub.s32 %v4255, %v5076
    %v5078 = vrot.slane %v3386, %v5077
    %v5079 = vsel %vm4260, %v5078, %v5074
    %v5080 = vlaneseq
    %v5081 = vshrl.u32 %v5080, 7
    %v5082 = vsub.s32 %v4262, %v5081
    %v5083 = vrot.slane %v3387, %v5082
    %v5084 = vsel %vm4267, %v5083, %v5079
    %v5085 = vlaneseq
    %v5086 = vshrl.u32 %v5085, 7
    %v5087 = vsub.s32 %v4269, %v5086
    %v5088 = vrot.slane %v3388, %v5087
    %v5089 = vsel %vm4274, %v5088, %v5084
    %v5090 = vlaneseq
    %v5091 = vshrl.u32 %v5090, 7
    %v5092 = vsub.s32 %v4276, %v5091
    %v5093 = vrot.slane %v3389, %v5092
    %v5094 = vsel %vm4281, %v5093, %v5089
    %v5095 = vlaneseq
    %v5096 = vshrl.u32 %v5095, 7
    %v5097 = vsub.s32 %v4283, %v5096
    %v5098 = vrot.slane %v3390, %v5097
    %v5099 = vsel %vm4288, %v5098, %v5094
    %v5100 = vlaneseq
    %v5101 = vshrl.u32 %v5100, 7
    %v5102 = vsub.s32 %v4290, %v5101
    %v5103 = vrot.slane %v3391, %v5102
    %v5104 = vsel %vm4295, %v5103, %v5099
    %v5105 = vlaneseq
    %v5106 = vshrl.u32 %v5105, 7
    %v5107 = vsub.s32 %v4297, %v5106
    %v5108 = vrot.slane %v3392, %v5107
    %v5109 = vsel %vm4302, %v5108, %v5104
    %v5110 = vlaneseq
    %v5111 = vshrl.u32 %v5110, 7
    %v5112 = vsub.s32 %v4304, %v5111
    %v5113 = vrot.slane %v3393, %v5112
    %v5114 = vsel %vm4309, %v5113, %v5109
    %v5115 = vlaneseq
    %v5116 = vshrl.u32 %v5115, 7
    %v5117 = vsub.s32 %v4311, %v5116
    %v5118 = vrot.slane %v3394, %v5117
    %v5119 = vsel %vm4316, %v5118, %v5114
    %v5120 = vlaneseq
    %v5121 = vshrl.u32 %v5120, 7
    %v5122 = vsub.s32 %v4318, %v5121
    %v5123 = vrot.slane %v3395, %v5122
    %v5124 = vsel %vm4323, %v5123, %v5119
    %v5125 = vlaneseq
    %v5126 = vshrl.u32 %v5125, 7
    %v5127 = vsub.s32 %v4325, %v5126
    %v5128 = vrot.slane %v3396, %v5127
    %v5129 = vsel %vm4330, %v5128, %v5124
    %v5130 = vlaneseq
    %v5131 = vshrl.u32 %v5130, 7
    %v5132 = vsub.s32 %v4332, %v5131
    %v5133 = vrot.slane %v3397, %v5132
    %v5134 = vsel %vm4337, %v5133, %v5129
    %v5135 = vlaneseq
    %v5136 = vshrl.u32 %v5135, 7
    %v5137 = vsub.s32 %v4339, %v5136
    %v5138 = vrot.slane %v3398, %v5137
    %v5139 = vsel %vm4344, %v5138, %v5134
    %v5140 = vlaneseq
    %v5141 = vshrl.u32 %v5140, 7
    %v5142 = vsub.s32 %v4346, %v5141
    %v5143 = vrot.slane %v3399, %v5142
    %v5144 = vsel %vm4351, %v5143, %v5139
    %v5145 = vlaneseq
    %v5146 = vshrl.u32 %v5145, 7
    %v5147 = vsub.s32 %v4353, %v5146
    %v5148 = vrot.slane %v3400, %v5147
    %v5149 = vsel %vm4358, %v5148, %v5144
    %v5150 = vlaneseq
    %v5151 = vshrl.u32 %v5150, 7
    %v5152 = vsub.s32 %v4250, %v5151
    %v5153 = vrot.slane %v3401, %v5152
    %v5154 = vlaneseq
    %v5155 = vshrl.u32 %v5154, 7
    %v5156 = vsub.s32 %v4255, %v5155
    %v5157 = vrot.slane %v3402, %v5156
    %v5158 = vsel %vm4260, %v5157, %v5153
    %v5159 = vlaneseq
    %v5160 = vshrl.u32 %v5159, 7
    %v5161 = vsub.s32 %v4262, %v5160
    %v5162 = vrot.slane %v3403, %v5161
    %v5163 = vsel %vm4267, %v5162, %v5158
    %v5164 = vlaneseq
    %v5165 = vshrl.u32 %v5164, 7
    %v5166 = vsub.s32 %v4269, %v5165
    %v5167 = vrot.slane %v3404, %v5166
    %v5168 = vsel %vm4274, %v5167, %v5163
    %v5169 = vlaneseq
    %v5170 = vshrl.u32 %v5169, 7
    %v5171 = vsub.s32 %v4276, %v5170
    %v5172 = vrot.slane %v3405, %v5171
    %v5173 = vsel %vm4281, %v5172, %v5168
    %v5174 = vlaneseq
    %v5175 = vshrl.u32 %v5174, 7
    %v5176 = vsub.s32 %v4283, %v5175
    %v5177 = vrot.slane %v3406, %v5176
    %v5178 = vsel %vm4288, %v5177, %v5173
    %v5179 = vlaneseq
    %v5180 = vshrl.u32 %v5179, 7
    %v5181 = vsub.s32 %v4290, %v5180
    %v5182 = vrot.slane %v3407, %v5181
    %v5183 = vsel %vm4295, %v5182, %v5178
    %v5184 = vlaneseq
    %v5185 = vshrl.u32 %v5184, 7
    %v5186 = vsub.s32 %v4297, %v5185
    %v5187 = vrot.slane %v3408, %v5186
    %v5188 = vsel %vm4302, %v5187, %v5183
    %v5189 = vlaneseq
    %v5190 = vshrl.u32 %v5189, 7
    %v5191 = vsub.s32 %v4304, %v5190
    %v5192 = vrot.slane %v3409, %v5191
    %v5193 = vsel %vm4309, %v5192, %v5188
    %v5194 = vlaneseq
    %v5195 = vshrl.u32 %v5194, 7
    %v5196 = vsub.s32 %v4311, %v5195
    %v5197 = vrot.slane %v3410, %v5196
    %v5198 = vsel %vm4316, %v5197, %v5193
    %v5199 = vlaneseq
    %v5200 = vshrl.u32 %v5199, 7
    %v5201 = vsub.s32 %v4318, %v5200
    %v5202 = vrot.slane %v3411, %v5201
    %v5203 = vsel %vm4323, %v5202, %v5198
    %v5204 = vlaneseq
    %v5205 = vshrl.u32 %v5204, 7
    %v5206 = vsub.s32 %v4325, %v5205
    %v5207 = vrot.slane %v3412, %v5206
    %v5208 = vsel %vm4330, %v5207, %v5203
    %v5209 = vlaneseq
    %v5210 = vshrl.u32 %v5209, 7
    %v5211 = vsub.s32 %v4332, %v5210
    %v5212 = vrot.slane %v3413, %v5211
    %v5213 = vsel %vm4337, %v5212, %v5208
    %v5214 = vlaneseq
    %v5215 = vshrl.u32 %v5214, 7
    %v5216 = vsub.s32 %v4339, %v5215
    %v5217 = vrot.slane %v3414, %v5216
    %v5218 = vsel %vm4344, %v5217, %v5213
    %v5219 = vlaneseq
    %v5220 = vshrl.u32 %v5219, 7
    %v5221 = vsub.s32 %v4346, %v5220
    %v5222 = vrot.slane %v3415, %v5221
    %v5223 = vsel %vm4351, %v5222, %v5218
    %v5224 = vlaneseq
    %v5225 = vshrl.u32 %v5224, 7
    %v5226 = vsub.s32 %v4353, %v5225
    %v5227 = vrot.slane %v3416, %v5226
    %v5228 = vsel %vm4358, %v5227, %v5223
    %v5229 = vlaneseq
    %v5230 = vshrl.u32 %v5229, 7
    %v5231 = vsub.s32 %v4250, %v5230
    %v5232 = vrot.slane %v3417, %v5231
    %v5233 = vlaneseq
    %v5234 = vshrl.u32 %v5233, 7
    %v5235 = vsub.s32 %v4255, %v5234
    %v5236 = vrot.slane %v3418, %v5235
    %v5237 = vsel %vm4260, %v5236, %v5232
    %v5238 = vlaneseq
    %v5239 = vshrl.u32 %v5238, 7
    %v5240 = vsub.s32 %v4262, %v5239
    %v5241 = vrot.slane %v3419, %v5240
    %v5242 = vsel %vm4267, %v5241, %v5237
    %v5243 = vlaneseq
    %v5244 = vshrl.u32 %v5243, 7
    %v5245 = vsub.s32 %v4269, %v5244
    %v5246 = vrot.slane %v3420, %v5245
    %v5247 = vsel %vm4274, %v5246, %v5242
    %v5248 = vlaneseq
    %v5249 = vshrl.u32 %v5248, 7
    %v5250 = vsub.s32 %v4276, %v5249
    %v5251 = vrot.slane %v3421, %v5250
    %v5252 = vsel %vm4281, %v5251, %v5247
    %v5253 = vlaneseq
    %v5254 = vshrl.u32 %v5253, 7
    %v5255 = vsub.s32 %v4283, %v5254
    %v5256 = vrot.slane %v3422, %v5255
    %v5257 = vsel %vm4288, %v5256, %v5252
    %v5258 = vlaneseq
    %v5259 = vshrl.u32 %v5258, 7
    %v5260 = vsub.s32 %v4290, %v5259
    %v5261 = vrot.slane %v3423, %v5260
    %v5262 = vsel %vm4295, %v5261, %v5257
    %v5263 = vlaneseq
    %v5264 = vshrl.u32 %v5263, 7
    %v5265 = vsub.s32 %v4297, %v5264
    %v5266 = vrot.slane %v3424, %v5265
    %v5267 = vsel %vm4302, %v5266, %v5262
    %v5268 = vlaneseq
    %v5269 = vshrl.u32 %v5268, 7
    %v5270 = vsub.s32 %v4304, %v5269
    %v5271 = vrot.slane %v3425, %v5270
    %v5272 = vsel %vm4309, %v5271, %v5267
    %v5273 = vlaneseq
    %v5274 = vshrl.u32 %v5273, 7
    %v5275 = vsub.s32 %v4311, %v5274
    %v5276 = vrot.slane %v3426, %v5275
    %v5277 = vsel %vm4316, %v5276, %v5272
    %v5278 = vlaneseq
    %v5279 = vshrl.u32 %v5278, 7
    %v5280 = vsub.s32 %v4318, %v5279
    %v5281 = vrot.slane %v3427, %v5280
    %v5282 = vsel %vm4323, %v5281, %v5277
    %v5283 = vlaneseq
    %v5284 = vshrl.u32 %v5283, 7
    %v5285 = vsub.s32 %v4325, %v5284
    %v5286 = vrot.slane %v3428, %v5285
    %v5287 = vsel %vm4330, %v5286, %v5282
    %v5288 = vlaneseq
    %v5289 = vshrl.u32 %v5288, 7
    %v5290 = vsub.s32 %v4332, %v5289
    %v5291 = vrot.slane %v3429, %v5290
    %v5292 = vsel %vm4337, %v5291, %v5287
    %v5293 = vlaneseq
    %v5294 = vshrl.u32 %v5293, 7
    %v5295 = vsub.s32 %v4339, %v5294
    %v5296 = vrot.slane %v3430, %v5295
    %v5297 = vsel %vm4344, %v5296, %v5292
    %v5298 = vlaneseq
    %v5299 = vshrl.u32 %v5298, 7
    %v5300 = vsub.s32 %v4346, %v5299
    %v5301 = vrot.slane %v3431, %v5300
    %v5302 = vsel %vm4351, %v5301, %v5297
    %v5303 = vlaneseq
    %v5304 = vshrl.u32 %v5303, 7
    %v5305 = vsub.s32 %v4353, %v5304
    %v5306 = vrot.slane %v3432, %v5305
    %v5307 = vsel %vm4358, %v5306, %v5302
    %v5308 = vlaneseq
    %v5309 = vshrl.u32 %v5308, 7
    %v5310 = vsub.s32 %v4250, %v5309
    %v5311 = vrot.slane %v3433, %v5310
    %v5312 = vlaneseq
    %v5313 = vshrl.u32 %v5312, 7
    %v5314 = vsub.s32 %v4255, %v5313
    %v5315 = vrot.slane %v3434, %v5314
    %v5316 = vsel %vm4260, %v5315, %v5311
    %v5317 = vlaneseq
    %v5318 = vshrl.u32 %v5317, 7
    %v5319 = vsub.s32 %v4262, %v5318
    %v5320 = vrot.slane %v3435, %v5319
    %v5321 = vsel %vm4267, %v5320, %v5316
    %v5322 = vlaneseq
    %v5323 = vshrl.u32 %v5322, 7
    %v5324 = vsub.s32 %v4269, %v5323
    %v5325 = vrot.slane %v3436, %v5324
    %v5326 = vsel %vm4274, %v5325, %v5321
    %v5327 = vlaneseq
    %v5328 = vshrl.u32 %v5327, 7
    %v5329 = vsub.s32 %v4276, %v5328
    %v5330 = vrot.slane %v3437, %v5329
    %v5331 = vsel %vm4281, %v5330, %v5326
    %v5332 = vlaneseq
    %v5333 = vshrl.u32 %v5332, 7
    %v5334 = vsub.s32 %v4283, %v5333
    %v5335 = vrot.slane %v3438, %v5334
    %v5336 = vsel %vm4288, %v5335, %v5331
    %v5337 = vlaneseq
    %v5338 = vshrl.u32 %v5337, 7
    %v5339 = vsub.s32 %v4290, %v5338
    %v5340 = vrot.slane %v3439, %v5339
    %v5341 = vsel %vm4295, %v5340, %v5336
    %v5342 = vlaneseq
    %v5343 = vshrl.u32 %v5342, 7
    %v5344 = vsub.s32 %v4297, %v5343
    %v5345 = vrot.slane %v3440, %v5344
    %v5346 = vsel %vm4302, %v5345, %v5341
    %v5347 = vlaneseq
    %v5348 = vshrl.u32 %v5347, 7
    %v5349 = vsub.s32 %v4304, %v5348
    %v5350 = vrot.slane %v3441, %v5349
    %v5351 = vsel %vm4309, %v5350, %v5346
    %v5352 = vlaneseq
    %v5353 = vshrl.u32 %v5352, 7
    %v5354 = vsub.s32 %v4311, %v5353
    %v5355 = vrot.slane %v3442, %v5354
    %v5356 = vsel %vm4316, %v5355, %v5351
    %v5357 = vlaneseq
    %v5358 = vshrl.u32 %v5357, 7
    %v5359 = vsub.s32 %v4318, %v5358
    %v5360 = vrot.slane %v3443, %v5359
    %v5361 = vsel %vm4323, %v5360, %v5356
    %v5362 = vlaneseq
    %v5363 = vshrl.u32 %v5362, 7
    %v5364 = vsub.s32 %v4325, %v5363
    %v5365 = vrot.slane %v3444, %v5364
    %v5366 = vsel %vm4330, %v5365, %v5361
    %v5367 = vlaneseq
    %v5368 = vshrl.u32 %v5367, 7
    %v5369 = vsub.s32 %v4332, %v5368
    %v5370 = vrot.slane %v3445, %v5369
    %v5371 = vsel %vm4337, %v5370, %v5366
    %v5372 = vlaneseq
    %v5373 = vshrl.u32 %v5372, 7
    %v5374 = vsub.s32 %v4339, %v5373
    %v5375 = vrot.slane %v3446, %v5374
    %v5376 = vsel %vm4344, %v5375, %v5371
    %v5377 = vlaneseq
    %v5378 = vshrl.u32 %v5377, 7
    %v5379 = vsub.s32 %v4346, %v5378
    %v5380 = vrot.slane %v3447, %v5379
    %v5381 = vsel %vm4351, %v5380, %v5376
    %v5382 = vlaneseq
    %v5383 = vshrl.u32 %v5382, 7
    %v5384 = vsub.s32 %v4353, %v5383
    %v5385 = vrot.slane %v3448, %v5384
    %v5386 = vsel %vm4358, %v5385, %v5381
    %v5387 = vlaneseq
    %v5388 = vshrl.u32 %v5387, 7
    %v5389 = vsub.s32 %v4250, %v5388
    %v5390 = vrot.slane %v3449, %v5389
    %v5391 = vlaneseq
    %v5392 = vshrl.u32 %v5391, 7
    %v5393 = vsub.s32 %v4255, %v5392
    %v5394 = vrot.slane %v3450, %v5393
    %v5395 = vsel %vm4260, %v5394, %v5390
    %v5396 = vlaneseq
    %v5397 = vshrl.u32 %v5396, 7
    %v5398 = vsub.s32 %v4262, %v5397
    %v5399 = vrot.slane %v3451, %v5398
    %v5400 = vsel %vm4267, %v5399, %v5395
    %v5401 = vlaneseq
    %v5402 = vshrl.u32 %v5401, 7
    %v5403 = vsub.s32 %v4269, %v5402
    %v5404 = vrot.slane %v3452, %v5403
    %v5405 = vsel %vm4274, %v5404, %v5400
    %v5406 = vlaneseq
    %v5407 = vshrl.u32 %v5406, 7
    %v5408 = vsub.s32 %v4276, %v5407
    %v5409 = vrot.slane %v3453, %v5408
    %v5410 = vsel %vm4281, %v5409, %v5405
    %v5411 = vlaneseq
    %v5412 = vshrl.u32 %v5411, 7
    %v5413 = vsub.s32 %v4283, %v5412
    %v5414 = vrot.slane %v3454, %v5413
    %v5415 = vsel %vm4288, %v5414, %v5410
    %v5416 = vlaneseq
    %v5417 = vshrl.u32 %v5416, 7
    %v5418 = vsub.s32 %v4290, %v5417
    %v5419 = vrot.slane %v3455, %v5418
    %v5420 = vsel %vm4295, %v5419, %v5415
    %v5421 = vlaneseq
    %v5422 = vshrl.u32 %v5421, 7
    %v5423 = vsub.s32 %v4297, %v5422
    %v5424 = vrot.slane %v3456, %v5423
    %v5425 = vsel %vm4302, %v5424, %v5420
    %v5426 = vlaneseq
    %v5427 = vshrl.u32 %v5426, 7
    %v5428 = vsub.s32 %v4304, %v5427
    %v5429 = vrot.slane %v3457, %v5428
    %v5430 = vsel %vm4309, %v5429, %v5425
    %v5431 = vlaneseq
    %v5432 = vshrl.u32 %v5431, 7
    %v5433 = vsub.s32 %v4311, %v5432
    %v5434 = vrot.slane %v3458, %v5433
    %v5435 = vsel %vm4316, %v5434, %v5430
    %v5436 = vlaneseq
    %v5437 = vshrl.u32 %v5436, 7
    %v5438 = vsub.s32 %v4318, %v5437
    %v5439 = vrot.slane %v3459, %v5438
    %v5440 = vsel %vm4323, %v5439, %v5435
    %v5441 = vlaneseq
    %v5442 = vshrl.u32 %v5441, 7
    %v5443 = vsub.s32 %v4325, %v5442
    %v5444 = vrot.slane %v3460, %v5443
    %v5445 = vsel %vm4330, %v5444, %v5440
    %v5446 = vlaneseq
    %v5447 = vshrl.u32 %v5446, 7
    %v5448 = vsub.s32 %v4332, %v5447
    %v5449 = vrot.slane %v3461, %v5448
    %v5450 = vsel %vm4337, %v5449, %v5445
    %v5451 = vlaneseq
    %v5452 = vshrl.u32 %v5451, 7
    %v5453 = vsub.s32 %v4339, %v5452
    %v5454 = vrot.slane %v3462, %v5453
    %v5455 = vsel %vm4344, %v5454, %v5450
    %v5456 = vlaneseq
    %v5457 = vshrl.u32 %v5456, 7
    %v5458 = vsub.s32 %v4346, %v5457
    %v5459 = vrot.slane %v3463, %v5458
    %v5460 = vsel %vm4351, %v5459, %v5455
    %v5461 = vlaneseq
    %v5462 = vshrl.u32 %v5461, 7
    %v5463 = vsub.s32 %v4353, %v5462
    %v5464 = vrot.slane %v3464, %v5463
    %v5465 = vsel %vm4358, %v5464, %v5460
    %v5466 = vlaneseq
    %v5467 = vshrl.u32 %v5466, 7
    %v5468 = vsub.s32 %v4250, %v5467
    %v5469 = vrot.slane %v3465, %v5468
    %v5470 = vlaneseq
    %v5471 = vshrl.u32 %v5470, 7
    %v5472 = vsub.s32 %v4255, %v5471
    %v5473 = vrot.slane %v3466, %v5472
    %v5474 = vsel %vm4260, %v5473, %v5469
    %v5475 = vlaneseq
    %v5476 = vshrl.u32 %v5475, 7
    %v5477 = vsub.s32 %v4262, %v5476
    %v5478 = vrot.slane %v3467, %v5477
    %v5479 = vsel %vm4267, %v5478, %v5474
    %v5480 = vlaneseq
    %v5481 = vshrl.u32 %v5480, 7
    %v5482 = vsub.s32 %v4269, %v5481
    %v5483 = vrot.slane %v3468, %v5482
    %v5484 = vsel %vm4274, %v5483, %v5479
    %v5485 = vlaneseq
    %v5486 = vshrl.u32 %v5485, 7
    %v5487 = vsub.s32 %v4276, %v5486
    %v5488 = vrot.slane %v3469, %v5487
    %v5489 = vsel %vm4281, %v5488, %v5484
    %v5490 = vlaneseq
    %v5491 = vshrl.u32 %v5490, 7
    %v5492 = vsub.s32 %v4283, %v5491
    %v5493 = vrot.slane %v3470, %v5492
    %v5494 = vsel %vm4288, %v5493, %v5489
    %v5495 = vlaneseq
    %v5496 = vshrl.u32 %v5495, 7
    %v5497 = vsub.s32 %v4290, %v5496
    %v5498 = vrot.slane %v3471, %v5497
    %v5499 = vsel %vm4295, %v5498, %v5494
    %v5500 = vlaneseq
    %v5501 = vshrl.u32 %v5500, 7
    %v5502 = vsub.s32 %v4297, %v5501
    %v5503 = vrot.slane %v3472, %v5502
    %v5504 = vsel %vm4302, %v5503, %v5499
    %v5505 = vlaneseq
    %v5506 = vshrl.u32 %v5505, 7
    %v5507 = vsub.s32 %v4304, %v5506
    %v5508 = vrot.slane %v3473, %v5507
    %v5509 = vsel %vm4309, %v5508, %v5504
    %v5510 = vlaneseq
    %v5511 = vshrl.u32 %v5510, 7
    %v5512 = vsub.s32 %v4311, %v5511
    %v5513 = vrot.slane %v3474, %v5512
    %v5514 = vsel %vm4316, %v5513, %v5509
    %v5515 = vlaneseq
    %v5516 = vshrl.u32 %v5515, 7
    %v5517 = vsub.s32 %v4318, %v5516
    %v5518 = vrot.slane %v3475, %v5517
    %v5519 = vsel %vm4323, %v5518, %v5514
    %v5520 = vlaneseq
    %v5521 = vshrl.u32 %v5520, 7
    %v5522 = vsub.s32 %v4325, %v5521
    %v5523 = vrot.slane %v3476, %v5522
    %v5524 = vsel %vm4330, %v5523, %v5519
    %v5525 = vlaneseq
    %v5526 = vshrl.u32 %v5525, 7
    %v5527 = vsub.s32 %v4332, %v5526
    %v5528 = vrot.slane %v3477, %v5527
    %v5529 = vsel %vm4337, %v5528, %v5524
    %v5530 = vlaneseq
    %v5531 = vshrl.u32 %v5530, 7
    %v5532 = vsub.s32 %v4339, %v5531
    %v5533 = vrot.slane %v3478, %v5532
    %v5534 = vsel %vm4344, %v5533, %v5529
    %v5535 = vlaneseq
    %v5536 = vshrl.u32 %v5535, 7
    %v5537 = vsub.s32 %v4346, %v5536
    %v5538 = vrot.slane %v3479, %v5537
    %v5539 = vsel %vm4351, %v5538, %v5534
    %v5540 = vlaneseq
    %v5541 = vshrl.u32 %v5540, 7
    %v5542 = vsub.s32 %v4353, %v5541
    %v5543 = vrot.slane %v3480, %v5542
    %v5544 = vsel %vm4358, %v5543, %v5539
    %v5545 = vlaneseq
    %v5546 = vshrl.u32 %v5545, 7
    %v5547 = vsub.s32 %v4250, %v5546
    %v5548 = vrot.slane %v3481, %v5547
    %v5549 = vlaneseq
    %v5550 = vshrl.u32 %v5549, 7
    %v5551 = vsub.s32 %v4255, %v5550
    %v5552 = vrot.slane %v3482, %v5551
    %v5553 = vsel %vm4260, %v5552, %v5548
    %v5554 = vlaneseq
    %v5555 = vshrl.u32 %v5554, 7
    %v5556 = vsub.s32 %v4262, %v5555
    %v5557 = vrot.slane %v3483, %v5556
    %v5558 = vsel %vm4267, %v5557, %v5553
    %v5559 = vlaneseq
    %v5560 = vshrl.u32 %v5559, 7
    %v5561 = vsub.s32 %v4269, %v5560
    %v5562 = vrot.slane %v3484, %v5561
    %v5563 = vsel %vm4274, %v5562, %v5558
    %v5564 = vlaneseq
    %v5565 = vshrl.u32 %v5564, 7
    %v5566 = vsub.s32 %v4276, %v5565
    %v5567 = vrot.slane %v3485, %v5566
    %v5568 = vsel %vm4281, %v5567, %v5563
    %v5569 = vlaneseq
    %v5570 = vshrl.u32 %v5569, 7
    %v5571 = vsub.s32 %v4283, %v5570
    %v5572 = vrot.slane %v3486, %v5571
    %v5573 = vsel %vm4288, %v5572, %v5568
    %v5574 = vlaneseq
    %v5575 = vshrl.u32 %v5574, 7
    %v5576 = vsub.s32 %v4290, %v5575
    %v5577 = vrot.slane %v3487, %v5576
    %v5578 = vsel %vm4295, %v5577, %v5573
    %v5579 = vlaneseq
    %v5580 = vshrl.u32 %v5579, 7
    %v5581 = vsub.s32 %v4297, %v5580
    %v5582 = vrot.slane %v3488, %v5581
    %v5583 = vsel %vm4302, %v5582, %v5578
    %v5584 = vlaneseq
    %v5585 = vshrl.u32 %v5584, 7
    %v5586 = vsub.s32 %v4304, %v5585
    %v5587 = vrot.slane %v3489, %v5586
    %v5588 = vsel %vm4309, %v5587, %v5583
    %v5589 = vlaneseq
    %v5590 = vshrl.u32 %v5589, 7
    %v5591 = vsub.s32 %v4311, %v5590
    %v5592 = vrot.slane %v3490, %v5591
    %v5593 = vsel %vm4316, %v5592, %v5588
    %v5594 = vlaneseq
    %v5595 = vshrl.u32 %v5594, 7
    %v5596 = vsub.s32 %v4318, %v5595
    %v5597 = vrot.slane %v3491, %v5596
    %v5598 = vsel %vm4323, %v5597, %v5593
    %v5599 = vlaneseq
    %v5600 = vshrl.u32 %v5599, 7
    %v5601 = vsub.s32 %v4325, %v5600
    %v5602 = vrot.slane %v3492, %v5601
    %v5603 = vsel %vm4330, %v5602, %v5598
    %v5604 = vlaneseq
    %v5605 = vshrl.u32 %v5604, 7
    %v5606 = vsub.s32 %v4332, %v5605
    %v5607 = vrot.slane %v3493, %v5606
    %v5608 = vsel %vm4337, %v5607, %v5603
    %v5609 = vlaneseq
    %v5610 = vshrl.u32 %v5609, 7
    %v5611 = vsub.s32 %v4339, %v5610
    %v5612 = vrot.slane %v3494, %v5611
    %v5613 = vsel %vm4344, %v5612, %v5608
    %v5614 = vlaneseq
    %v5615 = vshrl.u32 %v5614, 7
    %v5616 = vsub.s32 %v4346, %v5615
    %v5617 = vrot.slane %v3495, %v5616
    %v5618 = vsel %vm4351, %v5617, %v5613
    %v5619 = vlaneseq
    %v5620 = vshrl.u32 %v5619, 7
    %v5621 = vsub.s32 %v4353, %v5620
    %v5622 = vrot.slane %v3496, %v5621
    %v5623 = vsel %vm4358, %v5622, %v5618
    %v5624 = vlaneseq
    %v5625 = vshrl.u32 %v5624, 7
    %v5626 = vsub.s32 %v4250, %v5625
    %v5627 = vrot.slane %v3497, %v5626
    %v5628 = vlaneseq
    %v5629 = vshrl.u32 %v5628, 7
    %v5630 = vsub.s32 %v4255, %v5629
    %v5631 = vrot.slane %v3498, %v5630
    %v5632 = vsel %vm4260, %v5631, %v5627
    %v5633 = vlaneseq
    %v5634 = vshrl.u32 %v5633, 7
    %v5635 = vsub.s32 %v4262, %v5634
    %v5636 = vrot.slane %v3499, %v5635
    %v5637 = vsel %vm4267, %v5636, %v5632
    %v5638 = vlaneseq
    %v5639 = vshrl.u32 %v5638, 7
    %v5640 = vsub.s32 %v4269, %v5639
    %v5641 = vrot.slane %v3500, %v5640
    %v5642 = vsel %vm4274, %v5641, %v5637
    %v5643 = vlaneseq
    %v5644 = vshrl.u32 %v5643, 7
    %v5645 = vsub.s32 %v4276, %v5644
    %v5646 = vrot.slane %v3501, %v5645
    %v5647 = vsel %vm4281, %v5646, %v5642
    %v5648 = vlaneseq
    %v5649 = vshrl.u32 %v5648, 7
    %v5650 = vsub.s32 %v4283, %v5649
    %v5651 = vrot.slane %v3502, %v5650
    %v5652 = vsel %vm4288, %v5651, %v5647
    %v5653 = vlaneseq
    %v5654 = vshrl.u32 %v5653, 7
    %v5655 = vsub.s32 %v4290, %v5654
    %v5656 = vrot.slane %v3503, %v5655
    %v5657 = vsel %vm4295, %v5656, %v5652
    %v5658 = vlaneseq
    %v5659 = vshrl.u32 %v5658, 7
    %v5660 = vsub.s32 %v4297, %v5659
    %v5661 = vrot.slane %v3504, %v5660
    %v5662 = vsel %vm4302, %v5661, %v5657
    %v5663 = vlaneseq
    %v5664 = vshrl.u32 %v5663, 7
    %v5665 = vsub.s32 %v4304, %v5664
    %v5666 = vrot.slane %v3505, %v5665
    %v5667 = vsel %vm4309, %v5666, %v5662
    %v5668 = vlaneseq
    %v5669 = vshrl.u32 %v5668, 7
    %v5670 = vsub.s32 %v4311, %v5669
    %v5671 = vrot.slane %v3506, %v5670
    %v5672 = vsel %vm4316, %v5671, %v5667
    %v5673 = vlaneseq
    %v5674 = vshrl.u32 %v5673, 7
    %v5675 = vsub.s32 %v4318, %v5674
    %v5676 = vrot.slane %v3507, %v5675
    %v5677 = vsel %vm4323, %v5676, %v5672
    %v5678 = vlaneseq
    %v5679 = vshrl.u32 %v5678, 7
    %v5680 = vsub.s32 %v4325, %v5679
    %v5681 = vrot.slane %v3508, %v5680
    %v5682 = vsel %vm4330, %v5681, %v5677
    %v5683 = vlaneseq
    %v5684 = vshrl.u32 %v5683, 7
    %v5685 = vsub.s32 %v4332, %v5684
    %v5686 = vrot.slane %v3509, %v5685
    %v5687 = vsel %vm4337, %v5686, %v5682
    %v5688 = vlaneseq
    %v5689 = vshrl.u32 %v5688, 7
    %v5690 = vsub.s32 %v4339, %v5689
    %v5691 = vrot.slane %v3510, %v5690
    %v5692 = vsel %vm4344, %v5691, %v5687
    %v5693 = vlaneseq
    %v5694 = vshrl.u32 %v5693, 7
    %v5695 = vsub.s32 %v4346, %v5694
    %v5696 = vrot.slane %v3511, %v5695
    %v5697 = vsel %vm4351, %v5696, %v5692
    %v5698 = vlaneseq
    %v5699 = vshrl.u32 %v5698, 7
    %v5700 = vsub.s32 %v4353, %v5699
    %v5701 = vrot.slane %v3512, %v5700
    %v5702 = vsel %vm4358, %v5701, %v5697
    %v5703 = vlaneseq
    %v5704 = vshrl.u32 %v5703, 7
    %v5705 = vsub.s32 %v4250, %v5704
    %v5706 = vrot.slane %v3513, %v5705
    %v5707 = vlaneseq
    %v5708 = vshrl.u32 %v5707, 7
    %v5709 = vsub.s32 %v4255, %v5708
    %v5710 = vrot.slane %v3514, %v5709
    %v5711 = vsel %vm4260, %v5710, %v5706
    %v5712 = vlaneseq
    %v5713 = vshrl.u32 %v5712, 7
    %v5714 = vsub.s32 %v4262, %v5713
    %v5715 = vrot.slane %v3515, %v5714
    %v5716 = vsel %vm4267, %v5715, %v5711
    %v5717 = vlaneseq
    %v5718 = vshrl.u32 %v5717, 7
    %v5719 = vsub.s32 %v4269, %v5718
    %v5720 = vrot.slane %v3516, %v5719
    %v5721 = vsel %vm4274, %v5720, %v5716
    %v5722 = vlaneseq
    %v5723 = vshrl.u32 %v5722, 7
    %v5724 = vsub.s32 %v4276, %v5723
    %v5725 = vrot.slane %v3517, %v5724
    %v5726 = vsel %vm4281, %v5725, %v5721
    %v5727 = vlaneseq
    %v5728 = vshrl.u32 %v5727, 7
    %v5729 = vsub.s32 %v4283, %v5728
    %v5730 = vrot.slane %v3518, %v5729
    %v5731 = vsel %vm4288, %v5730, %v5726
    %v5732 = vlaneseq
    %v5733 = vshrl.u32 %v5732, 7
    %v5734 = vsub.s32 %v4290, %v5733
    %v5735 = vrot.slane %v3519, %v5734
    %v5736 = vsel %vm4295, %v5735, %v5731
    %v5737 = vlaneseq
    %v5738 = vshrl.u32 %v5737, 7
    %v5739 = vsub.s32 %v4297, %v5738
    %v5740 = vrot.slane %v3520, %v5739
    %v5741 = vsel %vm4302, %v5740, %v5736
    %v5742 = vlaneseq
    %v5743 = vshrl.u32 %v5742, 7
    %v5744 = vsub.s32 %v4304, %v5743
    %v5745 = vrot.slane %v3521, %v5744
    %v5746 = vsel %vm4309, %v5745, %v5741
    %v5747 = vlaneseq
    %v5748 = vshrl.u32 %v5747, 7
    %v5749 = vsub.s32 %v4311, %v5748
    %v5750 = vrot.slane %v3522, %v5749
    %v5751 = vsel %vm4316, %v5750, %v5746
    %v5752 = vlaneseq
    %v5753 = vshrl.u32 %v5752, 7
    %v5754 = vsub.s32 %v4318, %v5753
    %v5755 = vrot.slane %v3523, %v5754
    %v5756 = vsel %vm4323, %v5755, %v5751
    %v5757 = vlaneseq
    %v5758 = vshrl.u32 %v5757, 7
    %v5759 = vsub.s32 %v4325, %v5758
    %v5760 = vrot.slane %v3524, %v5759
    %v5761 = vsel %vm4330, %v5760, %v5756
    %v5762 = vlaneseq
    %v5763 = vshrl.u32 %v5762, 7
    %v5764 = vsub.s32 %v4332, %v5763
    %v5765 = vrot.slane %v3525, %v5764
    %v5766 = vsel %vm4337, %v5765, %v5761
    %v5767 = vlaneseq
    %v5768 = vshrl.u32 %v5767, 7
    %v5769 = vsub.s32 %v4339, %v5768
    %v5770 = vrot.slane %v3526, %v5769
    %v5771 = vsel %vm4344, %v5770, %v5766
    %v5772 = vlaneseq
    %v5773 = vshrl.u32 %v5772, 7
    %v5774 = vsub.s32 %v4346, %v5773
    %v5775 = vrot.slane %v3527, %v5774
    %v5776 = vsel %vm4351, %v5775, %v5771
    %v5777 = vlaneseq
    %v5778 = vshrl.u32 %v5777, 7
    %v5779 = vsub.s32 %v4353, %v5778
    %v5780 = vrot.slane %v3528, %v5779
    %v5781 = vsel %vm4358, %v5780, %v5776
    %v5782 = vlaneseq
    %v5783 = vshrl.u32 %v5782, 7
    %v5784 = vsub.s32 %v4250, %v5783
    %v5785 = vrot.slane %v3529, %v5784
    %v5786 = vlaneseq
    %v5787 = vshrl.u32 %v5786, 7
    %v5788 = vsub.s32 %v4255, %v5787
    %v5789 = vrot.slane %v3530, %v5788
    %v5790 = vsel %vm4260, %v5789, %v5785
    %v5791 = vlaneseq
    %v5792 = vshrl.u32 %v5791, 7
    %v5793 = vsub.s32 %v4262, %v5792
    %v5794 = vrot.slane %v3531, %v5793
    %v5795 = vsel %vm4267, %v5794, %v5790
    %v5796 = vlaneseq
    %v5797 = vshrl.u32 %v5796, 7
    %v5798 = vsub.s32 %v4269, %v5797
    %v5799 = vrot.slane %v3532, %v5798
    %v5800 = vsel %vm4274, %v5799, %v5795
    %v5801 = vlaneseq
    %v5802 = vshrl.u32 %v5801, 7
    %v5803 = vsub.s32 %v4276, %v5802
    %v5804 = vrot.slane %v3533, %v5803
    %v5805 = vsel %vm4281, %v5804, %v5800
    %v5806 = vlaneseq
    %v5807 = vshrl.u32 %v5806, 7
    %v5808 = vsub.s32 %v4283, %v5807
    %v5809 = vrot.slane %v3534, %v5808
    %v5810 = vsel %vm4288, %v5809, %v5805
    %v5811 = vlaneseq
    %v5812 = vshrl.u32 %v5811, 7
    %v5813 = vsub.s32 %v4290, %v5812
    %v5814 = vrot.slane %v3535, %v5813
    %v5815 = vsel %vm4295, %v5814, %v5810
    %v5816 = vlaneseq
    %v5817 = vshrl.u32 %v5816, 7
    %v5818 = vsub.s32 %v4297, %v5817
    %v5819 = vrot.slane %v3536, %v5818
    %v5820 = vsel %vm4302, %v5819, %v5815
    %v5821 = vlaneseq
    %v5822 = vshrl.u32 %v5821, 7
    %v5823 = vsub.s32 %v4304, %v5822
    %v5824 = vrot.slane %v3537, %v5823
    %v5825 = vsel %vm4309, %v5824, %v5820
    %v5826 = vlaneseq
    %v5827 = vshrl.u32 %v5826, 7
    %v5828 = vsub.s32 %v4311, %v5827
    %v5829 = vrot.slane %v3538, %v5828
    %v5830 = vsel %vm4316, %v5829, %v5825
    %v5831 = vlaneseq
    %v5832 = vshrl.u32 %v5831, 7
    %v5833 = vsub.s32 %v4318, %v5832
    %v5834 = vrot.slane %v3539, %v5833
    %v5835 = vsel %vm4323, %v5834, %v5830
    %v5836 = vlaneseq
    %v5837 = vshrl.u32 %v5836, 7
    %v5838 = vsub.s32 %v4325, %v5837
    %v5839 = vrot.slane %v3540, %v5838
    %v5840 = vsel %vm4330, %v5839, %v5835
    %v5841 = vlaneseq
    %v5842 = vshrl.u32 %v5841, 7
    %v5843 = vsub.s32 %v4332, %v5842
    %v5844 = vrot.slane %v3541, %v5843
    %v5845 = vsel %vm4337, %v5844, %v5840
    %v5846 = vlaneseq
    %v5847 = vshrl.u32 %v5846, 7
    %v5848 = vsub.s32 %v4339, %v5847
    %v5849 = vrot.slane %v3542, %v5848
    %v5850 = vsel %vm4344, %v5849, %v5845
    %v5851 = vlaneseq
    %v5852 = vshrl.u32 %v5851, 7
    %v5853 = vsub.s32 %v4346, %v5852
    %v5854 = vrot.slane %v3543, %v5853
    %v5855 = vsel %vm4351, %v5854, %v5850
    %v5856 = vlaneseq
    %v5857 = vshrl.u32 %v5856, 7
    %v5858 = vsub.s32 %v4353, %v5857
    %v5859 = vrot.slane %v3544, %v5858
    %v5860 = vsel %vm4358, %v5859, %v5855
    %v5861 = vlaneseq
    %v5862 = vshrl.u32 %v5861, 7
    %v5863 = vsub.s32 %v4250, %v5862
    %v5864 = vrot.slane %v3545, %v5863
    %v5865 = vlaneseq
    %v5866 = vshrl.u32 %v5865, 7
    %v5867 = vsub.s32 %v4255, %v5866
    %v5868 = vrot.slane %v3546, %v5867
    %v5869 = vsel %vm4260, %v5868, %v5864
    %v5870 = vlaneseq
    %v5871 = vshrl.u32 %v5870, 7
    %v5872 = vsub.s32 %v4262, %v5871
    %v5873 = vrot.slane %v3547, %v5872
    %v5874 = vsel %vm4267, %v5873, %v5869
    %v5875 = vlaneseq
    %v5876 = vshrl.u32 %v5875, 7
    %v5877 = vsub.s32 %v4269, %v5876
    %v5878 = vrot.slane %v3548, %v5877
    %v5879 = vsel %vm4274, %v5878, %v5874
    %v5880 = vlaneseq
    %v5881 = vshrl.u32 %v5880, 7
    %v5882 = vsub.s32 %v4276, %v5881
    %v5883 = vrot.slane %v3549, %v5882
    %v5884 = vsel %vm4281, %v5883, %v5879
    %v5885 = vlaneseq
    %v5886 = vshrl.u32 %v5885, 7
    %v5887 = vsub.s32 %v4283, %v5886
    %v5888 = vrot.slane %v3550, %v5887
    %v5889 = vsel %vm4288, %v5888, %v5884
    %v5890 = vlaneseq
    %v5891 = vshrl.u32 %v5890, 7
    %v5892 = vsub.s32 %v4290, %v5891
    %v5893 = vrot.slane %v3551, %v5892
    %v5894 = vsel %vm4295, %v5893, %v5889
    %v5895 = vlaneseq
    %v5896 = vshrl.u32 %v5895, 7
    %v5897 = vsub.s32 %v4297, %v5896
    %v5898 = vrot.slane %v3552, %v5897
    %v5899 = vsel %vm4302, %v5898, %v5894
    %v5900 = vlaneseq
    %v5901 = vshrl.u32 %v5900, 7
    %v5902 = vsub.s32 %v4304, %v5901
    %v5903 = vrot.slane %v3553, %v5902
    %v5904 = vsel %vm4309, %v5903, %v5899
    %v5905 = vlaneseq
    %v5906 = vshrl.u32 %v5905, 7
    %v5907 = vsub.s32 %v4311, %v5906
    %v5908 = vrot.slane %v3554, %v5907
    %v5909 = vsel %vm4316, %v5908, %v5904
    %v5910 = vlaneseq
    %v5911 = vshrl.u32 %v5910, 7
    %v5912 = vsub.s32 %v4318, %v5911
    %v5913 = vrot.slane %v3555, %v5912
    %v5914 = vsel %vm4323, %v5913, %v5909
    %v5915 = vlaneseq
    %v5916 = vshrl.u32 %v5915, 7
    %v5917 = vsub.s32 %v4325, %v5916
    %v5918 = vrot.slane %v3556, %v5917
    %v5919 = vsel %vm4330, %v5918, %v5914
    %v5920 = vlaneseq
    %v5921 = vshrl.u32 %v5920, 7
    %v5922 = vsub.s32 %v4332, %v5921
    %v5923 = vrot.slane %v3557, %v5922
    %v5924 = vsel %vm4337, %v5923, %v5919
    %v5925 = vlaneseq
    %v5926 = vshrl.u32 %v5925, 7
    %v5927 = vsub.s32 %v4339, %v5926
    %v5928 = vrot.slane %v3558, %v5927
    %v5929 = vsel %vm4344, %v5928, %v5924
    %v5930 = vlaneseq
    %v5931 = vshrl.u32 %v5930, 7
    %v5932 = vsub.s32 %v4346, %v5931
    %v5933 = vrot.slane %v3559, %v5932
    %v5934 = vsel %vm4351, %v5933, %v5929
    %v5935 = vlaneseq
    %v5936 = vshrl.u32 %v5935, 7
    %v5937 = vsub.s32 %v4353, %v5936
    %v5938 = vrot.slane %v3560, %v5937
    %v5939 = vsel %vm4358, %v5938, %v5934
    %v5940 = vlaneseq
    %v5941 = vshrl.u32 %v5940, 7
    %v5942 = vsub.s32 %v4250, %v5941
    %v5943 = vrot.slane %v3561, %v5942
    %v5944 = vlaneseq
    %v5945 = vshrl.u32 %v5944, 7
    %v5946 = vsub.s32 %v4255, %v5945
    %v5947 = vrot.slane %v3562, %v5946
    %v5948 = vsel %vm4260, %v5947, %v5943
    %v5949 = vlaneseq
    %v5950 = vshrl.u32 %v5949, 7
    %v5951 = vsub.s32 %v4262, %v5950
    %v5952 = vrot.slane %v3563, %v5951
    %v5953 = vsel %vm4267, %v5952, %v5948
    %v5954 = vlaneseq
    %v5955 = vshrl.u32 %v5954, 7
    %v5956 = vsub.s32 %v4269, %v5955
    %v5957 = vrot.slane %v3564, %v5956
    %v5958 = vsel %vm4274, %v5957, %v5953
    %v5959 = vlaneseq
    %v5960 = vshrl.u32 %v5959, 7
    %v5961 = vsub.s32 %v4276, %v5960
    %v5962 = vrot.slane %v3565, %v5961
    %v5963 = vsel %vm4281, %v5962, %v5958
    %v5964 = vlaneseq
    %v5965 = vshrl.u32 %v5964, 7
    %v5966 = vsub.s32 %v4283, %v5965
    %v5967 = vrot.slane %v3566, %v5966
    %v5968 = vsel %vm4288, %v5967, %v5963
    %v5969 = vlaneseq
    %v5970 = vshrl.u32 %v5969, 7
    %v5971 = vsub.s32 %v4290, %v5970
    %v5972 = vrot.slane %v3567, %v5971
    %v5973 = vsel %vm4295, %v5972, %v5968
    %v5974 = vlaneseq
    %v5975 = vshrl.u32 %v5974, 7
    %v5976 = vsub.s32 %v4297, %v5975
    %v5977 = vrot.slane %v3568, %v5976
    %v5978 = vsel %vm4302, %v5977, %v5973
    %v5979 = vlaneseq
    %v5980 = vshrl.u32 %v5979, 7
    %v5981 = vsub.s32 %v4304, %v5980
    %v5982 = vrot.slane %v3569, %v5981
    %v5983 = vsel %vm4309, %v5982, %v5978
    %v5984 = vlaneseq
    %v5985 = vshrl.u32 %v5984, 7
    %v5986 = vsub.s32 %v4311, %v5985
    %v5987 = vrot.slane %v3570, %v5986
    %v5988 = vsel %vm4316, %v5987, %v5983
    %v5989 = vlaneseq
    %v5990 = vshrl.u32 %v5989, 7
    %v5991 = vsub.s32 %v4318, %v5990
    %v5992 = vrot.slane %v3571, %v5991
    %v5993 = vsel %vm4323, %v5992, %v5988
    %v5994 = vlaneseq
    %v5995 = vshrl.u32 %v5994, 7
    %v5996 = vsub.s32 %v4325, %v5995
    %v5997 = vrot.slane %v3572, %v5996
    %v5998 = vsel %vm4330, %v5997, %v5993
    %v5999 = vlaneseq
    %v6000 = vshrl.u32 %v5999, 7
    %v6001 = vsub.s32 %v4332, %v6000
    %v6002 = vrot.slane %v3573, %v6001
    %v6003 = vsel %vm4337, %v6002, %v5998
    %v6004 = vlaneseq
    %v6005 = vshrl.u32 %v6004, 7
    %v6006 = vsub.s32 %v4339, %v6005
    %v6007 = vrot.slane %v3574, %v6006
    %v6008 = vsel %vm4344, %v6007, %v6003
    %v6009 = vlaneseq
    %v6010 = vshrl.u32 %v6009, 7
    %v6011 = vsub.s32 %v4346, %v6010
    %v6012 = vrot.slane %v3575, %v6011
    %v6013 = vsel %vm4351, %v6012, %v6008
    %v6014 = vlaneseq
    %v6015 = vshrl.u32 %v6014, 7
    %v6016 = vsub.s32 %v4353, %v6015
    %v6017 = vrot.slane %v3576, %v6016
    %v6018 = vsel %vm4358, %v6017, %v6013
    %v6019 = vlaneseq
    %v6020 = vshrl.u32 %v6019, 7
    %v6021 = vsub.s32 %v4250, %v6020
    %v6022 = vrot.slane %v3577, %v6021
    %v6023 = vlaneseq
    %v6024 = vshrl.u32 %v6023, 7
    %v6025 = vsub.s32 %v4255, %v6024
    %v6026 = vrot.slane %v3578, %v6025
    %v6027 = vsel %vm4260, %v6026, %v6022
    %v6028 = vlaneseq
    %v6029 = vshrl.u32 %v6028, 7
    %v6030 = vsub.s32 %v4262, %v6029
    %v6031 = vrot.slane %v3579, %v6030
    %v6032 = vsel %vm4267, %v6031, %v6027
    %v6033 = vlaneseq
    %v6034 = vshrl.u32 %v6033, 7
    %v6035 = vsub.s32 %v4269, %v6034
    %v6036 = vrot.slane %v3580, %v6035
    %v6037 = vsel %vm4274, %v6036, %v6032
    %v6038 = vlaneseq
    %v6039 = vshrl.u32 %v6038, 7
    %v6040 = vsub.s32 %v4276, %v6039
    %v6041 = vrot.slane %v3581, %v6040
    %v6042 = vsel %vm4281, %v6041, %v6037
    %v6043 = vlaneseq
    %v6044 = vshrl.u32 %v6043, 7
    %v6045 = vsub.s32 %v4283, %v6044
    %v6046 = vrot.slane %v3582, %v6045
    %v6047 = vsel %vm4288, %v6046, %v6042
    %v6048 = vlaneseq
    %v6049 = vshrl.u32 %v6048, 7
    %v6050 = vsub.s32 %v4290, %v6049
    %v6051 = vrot.slane %v3583, %v6050
    %v6052 = vsel %vm4295, %v6051, %v6047
    %v6053 = vlaneseq
    %v6054 = vshrl.u32 %v6053, 7
    %v6055 = vsub.s32 %v4297, %v6054
    %v6056 = vrot.slane %v3584, %v6055
    %v6057 = vsel %vm4302, %v6056, %v6052
    %v6058 = vlaneseq
    %v6059 = vshrl.u32 %v6058, 7
    %v6060 = vsub.s32 %v4304, %v6059
    %v6061 = vrot.slane %v3585, %v6060
    %v6062 = vsel %vm4309, %v6061, %v6057
    %v6063 = vlaneseq
    %v6064 = vshrl.u32 %v6063, 7
    %v6065 = vsub.s32 %v4311, %v6064
    %v6066 = vrot.slane %v3586, %v6065
    %v6067 = vsel %vm4316, %v6066, %v6062
    %v6068 = vlaneseq
    %v6069 = vshrl.u32 %v6068, 7
    %v6070 = vsub.s32 %v4318, %v6069
    %v6071 = vrot.slane %v3587, %v6070
    %v6072 = vsel %vm4323, %v6071, %v6067
    %v6073 = vlaneseq
    %v6074 = vshrl.u32 %v6073, 7
    %v6075 = vsub.s32 %v4325, %v6074
    %v6076 = vrot.slane %v3588, %v6075
    %v6077 = vsel %vm4330, %v6076, %v6072
    %v6078 = vlaneseq
    %v6079 = vshrl.u32 %v6078, 7
    %v6080 = vsub.s32 %v4332, %v6079
    %v6081 = vrot.slane %v3589, %v6080
    %v6082 = vsel %vm4337, %v6081, %v6077
    %v6083 = vlaneseq
    %v6084 = vshrl.u32 %v6083, 7
    %v6085 = vsub.s32 %v4339, %v6084
    %v6086 = vrot.slane %v3590, %v6085
    %v6087 = vsel %vm4344, %v6086, %v6082
    %v6088 = vlaneseq
    %v6089 = vshrl.u32 %v6088, 7
    %v6090 = vsub.s32 %v4346, %v6089
    %v6091 = vrot.slane %v3591, %v6090
    %v6092 = vsel %vm4351, %v6091, %v6087
    %v6093 = vlaneseq
    %v6094 = vshrl.u32 %v6093, 7
    %v6095 = vsub.s32 %v4353, %v6094
    %v6096 = vrot.slane %v3592, %v6095
    %v6097 = vsel %vm4358, %v6096, %v6092
    %v6098 = vlaneseq
    %v6099 = vshrl.u32 %v6098, 7
    %v6100 = vsub.s32 %v4250, %v6099
    %v6101 = vrot.slane %v3593, %v6100
    %v6102 = vlaneseq
    %v6103 = vshrl.u32 %v6102, 7
    %v6104 = vsub.s32 %v4255, %v6103
    %v6105 = vrot.slane %v3594, %v6104
    %v6106 = vsel %vm4260, %v6105, %v6101
    %v6107 = vlaneseq
    %v6108 = vshrl.u32 %v6107, 7
    %v6109 = vsub.s32 %v4262, %v6108
    %v6110 = vrot.slane %v3595, %v6109
    %v6111 = vsel %vm4267, %v6110, %v6106
    %v6112 = vlaneseq
    %v6113 = vshrl.u32 %v6112, 7
    %v6114 = vsub.s32 %v4269, %v6113
    %v6115 = vrot.slane %v3596, %v6114
    %v6116 = vsel %vm4274, %v6115, %v6111
    %v6117 = vlaneseq
    %v6118 = vshrl.u32 %v6117, 7
    %v6119 = vsub.s32 %v4276, %v6118
    %v6120 = vrot.slane %v3597, %v6119
    %v6121 = vsel %vm4281, %v6120, %v6116
    %v6122 = vlaneseq
    %v6123 = vshrl.u32 %v6122, 7
    %v6124 = vsub.s32 %v4283, %v6123
    %v6125 = vrot.slane %v3598, %v6124
    %v6126 = vsel %vm4288, %v6125, %v6121
    %v6127 = vlaneseq
    %v6128 = vshrl.u32 %v6127, 7
    %v6129 = vsub.s32 %v4290, %v6128
    %v6130 = vrot.slane %v3599, %v6129
    %v6131 = vsel %vm4295, %v6130, %v6126
    %v6132 = vlaneseq
    %v6133 = vshrl.u32 %v6132, 7
    %v6134 = vsub.s32 %v4297, %v6133
    %v6135 = vrot.slane %v3600, %v6134
    %v6136 = vsel %vm4302, %v6135, %v6131
    %v6137 = vlaneseq
    %v6138 = vshrl.u32 %v6137, 7
    %v6139 = vsub.s32 %v4304, %v6138
    %v6140 = vrot.slane %v3601, %v6139
    %v6141 = vsel %vm4309, %v6140, %v6136
    %v6142 = vlaneseq
    %v6143 = vshrl.u32 %v6142, 7
    %v6144 = vsub.s32 %v4311, %v6143
    %v6145 = vrot.slane %v3602, %v6144
    %v6146 = vsel %vm4316, %v6145, %v6141
    %v6147 = vlaneseq
    %v6148 = vshrl.u32 %v6147, 7
    %v6149 = vsub.s32 %v4318, %v6148
    %v6150 = vrot.slane %v3603, %v6149
    %v6151 = vsel %vm4323, %v6150, %v6146
    %v6152 = vlaneseq
    %v6153 = vshrl.u32 %v6152, 7
    %v6154 = vsub.s32 %v4325, %v6153
    %v6155 = vrot.slane %v3604, %v6154
    %v6156 = vsel %vm4330, %v6155, %v6151
    %v6157 = vlaneseq
    %v6158 = vshrl.u32 %v6157, 7
    %v6159 = vsub.s32 %v4332, %v6158
    %v6160 = vrot.slane %v3605, %v6159
    %v6161 = vsel %vm4337, %v6160, %v6156
    %v6162 = vlaneseq
    %v6163 = vshrl.u32 %v6162, 7
    %v6164 = vsub.s32 %v4339, %v6163
    %v6165 = vrot.slane %v3606, %v6164
    %v6166 = vsel %vm4344, %v6165, %v6161
    %v6167 = vlaneseq
    %v6168 = vshrl.u32 %v6167, 7
    %v6169 = vsub.s32 %v4346, %v6168
    %v6170 = vrot.slane %v3607, %v6169
    %v6171 = vsel %vm4351, %v6170, %v6166
    %v6172 = vlaneseq
    %v6173 = vshrl.u32 %v6172, 7
    %v6174 = vsub.s32 %v4353, %v6173
    %v6175 = vrot.slane %v3608, %v6174
    %v6176 = vsel %vm4358, %v6175, %v6171
    %v6177 = vlaneseq
    %v6178 = vshrl.u32 %v6177, 7
    %v6179 = vsub.s32 %v4250, %v6178
    %v6180 = vrot.slane %v3609, %v6179
    %v6181 = vlaneseq
    %v6182 = vshrl.u32 %v6181, 7
    %v6183 = vsub.s32 %v4255, %v6182
    %v6184 = vrot.slane %v3610, %v6183
    %v6185 = vsel %vm4260, %v6184, %v6180
    %v6186 = vlaneseq
    %v6187 = vshrl.u32 %v6186, 7
    %v6188 = vsub.s32 %v4262, %v6187
    %v6189 = vrot.slane %v3611, %v6188
    %v6190 = vsel %vm4267, %v6189, %v6185
    %v6191 = vlaneseq
    %v6192 = vshrl.u32 %v6191, 7
    %v6193 = vsub.s32 %v4269, %v6192
    %v6194 = vrot.slane %v3612, %v6193
    %v6195 = vsel %vm4274, %v6194, %v6190
    %v6196 = vlaneseq
    %v6197 = vshrl.u32 %v6196, 7
    %v6198 = vsub.s32 %v4276, %v6197
    %v6199 = vrot.slane %v3613, %v6198
    %v6200 = vsel %vm4281, %v6199, %v6195
    %v6201 = vlaneseq
    %v6202 = vshrl.u32 %v6201, 7
    %v6203 = vsub.s32 %v4283, %v6202
    %v6204 = vrot.slane %v3614, %v6203
    %v6205 = vsel %vm4288, %v6204, %v6200
    %v6206 = vlaneseq
    %v6207 = vshrl.u32 %v6206, 7
    %v6208 = vsub.s32 %v4290, %v6207
    %v6209 = vrot.slane %v3615, %v6208
    %v6210 = vsel %vm4295, %v6209, %v6205
    %v6211 = vlaneseq
    %v6212 = vshrl.u32 %v6211, 7
    %v6213 = vsub.s32 %v4297, %v6212
    %v6214 = vrot.slane %v3616, %v6213
    %v6215 = vsel %vm4302, %v6214, %v6210
    %v6216 = vlaneseq
    %v6217 = vshrl.u32 %v6216, 7
    %v6218 = vsub.s32 %v4304, %v6217
    %v6219 = vrot.slane %v3617, %v6218
    %v6220 = vsel %vm4309, %v6219, %v6215
    %v6221 = vlaneseq
    %v6222 = vshrl.u32 %v6221, 7
    %v6223 = vsub.s32 %v4311, %v6222
    %v6224 = vrot.slane %v3618, %v6223
    %v6225 = vsel %vm4316, %v6224, %v6220
    %v6226 = vlaneseq
    %v6227 = vshrl.u32 %v6226, 7
    %v6228 = vsub.s32 %v4318, %v6227
    %v6229 = vrot.slane %v3619, %v6228
    %v6230 = vsel %vm4323, %v6229, %v6225
    %v6231 = vlaneseq
    %v6232 = vshrl.u32 %v6231, 7
    %v6233 = vsub.s32 %v4325, %v6232
    %v6234 = vrot.slane %v3620, %v6233
    %v6235 = vsel %vm4330, %v6234, %v6230
    %v6236 = vlaneseq
    %v6237 = vshrl.u32 %v6236, 7
    %v6238 = vsub.s32 %v4332, %v6237
    %v6239 = vrot.slane %v3621, %v6238
    %v6240 = vsel %vm4337, %v6239, %v6235
    %v6241 = vlaneseq
    %v6242 = vshrl.u32 %v6241, 7
    %v6243 = vsub.s32 %v4339, %v6242
    %v6244 = vrot.slane %v3622, %v6243
    %v6245 = vsel %vm4344, %v6244, %v6240
    %v6246 = vlaneseq
    %v6247 = vshrl.u32 %v6246, 7
    %v6248 = vsub.s32 %v4346, %v6247
    %v6249 = vrot.slane %v3623, %v6248
    %v6250 = vsel %vm4351, %v6249, %v6245
    %v6251 = vlaneseq
    %v6252 = vshrl.u32 %v6251, 7
    %v6253 = vsub.s32 %v4353, %v6252
    %v6254 = vrot.slane %v3624, %v6253
    %v6255 = vsel %vm4358, %v6254, %v6250
    %v6256 = vlaneseq
    %v6257 = vshrl.u32 %v6256, 7
    %v6258 = vsub.s32 %v4250, %v6257
    %v6259 = vrot.slane %v3625, %v6258
    %v6260 = vlaneseq
    %v6261 = vshrl.u32 %v6260, 7
    %v6262 = vsub.s32 %v4255, %v6261
    %v6263 = vrot.slane %v3626, %v6262
    %v6264 = vsel %vm4260, %v6263, %v6259
    %v6265 = vlaneseq
    %v6266 = vshrl.u32 %v6265, 7
    %v6267 = vsub.s32 %v4262, %v6266
    %v6268 = vrot.slane %v3627, %v6267
    %v6269 = vsel %vm4267, %v6268, %v6264
    %v6270 = vlaneseq
    %v6271 = vshrl.u32 %v6270, 7
    %v6272 = vsub.s32 %v4269, %v6271
    %v6273 = vrot.slane %v3628, %v6272
    %v6274 = vsel %vm4274, %v6273, %v6269
    %v6275 = vlaneseq
    %v6276 = vshrl.u32 %v6275, 7
    %v6277 = vsub.s32 %v4276, %v6276
    %v6278 = vrot.slane %v3629, %v6277
    %v6279 = vsel %vm4281, %v6278, %v6274
    %v6280 = vlaneseq
    %v6281 = vshrl.u32 %v6280, 7
    %v6282 = vsub.s32 %v4283, %v6281
    %v6283 = vrot.slane %v3630, %v6282
    %v6284 = vsel %vm4288, %v6283, %v6279
    %v6285 = vlaneseq
    %v6286 = vshrl.u32 %v6285, 7
    %v6287 = vsub.s32 %v4290, %v6286
    %v6288 = vrot.slane %v3631, %v6287
    %v6289 = vsel %vm4295, %v6288, %v6284
    %v6290 = vlaneseq
    %v6291 = vshrl.u32 %v6290, 7
    %v6292 = vsub.s32 %v4297, %v6291
    %v6293 = vrot.slane %v3632, %v6292
    %v6294 = vsel %vm4302, %v6293, %v6289
    %v6295 = vlaneseq
    %v6296 = vshrl.u32 %v6295, 7
    %v6297 = vsub.s32 %v4304, %v6296
    %v6298 = vrot.slane %v3633, %v6297
    %v6299 = vsel %vm4309, %v6298, %v6294
    %v6300 = vlaneseq
    %v6301 = vshrl.u32 %v6300, 7
    %v6302 = vsub.s32 %v4311, %v6301
    %v6303 = vrot.slane %v3634, %v6302
    %v6304 = vsel %vm4316, %v6303, %v6299
    %v6305 = vlaneseq
    %v6306 = vshrl.u32 %v6305, 7
    %v6307 = vsub.s32 %v4318, %v6306
    %v6308 = vrot.slane %v3635, %v6307
    %v6309 = vsel %vm4323, %v6308, %v6304
    %v6310 = vlaneseq
    %v6311 = vshrl.u32 %v6310, 7
    %v6312 = vsub.s32 %v4325, %v6311
    %v6313 = vrot.slane %v3636, %v6312
    %v6314 = vsel %vm4330, %v6313, %v6309
    %v6315 = vlaneseq
    %v6316 = vshrl.u32 %v6315, 7
    %v6317 = vsub.s32 %v4332, %v6316
    %v6318 = vrot.slane %v3637, %v6317
    %v6319 = vsel %vm4337, %v6318, %v6314
    %v6320 = vlaneseq
    %v6321 = vshrl.u32 %v6320, 7
    %v6322 = vsub.s32 %v4339, %v6321
    %v6323 = vrot.slane %v3638, %v6322
    %v6324 = vsel %vm4344, %v6323, %v6319
    %v6325 = vlaneseq
    %v6326 = vshrl.u32 %v6325, 7
    %v6327 = vsub.s32 %v4346, %v6326
    %v6328 = vrot.slane %v3639, %v6327
    %v6329 = vsel %vm4351, %v6328, %v6324
    %v6330 = vlaneseq
    %v6331 = vshrl.u32 %v6330, 7
    %v6332 = vsub.s32 %v4353, %v6331
    %v6333 = vrot.slane %v3640, %v6332
    %v6334 = vsel %vm4358, %v6333, %v6329
    %v6335 = vlaneseq
    %v6336 = vshrl.u32 %v6335, 7
    %v6337 = vsub.s32 %v4250, %v6336
    %v6338 = vrot.slane %v3641, %v6337
    %v6339 = vlaneseq
    %v6340 = vshrl.u32 %v6339, 7
    %v6341 = vsub.s32 %v4255, %v6340
    %v6342 = vrot.slane %v3642, %v6341
    %v6343 = vsel %vm4260, %v6342, %v6338
    %v6344 = vlaneseq
    %v6345 = vshrl.u32 %v6344, 7
    %v6346 = vsub.s32 %v4262, %v6345
    %v6347 = vrot.slane %v3643, %v6346
    %v6348 = vsel %vm4267, %v6347, %v6343
    %v6349 = vlaneseq
    %v6350 = vshrl.u32 %v6349, 7
    %v6351 = vsub.s32 %v4269, %v6350
    %v6352 = vrot.slane %v3644, %v6351
    %v6353 = vsel %vm4274, %v6352, %v6348
    %v6354 = vlaneseq
    %v6355 = vshrl.u32 %v6354, 7
    %v6356 = vsub.s32 %v4276, %v6355
    %v6357 = vrot.slane %v3645, %v6356
    %v6358 = vsel %vm4281, %v6357, %v6353
    %v6359 = vlaneseq
    %v6360 = vshrl.u32 %v6359, 7
    %v6361 = vsub.s32 %v4283, %v6360
    %v6362 = vrot.slane %v3646, %v6361
    %v6363 = vsel %vm4288, %v6362, %v6358
    %v6364 = vlaneseq
    %v6365 = vshrl.u32 %v6364, 7
    %v6366 = vsub.s32 %v4290, %v6365
    %v6367 = vrot.slane %v3647, %v6366
    %v6368 = vsel %vm4295, %v6367, %v6363
    %v6369 = vlaneseq
    %v6370 = vshrl.u32 %v6369, 7
    %v6371 = vsub.s32 %v4297, %v6370
    %v6372 = vrot.slane %v3648, %v6371
    %v6373 = vsel %vm4302, %v6372, %v6368
    %v6374 = vlaneseq
    %v6375 = vshrl.u32 %v6374, 7
    %v6376 = vsub.s32 %v4304, %v6375
    %v6377 = vrot.slane %v3649, %v6376
    %v6378 = vsel %vm4309, %v6377, %v6373
    %v6379 = vlaneseq
    %v6380 = vshrl.u32 %v6379, 7
    %v6381 = vsub.s32 %v4311, %v6380
    %v6382 = vrot.slane %v3650, %v6381
    %v6383 = vsel %vm4316, %v6382, %v6378
    %v6384 = vlaneseq
    %v6385 = vshrl.u32 %v6384, 7
    %v6386 = vsub.s32 %v4318, %v6385
    %v6387 = vrot.slane %v3651, %v6386
    %v6388 = vsel %vm4323, %v6387, %v6383
    %v6389 = vlaneseq
    %v6390 = vshrl.u32 %v6389, 7
    %v6391 = vsub.s32 %v4325, %v6390
    %v6392 = vrot.slane %v3652, %v6391
    %v6393 = vsel %vm4330, %v6392, %v6388
    %v6394 = vlaneseq
    %v6395 = vshrl.u32 %v6394, 7
    %v6396 = vsub.s32 %v4332, %v6395
    %v6397 = vrot.slane %v3653, %v6396
    %v6398 = vsel %vm4337, %v6397, %v6393
    %v6399 = vlaneseq
    %v6400 = vshrl.u32 %v6399, 7
    %v6401 = vsub.s32 %v4339, %v6400
    %v6402 = vrot.slane %v3654, %v6401
    %v6403 = vsel %vm4344, %v6402, %v6398
    %v6404 = vlaneseq
    %v6405 = vshrl.u32 %v6404, 7
    %v6406 = vsub.s32 %v4346, %v6405
    %v6407 = vrot.slane %v3655, %v6406
    %v6408 = vsel %vm4351, %v6407, %v6403
    %v6409 = vlaneseq
    %v6410 = vshrl.u32 %v6409, 7
    %v6411 = vsub.s32 %v4353, %v6410
    %v6412 = vrot.slane %v3656, %v6411
    %v6413 = vsel %vm4358, %v6412, %v6408
    %v6414 = vlaneseq
    %v6415 = vshrl.u32 %v6414, 7
    %v6416 = vsub.s32 %v4250, %v6415
    %v6417 = vrot.slane %v3657, %v6416
    %v6418 = vlaneseq
    %v6419 = vshrl.u32 %v6418, 7
    %v6420 = vsub.s32 %v4255, %v6419
    %v6421 = vrot.slane %v3658, %v6420
    %v6422 = vsel %vm4260, %v6421, %v6417
    %v6423 = vlaneseq
    %v6424 = vshrl.u32 %v6423, 7
    %v6425 = vsub.s32 %v4262, %v6424
    %v6426 = vrot.slane %v3659, %v6425
    %v6427 = vsel %vm4267, %v6426, %v6422
    %v6428 = vlaneseq
    %v6429 = vshrl.u32 %v6428, 7
    %v6430 = vsub.s32 %v4269, %v6429
    %v6431 = vrot.slane %v3660, %v6430
    %v6432 = vsel %vm4274, %v6431, %v6427
    %v6433 = vlaneseq
    %v6434 = vshrl.u32 %v6433, 7
    %v6435 = vsub.s32 %v4276, %v6434
    %v6436 = vrot.slane %v3661, %v6435
    %v6437 = vsel %vm4281, %v6436, %v6432
    %v6438 = vlaneseq
    %v6439 = vshrl.u32 %v6438, 7
    %v6440 = vsub.s32 %v4283, %v6439
    %v6441 = vrot.slane %v3662, %v6440
    %v6442 = vsel %vm4288, %v6441, %v6437
    %v6443 = vlaneseq
    %v6444 = vshrl.u32 %v6443, 7
    %v6445 = vsub.s32 %v4290, %v6444
    %v6446 = vrot.slane %v3663, %v6445
    %v6447 = vsel %vm4295, %v6446, %v6442
    %v6448 = vlaneseq
    %v6449 = vshrl.u32 %v6448, 7
    %v6450 = vsub.s32 %v4297, %v6449
    %v6451 = vrot.slane %v3664, %v6450
    %v6452 = vsel %vm4302, %v6451, %v6447
    %v6453 = vlaneseq
    %v6454 = vshrl.u32 %v6453, 7
    %v6455 = vsub.s32 %v4304, %v6454
    %v6456 = vrot.slane %v3665, %v6455
    %v6457 = vsel %vm4309, %v6456, %v6452
    %v6458 = vlaneseq
    %v6459 = vshrl.u32 %v6458, 7
    %v6460 = vsub.s32 %v4311, %v6459
    %v6461 = vrot.slane %v3666, %v6460
    %v6462 = vsel %vm4316, %v6461, %v6457
    %v6463 = vlaneseq
    %v6464 = vshrl.u32 %v6463, 7
    %v6465 = vsub.s32 %v4318, %v6464
    %v6466 = vrot.slane %v3667, %v6465
    %v6467 = vsel %vm4323, %v6466, %v6462
    %v6468 = vlaneseq
    %v6469 = vshrl.u32 %v6468, 7
    %v6470 = vsub.s32 %v4325, %v6469
    %v6471 = vrot.slane %v3668, %v6470
    %v6472 = vsel %vm4330, %v6471, %v6467
    %v6473 = vlaneseq
    %v6474 = vshrl.u32 %v6473, 7
    %v6475 = vsub.s32 %v4332, %v6474
    %v6476 = vrot.slane %v3669, %v6475
    %v6477 = vsel %vm4337, %v6476, %v6472
    %v6478 = vlaneseq
    %v6479 = vshrl.u32 %v6478, 7
    %v6480 = vsub.s32 %v4339, %v6479
    %v6481 = vrot.slane %v3670, %v6480
    %v6482 = vsel %vm4344, %v6481, %v6477
    %v6483 = vlaneseq
    %v6484 = vshrl.u32 %v6483, 7
    %v6485 = vsub.s32 %v4346, %v6484
    %v6486 = vrot.slane %v3671, %v6485
    %v6487 = vsel %vm4351, %v6486, %v6482
    %v6488 = vlaneseq
    %v6489 = vshrl.u32 %v6488, 7
    %v6490 = vsub.s32 %v4353, %v6489
    %v6491 = vrot.slane %v3672, %v6490
    %v6492 = vsel %vm4358, %v6491, %v6487
    %v6493 = vlaneseq
    %v6494 = vshrl.u32 %v6493, 7
    %v6495 = vsub.s32 %v4250, %v6494
    %v6496 = vrot.slane %v3673, %v6495
    %v6497 = vlaneseq
    %v6498 = vshrl.u32 %v6497, 7
    %v6499 = vsub.s32 %v4255, %v6498
    %v6500 = vrot.slane %v3674, %v6499
    %v6501 = vsel %vm4260, %v6500, %v6496
    %v6502 = vlaneseq
    %v6503 = vshrl.u32 %v6502, 7
    %v6504 = vsub.s32 %v4262, %v6503
    %v6505 = vrot.slane %v3675, %v6504
    %v6506 = vsel %vm4267, %v6505, %v6501
    %v6507 = vlaneseq
    %v6508 = vshrl.u32 %v6507, 7
    %v6509 = vsub.s32 %v4269, %v6508
    %v6510 = vrot.slane %v3676, %v6509
    %v6511 = vsel %vm4274, %v6510, %v6506
    %v6512 = vlaneseq
    %v6513 = vshrl.u32 %v6512, 7
    %v6514 = vsub.s32 %v4276, %v6513
    %v6515 = vrot.slane %v3677, %v6514
    %v6516 = vsel %vm4281, %v6515, %v6511
    %v6517 = vlaneseq
    %v6518 = vshrl.u32 %v6517, 7
    %v6519 = vsub.s32 %v4283, %v6518
    %v6520 = vrot.slane %v3678, %v6519
    %v6521 = vsel %vm4288, %v6520, %v6516
    %v6522 = vlaneseq
    %v6523 = vshrl.u32 %v6522, 7
    %v6524 = vsub.s32 %v4290, %v6523
    %v6525 = vrot.slane %v3679, %v6524
    %v6526 = vsel %vm4295, %v6525, %v6521
    %v6527 = vlaneseq
    %v6528 = vshrl.u32 %v6527, 7
    %v6529 = vsub.s32 %v4297, %v6528
    %v6530 = vrot.slane %v3680, %v6529
    %v6531 = vsel %vm4302, %v6530, %v6526
    %v6532 = vlaneseq
    %v6533 = vshrl.u32 %v6532, 7
    %v6534 = vsub.s32 %v4304, %v6533
    %v6535 = vrot.slane %v3681, %v6534
    %v6536 = vsel %vm4309, %v6535, %v6531
    %v6537 = vlaneseq
    %v6538 = vshrl.u32 %v6537, 7
    %v6539 = vsub.s32 %v4311, %v6538
    %v6540 = vrot.slane %v3682, %v6539
    %v6541 = vsel %vm4316, %v6540, %v6536
    %v6542 = vlaneseq
    %v6543 = vshrl.u32 %v6542, 7
    %v6544 = vsub.s32 %v4318, %v6543
    %v6545 = vrot.slane %v3683, %v6544
    %v6546 = vsel %vm4323, %v6545, %v6541
    %v6547 = vlaneseq
    %v6548 = vshrl.u32 %v6547, 7
    %v6549 = vsub.s32 %v4325, %v6548
    %v6550 = vrot.slane %v3684, %v6549
    %v6551 = vsel %vm4330, %v6550, %v6546
    %v6552 = vlaneseq
    %v6553 = vshrl.u32 %v6552, 7
    %v6554 = vsub.s32 %v4332, %v6553
    %v6555 = vrot.slane %v3685, %v6554
    %v6556 = vsel %vm4337, %v6555, %v6551
    %v6557 = vlaneseq
    %v6558 = vshrl.u32 %v6557, 7
    %v6559 = vsub.s32 %v4339, %v6558
    %v6560 = vrot.slane %v3686, %v6559
    %v6561 = vsel %vm4344, %v6560, %v6556
    %v6562 = vlaneseq
    %v6563 = vshrl.u32 %v6562, 7
    %v6564 = vsub.s32 %v4346, %v6563
    %v6565 = vrot.slane %v3687, %v6564
    %v6566 = vsel %vm4351, %v6565, %v6561
    %v6567 = vlaneseq
    %v6568 = vshrl.u32 %v6567, 7
    %v6569 = vsub.s32 %v4353, %v6568
    %v6570 = vrot.slane %v3688, %v6569
    %v6571 = vsel %vm4358, %v6570, %v6566
    %v6572 = vlaneseq
    %v6573 = vshrl.u32 %v6572, 7
    %v6574 = vsub.s32 %v4250, %v6573
    %v6575 = vrot.slane %v3689, %v6574
    %v6576 = vlaneseq
    %v6577 = vshrl.u32 %v6576, 7
    %v6578 = vsub.s32 %v4255, %v6577
    %v6579 = vrot.slane %v3690, %v6578
    %v6580 = vsel %vm4260, %v6579, %v6575
    %v6581 = vlaneseq
    %v6582 = vshrl.u32 %v6581, 7
    %v6583 = vsub.s32 %v4262, %v6582
    %v6584 = vrot.slane %v3691, %v6583
    %v6585 = vsel %vm4267, %v6584, %v6580
    %v6586 = vlaneseq
    %v6587 = vshrl.u32 %v6586, 7
    %v6588 = vsub.s32 %v4269, %v6587
    %v6589 = vrot.slane %v3692, %v6588
    %v6590 = vsel %vm4274, %v6589, %v6585
    %v6591 = vlaneseq
    %v6592 = vshrl.u32 %v6591, 7
    %v6593 = vsub.s32 %v4276, %v6592
    %v6594 = vrot.slane %v3693, %v6593
    %v6595 = vsel %vm4281, %v6594, %v6590
    %v6596 = vlaneseq
    %v6597 = vshrl.u32 %v6596, 7
    %v6598 = vsub.s32 %v4283, %v6597
    %v6599 = vrot.slane %v3694, %v6598
    %v6600 = vsel %vm4288, %v6599, %v6595
    %v6601 = vlaneseq
    %v6602 = vshrl.u32 %v6601, 7
    %v6603 = vsub.s32 %v4290, %v6602
    %v6604 = vrot.slane %v3695, %v6603
    %v6605 = vsel %vm4295, %v6604, %v6600
    %v6606 = vlaneseq
    %v6607 = vshrl.u32 %v6606, 7
    %v6608 = vsub.s32 %v4297, %v6607
    %v6609 = vrot.slane %v3696, %v6608
    %v6610 = vsel %vm4302, %v6609, %v6605
    %v6611 = vlaneseq
    %v6612 = vshrl.u32 %v6611, 7
    %v6613 = vsub.s32 %v4304, %v6612
    %v6614 = vrot.slane %v3697, %v6613
    %v6615 = vsel %vm4309, %v6614, %v6610
    %v6616 = vlaneseq
    %v6617 = vshrl.u32 %v6616, 7
    %v6618 = vsub.s32 %v4311, %v6617
    %v6619 = vrot.slane %v3698, %v6618
    %v6620 = vsel %vm4316, %v6619, %v6615
    %v6621 = vlaneseq
    %v6622 = vshrl.u32 %v6621, 7
    %v6623 = vsub.s32 %v4318, %v6622
    %v6624 = vrot.slane %v3699, %v6623
    %v6625 = vsel %vm4323, %v6624, %v6620
    %v6626 = vlaneseq
    %v6627 = vshrl.u32 %v6626, 7
    %v6628 = vsub.s32 %v4325, %v6627
    %v6629 = vrot.slane %v3700, %v6628
    %v6630 = vsel %vm4330, %v6629, %v6625
    %v6631 = vlaneseq
    %v6632 = vshrl.u32 %v6631, 7
    %v6633 = vsub.s32 %v4332, %v6632
    %v6634 = vrot.slane %v3701, %v6633
    %v6635 = vsel %vm4337, %v6634, %v6630
    %v6636 = vlaneseq
    %v6637 = vshrl.u32 %v6636, 7
    %v6638 = vsub.s32 %v4339, %v6637
    %v6639 = vrot.slane %v3702, %v6638
    %v6640 = vsel %vm4344, %v6639, %v6635
    %v6641 = vlaneseq
    %v6642 = vshrl.u32 %v6641, 7
    %v6643 = vsub.s32 %v4346, %v6642
    %v6644 = vrot.slane %v3703, %v6643
    %v6645 = vsel %vm4351, %v6644, %v6640
    %v6646 = vlaneseq
    %v6647 = vshrl.u32 %v6646, 7
    %v6648 = vsub.s32 %v4353, %v6647
    %v6649 = vrot.slane %v3704, %v6648
    %v6650 = vsel %vm4358, %v6649, %v6645
    %v6651 = vlaneseq
    %v6652 = vshrl.u32 %v6651, 7
    %v6653 = vsub.s32 %v4250, %v6652
    %v6654 = vrot.slane %v3705, %v6653
    %v6655 = vlaneseq
    %v6656 = vshrl.u32 %v6655, 7
    %v6657 = vsub.s32 %v4255, %v6656
    %v6658 = vrot.slane %v3706, %v6657
    %v6659 = vsel %vm4260, %v6658, %v6654
    %v6660 = vlaneseq
    %v6661 = vshrl.u32 %v6660, 7
    %v6662 = vsub.s32 %v4262, %v6661
    %v6663 = vrot.slane %v3707, %v6662
    %v6664 = vsel %vm4267, %v6663, %v6659
    %v6665 = vlaneseq
    %v6666 = vshrl.u32 %v6665, 7
    %v6667 = vsub.s32 %v4269, %v6666
    %v6668 = vrot.slane %v3708, %v6667
    %v6669 = vsel %vm4274, %v6668, %v6664
    %v6670 = vlaneseq
    %v6671 = vshrl.u32 %v6670, 7
    %v6672 = vsub.s32 %v4276, %v6671
    %v6673 = vrot.slane %v3709, %v6672
    %v6674 = vsel %vm4281, %v6673, %v6669
    %v6675 = vlaneseq
    %v6676 = vshrl.u32 %v6675, 7
    %v6677 = vsub.s32 %v4283, %v6676
    %v6678 = vrot.slane %v3710, %v6677
    %v6679 = vsel %vm4288, %v6678, %v6674
    %v6680 = vlaneseq
    %v6681 = vshrl.u32 %v6680, 7
    %v6682 = vsub.s32 %v4290, %v6681
    %v6683 = vrot.slane %v3711, %v6682
    %v6684 = vsel %vm4295, %v6683, %v6679
    %v6685 = vlaneseq
    %v6686 = vshrl.u32 %v6685, 7
    %v6687 = vsub.s32 %v4297, %v6686
    %v6688 = vrot.slane %v3712, %v6687
    %v6689 = vsel %vm4302, %v6688, %v6684
    %v6690 = vlaneseq
    %v6691 = vshrl.u32 %v6690, 7
    %v6692 = vsub.s32 %v4304, %v6691
    %v6693 = vrot.slane %v3713, %v6692
    %v6694 = vsel %vm4309, %v6693, %v6689
    %v6695 = vlaneseq
    %v6696 = vshrl.u32 %v6695, 7
    %v6697 = vsub.s32 %v4311, %v6696
    %v6698 = vrot.slane %v3714, %v6697
    %v6699 = vsel %vm4316, %v6698, %v6694
    %v6700 = vlaneseq
    %v6701 = vshrl.u32 %v6700, 7
    %v6702 = vsub.s32 %v4318, %v6701
    %v6703 = vrot.slane %v3715, %v6702
    %v6704 = vsel %vm4323, %v6703, %v6699
    %v6705 = vlaneseq
    %v6706 = vshrl.u32 %v6705, 7
    %v6707 = vsub.s32 %v4325, %v6706
    %v6708 = vrot.slane %v3716, %v6707
    %v6709 = vsel %vm4330, %v6708, %v6704
    %v6710 = vlaneseq
    %v6711 = vshrl.u32 %v6710, 7
    %v6712 = vsub.s32 %v4332, %v6711
    %v6713 = vrot.slane %v3717, %v6712
    %v6714 = vsel %vm4337, %v6713, %v6709
    %v6715 = vlaneseq
    %v6716 = vshrl.u32 %v6715, 7
    %v6717 = vsub.s32 %v4339, %v6716
    %v6718 = vrot.slane %v3718, %v6717
    %v6719 = vsel %vm4344, %v6718, %v6714
    %v6720 = vlaneseq
    %v6721 = vshrl.u32 %v6720, 7
    %v6722 = vsub.s32 %v4346, %v6721
    %v6723 = vrot.slane %v3719, %v6722
    %v6724 = vsel %vm4351, %v6723, %v6719
    %v6725 = vlaneseq
    %v6726 = vshrl.u32 %v6725, 7
    %v6727 = vsub.s32 %v4353, %v6726
    %v6728 = vrot.slane %v3720, %v6727
    %v6729 = vsel %vm4358, %v6728, %v6724
    %v6730 = vlaneseq
    %v6731 = vshrl.u32 %v6730, 7
    %v6732 = vsub.s32 %v4250, %v6731
    %v6733 = vrot.slane %v3721, %v6732
    %v6734 = vlaneseq
    %v6735 = vshrl.u32 %v6734, 7
    %v6736 = vsub.s32 %v4255, %v6735
    %v6737 = vrot.slane %v3722, %v6736
    %v6738 = vsel %vm4260, %v6737, %v6733
    %v6739 = vlaneseq
    %v6740 = vshrl.u32 %v6739, 7
    %v6741 = vsub.s32 %v4262, %v6740
    %v6742 = vrot.slane %v3723, %v6741
    %v6743 = vsel %vm4267, %v6742, %v6738
    %v6744 = vlaneseq
    %v6745 = vshrl.u32 %v6744, 7
    %v6746 = vsub.s32 %v4269, %v6745
    %v6747 = vrot.slane %v3724, %v6746
    %v6748 = vsel %vm4274, %v6747, %v6743
    %v6749 = vlaneseq
    %v6750 = vshrl.u32 %v6749, 7
    %v6751 = vsub.s32 %v4276, %v6750
    %v6752 = vrot.slane %v3725, %v6751
    %v6753 = vsel %vm4281, %v6752, %v6748
    %v6754 = vlaneseq
    %v6755 = vshrl.u32 %v6754, 7
    %v6756 = vsub.s32 %v4283, %v6755
    %v6757 = vrot.slane %v3726, %v6756
    %v6758 = vsel %vm4288, %v6757, %v6753
    %v6759 = vlaneseq
    %v6760 = vshrl.u32 %v6759, 7
    %v6761 = vsub.s32 %v4290, %v6760
    %v6762 = vrot.slane %v3727, %v6761
    %v6763 = vsel %vm4295, %v6762, %v6758
    %v6764 = vlaneseq
    %v6765 = vshrl.u32 %v6764, 7
    %v6766 = vsub.s32 %v4297, %v6765
    %v6767 = vrot.slane %v3728, %v6766
    %v6768 = vsel %vm4302, %v6767, %v6763
    %v6769 = vlaneseq
    %v6770 = vshrl.u32 %v6769, 7
    %v6771 = vsub.s32 %v4304, %v6770
    %v6772 = vrot.slane %v3729, %v6771
    %v6773 = vsel %vm4309, %v6772, %v6768
    %v6774 = vlaneseq
    %v6775 = vshrl.u32 %v6774, 7
    %v6776 = vsub.s32 %v4311, %v6775
    %v6777 = vrot.slane %v3730, %v6776
    %v6778 = vsel %vm4316, %v6777, %v6773
    %v6779 = vlaneseq
    %v6780 = vshrl.u32 %v6779, 7
    %v6781 = vsub.s32 %v4318, %v6780
    %v6782 = vrot.slane %v3731, %v6781
    %v6783 = vsel %vm4323, %v6782, %v6778
    %v6784 = vlaneseq
    %v6785 = vshrl.u32 %v6784, 7
    %v6786 = vsub.s32 %v4325, %v6785
    %v6787 = vrot.slane %v3732, %v6786
    %v6788 = vsel %vm4330, %v6787, %v6783
    %v6789 = vlaneseq
    %v6790 = vshrl.u32 %v6789, 7
    %v6791 = vsub.s32 %v4332, %v6790
    %v6792 = vrot.slane %v3733, %v6791
    %v6793 = vsel %vm4337, %v6792, %v6788
    %v6794 = vlaneseq
    %v6795 = vshrl.u32 %v6794, 7
    %v6796 = vsub.s32 %v4339, %v6795
    %v6797 = vrot.slane %v3734, %v6796
    %v6798 = vsel %vm4344, %v6797, %v6793
    %v6799 = vlaneseq
    %v6800 = vshrl.u32 %v6799, 7
    %v6801 = vsub.s32 %v4346, %v6800
    %v6802 = vrot.slane %v3735, %v6801
    %v6803 = vsel %vm4351, %v6802, %v6798
    %v6804 = vlaneseq
    %v6805 = vshrl.u32 %v6804, 7
    %v6806 = vsub.s32 %v4353, %v6805
    %v6807 = vrot.slane %v3736, %v6806
    %v6808 = vsel %vm4358, %v6807, %v6803
    %vm6809 = vcmask 1041409
    %v6810 = vsel %vm6809, %v4517, %v4359
    %vm6811 = vcmask 1042434
    %v6812 = vsel %vm6811, %v4675, %v6810
    %vm6813 = vcmask 1043459
    %v6814 = vsel %vm6813, %v4833, %v6812
    %vm6815 = vcmask 1044484
    %v6816 = vsel %vm6815, %v4991, %v6814
    %vm6817 = vcmask 1045509
    %v6818 = vsel %vm6817, %v5149, %v6816
    %vm6819 = vcmask 1046534
    %v6820 = vsel %vm6819, %v5307, %v6818
    %vm6821 = vcmask 1047559
    %v6822 = vsel %vm6821, %v5465, %v6820
    %v6823 = vsel %vm6809, %v4596, %v4438
    %v6824 = vsel %vm6811, %v4754, %v6823
    %v6825 = vsel %vm6813, %v4912, %v6824
    %v6826 = vsel %vm6815, %v5070, %v6825
    %v6827 = vsel %vm6817, %v5228, %v6826
    %v6828 = vsel %vm6819, %v5386, %v6827
    %v6829 = vsel %vm6821, %v5544, %v6828
    %v6830 = vsel %vm6809, %v5781, %v5623
    %v6831 = vsel %vm6811, %v5939, %v6830
    %v6832 = vsel %vm6813, %v6097, %v6831
    %v6833 = vsel %vm6815, %v6255, %v6832
    %v6834 = vsel %vm6817, %v6413, %v6833
    %v6835 = vsel %vm6819, %v6571, %v6834
    %v6836 = vsel %vm6821, %v6729, %v6835
    %v6837 = vsel %vm6809, %v5860, %v5702
    %v6838 = vsel %vm6811, %v6018, %v6837
    %v6839 = vsel %vm6813, %v6176, %v6838
    %v6840 = vsel %vm6815, %v6334, %v6839
    %v6841 = vsel %vm6817, %v6492, %v6840
    %v6842 = vsel %vm6819, %v6650, %v6841
    %v6843 = vsel %vm6821, %v6808, %v6842
    %6848 = vst [vmem:[#allocation18] sm:$0xff] %v6822
    %6849 = vst [vmem:[#allocation18 + $0x8] sm:$0xff] %v6829
    %6850 = vst [vmem:[#allocation18 + $0x10] sm:$0xff] %v6836
    %6851 = vst [vmem:[#allocation18 + $0x18] sm:$0xff] %v6843
    %v6852 = vld [vmem:[#allocation8] sm:$0xff]
    %v6853 = vld [vmem:[#allocation8 + $0x8] sm:$0xff]
    %v6854 = vld [vmem:[#allocation8 + $0x10] sm:$0xff]
    %v6855 = vld [vmem:[#allocation8 + $0x18] sm:$0xff]
    %v6856 = vld [vmem:[#allocation8 + $0x20] sm:$0xff]
    %v6857 = vld [vmem:[#allocation8 + $0x28] sm:$0xff]
    %v6858 = vld [vmem:[#allocation8 + $0x30] sm:$0xff]
    %v6859 = vld [vmem:[#allocation8 + $0x38] sm:$0xff]
    %v6860 = vld [vmem:[#allocation8 + $0x40] sm:$0xff]
    %v6861 = vld [vmem:[#allocation8 + $0x48] sm:$0xff]
    %v6862 = vld [vmem:[#allocation8 + $0x50] sm:$0xff]
    %v6863 = vld [vmem:[#allocation8 + $0x58] sm:$0xff]
    %v6864 = vld [vmem:[#allocation8 + $0x60] sm:$0xff]
    %v6865 = vld [vmem:[#allocation8 + $0x68] sm:$0xff]
    %v6866 = vld [vmem:[#allocation8 + $0x70] sm:$0xff]
    %v6867 = vld [vmem:[#allocation8 + $0x78] sm:$0xff]
    %v6868 = vld [vmem:[#allocation8 + $0x80] sm:$0xff]
    %v6869 = vld [vmem:[#allocation8 + $0x88] sm:$0xff]
    %v6870 = vld [vmem:[#allocation8 + $0x90] sm:$0xff]
    %v6871 = vld [vmem:[#allocation8 + $0x98] sm:$0xff]
    %v6872 = vld [vmem:[#allocation8 + $0xa0] sm:$0xff]
    %v6873 = vld [vmem:[#allocation8 + $0xa8] sm:$0xff]
    %v6874 = vld [vmem:[#allocation8 + $0xb0] sm:$0xff]
    %v6875 = vld [vmem:[#allocation8 + $0xb8] sm:$0xff]
    %v6876 = vld [vmem:[#allocation8 + $0xc0] sm:$0xff]
    %v6877 = vld [vmem:[#allocation8 + $0xc8] sm:$0xff]
    %v6878 = vld [vmem:[#allocation8 + $0xd0] sm:$0xff]
    %v6879 = vld [vmem:[#allocation8 + $0xd8] sm:$0xff]
    %v6880 = vld [vmem:[#allocation8 + $0xe0] sm:$0xff]
    %v6881 = vld [vmem:[#allocation8 + $0xe8] sm:$0xff]
    %v6882 = vld [vmem:[#allocation8 + $0xf0] sm:$0xff]
    %v6883 = vld [vmem:[#allocation8 + $0xf8] sm:$0xff]
    %v6884 = vld [vmem:[#allocation9] sm:$0x1]
    %v6886 = vlaneseq
    %v6887 = vshrl.u32 %v6886, 7
    %v6888 = vsub.s32 0, %v6887
    %v6889 = vrot.slane %v6884, %v6888
    %6891 = vmatprep.subr.mxu0 0.0
    %6892 = vmatpush1.msra.mxu0 %v6852
    %6893 = vmatprep.subr.mxu0 0.0
    %6894 = vmatpush1.msra.mxu0 %v6853
    %6895 = vmatprep.subr.mxu0 0.0
    %6896 = vmatpush1.msra.mxu0 %v6854
    %6897 = vmatprep.subr.mxu0 0.0
    %6898 = vmatpush1.msra.mxu0 %v6855
    %6899 = vmatprep.subr.mxu0 0.0
    %6900 = vmatpush1.msra.mxu0 %v6856
    %6901 = vmatprep.subr.mxu0 0.0
    %6902 = vmatpush1.msra.mxu0 %v6857
    %6903 = vmatprep.subr.mxu0 0.0
    %6904 = vmatpush1.msra.mxu0 %v6858
    %6905 = vmatprep.subr.mxu0 0.0
    %6906 = vmatpush1.msra.mxu0 %v6859
    %6907 = vmatprep.subr.mxu0 0.0
    %6908 = vmatpush1.msra.mxu0 %v6860
    %6909 = vmatprep.subr.mxu0 0.0
    %6910 = vmatpush1.msra.mxu0 %v6861
    %6911 = vmatprep.subr.mxu0 0.0
    %6912 = vmatpush1.msra.mxu0 %v6862
    %6913 = vmatprep.subr.mxu0 0.0
    %6914 = vmatpush1.msra.mxu0 %v6863
    %6915 = vmatprep.subr.mxu0 0.0
    %6916 = vmatpush1.msra.mxu0 %v6864
    %6917 = vmatprep.subr.mxu0 0.0
    %6918 = vmatpush1.msra.mxu0 %v6865
    %6919 = vmatprep.subr.mxu0 0.0
    %6920 = vmatpush1.msra.mxu0 %v6866
    %6921 = vmatprep.subr.mxu0 0.0
    %6922 = vmatpush1.msra.mxu0 %v6867
    %6923 = vmatprep.subr.mxu0 0.0
    %6924 = vmatpush1.msra.mxu0 %v6868
    %6925 = vmatprep.subr.mxu0 0.0
    %6926 = vmatpush1.msra.mxu0 %v6869
    %6927 = vmatprep.subr.mxu0 0.0
    %6928 = vmatpush1.msra.mxu0 %v6870
    %6929 = vmatprep.subr.mxu0 0.0
    %6930 = vmatpush1.msra.mxu0 %v6871
    %6931 = vmatprep.subr.mxu0 0.0
    %6932 = vmatpush1.msra.mxu0 %v6872
    %6933 = vmatprep.subr.mxu0 0.0
    %6934 = vmatpush1.msra.mxu0 %v6873
    %6935 = vmatprep.subr.mxu0 0.0
    %6936 = vmatpush1.msra.mxu0 %v6874
    %6937 = vmatprep.subr.mxu0 0.0
    %6938 = vmatpush1.msra.mxu0 %v6875
    %6939 = vmatprep.subr.mxu0 0.0
    %6940 = vmatpush1.msra.mxu0 %v6876
    %6941 = vmatprep.subr.mxu0 0.0
    %6942 = vmatpush1.msra.mxu0 %v6877
    %6943 = vmatprep.subr.mxu0 0.0
    %6944 = vmatpush1.msra.mxu0 %v6878
    %6945 = vmatprep.subr.mxu0 0.0
    %6946 = vmatpush1.msra.mxu0 %v6879
    %6947 = vmatprep.subr.mxu0 0.0
    %6948 = vmatpush1.msra.mxu0 %v6880
    %6949 = vmatprep.subr.mxu0 0.0
    %6950 = vmatpush1.msra.mxu0 %v6881
    %6951 = vmatprep.subr.mxu0 0.0
    %6952 = vmatpush1.msra.mxu0 %v6882
    %6953 = vmatprep.subr.mxu0 0.0
    %6954 = vmatpush1.msra.mxu0 %v6883
    %6955 = vmatprep.mubr.f32.mxu0 %v6829
    %6956 = vmatmul.mubr.f32.gmra.mrb[0].mxu0 %v6822
    %v6957 = vpop.f32.mrb[0].mxu0
    %v6958 = vadd.f32 %v6889, %v6957
    %v6959 = vpop.f32.mrb[0].mxu0
    %6960 = vmatprep.mubr.f32.mxu0 %v6843
    %6961 = vmatmul.mubr.f32.gmra.mrb[0].mxu0 %v6836
    %v6962 = vpop.f32.mrb[0].mxu0
    %v6963 = vadd.f32 %v6889, %v6962
    %v6964 = vpop.f32.mrb[0].mxu0
    %6965 = vdwg.mxu0
    %v6966 = vmax.f32 %v6958, 0.0
    %v6967 = vmax.f32 %v6963, 0.0
    %v6968 = vld [vmem:[#allocation11] sm:$0xff]
    %v6969 = vld [vmem:[#allocation11 + $0x8] sm:$0xff]
    %v6970 = vld [vmem:[#allocation11 + $0x10] sm:$0xff]
    %v6971 = vld [vmem:[#allocation11 + $0x18] sm:$0xff]
    %v6972 = vld [vmem:[#allocation11 + $0x20] sm:$0xff]
    %v6973 = vld [vmem:[#allocation11 + $0x28] sm:$0xff]
    %v6974 = vld [vmem:[#allocation11 + $0x30] sm:$0xff]
    %v6975 = vld [vmem:[#allocation11 + $0x38] sm:$0xff]
    %v6976 = vld [vmem:[#allocation11 + $0x40] sm:$0xff]
    %v6977 = vld [vmem:[#allocation11 + $0x48] sm:$0xff]
    %v6978 = vld [vmem:[#allocation11 + $0x50] sm:$0xff]
    %v6979 = vld [vmem:[#allocation11 + $0x58] sm:$0xff]
    %v6980 = vld [vmem:[#allocation11 + $0x60] sm:$0xff]
    %v6981 = vld [vmem:[#allocation11 + $0x68] sm:$0xff]
    %v6982 = vld [vmem:[#allocation11 + $0x70] sm:$0xff]
    %v6983 = vld [vmem:[#allocation11 + $0x78] sm:$0xff]
    %v6984 = vld [vmem:[#allocation12] sm:$0x1]
    %v6986 = vlaneseq
    %v6987 = vshrl.u32 %v6986, 7
    %v6988 = vsub.s32 0, %v6987
    %v6989 = vrot.slane %v6984, %v6988
    %6991 = vmatprep.subr.mxu0 0.0
    %6992 = vmatpush1.msra.mxu0 %v6968
    %6993 = vmatprep.subr.mxu0 0.0
    %6994 = vmatpush1.msra.mxu0 %v6969
    %6995 = vmatprep.subr.mxu0 0.0
    %6996 = vmatpush1.msra.mxu0 %v6970
    %6997 = vmatprep.subr.mxu0 0.0
    %6998 = vmatpush1.msra.mxu0 %v6971
    %6999 = vmatprep.subr.mxu0 0.0
    %7000 = vmatpush1.msra.mxu0 %v6972
    %7001 = vmatprep.subr.mxu0 0.0
    %7002 = vmatpush1.msra.mxu0 %v6973
    %7003 = vmatprep.subr.mxu0 0.0
    %7004 = vmatpush1.msra.mxu0 %v6974
    %7005 = vmatprep.subr.mxu0 0.0
    %7006 = vmatpush1.msra.mxu0 %v6975
    %7007 = vmatprep.subr.mxu0 0.0
    %7008 = vmatpush1.msra.mxu0 %v6976
    %7009 = vmatprep.subr.mxu0 0.0
    %7010 = vmatpush1.msra.mxu0 %v6977
    %7011 = vmatprep.subr.mxu0 0.0
    %7012 = vmatpush1.msra.mxu0 %v6978
    %7013 = vmatprep.subr.mxu0 0.0
    %7014 = vmatpush1.msra.mxu0 %v6979
    %7015 = vmatprep.subr.mxu0 0.0
    %7016 = vmatpush1.msra.mxu0 %v6980
    %7017 = vmatprep.subr.mxu0 0.0
    %7018 = vmatpush1.msra.mxu0 %v6981
    %7019 = vmatprep.subr.mxu0 0.0
    %7020 = vmatpush1.msra.mxu0 %v6982
    %7021 = vmatprep.subr.mxu0 0.0
    %7022 = vmatpush1.msra.mxu0 %v6983
    %7023 = vmatprep.subr.mxu0 0.0
    %7024 = vmatpush1.msra.mxu0 0.0
    %7025 = vmatprep.subr.mxu0 0.0
    %7026 = vmatpush1.msra.mxu0 0.0
    %7027 = vmatprep.subr.mxu0 0.0
    %7028 = vmatpush1.msra.mxu0 0.0
    %7029 = vmatprep.subr.mxu0 0.0
    %7030 = vmatpush1.msra.mxu0 0.0
    %7031 = vmatprep.subr.mxu0 0.0
    %7032 = vmatpush1.msra.mxu0 0.0
    %7033 = vmatprep.subr.mxu0 0.0
    %7034 = vmatpush1.msra.mxu0 0.0
    %7035 = vmatprep.subr.mxu0 0.0
    %7036 = vmatpush1.msra.mxu0 0.0
    %7037 = vmatprep.subr.mxu0 0.0
    %7038 = vmatpush1.msra.mxu0 0.0
    %7039 = vmatprep.subr.mxu0 0.0
    %7040 = vmatpush1.msra.mxu0 0.0
    %7041 = vmatprep.subr.mxu0 0.0
    %7042 = vmatpush1.msra.mxu0 0.0
    %7043 = vmatprep.subr.mxu0 0.0
    %7044 = vmatpush1.msra.mxu0 0.0
    %7045 = vmatprep.subr.mxu0 0.0
    %7046 = vmatpush1.msra.mxu0 0.0
    %7047 = vmatprep.subr.mxu0 0.0
    %7048 = vmatpush1.msra.mxu0 0.0
    %7049 = vmatprep.subr.mxu0 0.0
    %7050 = vmatpush1.msra.mxu0 0.0
    %7051 = vmatprep.subr.mxu0 0.0
    %7052 = vmatpush1.msra.mxu0 0.0
    %7053 = vmatprep.subr.mxu0 0.0
    %7054 = vmatpush1.msra.mxu0 0.0
    %7055 = vmatprep.mubr.f32.mxu0 0.0
    %7056 = vmatmul.mubr.f32.gmra.mrb[0].mxu0 %v6966
    %v7057 = vpop.f32.mrb[0].mxu0
    %v7058 = vadd.f32 %v6989, %v7057
    %v7059 = vpop.f32.mrb[0].mxu0
    %7060 = vmatprep.mubr.f32.mxu0 0.0
    %7061 = vmatmul.mubr.f32.gmra.mrb[0].mxu0 %v6967
    %v7062 = vpop.f32.mrb[0].mxu0
    %v7063 = vadd.f32 %v6989, %v7062
    %v7064 = vpop.f32.mrb[0].mxu0
    %7065 = vdwg.mxu0
    %v7066 = vmax.f32 %v7058, 0.0
    %v7067 = vmax.f32 %v7063, 0.0
    %v7068 = vld [vmem:[#allocation14] sm:$0xff]
    %v7069 = vld [vmem:[#allocation14 + $0x8] sm:$0xff]
    %v7070 = vld [vmem:[#allocation14 + $0x10] sm:$0xff]
    %v7071 = vld [vmem:[#allocation14 + $0x18] sm:$0xff]
    %v7072 = vld [vmem:[#allocation14 + $0x20] sm:$0xff]
    %v7073 = vld [vmem:[#allocation14 + $0x28] sm:$0xff]
    %v7074 = vld [vmem:[#allocation14 + $0x30] sm:$0xff]
    %v7075 = vld [vmem:[#allocation14 + $0x38] sm:$0xff]
    %v7076 = vld [vmem:[#allocation14 + $0x40] sm:$0xff]
    %v7077 = vld [vmem:[#allocation14 + $0x48] sm:$0xff]
    %v7078 = vld [vmem:[#allocation14 + $0x50] sm:$0xff]
    %v7079 = vld [vmem:[#allocation14 + $0x58] sm:$0xff]
    %v7080 = vld [vmem:[#allocation14 + $0x60] sm:$0xff]
    %v7081 = vld [vmem:[#allocation14 + $0x68] sm:$0xff]
    %v7082 = vld [vmem:[#allocation14 + $0x70] sm:$0xff]
    %v7083 = vld [vmem:[#allocation14 + $0x78] sm:$0xff]
    %v7084 = vld [vmem:[#allocation15] sm:$0x1]
    %v7086 = vlaneseq
    %v7087 = vshrl.u32 %v7086, 7
    %v7088 = vsub.s32 0, %v7087
    %v7089 = vrot.slane %v7084, %v7088
    %7091 = vmatprep.subr.mxu0 0.0
    %7092 = vmatpush1.msra.mxu0 %v7068
    %7093 = vmatprep.subr.mxu0 0.0
    %7094 = vmatpush1.msra.mxu0 %v7069
    %7095 = vmatprep.subr.mxu0 0.0
    %7096 = vmatpush1.msra.mxu0 %v7070
    %7097 = vmatprep.subr.mxu0 0.0
    %7098 = vmatpush1.msra.mxu0 %v7071
    %7099 = vmatprep.subr.mxu0 0.0
    %7100 = vmatpush1.msra.mxu0 %v7072
    %7101 = vmatprep.subr.mxu0 0.0
    %7102 = vmatpush1.msra.mxu0 %v7073
    %7103 = vmatprep.subr.mxu0 0.0
    %7104 = vmatpush1.msra.mxu0 %v7074
    %7105 = vmatprep.subr.mxu0 0.0
    %7106 = vmatpush1.msra.mxu0 %v7075
    %7107 = vmatprep.subr.mxu0 0.0
    %7108 = vmatpush1.msra.mxu0 %v7076
    %7109 = vmatprep.subr.mxu0 0.0
    %7110 = vmatpush1.msra.mxu0 %v7077
    %7111 = vmatprep.subr.mxu0 0.0
    %7112 = vmatpush1.msra.mxu0 %v7078
    %7113 = vmatprep.subr.mxu0 0.0
    %7114 = vmatpush1.msra.mxu0 %v7079
    %7115 = vmatprep.subr.mxu0 0.0
    %7116 = vmatpush1.msra.mxu0 %v7080
    %7117 = vmatprep.subr.mxu0 0.0
    %7118 = vmatpush1.msra.mxu0 %v7081
    %7119 = vmatprep.subr.mxu0 0.0
    %7120 = vmatpush1.msra.mxu0 %v7082
    %7121 = vmatprep.subr.mxu0 0.0
    %7122 = vmatpush1.msra.mxu0 %v7083
    %7123 = vmatprep.subr.mxu0 0.0
    %7124 = vmatpush1.msra.mxu0 0.0
    %7125 = vmatprep.subr.mxu0 0.0
    %7126 = vmatpush1.msra.mxu0 0.0
    %7127 = vmatprep.subr.mxu0 0.0
    %7128 = vmatpush1.msra.mxu0 0.0
    %7129 = vmatprep.subr.mxu0 0.0
    %7130 = vmatpush1.msra.mxu0 0.0
    %7131 = vmatprep.subr.mxu0 0.0
    %7132 = vmatpush1.msra.mxu0 0.0
    %7133 = vmatprep.subr.mxu0 0.0
    %7134 = vmatpush1.msra.mxu0 0.0
    %7135 = vmatprep.subr.mxu0 0.0
    %7136 = vmatpush1.msra.mxu0 0.0
    %7137 = vmatprep.subr.mxu0 0.0
    %7138 = vmatpush1.msra.mxu0 0.0
    %7139 = vmatprep.subr.mxu0 0.0
    %7140 = vmatpush1.msra.mxu0 0.0
    %7141 = vmatprep.subr.mxu0 0.0
    %7142 = vmatpush1.msra.mxu0 0.0
    %7143 = vmatprep.subr.mxu0 0.0
    %7144 = vmatpush1.msra.mxu0 0.0
    %7145 = vmatprep.subr.mxu0 0.0
    %7146 = vmatpush1.msra.mxu0 0.0
    %7147 = vmatprep.subr.mxu0 0.0
    %7148 = vmatpush1.msra.mxu0 0.0
    %7149 = vmatprep.subr.mxu0 0.0
    %7150 = vmatpush1.msra.mxu0 0.0
    %7151 = vmatprep.subr.mxu0 0.0
    %7152 = vmatpush1.msra.mxu0 0.0
    %7153 = vmatprep.subr.mxu0 0.0
    %7154 = vmatpush1.msra.mxu0 0.0
    %7155 = vmatprep.mubr.f32.mxu0 0.0
    %7156 = vmatmul.mubr.f32.gmra.mrb[0].mxu0 %v7066
    %v7157 = vpop.f32.mrb[0].mxu0
    %v7158 = vadd.f32 %v7089, %v7157
    %v7159 = vpop.f32.mrb[0].mxu0
    %7160 = vmatprep.mubr.f32.mxu0 0.0
    %7161 = vmatmul.mubr.f32.gmra.mrb[0].mxu0 %v7067
    %v7162 = vpop.f32.mrb[0].mxu0
    %v7163 = vadd.f32 %v7089, %v7162
    %v7164 = vpop.f32.mrb[0].mxu0
    %7165 = vdwg.mxu0
    %v7166 = vmax.f32 %v7158, 0.0
    %v7167 = vmax.f32 %v7163, 0.0
    %v7168 = vld [vmem:[#allocation17] sm:$0x1]
    %v7170 = vlaneseq
    %v7171 = vshrl.u32 %v7170, 7
    %v7172 = vsub.s32 0, %v7171
    %v7173 = vrot.slane %v7168, %v7172
    %v7175 = vmul.f32 %v7166, %v7173
    %v7176 = vmul.f32 %v7167, %v7173
    %7177 = vadd.xlane.f32.xlu0 %v7175
    %v7178 = vpop.xlane.xlu0 %7177
    %7179 = vadd.xlane.f32.xlu0 %v7176
    %v7180 = vpop.xlane.xlu0 %7179
    %s7181 = sld [smem:[#allocation2]]
    %v7182 = vstv %s7181
    %v7183 = vadd.f32 %v7178, %v7182
    %v7184 = vadd.f32 %v7180, %v7182
    %v7185 = vmax.f32 %v7183, 0.01
    %v7186 = vmax.f32 %v7184, 0.01
    %v7187 = vmin.f32 %v7185, 100.0
    %v7188 = vmin.f32 %v7186, 100.0
    %vm7189 = vcmask 7168
    %7190 = vst.msk [vmem:[%s10] sm:$0xff] %vm7189, %v7187
    %7191 = vst.msk [vmem:[%s10 + $0x8] sm:$0xff] %vm7189, %v7188
    // Predicated region
    $region78: #{tpu_custom_call.1} parent=1 // pred_check
      _
    $region79: #{tpu_custom_call.1} parent=1 // pred_check_branch
      %7193 = sbr.rel (0) target = $region81
    $region80: #{tpu_custom_call.1} parent=1 // pred_region
      _
    $region81: #{tpu_custom_call.1} parent=1 // pred_fallthru
      _
    // Predicated region
    $region82: #{tpu_custom_call.1} parent=1 // pred_check
      _
    $region83: #{tpu_custom_call.1} parent=1 // pred_check_branch
      %7195 = sbr.rel (0) target = $region85
    $region84: #{tpu_custom_call.1} parent=1 // pred_region
      %s7197 = ssub.s32 512, 512
      %7198 = vsyncadd [#allocation5], %s7197
      %s7199 = sshll.u32 [#allocation18], 4
      %s7200 = int_to_ptr.vmem [resolvable:$true] %s7199
      %7205 = dma.vmem_to_hbm [thread:$0]  %s7200, 512, %s11, [#allocation5], 256, 256, 16
    $region85: #{tpu_custom_call.1} parent=1 // pred_fallthru
      _
    // Predicated region
    $region86: #{tpu_custom_call.1} parent=1 // pred_check
      _
    $region87: #{tpu_custom_call.1} parent=1 // pred_check_branch
      %7207 = sbr.rel (0) target = $region89
    $region88: #{tpu_custom_call.1} parent=1 // pred_region
      _
    $region89: #{tpu_custom_call.1} parent=1 // pred_fallthru
      _
    // Predicated region
    $region90: #{tpu_custom_call.1} parent=1 // pred_check
      _
    $region91: #{tpu_custom_call.1} parent=1 // pred_check_branch
      %7209 = sbr.rel (0) target = $region93
    $region92: #{tpu_custom_call.1} parent=1 // pred_region
      %7210 = dma.done [#allocation5], 512
    $region93: #{tpu_custom_call.1} parent=1 // pred_fallthru
      _
    %7211 = vsyncpa [#allocation4], 1
    %7212 = vsyncpa [#allocation7], 1
    %7213 = vsyncpa [#allocation10], 1
    %7214 = vsyncpa [#allocation13], 1
    %7215 = vsyncpa [#allocation16], 1
    %7216 = vsyncpa [#allocation5], 1

</llo_original>
